<compile_context>
chip_gen: v7x
topology: tpu7x:2x2x1
jax: 0.10.0
libtpu: 0.0.40
codegen_flags: <defaults>
</compile_context>

<pallas_src>
import functools
import math

import jax
import jax.numpy as jnp
from jax.experimental import pallas as pl
from jax.experimental.pallas import tpu as pltpu

# ----------------------------- config (small, tile-aligned) -----------------
B = 2           # batch
S = 16          # sequence length
H = 256         # hidden size          (full model: 768)
NH = 4          # attention heads
DH = H // NH    # head dim = 64
I = 1024        # FFN intermediate     (full model: 3072)
N_LAYERS = 2    # encoder layers       (full model: 12)
VOCAB = 2048    # vocab / output size  (full model: 21128)
LN_EPS = 1e-12
MASK_TOKEN_ID = 103
PAD_TOKEN_ID = 0


# ----------------------------- in-kernel helpers -----------------------------
def _ln(x, g, b, eps=LN_EPS):
    """f32 layernorm over last axis (g/b may be (1, H) and broadcast)."""
    mean = jnp.mean(x, axis=-1, keepdims=True)
    var = jnp.mean(jnp.square(x - mean), axis=-1, keepdims=True)
    return (x - mean) * jax.lax.rsqrt(var + eps) * g + b


# ----------------------------- fused encoder stack ---------------------------
def _encoder_stack_kernel(h_in_ref, mbias_ref,
                          w_qkv_ref, b_qkv_ref, w_o_ref, b_o_ref,
                          ln1_g_ref, ln1_b_ref,
                          w_i_ref, b_i_ref, w_f_ref, b_f_ref,
                          ln2_g_ref, ln2_b_ref,
                          o_ref,
                          h_vmem,
                          *, batch, seq, nh, dh, hdim):
    """grid=(N_LAYERS,): one grid step == one full BERT encoder layer.

    h stays resident in VMEM scratch across layers; per-layer weights are
    streamed (and double-buffered) by the Pallas pipeline.
    """
    l = pl.program_id(0)

    @pl.when(l == 0)
    def _():
        h_vmem[...] = h_in_ref[...]

    h = h_vmem[...]                                                   # (M, H) f32

    # --- QKV projection (bf16 MXU, f32 acc), cast to bf16 once ---------------
    qkv = jnp.dot(h.astype(jnp.bfloat16), w_qkv_ref[...],
                  preferred_element_type=jnp.float32) + b_qkv_ref[...]
    qkv = qkv.astype(jnp.bfloat16)                                    # (M, 3H)

    scale = 1.0 / math.sqrt(dh)

    # --- masked-softmax attention, per-head output-projection accumulation ---
    # TODO(synk): at real B*S sizes, lane-pack the per-head score blocks and tile
    # rows ('parallel') for the second v7x TensorCore; skipped at M=32, S=16.
    out_rows = []
    for b in range(batch):
        r0 = b * seq
        mb = mbias_ref[b:b + 1, :]                                    # (1, S) additive key bias
        out_b = jnp.zeros((seq, hdim), jnp.float32)                   # lane-dense accumulator
        for hd in range(nh):
            c0 = hd * dh
            q = qkv[r0:r0 + seq, c0:c0 + dh]                          # (S, d) bf16
            k = qkv[r0:r0 + seq, hdim + c0:hdim + c0 + dh]
            v = qkv[r0:r0 + seq, 2 * hdim + c0:2 * hdim + c0 + dh]
            # scores = q @ k^T (contract last dims, no explicit transpose)
            s = jax.lax.dot_general(q, k, (((1,), (1,)), ((), ())),
                                    preferred_element_type=jnp.float32)
            s = s * scale + mb                                        # (S, S) f32
            s = s - jnp.max(s, axis=-1, keepdims=True)
            p = jnp.exp(s)
            p = p / jnp.sum(p, axis=-1, keepdims=True)                # exact softmax
            ctx = jnp.dot(p.astype(jnp.bfloat16), v,
                          preferred_element_type=jnp.float32)         # (S, d)
            # accumulate the output projection per head: full H-wide, f32
            out_b = out_b + jnp.dot(ctx.astype(jnp.bfloat16),
                                    w_o_ref[c0:c0 + dh, :],
                                    preferred_element_type=jnp.float32)
        out_rows.append(out_b)
    attn_out = jnp.concatenate(out_rows, axis=0) + b_o_ref[...]       # (M, H)

    # --- residual + LN1 -------------------------------------------------------
    h1 = _ln(attn_out + h, ln1_g_ref[...], ln1_b_ref[...])

    # --- FFN (GELU) + residual + LN2 ------------------------------------------
    inter = jnp.dot(h1.astype(jnp.bfloat16), w_i_ref[...],
                    preferred_element_type=jnp.float32) + b_i_ref[...]
    # TODO(synk): HF BERT uses exact erf GELU; tanh approximation used here (EUP-friendly).
    inter = jax.nn.gelu(inter, approximate=True)
    ffn = jnp.dot(inter.astype(jnp.bfloat16), w_f_ref[...],
                  preferred_element_type=jnp.float32) + b_f_ref[...]
    h2 = _ln(ffn + h1, ln2_g_ref[...], ln2_b_ref[...])

    h_vmem[...] = h2

    @pl.when(l == pl.num_programs(0) - 1)
    def _():
        o_ref[...] = h2


def encoder_stack(h, mask_bias, enc):
    """Run all N_LAYERS encoder layers in a single pallas_call."""
    M = h.shape[0]
    L = enc["w_qkv"].shape[0]

    def wspec(r, c):   # stacked (L, r, c) weight -> per-layer (r, c) block
        return pl.BlockSpec((None, r, c), lambda l: (l, 0, 0))

    def vspec(c):      # stacked (L, 1, c) vector -> per-layer (1, c) block
        return pl.BlockSpec((None, 1, c), lambda l: (l, 0, 0))

    kernel = functools.partial(_encoder_stack_kernel,
                               batch=B, seq=S, nh=NH, dh=DH, hdim=H)
    # NOTE: at real-BERT sizes (13.6 MiB bf16 weights/layer, double-buffered),
    # set pltpu.CompilerParams(vmem_limit_bytes=...) explicitly; toy sizes fit
    # the default scoped VMEM comfortably (~3 MiB live).
    return pl.pallas_call(
        kernel,
        out_shape=jax.ShapeDtypeStruct((M, H), jnp.float32),
        grid=(L,),
        in_specs=[
            pl.BlockSpec((M, H), lambda l: (0, 0)),        # h_in (read once)
            pl.BlockSpec((B, S), lambda l: (0, 0)),        # additive mask bias
            wspec(H, 3 * H), vspec(3 * H),                 # w_qkv (bf16), b_qkv
            wspec(H, H), vspec(H),                         # w_o (bf16), b_o
            vspec(H), vspec(H),                            # ln1 gamma/beta
            wspec(H, I), vspec(I),                         # w_i (bf16), b_i
            wspec(I, H), vspec(H),                         # w_f (bf16), b_f
            vspec(H), vspec(H),                            # ln2 gamma/beta
        ],
        out_specs=pl.BlockSpec((M, H), lambda l: (0, 0)),
        scratch_shapes=[pltpu.VMEM((M, H), jnp.float32)],  # layer-resident h
        compiler_params=pltpu.CompilerParams(
            dimension_semantics=("arbitrary",)),           # layers are sequential
    )(h, mask_bias,
      enc["w_qkv"], enc["b_qkv"], enc["w_o"], enc["b_o"],
      enc["ln1_g"], enc["ln1_b"],
      enc["w_i"], enc["b_i"], enc["w_f"], enc["b_f"],
      enc["ln2_g"], enc["ln2_b"])


# ----------------------------- generate_layer + argmax -----------------------
def _generate_argmax_kernel(h_ref, w_ref, b_ref, o_ref):
    """Single-step generate_layer matmul fused with argmax (logits stay in VMEM)."""
    logits = jnp.dot(h_ref[...].astype(jnp.bfloat16), w_ref[...],
                     preferred_element_type=jnp.float32) + b_ref[...]   # (M, V)
    vmax = jnp.max(logits, axis=-1, keepdims=True)                      # (M, 1)
    iota = jax.lax.broadcasted_iota(jnp.int32, logits.shape, 1)
    # first index achieving the max (matches torch.argmax tie behavior)
    o_ref[...] = jnp.min(jnp.where(logits == vmax, iota,
                                   jnp.int32(logits.shape[-1])),
                         axis=-1, keepdims=True)


def generate_argmax(h, w, b):
    M, Hd = h.shape
    V = w.shape[1]
    # gen_w is only H x VOCAB bf16 = 1 MiB at these sizes -> one grid step.
    # TODO(synk): for the real 21128-vocab model, tile the vocab axis (tn~2048-4096).
    out = pl.pallas_call(
        _generate_argmax_kernel,
        out_shape=jax.ShapeDtypeStruct((M, 1), jnp.int32),
        grid=(1,),
        in_specs=[pl.BlockSpec((M, Hd), lambda i: (0, 0)),
                  pl.BlockSpec((Hd, V), lambda i: (0, 0)),
                  pl.BlockSpec((1, V), lambda i: (0, 0))],
        out_specs=pl.BlockSpec((M, 1), lambda i: (0, 0)),
    )(h, w, b)
    return out[:, 0]


# ----------------------------- parameter init -------------------------------
def init_params(key):
    def dense(k, fan_in, fan_out):
        w = (jax.random.normal(k, (fan_in, fan_out), jnp.float32) * 0.02
             ).astype(jnp.bfloat16)                      # bf16 MXU weights
        b = jnp.zeros((fan_out,), jnp.float32)
        return w, b

    keys = jax.random.split(key, 4 + N_LAYERS)
    params = {
        "word_emb": jax.random.normal(keys[0], (VOCAB, H), jnp.float32) * 0.02,
        "pos_emb": jax.random.normal(keys[1], (S, H), jnp.float32) * 0.02,
        "type_emb": jax.random.normal(keys[2], (2, H), jnp.float32) * 0.02,
        "emb_ln_g": jnp.ones((H,), jnp.float32),
        "emb_ln_b": jnp.zeros((H,), jnp.float32),
    }

    w_qkv, b_qkv, w_o, b_o = [], [], [], []
    w_i, b_i, w_f, b_f = [], [], [], []
    ln1_g, ln1_b, ln2_g, ln2_b = [], [], [], []
    for li in range(N_LAYERS):
        lk = jax.random.split(keys[4 + li], 4)
        w, b = dense(lk[0], H, 3 * H); w_qkv.append(w); b_qkv.append(b)
        w, b = dense(lk[1], H, H);     w_o.append(w);   b_o.append(b)
        w, b = dense(lk[2], H, I);     w_i.append(w);   b_i.append(b)
        w, b = dense(lk[3], I, H);     w_f.append(w);   b_f.append(b)
        ln1_g.append(jnp.ones((H,), jnp.float32)); ln1_b.append(jnp.zeros((H,), jnp.float32))
        ln2_g.append(jnp.ones((H,), jnp.float32)); ln2_b.append(jnp.zeros((H,), jnp.float32))

    def stack_vec(xs):
        return jnp.stack(xs)[:, None, :]      # (L, 1, X) -> safe (1, X) kernel blocks

    params["enc"] = {
        "w_qkv": jnp.stack(w_qkv), "b_qkv": stack_vec(b_qkv),
        "w_o": jnp.stack(w_o), "b_o": stack_vec(b_o),
        "ln1_g": stack_vec(ln1_g), "ln1_b": stack_vec(ln1_b),
        "w_i": jnp.stack(w_i), "b_i": stack_vec(b_i),
        "w_f": jnp.stack(w_f), "b_f": stack_vec(b_f),
        "ln2_g": stack_vec(ln2_g), "ln2_b": stack_vec(ln2_b),
    }

    wg, bg = dense(keys[3], H, VOCAB)
    params["gen_w"], params["gen_b"] = wg, bg.reshape(1, VOCAB)
    return params


# ----------------------------- PModel forward -------------------------------
def pmodel_forward(params, x):
    """x: [B, S] int32 token ids -> [B, S] int32 predicted token ids."""
    Bb, Ss = x.shape
    # attention_mask = (x != 103) & (x != 0); converted to additive key bias
    attn_mask = ((x != MASK_TOKEN_ID) & (x != PAD_TOKEN_ID)).astype(jnp.float32)
    mask_bias = (1.0 - attn_mask) * jnp.float32(-1e9)            # (B, S)

    # BERT embeddings (gather) + LayerNorm in plain JAX; XLA fuses these and a
    # dedicated pallas_call over a 32 KiB tensor would be pure launch overhead.
    h = (params["word_emb"][x]
         + params["pos_emb"][None, :Ss, :]
         + params["type_emb"][0][None, None, :])                 # token_type_ids == 0
    h = h.reshape(Bb * Ss, H)
    mean = jnp.mean(h, axis=-1, keepdims=True)
    var = jnp.mean(jnp.square(h - mean), axis=-1, keepdims=True)
    h = (h - mean) * jax.lax.rsqrt(var + LN_EPS) * params["emb_ln_g"] + params["emb_ln_b"]

    # All encoder layers fused into a single Pallas kernel (grid over layers)
    h = encoder_stack(h, mask_bias, params["enc"])

    # bert_out2 (pooler) is unused by the returned value -> not computed.
    # generate_layer matmul fused with argmax (logits never hit HBM)
    pred = generate_argmax(h, params["gen_w"], params["gen_b"]).reshape(Bb, Ss)
    # TODO(synk): training branch (CrossEntropyLoss(ignore_index=0) over labels) not implemented.
    return pred


# ----------------------------- main ------------------------------------------
if __name__ == "__main__":
    key = jax.random.PRNGKey(0)
    pkey, xkey = jax.random.split(key)
    params = init_params(pkey)

    x = jax.random.randint(xkey, (B, S), 1, VOCAB, dtype=jnp.int32)
    # exercise the masking logic: some [MASK]=103 and some pad=0 tokens
    x = x.at[:, 3].set(MASK_TOKEN_ID)
    x = x.at[:, -2:].set(PAD_TOKEN_ID)

    fwd = jax.jit(pmodel_forward)
    pred = fwd(params, x)
    jax.block_until_ready(pred)

    assert pred.shape == (B, S) and pred.dtype == jnp.int32
    print("KERNEL_OK")
</pallas_src>

<mosaic_0001>
module attributes {stable_mosaic.version = 11 : i64} {
  func.func @_generate_argmax_kernel(%arg0: i32, %arg1: memref<32x256xf32, #tpu.memory_space<vmem>>, %arg2: memref<256x2048xbf16, #tpu.memory_space<vmem>>, %arg3: memref<1x2048xf32, #tpu.memory_space<vmem>>, %arg4: memref<32x1xi32, #tpu.memory_space<vmem>>) attributes {dimension_semantics = [#tpu.dimension_semantics<arbitrary>], iteration_bounds = array<i64: 1>, scalar_prefetch = 0 : i64, scratch_operands = 0 : i64, tpu.core_type = #tpu.core_type<tc>, window_params = [{pipeline_mode = #tpu.pipeline_mode<synchronous>, transform_indices = @transform_0, window_bounds = array<i64: 32, 256>}, {pipeline_mode = #tpu.pipeline_mode<synchronous>, transform_indices = @transform_1, window_bounds = array<i64: 256, 2048>}, {pipeline_mode = #tpu.pipeline_mode<synchronous>, transform_indices = @transform_2, window_bounds = array<i64: 1, 2048>}, {pipeline_mode = #tpu.pipeline_mode<synchronous>, transform_indices = @transform_3, window_bounds = array<i64: 32, 1>}]} {
    %c0 = arith.constant 0 : index
    %c0_0 = arith.constant 0 : index
    %0 = vector.load %arg1[%c0, %c0_0] : memref<32x256xf32, #tpu.memory_space<vmem>>, vector<32x256xf32>
    %1 = arith.truncf %0 : vector<32x256xf32> to vector<32x256xbf16>
    %c0_1 = arith.constant 0 : index
    %c0_2 = arith.constant 0 : index
    %2 = vector.load %arg2[%c0_1, %c0_2] : memref<256x2048xbf16, #tpu.memory_space<vmem>>, vector<256x2048xbf16>
    %cst = arith.constant dense<0.000000e+00> : vector<32x2048xf32>
    %3 = tpu.matmul %1, %2, %cst {dimension_numbers = #tpu.dot_dimension_numbers<[1], [0], [0], [1], [0, 0, 1, 1], [], []>} : vector<32x256xbf16>, vector<256x2048xbf16>, vector<32x2048xf32> -> vector<32x2048xf32>
    %c0_3 = arith.constant 0 : index
    %c0_4 = arith.constant 0 : index
    %4 = vector.load %arg3[%c0_3, %c0_4] : memref<1x2048xf32, #tpu.memory_space<vmem>>, vector<1x2048xf32>
    %5 = vector.broadcast %4 : vector<1x2048xf32> to vector<32x2048xf32>
    %6 = arith.addf %3, %5 : vector<32x2048xf32>
    %cst_5 = arith.constant dense<0xFF800000> : vector<32xf32>
    %7 = vector.multi_reduction <maximumf>, %6, %cst_5 [1] : vector<32x2048xf32> to vector<32xf32>
    %8 = vector.shape_cast %7 : vector<32xf32> to vector<32x1xf32>
    %9 = tpu.iota {dimensions = array<i32: 1>} : vector<32x2048xi32>
    %10 = vector.broadcast %8 : vector<32x1xf32> to vector<32x2048xf32>
    %11 = arith.cmpf oeq, %6, %10 : vector<32x2048xf32>
    %c2048_i32 = arith.constant 2048 : i32
    %12 = vector.broadcast %c2048_i32 : i32 to vector<32x2048xi32>
    %13 = arith.select %11, %9, %12 : vector<32x2048xi1>, vector<32x2048xi32>
    %cst_6 = arith.constant dense<2147483647> : vector<32xi32>
    %14 = vector.multi_reduction <minsi>, %13, %cst_6 [1] : vector<32x2048xi32> to vector<32xi32>
    %15 = vector.shape_cast %14 : vector<32xi32> to vector<32x1xi32>
    %c0_7 = arith.constant 0 : index
    %c0_8 = arith.constant 0 : index
    %16 = vector.load %arg4[%c0_7, %c0_8] : memref<32x1xi32, #tpu.memory_space<vmem>>, vector<32x1xi32>
    tpu.vector_store %arg4[%c0_7, %c0_8], %15 {strides = array<i32>} : memref<32x1xi32, #tpu.memory_space<vmem>>, vector<32x1xi32>,
    return
  }
  func.func @transform_0(%arg0: i32) -> (i32, i32) {
    %c0_i32 = arith.constant 0 : i32
    %c0_i32_0 = arith.constant 0 : i32
    %c0_i32_1 = arith.constant 0 : i32
    return %c0_i32, %c0_i32_0 : i32, i32
  }
  func.func @transform_1(%arg0: i32) -> (i32, i32) {
    %c0_i32 = arith.constant 0 : i32
    %c0_i32_0 = arith.constant 0 : i32
    %c0_i32_1 = arith.constant 0 : i32
    return %c0_i32, %c0_i32_0 : i32, i32
  }
  func.func @transform_2(%arg0: i32) -> (i32, i32) {
    %c0_i32 = arith.constant 0 : i32
    %c0_i32_0 = arith.constant 0 : i32
    %c0_i32_1 = arith.constant 0 : i32
    return %c0_i32, %c0_i32_0 : i32, i32
  }
  func.func @transform_3(%arg0: i32) -> (i32, i32) {
    %c0_i32 = arith.constant 0 : i32
    %c0_i32_0 = arith.constant 0 : i32
    %c0_i32_1 = arith.constant 0 : i32
    return %c0_i32, %c0_i32_0 : i32, i32
  }
}

module attributes {stable_mosaic.version = 11 : i64} {
  func.func @_encoder_stack_kernel(%arg0: i32, %arg1: memref<32x256xf32, #tpu.memory_space<vmem>>, %arg2: memref<2x16xf32, #tpu.memory_space<vmem>>, %arg3: memref<1x256x768xbf16, #tpu.memory_space<vmem>>, %arg4: memref<1x1x768xf32, #tpu.memory_space<vmem>>, %arg5: memref<1x256x256xbf16, #tpu.memory_space<vmem>>, %arg6: memref<1x1x256xf32, #tpu.memory_space<vmem>>, %arg7: memref<1x1x256xf32, #tpu.memory_space<vmem>>, %arg8: memref<1x1x256xf32, #tpu.memory_space<vmem>>, %arg9: memref<1x256x1024xbf16, #tpu.memory_space<vmem>>, %arg10: memref<1x1x1024xf32, #tpu.memory_space<vmem>>, %arg11: memref<1x1024x256xbf16, #tpu.memory_space<vmem>>, %arg12: memref<1x1x256xf32, #tpu.memory_space<vmem>>, %arg13: memref<1x1x256xf32, #tpu.memory_space<vmem>>, %arg14: memref<1x1x256xf32, #tpu.memory_space<vmem>>, %arg15: memref<32x256xf32, #tpu.memory_space<vmem>>, %arg16: memref<32x256xf32, #tpu.memory_space<vmem>>) attributes {dimension_semantics = [#tpu.dimension_semantics<arbitrary>], iteration_bounds = array<i64: 2>, scalar_prefetch = 0 : i64, scratch_operands = 1 : i64, tpu.core_type = #tpu.core_type<tc>, window_params = [{pipeline_mode = #tpu.pipeline_mode<synchronous>, transform_indices = @transform_0, window_bounds = array<i64: 32, 256>}, {pipeline_mode = #tpu.pipeline_mode<synchronous>, transform_indices = @transform_1, window_bounds = array<i64: 2, 16>}, {transform_indices = @transform_2, window_bounds = array<i64: 1, 256, 768>}, {transform_indices = @transform_3, window_bounds = array<i64: 1, 1, 768>}, {transform_indices = @transform_4, window_bounds = array<i64: 1, 256, 256>}, {transform_indices = @transform_5, window_bounds = array<i64: 1, 1, 256>}, {transform_indices = @transform_6, window_bounds = array<i64: 1, 1, 256>}, {transform_indices = @transform_7, window_bounds = array<i64: 1, 1, 256>}, {transform_indices = @transform_8, window_bounds = array<i64: 1, 256, 1024>}, {transform_indices = @transform_9, window_bounds = array<i64: 1, 1, 1024>}, {transform_indices = @transform_10, window_bounds = array<i64: 1, 1024, 256>}, {transform_indices = @transform_11, window_bounds = array<i64: 1, 1, 256>}, {transform_indices = @transform_12, window_bounds = array<i64: 1, 1, 256>}, {transform_indices = @transform_13, window_bounds = array<i64: 1, 1, 256>}, {pipeline_mode = #tpu.pipeline_mode<synchronous>, transform_indices = @transform_14, window_bounds = array<i64: 32, 256>}]} {
    %c0_i32 = arith.constant 0 : i32
    %0 = arith.cmpi eq, %arg0, %c0_i32 : i32
    %1 = arith.extui %0 : i1 to i32
    %c0_i32_0 = arith.constant 0 : i32
    %2 = arith.cmpi ne, %1, %c0_i32_0 : i32
    scf.if %2 {
      %c0_128 = arith.constant 0 : index
      %c0_129 = arith.constant 0 : index
      %301 = vector.load %arg1[%c0_128, %c0_129] : memref<32x256xf32, #tpu.memory_space<vmem>>, vector<32x256xf32>
      %c0_130 = arith.constant 0 : index
      %c0_131 = arith.constant 0 : index
      %302 = vector.load %arg16[%c0_130, %c0_131] : memref<32x256xf32, #tpu.memory_space<vmem>>, vector<32x256xf32>
      tpu.vector_store %arg16[%c0_130, %c0_131], %301 {strides = array<i32>} : memref<32x256xf32, #tpu.memory_space<vmem>>, vector<32x256xf32>,
    } else {
    }
    %c0 = arith.constant 0 : index
    %c0_1 = arith.constant 0 : index
    %3 = vector.load %arg16[%c0, %c0_1] : memref<32x256xf32, #tpu.memory_space<vmem>>, vector<32x256xf32>
    %4 = arith.truncf %3 : vector<32x256xf32> to vector<32x256xbf16>
    %c0_2 = arith.constant 0 : index
    %c0_3 = arith.constant 0 : index
    %c0_4 = arith.constant 0 : index
    %5 = vector.load %arg3[%c0_2, %c0_3, %c0_4] : memref<1x256x768xbf16, #tpu.memory_space<vmem>>, vector<1x256x768xbf16>
    %6 = vector.shape_cast %5 : vector<1x256x768xbf16> to vector<256x768xbf16>
    %cst = arith.constant dense<0.000000e+00> : vector<32x768xf32>
    %7 = tpu.matmul %4, %6, %cst {dimension_numbers = #tpu.dot_dimension_numbers<[1], [0], [0], [1], [0, 0, 1, 1], [], []>} : vector<32x256xbf16>, vector<256x768xbf16>, vector<32x768xf32> -> vector<32x768xf32>
    %c0_5 = arith.constant 0 : index
    %c0_6 = arith.constant 0 : index
    %c0_7 = arith.constant 0 : index
    %8 = vector.load %arg4[%c0_5, %c0_6, %c0_7] : memref<1x1x768xf32, #tpu.memory_space<vmem>>, vector<1x1x768xf32>
    %9 = vector.shape_cast %8 : vector<1x1x768xf32> to vector<1x768xf32>
    %10 = vector.broadcast %9 : vector<1x768xf32> to vector<32x768xf32>
    %11 = arith.addf %7, %10 : vector<32x768xf32>
    %12 = arith.truncf %11 : vector<32x768xf32> to vector<32x768xbf16>
    %c0_8 = arith.constant 0 : index
    %c0_9 = arith.constant 0 : index
    %13 = vector.load %arg2[%c0_8, %c0_9] : memref<2x16xf32, #tpu.memory_space<vmem>>, vector<1x16xf32>
    %cst_10 = arith.constant 0.000000e+00 : f32
    %14 = vector.broadcast %cst_10 : f32 to vector<16x256xf32>
    %15 = vector.extract_strided_slice %12 {offsets = [0, 0], sizes = [16, 64], strides = [1, 1]} : vector<32x768xbf16> to vector<16x64xbf16>
    %16 = vector.extract_strided_slice %12 {offsets = [0, 256], sizes = [16, 64], strides = [1, 1]} : vector<32x768xbf16> to vector<16x64xbf16>
    %17 = vector.extract_strided_slice %12 {offsets = [0, 512], sizes = [16, 64], strides = [1, 1]} : vector<32x768xbf16> to vector<16x64xbf16>
    %cst_11 = arith.constant dense<0.000000e+00> : vector<16x16xf32>
    %18 = tpu.matmul %15, %16, %cst_11 {dimension_numbers = #tpu.dot_dimension_numbers<[1], [1], [0], [0], [0, 0, 1, 0], [], []>} : vector<16x64xbf16>, vector<16x64xbf16>, vector<16x16xf32> -> vector<16x16xf32>
    %cst_12 = arith.constant 1.250000e-01 : f32
    %19 = vector.broadcast %cst_12 : f32 to vector<16x16xf32>
    %20 = arith.mulf %18, %19 : vector<16x16xf32>
    %21 = vector.broadcast %13 : vector<1x16xf32> to vector<16x16xf32>
    %22 = arith.addf %20, %21 : vector<16x16xf32>
    %cst_13 = arith.constant dense<0xFF800000> : vector<16xf32>
    %23 = vector.multi_reduction <maximumf>, %22, %cst_13 [1] : vector<16x16xf32> to vector<16xf32>
    %24 = vector.shape_cast %23 : vector<16xf32> to vector<16x1xf32>
    %25 = vector.broadcast %24 : vector<16x1xf32> to vector<16x16xf32>
    %26 = arith.subf %22, %25 : vector<16x16xf32>
    %27 = math.exp %26 : vector<16x16xf32>
    %cst_14 = arith.constant dense<0.000000e+00> : vector<16xf32>
    %28 = vector.multi_reduction <add>, %27, %cst_14 [1] : vector<16x16xf32> to vector<16xf32>
    %29 = vector.shape_cast %28 : vector<16xf32> to vector<16x1xf32>
    %30 = vector.broadcast %29 : vector<16x1xf32> to vector<16x16xf32>
    %31 = arith.divf %27, %30 : vector<16x16xf32>
    %32 = arith.truncf %31 : vector<16x16xf32> to vector<16x16xbf16>
    %cst_15 = arith.constant dense<0.000000e+00> : vector<16x64xf32>
    %33 = tpu.matmul %32, %17, %cst_15 {dimension_numbers = #tpu.dot_dimension_numbers<[1], [0], [0], [1], [0, 0, 1, 1], [], []>} : vector<16x16xbf16>, vector<16x64xbf16>, vector<16x64xf32> -> vector<16x64xf32>
    %34 = arith.truncf %33 : vector<16x64xf32> to vector<16x64xbf16>
    %c0_16 = arith.constant 0 : index
    %c0_17 = arith.constant 0 : index
    %c0_18 = arith.constant 0 : index
    %35 = vector.load %arg5[%c0_16, %c0_17, %c0_18] : memref<1x256x256xbf16, #tpu.memory_space<vmem>>, vector<1x64x256xbf16>
    %36 = vector.shape_cast %35 : vector<1x64x256xbf16> to vector<64x256xbf16>
    %cst_19 = arith.constant dense<0.000000e+00> : vector<16x256xf32>
    %37 = tpu.matmul %34, %36, %cst_19 {dimension_numbers = #tpu.dot_dimension_numbers<[1], [0], [0], [1], [0, 0, 1, 1], [], []>} : vector<16x64xbf16>, vector<64x256xbf16>, vector<16x256xf32> -> vector<16x256xf32>
    %38 = arith.addf %14, %37 : vector<16x256xf32>
    %39 = vector.extract_strided_slice %12 {offsets = [0, 64], sizes = [16, 64], strides = [1, 1]} : vector<32x768xbf16> to vector<16x64xbf16>
    %40 = vector.extract_strided_slice %12 {offsets = [0, 320], sizes = [16, 64], strides = [1, 1]} : vector<32x768xbf16> to vector<16x64xbf16>
    %41 = vector.extract_strided_slice %12 {offsets = [0, 576], sizes = [16, 64], strides = [1, 1]} : vector<32x768xbf16> to vector<16x64xbf16>
    %cst_20 = arith.constant dense<0.000000e+00> : vector<16x16xf32>
    %42 = tpu.matmul %39, %40, %cst_20 {dimension_numbers = #tpu.dot_dimension_numbers<[1], [1], [0], [0], [0, 0, 1, 0], [], []>} : vector<16x64xbf16>, vector<16x64xbf16>, vector<16x16xf32> -> vector<16x16xf32>
    %cst_21 = arith.constant 1.250000e-01 : f32
    %43 = vector.broadcast %cst_21 : f32 to vector<16x16xf32>
    %44 = arith.mulf %42, %43 : vector<16x16xf32>
    %45 = vector.broadcast %13 : vector<1x16xf32> to vector<16x16xf32>
    %46 = arith.addf %44, %45 : vector<16x16xf32>
    %cst_22 = arith.constant dense<0xFF800000> : vector<16xf32>
    %47 = vector.multi_reduction <maximumf>, %46, %cst_22 [1] : vector<16x16xf32> to vector<16xf32>
    %48 = vector.shape_cast %47 : vector<16xf32> to vector<16x1xf32>
    %49 = vector.broadcast %48 : vector<16x1xf32> to vector<16x16xf32>
    %50 = arith.subf %46, %49 : vector<16x16xf32>
    %51 = math.exp %50 : vector<16x16xf32>
    %cst_23 = arith.constant dense<0.000000e+00> : vector<16xf32>
    %52 = vector.multi_reduction <add>, %51, %cst_23 [1] : vector<16x16xf32> to vector<16xf32>
    %53 = vector.shape_cast %52 : vector<16xf32> to vector<16x1xf32>
    %54 = vector.broadcast %53 : vector<16x1xf32> to vector<16x16xf32>
    %55 = arith.divf %51, %54 : vector<16x16xf32>
    %56 = arith.truncf %55 : vector<16x16xf32> to vector<16x16xbf16>
    %cst_24 = arith.constant dense<0.000000e+00> : vector<16x64xf32>
    %57 = tpu.matmul %56, %41, %cst_24 {dimension_numbers = #tpu.dot_dimension_numbers<[1], [0], [0], [1], [0, 0, 1, 1], [], []>} : vector<16x16xbf16>, vector<16x64xbf16>, vector<16x64xf32> -> vector<16x64xf32>
    %58 = arith.truncf %57 : vector<16x64xf32> to vector<16x64xbf16>
    %c0_25 = arith.constant 0 : index
    %c64 = arith.constant 64 : index
    %c0_26 = arith.constant 0 : index
    %59 = vector.load %arg5[%c0_25, %c64, %c0_26] : memref<1x256x256xbf16, #tpu.memory_space<vmem>>, vector<1x64x256xbf16>
    %60 = vector.shape_cast %59 : vector<1x64x256xbf16> to vector<64x256xbf16>
    %cst_27 = arith.constant dense<0.000000e+00> : vector<16x256xf32>
    %61 = tpu.matmul %58, %60, %cst_27 {dimension_numbers = #tpu.dot_dimension_numbers<[1], [0], [0], [1], [0, 0, 1, 1], [], []>} : vector<16x64xbf16>, vector<64x256xbf16>, vector<16x256xf32> -> vector<16x256xf32>
    %62 = arith.addf %38, %61 : vector<16x256xf32>
    %63 = vector.extract_strided_slice %12 {offsets = [0, 128], sizes = [16, 64], strides = [1, 1]} : vector<32x768xbf16> to vector<16x64xbf16>
    %64 = vector.extract_strided_slice %12 {offsets = [0, 384], sizes = [16, 64], strides = [1, 1]} : vector<32x768xbf16> to vector<16x64xbf16>
    %65 = vector.extract_strided_slice %12 {offsets = [0, 640], sizes = [16, 64], strides = [1, 1]} : vector<32x768xbf16> to vector<16x64xbf16>
    %cst_28 = arith.constant dense<0.000000e+00> : vector<16x16xf32>
    %66 = tpu.matmul %63, %64, %cst_28 {dimension_numbers = #tpu.dot_dimension_numbers<[1], [1], [0], [0], [0, 0, 1, 0], [], []>} : vector<16x64xbf16>, vector<16x64xbf16>, vector<16x16xf32> -> vector<16x16xf32>
    %cst_29 = arith.constant 1.250000e-01 : f32
    %67 = vector.broadcast %cst_29 : f32 to vector<16x16xf32>
    %68 = arith.mulf %66, %67 : vector<16x16xf32>
    %69 = vector.broadcast %13 : vector<1x16xf32> to vector<16x16xf32>
    %70 = arith.addf %68, %69 : vector<16x16xf32>
    %cst_30 = arith.constant dense<0xFF800000> : vector<16xf32>
    %71 = vector.multi_reduction <maximumf>, %70, %cst_30 [1] : vector<16x16xf32> to vector<16xf32>
    %72 = vector.shape_cast %71 : vector<16xf32> to vector<16x1xf32>
    %73 = vector.broadcast %72 : vector<16x1xf32> to vector<16x16xf32>
    %74 = arith.subf %70, %73 : vector<16x16xf32>
    %75 = math.exp %74 : vector<16x16xf32>
    %cst_31 = arith.constant dense<0.000000e+00> : vector<16xf32>
    %76 = vector.multi_reduction <add>, %75, %cst_31 [1] : vector<16x16xf32> to vector<16xf32>
    %77 = vector.shape_cast %76 : vector<16xf32> to vector<16x1xf32>
    %78 = vector.broadcast %77 : vector<16x1xf32> to vector<16x16xf32>
    %79 = arith.divf %75, %78 : vector<16x16xf32>
    %80 = arith.truncf %79 : vector<16x16xf32> to vector<16x16xbf16>
    %cst_32 = arith.constant dense<0.000000e+00> : vector<16x64xf32>
    %81 = tpu.matmul %80, %65, %cst_32 {dimension_numbers = #tpu.dot_dimension_numbers<[1], [0], [0], [1], [0, 0, 1, 1], [], []>} : vector<16x16xbf16>, vector<16x64xbf16>, vector<16x64xf32> -> vector<16x64xf32>
    %82 = arith.truncf %81 : vector<16x64xf32> to vector<16x64xbf16>
    %c0_33 = arith.constant 0 : index
    %c128 = arith.constant 128 : index
    %c0_34 = arith.constant 0 : index
    %83 = vector.load %arg5[%c0_33, %c128, %c0_34] : memref<1x256x256xbf16, #tpu.memory_space<vmem>>, vector<1x64x256xbf16>
    %84 = vector.shape_cast %83 : vector<1x64x256xbf16> to vector<64x256xbf16>
    %cst_35 = arith.constant dense<0.000000e+00> : vector<16x256xf32>
    %85 = tpu.matmul %82, %84, %cst_35 {dimension_numbers = #tpu.dot_dimension_numbers<[1], [0], [0], [1], [0, 0, 1, 1], [], []>} : vector<16x64xbf16>, vector<64x256xbf16>, vector<16x256xf32> -> vector<16x256xf32>
    %86 = arith.addf %62, %85 : vector<16x256xf32>
    %87 = vector.extract_strided_slice %12 {offsets = [0, 192], sizes = [16, 64], strides = [1, 1]} : vector<32x768xbf16> to vector<16x64xbf16>
    %88 = vector.extract_strided_slice %12 {offsets = [0, 448], sizes = [16, 64], strides = [1, 1]} : vector<32x768xbf16> to vector<16x64xbf16>
    %89 = vector.extract_strided_slice %12 {offsets = [0, 704], sizes = [16, 64], strides = [1, 1]} : vector<32x768xbf16> to vector<16x64xbf16>
    %cst_36 = arith.constant dense<0.000000e+00> : vector<16x16xf32>
    %90 = tpu.matmul %87, %88, %cst_36 {dimension_numbers = #tpu.dot_dimension_numbers<[1], [1], [0], [0], [0, 0, 1, 0], [], []>} : vector<16x64xbf16>, vector<16x64xbf16>, vector<16x16xf32> -> vector<16x16xf32>
    %cst_37 = arith.constant 1.250000e-01 : f32
    %91 = vector.broadcast %cst_37 : f32 to vector<16x16xf32>
    %92 = arith.mulf %90, %91 : vector<16x16xf32>
    %93 = vector.broadcast %13 : vector<1x16xf32> to vector<16x16xf32>
    %94 = arith.addf %92, %93 : vector<16x16xf32>
    %cst_38 = arith.constant dense<0xFF800000> : vector<16xf32>
    %95 = vector.multi_reduction <maximumf>, %94, %cst_38 [1] : vector<16x16xf32> to vector<16xf32>
    %96 = vector.shape_cast %95 : vector<16xf32> to vector<16x1xf32>
    %97 = vector.broadcast %96 : vector<16x1xf32> to vector<16x16xf32>
    %98 = arith.subf %94, %97 : vector<16x16xf32>
    %99 = math.exp %98 : vector<16x16xf32>
    %cst_39 = arith.constant dense<0.000000e+00> : vector<16xf32>
    %100 = vector.multi_reduction <add>, %99, %cst_39 [1] : vector<16x16xf32> to vector<16xf32>
    %101 = vector.shape_cast %100 : vector<16xf32> to vector<16x1xf32>
    %102 = vector.broadcast %101 : vector<16x1xf32> to vector<16x16xf32>
    %103 = arith.divf %99, %102 : vector<16x16xf32>
    %104 = arith.truncf %103 : vector<16x16xf32> to vector<16x16xbf16>
    %cst_40 = arith.constant dense<0.000000e+00> : vector<16x64xf32>
    %105 = tpu.matmul %104, %89, %cst_40 {dimension_numbers = #tpu.dot_dimension_numbers<[1], [0], [0], [1], [0, 0, 1, 1], [], []>} : vector<16x16xbf16>, vector<16x64xbf16>, vector<16x64xf32> -> vector<16x64xf32>
    %106 = arith.truncf %105 : vector<16x64xf32> to vector<16x64xbf16>
    %c0_41 = arith.constant 0 : index
    %c192 = arith.constant 192 : index
    %c0_42 = arith.constant 0 : index
    %107 = vector.load %arg5[%c0_41, %c192, %c0_42] : memref<1x256x256xbf16, #tpu.memory_space<vmem>>, vector<1x64x256xbf16>
    %108 = vector.shape_cast %107 : vector<1x64x256xbf16> to vector<64x256xbf16>
    %cst_43 = arith.constant dense<0.000000e+00> : vector<16x256xf32>
    %109 = tpu.matmul %106, %108, %cst_43 {dimension_numbers = #tpu.dot_dimension_numbers<[1], [0], [0], [1], [0, 0, 1, 1], [], []>} : vector<16x64xbf16>, vector<64x256xbf16>, vector<16x256xf32> -> vector<16x256xf32>
    %110 = arith.addf %86, %109 : vector<16x256xf32>
    %c1 = arith.constant 1 : index
    %c0_44 = arith.constant 0 : index
    %111 = vector.load %arg2[%c1, %c0_44] : memref<2x16xf32, #tpu.memory_space<vmem>>, vector<1x16xf32>
    %cst_45 = arith.constant 0.000000e+00 : f32
    %112 = vector.broadcast %cst_45 : f32 to vector<16x256xf32>
    %113 = vector.extract_strided_slice %12 {offsets = [16, 0], sizes = [16, 64], strides = [1, 1]} : vector<32x768xbf16> to vector<16x64xbf16>
    %114 = vector.extract_strided_slice %12 {offsets = [16, 256], sizes = [16, 64], strides = [1, 1]} : vector<32x768xbf16> to vector<16x64xbf16>
    %115 = vector.extract_strided_slice %12 {offsets = [16, 512], sizes = [16, 64], strides = [1, 1]} : vector<32x768xbf16> to vector<16x64xbf16>
    %cst_46 = arith.constant dense<0.000000e+00> : vector<16x16xf32>
    %116 = tpu.matmul %113, %114, %cst_46 {dimension_numbers = #tpu.dot_dimension_numbers<[1], [1], [0], [0], [0, 0, 1, 0], [], []>} : vector<16x64xbf16>, vector<16x64xbf16>, vector<16x16xf32> -> vector<16x16xf32>
    %cst_47 = arith.constant 1.250000e-01 : f32
    %117 = vector.broadcast %cst_47 : f32 to vector<16x16xf32>
    %118 = arith.mulf %116, %117 : vector<16x16xf32>
    %119 = vector.broadcast %111 : vector<1x16xf32> to vector<16x16xf32>
    %120 = arith.addf %118, %119 : vector<16x16xf32>
    %cst_48 = arith.constant dense<0xFF800000> : vector<16xf32>
    %121 = vector.multi_reduction <maximumf>, %120, %cst_48 [1] : vector<16x16xf32> to vector<16xf32>
    %122 = vector.shape_cast %121 : vector<16xf32> to vector<16x1xf32>
    %123 = vector.broadcast %122 : vector<16x1xf32> to vector<16x16xf32>
    %124 = arith.subf %120, %123 : vector<16x16xf32>
    %125 = math.exp %124 : vector<16x16xf32>
    %cst_49 = arith.constant dense<0.000000e+00> : vector<16xf32>
    %126 = vector.multi_reduction <add>, %125, %cst_49 [1] : vector<16x16xf32> to vector<16xf32>
    %127 = vector.shape_cast %126 : vector<16xf32> to vector<16x1xf32>
    %128 = vector.broadcast %127 : vector<16x1xf32> to vector<16x16xf32>
    %129 = arith.divf %125, %128 : vector<16x16xf32>
    %130 = arith.truncf %129 : vector<16x16xf32> to vector<16x16xbf16>
    %cst_50 = arith.constant dense<0.000000e+00> : vector<16x64xf32>
    %131 = tpu.matmul %130, %115, %cst_50 {dimension_numbers = #tpu.dot_dimension_numbers<[1], [0], [0], [1], [0, 0, 1, 1], [], []>} : vector<16x16xbf16>, vector<16x64xbf16>, vector<16x64xf32> -> vector<16x64xf32>
    %132 = arith.truncf %131 : vector<16x64xf32> to vector<16x64xbf16>
    %c0_51 = arith.constant 0 : index
    %c0_52 = arith.constant 0 : index
    %c0_53 = arith.constant 0 : index
    %133 = vector.load %arg5[%c0_51, %c0_52, %c0_53] : memref<1x256x256xbf16, #tpu.memory_space<vmem>>, vector<1x64x256xbf16>
    %134 = vector.shape_cast %133 : vector<1x64x256xbf16> to vector<64x256xbf16>
    %cst_54 = arith.constant dense<0.000000e+00> : vector<16x256xf32>
    %135 = tpu.matmul %132, %134, %cst_54 {dimension_numbers = #tpu.dot_dimension_numbers<[1], [0], [0], [1], [0, 0, 1, 1], [], []>} : vector<16x64xbf16>, vector<64x256xbf16>, vector<16x256xf32> -> vector<16x256xf32>
    %136 = arith.addf %112, %135 : vector<16x256xf32>
    %137 = vector.extract_strided_slice %12 {offsets = [16, 64], sizes = [16, 64], strides = [1, 1]} : vector<32x768xbf16> to vector<16x64xbf16>
    %138 = vector.extract_strided_slice %12 {offsets = [16, 320], sizes = [16, 64], strides = [1, 1]} : vector<32x768xbf16> to vector<16x64xbf16>
    %139 = vector.extract_strided_slice %12 {offsets = [16, 576], sizes = [16, 64], strides = [1, 1]} : vector<32x768xbf16> to vector<16x64xbf16>
    %cst_55 = arith.constant dense<0.000000e+00> : vector<16x16xf32>
    %140 = tpu.matmul %137, %138, %cst_55 {dimension_numbers = #tpu.dot_dimension_numbers<[1], [1], [0], [0], [0, 0, 1, 0], [], []>} : vector<16x64xbf16>, vector<16x64xbf16>, vector<16x16xf32> -> vector<16x16xf32>
    %cst_56 = arith.constant 1.250000e-01 : f32
    %141 = vector.broadcast %cst_56 : f32 to vector<16x16xf32>
    %142 = arith.mulf %140, %141 : vector<16x16xf32>
    %143 = vector.broadcast %111 : vector<1x16xf32> to vector<16x16xf32>
    %144 = arith.addf %142, %143 : vector<16x16xf32>
    %cst_57 = arith.constant dense<0xFF800000> : vector<16xf32>
    %145 = vector.multi_reduction <maximumf>, %144, %cst_57 [1] : vector<16x16xf32> to vector<16xf32>
    %146 = vector.shape_cast %145 : vector<16xf32> to vector<16x1xf32>
    %147 = vector.broadcast %146 : vector<16x1xf32> to vector<16x16xf32>
    %148 = arith.subf %144, %147 : vector<16x16xf32>
    %149 = math.exp %148 : vector<16x16xf32>
    %cst_58 = arith.constant dense<0.000000e+00> : vector<16xf32>
    %150 = vector.multi_reduction <add>, %149, %cst_58 [1] : vector<16x16xf32> to vector<16xf32>
    %151 = vector.shape_cast %150 : vector<16xf32> to vector<16x1xf32>
    %152 = vector.broadcast %151 : vector<16x1xf32> to vector<16x16xf32>
    %153 = arith.divf %149, %152 : vector<16x16xf32>
    %154 = arith.truncf %153 : vector<16x16xf32> to vector<16x16xbf16>
    %cst_59 = arith.constant dense<0.000000e+00> : vector<16x64xf32>
    %155 = tpu.matmul %154, %139, %cst_59 {dimension_numbers = #tpu.dot_dimension_numbers<[1], [0], [0], [1], [0, 0, 1, 1], [], []>} : vector<16x16xbf16>, vector<16x64xbf16>, vector<16x64xf32> -> vector<16x64xf32>
    %156 = arith.truncf %155 : vector<16x64xf32> to vector<16x64xbf16>
    %c0_60 = arith.constant 0 : index
    %c64_61 = arith.constant 64 : index
    %c0_62 = arith.constant 0 : index
    %157 = vector.load %arg5[%c0_60, %c64_61, %c0_62] : memref<1x256x256xbf16, #tpu.memory_space<vmem>>, vector<1x64x256xbf16>
    %158 = vector.shape_cast %157 : vector<1x64x256xbf16> to vector<64x256xbf16>
    %cst_63 = arith.constant dense<0.000000e+00> : vector<16x256xf32>
    %159 = tpu.matmul %156, %158, %cst_63 {dimension_numbers = #tpu.dot_dimension_numbers<[1], [0], [0], [1], [0, 0, 1, 1], [], []>} : vector<16x64xbf16>, vector<64x256xbf16>, vector<16x256xf32> -> vector<16x256xf32>
    %160 = arith.addf %136, %159 : vector<16x256xf32>
    %161 = vector.extract_strided_slice %12 {offsets = [16, 128], sizes = [16, 64], strides = [1, 1]} : vector<32x768xbf16> to vector<16x64xbf16>
    %162 = vector.extract_strided_slice %12 {offsets = [16, 384], sizes = [16, 64], strides = [1, 1]} : vector<32x768xbf16> to vector<16x64xbf16>
    %163 = vector.extract_strided_slice %12 {offsets = [16, 640], sizes = [16, 64], strides = [1, 1]} : vector<32x768xbf16> to vector<16x64xbf16>
    %cst_64 = arith.constant dense<0.000000e+00> : vector<16x16xf32>
    %164 = tpu.matmul %161, %162, %cst_64 {dimension_numbers = #tpu.dot_dimension_numbers<[1], [1], [0], [0], [0, 0, 1, 0], [], []>} : vector<16x64xbf16>, vector<16x64xbf16>, vector<16x16xf32> -> vector<16x16xf32>
    %cst_65 = arith.constant 1.250000e-01 : f32
    %165 = vector.broadcast %cst_65 : f32 to vector<16x16xf32>
    %166 = arith.mulf %164, %165 : vector<16x16xf32>
    %167 = vector.broadcast %111 : vector<1x16xf32> to vector<16x16xf32>
    %168 = arith.addf %166, %167 : vector<16x16xf32>
    %cst_66 = arith.constant dense<0xFF800000> : vector<16xf32>
    %169 = vector.multi_reduction <maximumf>, %168, %cst_66 [1] : vector<16x16xf32> to vector<16xf32>
    %170 = vector.shape_cast %169 : vector<16xf32> to vector<16x1xf32>
    %171 = vector.broadcast %170 : vector<16x1xf32> to vector<16x16xf32>
    %172 = arith.subf %168, %171 : vector<16x16xf32>
    %173 = math.exp %172 : vector<16x16xf32>
    %cst_67 = arith.constant dense<0.000000e+00> : vector<16xf32>
    %174 = vector.multi_reduction <add>, %173, %cst_67 [1] : vector<16x16xf32> to vector<16xf32>
    %175 = vector.shape_cast %174 : vector<16xf32> to vector<16x1xf32>
    %176 = vector.broadcast %175 : vector<16x1xf32> to vector<16x16xf32>
    %177 = arith.divf %173, %176 : vector<16x16xf32>
    %178 = arith.truncf %177 : vector<16x16xf32> to vector<16x16xbf16>
    %cst_68 = arith.constant dense<0.000000e+00> : vector<16x64xf32>
    %179 = tpu.matmul %178, %163, %cst_68 {dimension_numbers = #tpu.dot_dimension_numbers<[1], [0], [0], [1], [0, 0, 1, 1], [], []>} : vector<16x16xbf16>, vector<16x64xbf16>, vector<16x64xf32> -> vector<16x64xf32>
    %180 = arith.truncf %179 : vector<16x64xf32> to vector<16x64xbf16>
    %c0_69 = arith.constant 0 : index
    %c128_70 = arith.constant 128 : index
    %c0_71 = arith.constant 0 : index
    %181 = vector.load %arg5[%c0_69, %c128_70, %c0_71] : memref<1x256x256xbf16, #tpu.memory_space<vmem>>, vector<1x64x256xbf16>
    %182 = vector.shape_cast %181 : vector<1x64x256xbf16> to vector<64x256xbf16>
    %cst_72 = arith.constant dense<0.000000e+00> : vector<16x256xf32>
    %183 = tpu.matmul %180, %182, %cst_72 {dimension_numbers = #tpu.dot_dimension_numbers<[1], [0], [0], [1], [0, 0, 1, 1], [], []>} : vector<16x64xbf16>, vector<64x256xbf16>, vector<16x256xf32> -> vector<16x256xf32>
    %184 = arith.addf %160, %183 : vector<16x256xf32>
    %185 = vector.extract_strided_slice %12 {offsets = [16, 192], sizes = [16, 64], strides = [1, 1]} : vector<32x768xbf16> to vector<16x64xbf16>
    %186 = vector.extract_strided_slice %12 {offsets = [16, 448], sizes = [16, 64], strides = [1, 1]} : vector<32x768xbf16> to vector<16x64xbf16>
    %187 = vector.extract_strided_slice %12 {offsets = [16, 704], sizes = [16, 64], strides = [1, 1]} : vector<32x768xbf16> to vector<16x64xbf16>
    %cst_73 = arith.constant dense<0.000000e+00> : vector<16x16xf32>
    %188 = tpu.matmul %185, %186, %cst_73 {dimension_numbers = #tpu.dot_dimension_numbers<[1], [1], [0], [0], [0, 0, 1, 0], [], []>} : vector<16x64xbf16>, vector<16x64xbf16>, vector<16x16xf32> -> vector<16x16xf32>
    %cst_74 = arith.constant 1.250000e-01 : f32
    %189 = vector.broadcast %cst_74 : f32 to vector<16x16xf32>
    %190 = arith.mulf %188, %189 : vector<16x16xf32>
    %191 = vector.broadcast %111 : vector<1x16xf32> to vector<16x16xf32>
    %192 = arith.addf %190, %191 : vector<16x16xf32>
    %cst_75 = arith.constant dense<0xFF800000> : vector<16xf32>
    %193 = vector.multi_reduction <maximumf>, %192, %cst_75 [1] : vector<16x16xf32> to vector<16xf32>
    %194 = vector.shape_cast %193 : vector<16xf32> to vector<16x1xf32>
    %195 = vector.broadcast %194 : vector<16x1xf32> to vector<16x16xf32>
    %196 = arith.subf %192, %195 : vector<16x16xf32>
    %197 = math.exp %196 : vector<16x16xf32>
    %cst_76 = arith.constant dense<0.000000e+00> : vector<16xf32>
    %198 = vector.multi_reduction <add>, %197, %cst_76 [1] : vector<16x16xf32> to vector<16xf32>
    %199 = vector.shape_cast %198 : vector<16xf32> to vector<16x1xf32>
    %200 = vector.broadcast %199 : vector<16x1xf32> to vector<16x16xf32>
    %201 = arith.divf %197, %200 : vector<16x16xf32>
    %202 = arith.truncf %201 : vector<16x16xf32> to vector<16x16xbf16>
    %cst_77 = arith.constant dense<0.000000e+00> : vector<16x64xf32>
    %203 = tpu.matmul %202, %187, %cst_77 {dimension_numbers = #tpu.dot_dimension_numbers<[1], [0], [0], [1], [0, 0, 1, 1], [], []>} : vector<16x16xbf16>, vector<16x64xbf16>, vector<16x64xf32> -> vector<16x64xf32>
    %204 = arith.truncf %203 : vector<16x64xf32> to vector<16x64xbf16>
    %c0_78 = arith.constant 0 : index
    %c192_79 = arith.constant 192 : index
    %c0_80 = arith.constant 0 : index
    %205 = vector.load %arg5[%c0_78, %c192_79, %c0_80] : memref<1x256x256xbf16, #tpu.memory_space<vmem>>, vector<1x64x256xbf16>
    %206 = vector.shape_cast %205 : vector<1x64x256xbf16> to vector<64x256xbf16>
    %cst_81 = arith.constant dense<0.000000e+00> : vector<16x256xf32>
    %207 = tpu.matmul %204, %206, %cst_81 {dimension_numbers = #tpu.dot_dimension_numbers<[1], [0], [0], [1], [0, 0, 1, 1], [], []>} : vector<16x64xbf16>, vector<64x256xbf16>, vector<16x256xf32> -> vector<16x256xf32>
    %208 = arith.addf %184, %207 : vector<16x256xf32>
    %209 = tpu.concatenate %110, %208 in 0 : vector<16x256xf32>, vector<16x256xf32> -> vector<32x256xf32>
    %c0_82 = arith.constant 0 : index
    %c0_83 = arith.constant 0 : index
    %c0_84 = arith.constant 0 : index
    %210 = vector.load %arg6[%c0_82, %c0_83, %c0_84] : memref<1x1x256xf32, #tpu.memory_space<vmem>>, vector<1x1x256xf32>
    %211 = vector.shape_cast %210 : vector<1x1x256xf32> to vector<1x256xf32>
    %212 = vector.broadcast %211 : vector<1x256xf32> to vector<32x256xf32>
    %213 = arith.addf %209, %212 : vector<32x256xf32>
    %214 = arith.addf %213, %3 : vector<32x256xf32>
    %c0_85 = arith.constant 0 : index
    %c0_86 = arith.constant 0 : index
    %c0_87 = arith.constant 0 : index
    %215 = vector.load %arg7[%c0_85, %c0_86, %c0_87] : memref<1x1x256xf32, #tpu.memory_space<vmem>>, vector<1x1x256xf32>
    %216 = vector.shape_cast %215 : vector<1x1x256xf32> to vector<1x256xf32>
    %c0_88 = arith.constant 0 : index
    %c0_89 = arith.constant 0 : index
    %c0_90 = arith.constant 0 : index
    %217 = vector.load %arg8[%c0_88, %c0_89, %c0_90] : memref<1x1x256xf32, #tpu.memory_space<vmem>>, vector<1x1x256xf32>
    %218 = vector.shape_cast %217 : vector<1x1x256xf32> to vector<1x256xf32>
    %cst_91 = arith.constant dense<0.000000e+00> : vector<32xf32>
    %219 = vector.multi_reduction <add>, %214, %cst_91 [1] : vector<32x256xf32> to vector<32xf32>
    %220 = vector.shape_cast %219 : vector<32xf32> to vector<32x1xf32>
    %cst_92 = arith.constant 2.560000e+02 : f32
    %221 = vector.broadcast %cst_92 : f32 to vector<32x1xf32>
    %222 = arith.divf %220, %221 : vector<32x1xf32>
    %223 = vector.broadcast %222 : vector<32x1xf32> to vector<32x256xf32>
    %224 = arith.subf %214, %223 : vector<32x256xf32>
    %225 = arith.mulf %224, %224 : vector<32x256xf32>
    %cst_93 = arith.constant dense<0.000000e+00> : vector<32xf32>
    %226 = vector.multi_reduction <add>, %225, %cst_93 [1] : vector<32x256xf32> to vector<32xf32>
    %227 = vector.shape_cast %226 : vector<32xf32> to vector<32x1xf32>
    %cst_94 = arith.constant 2.560000e+02 : f32
    %228 = vector.broadcast %cst_94 : f32 to vector<32x1xf32>
    %229 = arith.divf %227, %228 : vector<32x1xf32>
    %230 = vector.broadcast %222 : vector<32x1xf32> to vector<32x256xf32>
    %231 = arith.subf %214, %230 : vector<32x256xf32>
    %cst_95 = arith.constant 9.99999996E-13 : f32
    %232 = vector.broadcast %cst_95 : f32 to vector<32x1xf32>
    %233 = arith.addf %229, %232 : vector<32x1xf32>
    %234 = math.rsqrt %233 : vector<32x1xf32>
    %235 = vector.broadcast %234 : vector<32x1xf32> to vector<32x256xf32>
    %236 = arith.mulf %231, %235 : vector<32x256xf32>
    %237 = vector.broadcast %216 : vector<1x256xf32> to vector<32x256xf32>
    %238 = arith.mulf %236, %237 : vector<32x256xf32>
    %239 = vector.broadcast %218 : vector<1x256xf32> to vector<32x256xf32>
    %240 = arith.addf %238, %239 : vector<32x256xf32>
    %241 = arith.truncf %240 : vector<32x256xf32> to vector<32x256xbf16>
    %c0_96 = arith.constant 0 : index
    %c0_97 = arith.constant 0 : index
    %c0_98 = arith.constant 0 : index
    %242 = vector.load %arg9[%c0_96, %c0_97, %c0_98] : memref<1x256x1024xbf16, #tpu.memory_space<vmem>>, vector<1x256x1024xbf16>
    %243 = vector.shape_cast %242 : vector<1x256x1024xbf16> to vector<256x1024xbf16>
    %cst_99 = arith.constant dense<0.000000e+00> : vector<32x1024xf32>
    %244 = tpu.matmul %241, %243, %cst_99 {dimension_numbers = #tpu.dot_dimension_numbers<[1], [0], [0], [1], [0, 0, 1, 1], [], []>} : vector<32x256xbf16>, vector<256x1024xbf16>, vector<32x1024xf32> -> vector<32x1024xf32>
    %c0_100 = arith.constant 0 : index
    %c0_101 = arith.constant 0 : index
    %c0_102 = arith.constant 0 : index
    %245 = vector.load %arg10[%c0_100, %c0_101, %c0_102] : memref<1x1x1024xf32, #tpu.memory_space<vmem>>, vector<1x1x1024xf32>
    %246 = vector.shape_cast %245 : vector<1x1x1024xf32> to vector<1x1024xf32>
    %247 = vector.broadcast %246 : vector<1x1024xf32> to vector<32x1024xf32>
    %248 = arith.addf %244, %247 : vector<32x1024xf32>
    %249 = arith.mulf %248, %248 : vector<32x1024xf32>
    %250 = arith.mulf %248, %249 : vector<32x1024xf32>
    %cst_103 = arith.constant 4.471500e-02 : f32
    %251 = vector.broadcast %cst_103 : f32 to vector<32x1024xf32>
    %252 = arith.mulf %251, %250 : vector<32x1024xf32>
    %253 = arith.addf %248, %252 : vector<32x1024xf32>
    %cst_104 = arith.constant 0.797884583 : f32
    %254 = vector.broadcast %cst_104 : f32 to vector<32x1024xf32>
    %255 = arith.mulf %254, %253 : vector<32x1024xf32>
    %256 = math.tanh %255 : vector<32x1024xf32>
    %cst_105 = arith.constant 1.000000e+00 : f32
    %257 = vector.broadcast %cst_105 : f32 to vector<32x1024xf32>
    %258 = arith.addf %257, %256 : vector<32x1024xf32>
    %cst_106 = arith.constant 5.000000e-01 : f32
    %259 = vector.broadcast %cst_106 : f32 to vector<32x1024xf32>
    %260 = arith.mulf %259, %258 : vector<32x1024xf32>
    %261 = arith.mulf %248, %260 : vector<32x1024xf32>
    %262 = arith.truncf %261 : vector<32x1024xf32> to vector<32x1024xbf16>
    %c0_107 = arith.constant 0 : index
    %c0_108 = arith.constant 0 : index
    %c0_109 = arith.constant 0 : index
    %263 = vector.load %arg11[%c0_107, %c0_108, %c0_109] : memref<1x1024x256xbf16, #tpu.memory_space<vmem>>, vector<1x1024x256xbf16>
    %264 = vector.shape_cast %263 : vector<1x1024x256xbf16> to vector<1024x256xbf16>
    %cst_110 = arith.constant dense<0.000000e+00> : vector<32x256xf32>
    %265 = tpu.matmul %262, %264, %cst_110 {dimension_numbers = #tpu.dot_dimension_numbers<[1], [0], [0], [1], [0, 0, 1, 1], [], []>} : vector<32x1024xbf16>, vector<1024x256xbf16>, vector<32x256xf32> -> vector<32x256xf32>
    %c0_111 = arith.constant 0 : index
    %c0_112 = arith.constant 0 : index
    %c0_113 = arith.constant 0 : index
    %266 = vector.load %arg12[%c0_111, %c0_112, %c0_113] : memref<1x1x256xf32, #tpu.memory_space<vmem>>, vector<1x1x256xf32>
    %267 = vector.shape_cast %266 : vector<1x1x256xf32> to vector<1x256xf32>
    %268 = vector.broadcast %267 : vector<1x256xf32> to vector<32x256xf32>
    %269 = arith.addf %265, %268 : vector<32x256xf32>
    %270 = arith.addf %269, %240 : vector<32x256xf32>
    %c0_114 = arith.constant 0 : index
    %c0_115 = arith.constant 0 : index
    %c0_116 = arith.constant 0 : index
    %271 = vector.load %arg13[%c0_114, %c0_115, %c0_116] : memref<1x1x256xf32, #tpu.memory_space<vmem>>, vector<1x1x256xf32>
    %272 = vector.shape_cast %271 : vector<1x1x256xf32> to vector<1x256xf32>
    %c0_117 = arith.constant 0 : index
    %c0_118 = arith.constant 0 : index
    %c0_119 = arith.constant 0 : index
    %273 = vector.load %arg14[%c0_117, %c0_118, %c0_119] : memref<1x1x256xf32, #tpu.memory_space<vmem>>, vector<1x1x256xf32>
    %274 = vector.shape_cast %273 : vector<1x1x256xf32> to vector<1x256xf32>
    %cst_120 = arith.constant dense<0.000000e+00> : vector<32xf32>
    %275 = vector.multi_reduction <add>, %270, %cst_120 [1] : vector<32x256xf32> to vector<32xf32>
    %276 = vector.shape_cast %275 : vector<32xf32> to vector<32x1xf32>
    %cst_121 = arith.constant 2.560000e+02 : f32
    %277 = vector.broadcast %cst_121 : f32 to vector<32x1xf32>
    %278 = arith.divf %276, %277 : vector<32x1xf32>
    %279 = vector.broadcast %278 : vector<32x1xf32> to vector<32x256xf32>
    %280 = arith.subf %270, %279 : vector<32x256xf32>
    %281 = arith.mulf %280, %280 : vector<32x256xf32>
    %cst_122 = arith.constant dense<0.000000e+00> : vector<32xf32>
    %282 = vector.multi_reduction <add>, %281, %cst_122 [1] : vector<32x256xf32> to vector<32xf32>
    %283 = vector.shape_cast %282 : vector<32xf32> to vector<32x1xf32>
    %cst_123 = arith.constant 2.560000e+02 : f32
    %284 = vector.broadcast %cst_123 : f32 to vector<32x1xf32>
    %285 = arith.divf %283, %284 : vector<32x1xf32>
    %286 = vector.broadcast %278 : vector<32x1xf32> to vector<32x256xf32>
    %287 = arith.subf %270, %286 : vector<32x256xf32>
    %cst_124 = arith.constant 9.99999996E-13 : f32
    %288 = vector.broadcast %cst_124 : f32 to vector<32x1xf32>
    %289 = arith.addf %285, %288 : vector<32x1xf32>
    %290 = math.rsqrt %289 : vector<32x1xf32>
    %291 = vector.broadcast %290 : vector<32x1xf32> to vector<32x256xf32>
    %292 = arith.mulf %287, %291 : vector<32x256xf32>
    %293 = vector.broadcast %272 : vector<1x256xf32> to vector<32x256xf32>
    %294 = arith.mulf %292, %293 : vector<32x256xf32>
    %295 = vector.broadcast %274 : vector<1x256xf32> to vector<32x256xf32>
    %296 = arith.addf %294, %295 : vector<32x256xf32>
    %c0_125 = arith.constant 0 : index
    %c0_126 = arith.constant 0 : index
    %297 = vector.load %arg16[%c0_125, %c0_126] : memref<32x256xf32, #tpu.memory_space<vmem>>, vector<32x256xf32>
    tpu.vector_store %arg16[%c0_125, %c0_126], %296 {strides = array<i32>} : memref<32x256xf32, #tpu.memory_space<vmem>>, vector<32x256xf32>,
    %c1_i32 = arith.constant 1 : i32
    %298 = arith.cmpi eq, %arg0, %c1_i32 : i32
    %299 = arith.extui %298 : i1 to i32
    %c0_i32_127 = arith.constant 0 : i32
    %300 = arith.cmpi ne, %299, %c0_i32_127 : i32
    scf.if %300 {
      %c0_128 = arith.constant 0 : index
      %c0_129 = arith.constant 0 : index
      %301 = vector.load %arg15[%c0_128, %c0_129] : memref<32x256xf32, #tpu.memory_space<vmem>>, vector<32x256xf32>
      tpu.vector_store %arg15[%c0_128, %c0_129], %296 {strides = array<i32>} : memref<32x256xf32, #tpu.memory_space<vmem>>, vector<32x256xf32>,
    } else {
    }
    return
  }
  func.func @transform_0(%arg0: i32) -> (i32, i32) {
    %c0_i32 = arith.constant 0 : i32
    %c0_i32_0 = arith.constant 0 : i32
    %c0_i32_1 = arith.constant 0 : i32
    return %c0_i32, %c0_i32_0 : i32, i32
  }
  func.func @transform_1(%arg0: i32) -> (i32, i32) {
    %c0_i32 = arith.constant 0 : i32
    %c0_i32_0 = arith.constant 0 : i32
    %c0_i32_1 = arith.constant 0 : i32
    return %c0_i32, %c0_i32_0 : i32, i32
  }
  func.func @transform_2(%arg0: i32) -> (i32, i32, i32) {
    %c0_i32 = arith.constant 0 : i32
    %c0_i32_0 = arith.constant 0 : i32
    %c0_i32_1 = arith.constant 0 : i32
    return %arg0, %c0_i32, %c0_i32_0 : i32, i32, i32
  }
  func.func @transform_3(%arg0: i32) -> (i32, i32, i32) {
    %c0_i32 = arith.constant 0 : i32
    %c0_i32_0 = arith.constant 0 : i32
    %c0_i32_1 = arith.constant 0 : i32
    return %arg0, %c0_i32, %c0_i32_0 : i32, i32, i32
  }
  func.func @transform_4(%arg0: i32) -> (i32, i32, i32) {
    %c0_i32 = arith.constant 0 : i32
    %c0_i32_0 = arith.constant 0 : i32
    %c0_i32_1 = arith.constant 0 : i32
    return %arg0, %c0_i32, %c0_i32_0 : i32, i32, i32
  }
  func.func @transform_5(%arg0: i32) -> (i32, i32, i32) {
    %c0_i32 = arith.constant 0 : i32
    %c0_i32_0 = arith.constant 0 : i32
    %c0_i32_1 = arith.constant 0 : i32
    return %arg0, %c0_i32, %c0_i32_0 : i32, i32, i32
  }
  func.func @transform_6(%arg0: i32) -> (i32, i32, i32) {
    %c0_i32 = arith.constant 0 : i32
    %c0_i32_0 = arith.constant 0 : i32
    %c0_i32_1 = arith.constant 0 : i32
    return %arg0, %c0_i32, %c0_i32_0 : i32, i32, i32
  }
  func.func @transform_7(%arg0: i32) -> (i32, i32, i32) {
    %c0_i32 = arith.constant 0 : i32
    %c0_i32_0 = arith.constant 0 : i32
    %c0_i32_1 = arith.constant 0 : i32
    return %arg0, %c0_i32, %c0_i32_0 : i32, i32, i32
  }
  func.func @transform_8(%arg0: i32) -> (i32, i32, i32) {
    %c0_i32 = arith.constant 0 : i32
    %c0_i32_0 = arith.constant 0 : i32
    %c0_i32_1 = arith.constant 0 : i32
    return %arg0, %c0_i32, %c0_i32_0 : i32, i32, i32
  }
  func.func @transform_9(%arg0: i32) -> (i32, i32, i32) {
    %c0_i32 = arith.constant 0 : i32
    %c0_i32_0 = arith.constant 0 : i32
    %c0_i32_1 = arith.constant 0 : i32
    return %arg0, %c0_i32, %c0_i32_0 : i32, i32, i32
  }
  func.func @transform_10(%arg0: i32) -> (i32, i32, i32) {
    %c0_i32 = arith.constant 0 : i32
    %c0_i32_0 = arith.constant 0 : i32
    %c0_i32_1 = arith.constant 0 : i32
    return %arg0, %c0_i32, %c0_i32_0 : i32, i32, i32
  }
  func.func @transform_11(%arg0: i32) -> (i32, i32, i32) {
    %c0_i32 = arith.constant 0 : i32
    %c0_i32_0 = arith.constant 0 : i32
    %c0_i32_1 = arith.constant 0 : i32
    return %arg0, %c0_i32, %c0_i32_0 : i32, i32, i32
  }
  func.func @transform_12(%arg0: i32) -> (i32, i32, i32) {
    %c0_i32 = arith.constant 0 : i32
    %c0_i32_0 = arith.constant 0 : i32
    %c0_i32_1 = arith.constant 0 : i32
    return %arg0, %c0_i32, %c0_i32_0 : i32, i32, i32
  }
  func.func @transform_13(%arg0: i32) -> (i32, i32, i32) {
    %c0_i32 = arith.constant 0 : i32
    %c0_i32_0 = arith.constant 0 : i32
    %c0_i32_1 = arith.constant 0 : i32
    return %arg0, %c0_i32, %c0_i32_0 : i32, i32, i32
  }
  func.func @transform_14(%arg0: i32) -> (i32, i32) {
    %c0_i32 = arith.constant 0 : i32
    %c0_i32_0 = arith.constant 0 : i32
    %c0_i32_1 = arith.constant 0 : i32
    return %c0_i32, %c0_i32_0 : i32, i32
  }
}

</mosaic_0001>

<llo_original>
// kernel: squeeze.3
$region0: #{squeeze.3}
  %s0 = inlined_call_operand.vmem [shape: s32[32], index: 0, kind: input, shape index: {}]
  %s1 = inlined_call_operand.hbm [shape: s32[2,16], index: 1, kind: output, shape index: {}]
  $region1: #{squeeze.3} parent=0
    #allocation0 [shape = 'u8[1024]{0}', space=vmem, size = 0x400, scoped, tag = 'operand span for operand 1']
    #allocation1 [shape = 's32[1]{0}', space=sflag, size = 0x4, scoped, tag = 'scoped memory for squeeze.3']
    #allocation2 [shape = 'u8[4096]{0}', space=vmem, size = 0x1000, scoped, tag = 'scoped mem for output reshape']
    #allocation3 [shape = 'u8[4096]{0}', space=vmem, size = 0x1000, scoped, tag = 'scoped mem for input reshape']
    %2 = vsyncpa [#allocation1], 0
    %s4 = sshllo.u32 0, 1
    %v5 = vld [vmem:[%s0] sm:%s4]
    %6 = vst [vmem:[#allocation3] sm:%s4] %v5
    %v7 = vld [vmem:[#allocation3] sm:$0x1]
    %vm8 = vcmask 130048
    %9 = vst.msk [vmem:[#allocation2] sm:$0x1] %vm8, %v7
    %v10 = vld [vmem:[#allocation3] sm:$0x1]
    %11 = vrot.lane.b32.xlu0 %v10, 112
    %v12 = vpop.permute.xlu0 %11
    %vm13 = vcmask 130048
    %s14 = scalar_lea.vmem [#allocation2], 1
    %15 = vst.msk [vmem:[%s14] sm:$0x1] %vm13, %v12
    %s17 = sshllo.u32 0, 2
    %v19 = vld [vmem:[#allocation2] sm:%s17]
    %s20 = sshllo.u32 0, 2
    %21 = vst [vmem:[#allocation0] sm:%s20] %v19
    %s23 = ssub.s32 32, 32
    %24 = vsyncadd [#allocation1], %s23
    %s26 = sshll.u32 [#allocation0], 4
    %s27 = int_to_ptr.vmem [resolvable:$true] %s26
    %29 = dma.vmem_to_hbm [thread:$0]  %s27, 32, %s1, [#allocation1]
    %30 = dma.done [#allocation1], 32
    %31 = vsyncpa [#allocation1], 1

// kernel: pmodel_forward.3
$region0: #{pmodel_forward.3}
  #allocation0 [shape = 'u32[]', space=smem, size = 0x4, offset = 0x4, fixed_abs, tag = 'smem constant byte address 0x4 - core index']
  #allocation1 [shape = 'u32[144,128]{1,0:T(1,128)}', space=vmem, size = 0x12000, scoped, tag = 'internal scratch']
  %s0 = inlined_call_operand.vmem [shape: f32[32,256], index: 0, kind: input, shape index: {}]
  %s1 = inlined_call_operand.vmem [shape: bf16[256,2048], index: 1, kind: input, shape index: {}]
  %s2 = inlined_call_operand.vmem [shape: f32[1,2048], index: 2, kind: input, shape index: {}]
  %s3 = inlined_call_operand.vmem [shape: s32[32,1], index: 3, kind: output, shape index: {}]
  %s4 = sld [smem:[#allocation0]]
  $region22: #{pmodel_forward.3} parent=0
    _
  %s6 = ssub.s32 1, %s4
  %s7 = scalar_select 0, %s6, %s4
  // Predicated region
  $region2: #{pmodel_forward.3} parent=0 // pred_check
    _
  $region3: #{pmodel_forward.3} parent=0 // pred_check_branch
    %9 = sbr.rel (0) target = $region5
  $region4: #{pmodel_forward.3} parent=0 // pred_region
    _
  $region5: #{pmodel_forward.3} parent=0 // pred_fallthru
    _
  // Predicated region
  $region6: #{pmodel_forward.3} parent=0 // pred_check
    _
  $region7: #{pmodel_forward.3} parent=0 // pred_check_branch
    %11 = sbr.rel (0) target = $region9
  $region8: #{pmodel_forward.3} parent=0 // pred_region
    _
  $region9: #{pmodel_forward.3} parent=0 // pred_fallthru
    _
  // Predicated region
  $region10: #{pmodel_forward.3} parent=0 // pred_check
    _
  $region11: #{pmodel_forward.3} parent=0 // pred_check_branch
    %13 = sbr.rel (0) target = $region13
  $region12: #{pmodel_forward.3} parent=0 // pred_region
    _
  $region13: #{pmodel_forward.3} parent=0 // pred_fallthru
    _
  %v14 = vld [vmem:[%s0] sm:$0xff]
  %v15 = vld [vmem:[%s0 + $0x8] sm:$0xff]
  %v16 = vld [vmem:[%s0 + $0x10] sm:$0xff]
  %v17 = vld [vmem:[%s0 + $0x18] sm:$0xff]
  %v18 = vld [vmem:[%s0 + $0x20] sm:$0xff]
  %v19 = vld [vmem:[%s0 + $0x28] sm:$0xff]
  %v20 = vld [vmem:[%s0 + $0x30] sm:$0xff]
  %v21 = vld [vmem:[%s0 + $0x38] sm:$0xff]
  %v22 = vpack.c.bf16 %v16, %v14
  %v23 = vpack.c.bf16 %v17, %v15
  %v24 = vpack.c.bf16 %v20, %v18
  %v25 = vpack.c.bf16 %v21, %v19
  %v26 = vld [vmem:[%s1] sm:$0xff]
  %v27 = vld [vmem:[%s1 + $0x8] sm:$0xff]
  %v28 = vld [vmem:[%s1 + $0x10] sm:$0xff]
  %v29 = vld [vmem:[%s1 + $0x18] sm:$0xff]
  %v30 = vld [vmem:[%s1 + $0x20] sm:$0xff]
  %v31 = vld [vmem:[%s1 + $0x28] sm:$0xff]
  %v32 = vld [vmem:[%s1 + $0x30] sm:$0xff]
  %v33 = vld [vmem:[%s1 + $0x38] sm:$0xff]
  %v34 = vld [vmem:[%s1 + $0x40] sm:$0xff]
  %v35 = vld [vmem:[%s1 + $0x48] sm:$0xff]
  %v36 = vld [vmem:[%s1 + $0x50] sm:$0xff]
  %v37 = vld [vmem:[%s1 + $0x58] sm:$0xff]
  %v38 = vld [vmem:[%s1 + $0x60] sm:$0xff]
  %v39 = vld [vmem:[%s1 + $0x68] sm:$0xff]
  %v40 = vld [vmem:[%s1 + $0x70] sm:$0xff]
  %v41 = vld [vmem:[%s1 + $0x78] sm:$0xff]
  %v42 = vld [vmem:[%s1 + $0x80] sm:$0xff]
  %v43 = vld [vmem:[%s1 + $0x88] sm:$0xff]
  %v44 = vld [vmem:[%s1 + $0x90] sm:$0xff]
  %v45 = vld [vmem:[%s1 + $0x98] sm:$0xff]
  %v46 = vld [vmem:[%s1 + $0xa0] sm:$0xff]
  %v47 = vld [vmem:[%s1 + $0xa8] sm:$0xff]
  %v48 = vld [vmem:[%s1 + $0xb0] sm:$0xff]
  %v49 = vld [vmem:[%s1 + $0xb8] sm:$0xff]
  %v50 = vld [vmem:[%s1 + $0xc0] sm:$0xff]
  %v51 = vld [vmem:[%s1 + $0xc8] sm:$0xff]
  %v52 = vld [vmem:[%s1 + $0xd0] sm:$0xff]
  %v53 = vld [vmem:[%s1 + $0xd8] sm:$0xff]
  %v54 = vld [vmem:[%s1 + $0xe0] sm:$0xff]
  %v55 = vld [vmem:[%s1 + $0xe8] sm:$0xff]
  %v56 = vld [vmem:[%s1 + $0xf0] sm:$0xff]
  %v57 = vld [vmem:[%s1 + $0xf8] sm:$0xff]
  %v58 = vld [vmem:[%s1 + $0x100] sm:$0xff]
  %v59 = vld [vmem:[%s1 + $0x108] sm:$0xff]
  %v60 = vld [vmem:[%s1 + $0x110] sm:$0xff]
  %v61 = vld [vmem:[%s1 + $0x118] sm:$0xff]
  %v62 = vld [vmem:[%s1 + $0x120] sm:$0xff]
  %v63 = vld [vmem:[%s1 + $0x128] sm:$0xff]
  %v64 = vld [vmem:[%s1 + $0x130] sm:$0xff]
  %v65 = vld [vmem:[%s1 + $0x138] sm:$0xff]
  %v66 = vld [vmem:[%s1 + $0x140] sm:$0xff]
  %v67 = vld [vmem:[%s1 + $0x148] sm:$0xff]
  %v68 = vld [vmem:[%s1 + $0x150] sm:$0xff]
  %v69 = vld [vmem:[%s1 + $0x158] sm:$0xff]
  %v70 = vld [vmem:[%s1 + $0x160] sm:$0xff]
  %v71 = vld [vmem:[%s1 + $0x168] sm:$0xff]
  %v72 = vld [vmem:[%s1 + $0x170] sm:$0xff]
  %v73 = vld [vmem:[%s1 + $0x178] sm:$0xff]
  %v74 = vld [vmem:[%s1 + $0x180] sm:$0xff]
  %v75 = vld [vmem:[%s1 + $0x188] sm:$0xff]
  %v76 = vld [vmem:[%s1 + $0x190] sm:$0xff]
  %v77 = vld [vmem:[%s1 + $0x198] sm:$0xff]
  %v78 = vld [vmem:[%s1 + $0x1a0] sm:$0xff]
  %v79 = vld [vmem:[%s1 + $0x1a8] sm:$0xff]
  %v80 = vld [vmem:[%s1 + $0x1b0] sm:$0xff]
  %v81 = vld [vmem:[%s1 + $0x1b8] sm:$0xff]
  %v82 = vld [vmem:[%s1 + $0x1c0] sm:$0xff]
  %v83 = vld [vmem:[%s1 + $0x1c8] sm:$0xff]
  %v84 = vld [vmem:[%s1 + $0x1d0] sm:$0xff]
  %v85 = vld [vmem:[%s1 + $0x1d8] sm:$0xff]
  %v86 = vld [vmem:[%s1 + $0x1e0] sm:$0xff]
  %v87 = vld [vmem:[%s1 + $0x1e8] sm:$0xff]
  %v88 = vld [vmem:[%s1 + $0x1f0] sm:$0xff]
  %v89 = vld [vmem:[%s1 + $0x1f8] sm:$0xff]
  %v90 = vld [vmem:[%s1 + $0x200] sm:$0xff]
  %v91 = vld [vmem:[%s1 + $0x208] sm:$0xff]
  %v92 = vld [vmem:[%s1 + $0x210] sm:$0xff]
  %v93 = vld [vmem:[%s1 + $0x218] sm:$0xff]
  %v94 = vld [vmem:[%s1 + $0x220] sm:$0xff]
  %v95 = vld [vmem:[%s1 + $0x228] sm:$0xff]
  %v96 = vld [vmem:[%s1 + $0x230] sm:$0xff]
  %v97 = vld [vmem:[%s1 + $0x238] sm:$0xff]
  %v98 = vld [vmem:[%s1 + $0x240] sm:$0xff]
  %v99 = vld [vmem:[%s1 + $0x248] sm:$0xff]
  %v100 = vld [vmem:[%s1 + $0x250] sm:$0xff]
  %v101 = vld [vmem:[%s1 + $0x258] sm:$0xff]
  %v102 = vld [vmem:[%s1 + $0x260] sm:$0xff]
  %v103 = vld [vmem:[%s1 + $0x268] sm:$0xff]
  %v104 = vld [vmem:[%s1 + $0x270] sm:$0xff]
  %v105 = vld [vmem:[%s1 + $0x278] sm:$0xff]
  %v106 = vld [vmem:[%s1 + $0x280] sm:$0xff]
  %v107 = vld [vmem:[%s1 + $0x288] sm:$0xff]
  %v108 = vld [vmem:[%s1 + $0x290] sm:$0xff]
  %v109 = vld [vmem:[%s1 + $0x298] sm:$0xff]
  %v110 = vld [vmem:[%s1 + $0x2a0] sm:$0xff]
  %v111 = vld [vmem:[%s1 + $0x2a8] sm:$0xff]
  %v112 = vld [vmem:[%s1 + $0x2b0] sm:$0xff]
  %v113 = vld [vmem:[%s1 + $0x2b8] sm:$0xff]
  %v114 = vld [vmem:[%s1 + $0x2c0] sm:$0xff]
  %v115 = vld [vmem:[%s1 + $0x2c8] sm:$0xff]
  %v116 = vld [vmem:[%s1 + $0x2d0] sm:$0xff]
  %v117 = vld [vmem:[%s1 + $0x2d8] sm:$0xff]
  %v118 = vld [vmem:[%s1 + $0x2e0] sm:$0xff]
  %v119 = vld [vmem:[%s1 + $0x2e8] sm:$0xff]
  %v120 = vld [vmem:[%s1 + $0x2f0] sm:$0xff]
  %v121 = vld [vmem:[%s1 + $0x2f8] sm:$0xff]
  %v122 = vld [vmem:[%s1 + $0x300] sm:$0xff]
  %v123 = vld [vmem:[%s1 + $0x308] sm:$0xff]
  %v124 = vld [vmem:[%s1 + $0x310] sm:$0xff]
  %v125 = vld [vmem:[%s1 + $0x318] sm:$0xff]
  %v126 = vld [vmem:[%s1 + $0x320] sm:$0xff]
  %v127 = vld [vmem:[%s1 + $0x328] sm:$0xff]
  %v128 = vld [vmem:[%s1 + $0x330] sm:$0xff]
  %v129 = vld [vmem:[%s1 + $0x338] sm:$0xff]
  %v130 = vld [vmem:[%s1 + $0x340] sm:$0xff]
  %v131 = vld [vmem:[%s1 + $0x348] sm:$0xff]
  %v132 = vld [vmem:[%s1 + $0x350] sm:$0xff]
  %v133 = vld [vmem:[%s1 + $0x358] sm:$0xff]
  %v134 = vld [vmem:[%s1 + $0x360] sm:$0xff]
  %v135 = vld [vmem:[%s1 + $0x368] sm:$0xff]
  %v136 = vld [vmem:[%s1 + $0x370] sm:$0xff]
  %v137 = vld [vmem:[%s1 + $0x378] sm:$0xff]
  %v138 = vld [vmem:[%s1 + $0x380] sm:$0xff]
  %v139 = vld [vmem:[%s1 + $0x388] sm:$0xff]
  %v140 = vld [vmem:[%s1 + $0x390] sm:$0xff]
  %v141 = vld [vmem:[%s1 + $0x398] sm:$0xff]
  %v142 = vld [vmem:[%s1 + $0x3a0] sm:$0xff]
  %v143 = vld [vmem:[%s1 + $0x3a8] sm:$0xff]
  %v144 = vld [vmem:[%s1 + $0x3b0] sm:$0xff]
  %v145 = vld [vmem:[%s1 + $0x3b8] sm:$0xff]
  %v146 = vld [vmem:[%s1 + $0x3c0] sm:$0xff]
  %v147 = vld [vmem:[%s1 + $0x3c8] sm:$0xff]
  %v148 = vld [vmem:[%s1 + $0x3d0] sm:$0xff]
  %v149 = vld [vmem:[%s1 + $0x3d8] sm:$0xff]
  %v150 = vld [vmem:[%s1 + $0x3e0] sm:$0xff]
  %v151 = vld [vmem:[%s1 + $0x3e8] sm:$0xff]
  %v152 = vld [vmem:[%s1 + $0x3f0] sm:$0xff]
  %v153 = vld [vmem:[%s1 + $0x3f8] sm:$0xff]
  %v154 = vld [vmem:[%s1 + $0x400] sm:$0xff]
  %v155 = vld [vmem:[%s1 + $0x408] sm:$0xff]
  %v156 = vld [vmem:[%s1 + $0x410] sm:$0xff]
  %v157 = vld [vmem:[%s1 + $0x418] sm:$0xff]
  %v158 = vld [vmem:[%s1 + $0x420] sm:$0xff]
  %v159 = vld [vmem:[%s1 + $0x428] sm:$0xff]
  %v160 = vld [vmem:[%s1 + $0x430] sm:$0xff]
  %v161 = vld [vmem:[%s1 + $0x438] sm:$0xff]
  %v162 = vld [vmem:[%s1 + $0x440] sm:$0xff]
  %v163 = vld [vmem:[%s1 + $0x448] sm:$0xff]
  %v164 = vld [vmem:[%s1 + $0x450] sm:$0xff]
  %v165 = vld [vmem:[%s1 + $0x458] sm:$0xff]
  %v166 = vld [vmem:[%s1 + $0x460] sm:$0xff]
  %v167 = vld [vmem:[%s1 + $0x468] sm:$0xff]
  %v168 = vld [vmem:[%s1 + $0x470] sm:$0xff]
  %v169 = vld [vmem:[%s1 + $0x478] sm:$0xff]
  %v170 = vld [vmem:[%s1 + $0x480] sm:$0xff]
  %v171 = vld [vmem:[%s1 + $0x488] sm:$0xff]
  %v172 = vld [vmem:[%s1 + $0x490] sm:$0xff]
  %v173 = vld [vmem:[%s1 + $0x498] sm:$0xff]
  %v174 = vld [vmem:[%s1 + $0x4a0] sm:$0xff]
  %v175 = vld [vmem:[%s1 + $0x4a8] sm:$0xff]
  %v176 = vld [vmem:[%s1 + $0x4b0] sm:$0xff]
  %v177 = vld [vmem:[%s1 + $0x4b8] sm:$0xff]
  %v178 = vld [vmem:[%s1 + $0x4c0] sm:$0xff]
  %v179 = vld [vmem:[%s1 + $0x4c8] sm:$0xff]
  %v180 = vld [vmem:[%s1 + $0x4d0] sm:$0xff]
  %v181 = vld [vmem:[%s1 + $0x4d8] sm:$0xff]
  %v182 = vld [vmem:[%s1 + $0x4e0] sm:$0xff]
  %v183 = vld [vmem:[%s1 + $0x4e8] sm:$0xff]
  %v184 = vld [vmem:[%s1 + $0x4f0] sm:$0xff]
  %v185 = vld [vmem:[%s1 + $0x4f8] sm:$0xff]
  %v186 = vld [vmem:[%s1 + $0x500] sm:$0xff]
  %v187 = vld [vmem:[%s1 + $0x508] sm:$0xff]
  %v188 = vld [vmem:[%s1 + $0x510] sm:$0xff]
  %v189 = vld [vmem:[%s1 + $0x518] sm:$0xff]
  %v190 = vld [vmem:[%s1 + $0x520] sm:$0xff]
  %v191 = vld [vmem:[%s1 + $0x528] sm:$0xff]
  %v192 = vld [vmem:[%s1 + $0x530] sm:$0xff]
  %v193 = vld [vmem:[%s1 + $0x538] sm:$0xff]
  %v194 = vld [vmem:[%s1 + $0x540] sm:$0xff]
  %v195 = vld [vmem:[%s1 + $0x548] sm:$0xff]
  %v196 = vld [vmem:[%s1 + $0x550] sm:$0xff]
  %v197 = vld [vmem:[%s1 + $0x558] sm:$0xff]
  %v198 = vld [vmem:[%s1 + $0x560] sm:$0xff]
  %v199 = vld [vmem:[%s1 + $0x568] sm:$0xff]
  %v200 = vld [vmem:[%s1 + $0x570] sm:$0xff]
  %v201 = vld [vmem:[%s1 + $0x578] sm:$0xff]
  %v202 = vld [vmem:[%s1 + $0x580] sm:$0xff]
  %v203 = vld [vmem:[%s1 + $0x588] sm:$0xff]
  %v204 = vld [vmem:[%s1 + $0x590] sm:$0xff]
  %v205 = vld [vmem:[%s1 + $0x598] sm:$0xff]
  %v206 = vld [vmem:[%s1 + $0x5a0] sm:$0xff]
  %v207 = vld [vmem:[%s1 + $0x5a8] sm:$0xff]
  %v208 = vld [vmem:[%s1 + $0x5b0] sm:$0xff]
  %v209 = vld [vmem:[%s1 + $0x5b8] sm:$0xff]
  %v210 = vld [vmem:[%s1 + $0x5c0] sm:$0xff]
  %v211 = vld [vmem:[%s1 + $0x5c8] sm:$0xff]
  %v212 = vld [vmem:[%s1 + $0x5d0] sm:$0xff]
  %v213 = vld [vmem:[%s1 + $0x5d8] sm:$0xff]
  %v214 = vld [vmem:[%s1 + $0x5e0] sm:$0xff]
  %v215 = vld [vmem:[%s1 + $0x5e8] sm:$0xff]
  %v216 = vld [vmem:[%s1 + $0x5f0] sm:$0xff]
  %v217 = vld [vmem:[%s1 + $0x5f8] sm:$0xff]
  %v218 = vld [vmem:[%s1 + $0x600] sm:$0xff]
  %v219 = vld [vmem:[%s1 + $0x608] sm:$0xff]
  %v220 = vld [vmem:[%s1 + $0x610] sm:$0xff]
  %v221 = vld [vmem:[%s1 + $0x618] sm:$0xff]
  %v222 = vld [vmem:[%s1 + $0x620] sm:$0xff]
  %v223 = vld [vmem:[%s1 + $0x628] sm:$0xff]
  %v224 = vld [vmem:[%s1 + $0x630] sm:$0xff]
  %v225 = vld [vmem:[%s1 + $0x638] sm:$0xff]
  %v226 = vld [vmem:[%s1 + $0x640] sm:$0xff]
  %v227 = vld [vmem:[%s1 + $0x648] sm:$0xff]
  %v228 = vld [vmem:[%s1 + $0x650] sm:$0xff]
  %v229 = vld [vmem:[%s1 + $0x658] sm:$0xff]
  %v230 = vld [vmem:[%s1 + $0x660] sm:$0xff]
  %v231 = vld [vmem:[%s1 + $0x668] sm:$0xff]
  %v232 = vld [vmem:[%s1 + $0x670] sm:$0xff]
  %v233 = vld [vmem:[%s1 + $0x678] sm:$0xff]
  %v234 = vld [vmem:[%s1 + $0x680] sm:$0xff]
  %v235 = vld [vmem:[%s1 + $0x688] sm:$0xff]
  %v236 = vld [vmem:[%s1 + $0x690] sm:$0xff]
  %v237 = vld [vmem:[%s1 + $0x698] sm:$0xff]
  %v238 = vld [vmem:[%s1 + $0x6a0] sm:$0xff]
  %v239 = vld [vmem:[%s1 + $0x6a8] sm:$0xff]
  %v240 = vld [vmem:[%s1 + $0x6b0] sm:$0xff]
  %v241 = vld [vmem:[%s1 + $0x6b8] sm:$0xff]
  %v242 = vld [vmem:[%s1 + $0x6c0] sm:$0xff]
  %v243 = vld [vmem:[%s1 + $0x6c8] sm:$0xff]
  %v244 = vld [vmem:[%s1 + $0x6d0] sm:$0xff]
  %v245 = vld [vmem:[%s1 + $0x6d8] sm:$0xff]
  %v246 = vld [vmem:[%s1 + $0x6e0] sm:$0xff]
  %v247 = vld [vmem:[%s1 + $0x6e8] sm:$0xff]
  %v248 = vld [vmem:[%s1 + $0x6f0] sm:$0xff]
  %v249 = vld [vmem:[%s1 + $0x6f8] sm:$0xff]
  %v250 = vld [vmem:[%s1 + $0x700] sm:$0xff]
  %v251 = vld [vmem:[%s1 + $0x708] sm:$0xff]
  %v252 = vld [vmem:[%s1 + $0x710] sm:$0xff]
  %v253 = vld [vmem:[%s1 + $0x718] sm:$0xff]
  %v254 = vld [vmem:[%s1 + $0x720] sm:$0xff]
  %v255 = vld [vmem:[%s1 + $0x728] sm:$0xff]
  %v256 = vld [vmem:[%s1 + $0x730] sm:$0xff]
  %v257 = vld [vmem:[%s1 + $0x738] sm:$0xff]
  %v258 = vld [vmem:[%s1 + $0x740] sm:$0xff]
  %v259 = vld [vmem:[%s1 + $0x748] sm:$0xff]
  %v260 = vld [vmem:[%s1 + $0x750] sm:$0xff]
  %v261 = vld [vmem:[%s1 + $0x758] sm:$0xff]
  %v262 = vld [vmem:[%s1 + $0x760] sm:$0xff]
  %v263 = vld [vmem:[%s1 + $0x768] sm:$0xff]
  %v264 = vld [vmem:[%s1 + $0x770] sm:$0xff]
  %v265 = vld [vmem:[%s1 + $0x778] sm:$0xff]
  %v266 = vld [vmem:[%s1 + $0x780] sm:$0xff]
  %v267 = vld [vmem:[%s1 + $0x788] sm:$0xff]
  %v268 = vld [vmem:[%s1 + $0x790] sm:$0xff]
  %v269 = vld [vmem:[%s1 + $0x798] sm:$0xff]
  %v270 = vld [vmem:[%s1 + $0x7a0] sm:$0xff]
  %v271 = vld [vmem:[%s1 + $0x7a8] sm:$0xff]
  %v272 = vld [vmem:[%s1 + $0x7b0] sm:$0xff]
  %v273 = vld [vmem:[%s1 + $0x7b8] sm:$0xff]
  %v274 = vld [vmem:[%s1 + $0x7c0] sm:$0xff]
  %v275 = vld [vmem:[%s1 + $0x7c8] sm:$0xff]
  %v276 = vld [vmem:[%s1 + $0x7d0] sm:$0xff]
  %v277 = vld [vmem:[%s1 + $0x7d8] sm:$0xff]
  %v278 = vld [vmem:[%s1 + $0x7e0] sm:$0xff]
  %v279 = vld [vmem:[%s1 + $0x7e8] sm:$0xff]
  %v280 = vld [vmem:[%s1 + $0x7f0] sm:$0xff]
  %v281 = vld [vmem:[%s1 + $0x7f8] sm:$0xff]
  %v282 = vld [vmem:[%s2] sm:$0xff]
  %v283 = vld [vmem:[%s2 + $0x8] sm:$0xff]
  %v286 = vlaneseq
  %v287 = vshrl.u32 %v286, 7
  %v288 = vsub.s32 0, %v287
  %v289 = vrot.slane %v282, %v288
  %v290 = vlaneseq
  %v291 = vshrl.u32 %v290, 7
  %v292 = vsub.s32 1, %v291
  %v293 = vrot.slane %v282, %v292
  %v294 = vlaneseq
  %v295 = vshrl.u32 %v294, 7
  %v296 = vsub.s32 2, %v295
  %v297 = vrot.slane %v282, %v296
  %v298 = vlaneseq
  %v299 = vshrl.u32 %v298, 7
  %v300 = vsub.s32 3, %v299
  %v301 = vrot.slane %v282, %v300
  %v302 = vlaneseq
  %v303 = vshrl.u32 %v302, 7
  %v304 = vsub.s32 4, %v303
  %v305 = vrot.slane %v282, %v304
  %v306 = vlaneseq
  %v307 = vshrl.u32 %v306, 7
  %v308 = vsub.s32 5, %v307
  %v309 = vrot.slane %v282, %v308
  %v310 = vlaneseq
  %v311 = vshrl.u32 %v310, 7
  %v312 = vsub.s32 6, %v311
  %v313 = vrot.slane %v282, %v312
  %v314 = vlaneseq
  %v315 = vshrl.u32 %v314, 7
  %v316 = vsub.s32 7, %v315
  %v317 = vrot.slane %v282, %v316
  %v318 = vlaneseq
  %v319 = vshrl.u32 %v318, 7
  %v320 = vsub.s32 0, %v319
  %v321 = vrot.slane %v283, %v320
  %v322 = vlaneseq
  %v323 = vshrl.u32 %v322, 7
  %v324 = vsub.s32 1, %v323
  %v325 = vrot.slane %v283, %v324
  %v326 = vlaneseq
  %v327 = vshrl.u32 %v326, 7
  %v328 = vsub.s32 2, %v327
  %v329 = vrot.slane %v283, %v328
  %v330 = vlaneseq
  %v331 = vshrl.u32 %v330, 7
  %v332 = vsub.s32 3, %v331
  %v333 = vrot.slane %v283, %v332
  %v334 = vlaneseq
  %v335 = vshrl.u32 %v334, 7
  %v336 = vsub.s32 4, %v335
  %v337 = vrot.slane %v283, %v336
  %v338 = vlaneseq
  %v339 = vshrl.u32 %v338, 7
  %v340 = vsub.s32 5, %v339
  %v341 = vrot.slane %v283, %v340
  %v342 = vlaneseq
  %v343 = vshrl.u32 %v342, 7
  %v344 = vsub.s32 6, %v343
  %v345 = vrot.slane %v283, %v344
  %v346 = vlaneseq
  %v347 = vshrl.u32 %v346, 7
  %v348 = vsub.s32 7, %v347
  %v349 = vrot.slane %v283, %v348
  %v622 = vunpack.c.l.b16 %v26
  %v623 = vunpack.c.h.b16 %v26
  %v624 = vunpack.c.l.b16 %v27
  %v625 = vunpack.c.h.b16 %v27
  %v626 = vunpack.c.l.b16 %v28
  %v627 = vunpack.c.h.b16 %v28
  %v628 = vunpack.c.l.b16 %v29
  %v629 = vunpack.c.h.b16 %v29
  %v630 = vunpack.c.l.b16 %v30
  %v631 = vunpack.c.h.b16 %v30
  %v632 = vunpack.c.l.b16 %v31
  %v633 = vunpack.c.h.b16 %v31
  %v634 = vunpack.c.l.b16 %v32
  %v635 = vunpack.c.h.b16 %v32
  %v636 = vunpack.c.l.b16 %v33
  %v637 = vunpack.c.h.b16 %v33
  %v638 = vunpack.c.l.b16 %v34
  %v639 = vunpack.c.h.b16 %v34
  %v640 = vunpack.c.l.b16 %v35
  %v641 = vunpack.c.h.b16 %v35
  %v642 = vunpack.c.l.b16 %v36
  %v643 = vunpack.c.h.b16 %v36
  %v644 = vunpack.c.l.b16 %v37
  %v645 = vunpack.c.h.b16 %v37
  %v646 = vunpack.c.l.b16 %v38
  %v647 = vunpack.c.h.b16 %v38
  %v648 = vunpack.c.l.b16 %v39
  %v649 = vunpack.c.h.b16 %v39
  %v650 = vunpack.c.l.b16 %v40
  %v651 = vunpack.c.h.b16 %v40
  %v652 = vunpack.c.l.b16 %v41
  %v653 = vunpack.c.h.b16 %v41
  %v654 = vunpack.c.l.b16 %v42
  %v655 = vunpack.c.h.b16 %v42
  %v656 = vunpack.c.l.b16 %v43
  %v657 = vunpack.c.h.b16 %v43
  %v658 = vunpack.c.l.b16 %v44
  %v659 = vunpack.c.h.b16 %v44
  %v660 = vunpack.c.l.b16 %v45
  %v661 = vunpack.c.h.b16 %v45
  %v662 = vunpack.c.l.b16 %v46
  %v663 = vunpack.c.h.b16 %v46
  %v664 = vunpack.c.l.b16 %v47
  %v665 = vunpack.c.h.b16 %v47
  %v666 = vunpack.c.l.b16 %v48
  %v667 = vunpack.c.h.b16 %v48
  %v668 = vunpack.c.l.b16 %v49
  %v669 = vunpack.c.h.b16 %v49
  %v670 = vunpack.c.l.b16 %v50
  %v671 = vunpack.c.h.b16 %v50
  %v672 = vunpack.c.l.b16 %v51
  %v673 = vunpack.c.h.b16 %v51
  %v674 = vunpack.c.l.b16 %v52
  %v675 = vunpack.c.h.b16 %v52
  %v676 = vunpack.c.l.b16 %v53
  %v677 = vunpack.c.h.b16 %v53
  %v678 = vunpack.c.l.b16 %v54
  %v679 = vunpack.c.h.b16 %v54
  %v680 = vunpack.c.l.b16 %v55
  %v681 = vunpack.c.h.b16 %v55
  %v682 = vunpack.c.l.b16 %v56
  %v683 = vunpack.c.h.b16 %v56
  %v684 = vunpack.c.l.b16 %v57
  %v685 = vunpack.c.h.b16 %v57
  %v686 = vunpack.c.l.b16 %v58
  %v687 = vunpack.c.h.b16 %v58
  %v688 = vunpack.c.l.b16 %v59
  %v689 = vunpack.c.h.b16 %v59
  %v690 = vunpack.c.l.b16 %v60
  %v691 = vunpack.c.h.b16 %v60
  %v692 = vunpack.c.l.b16 %v61
  %v693 = vunpack.c.h.b16 %v61
  %v694 = vunpack.c.l.b16 %v62
  %v695 = vunpack.c.h.b16 %v62
  %v696 = vunpack.c.l.b16 %v63
  %v697 = vunpack.c.h.b16 %v63
  %v698 = vunpack.c.l.b16 %v64
  %v699 = vunpack.c.h.b16 %v64
  %v700 = vunpack.c.l.b16 %v65
  %v701 = vunpack.c.h.b16 %v65
  %v702 = vunpack.c.l.b16 %v66
  %v703 = vunpack.c.h.b16 %v66
  %v704 = vunpack.c.l.b16 %v67
  %v705 = vunpack.c.h.b16 %v67
  %v706 = vunpack.c.l.b16 %v68
  %v707 = vunpack.c.h.b16 %v68
  %v708 = vunpack.c.l.b16 %v69
  %v709 = vunpack.c.h.b16 %v69
  %v710 = vunpack.c.l.b16 %v70
  %v711 = vunpack.c.h.b16 %v70
  %v712 = vunpack.c.l.b16 %v71
  %v713 = vunpack.c.h.b16 %v71
  %v714 = vunpack.c.l.b16 %v72
  %v715 = vunpack.c.h.b16 %v72
  %v716 = vunpack.c.l.b16 %v73
  %v717 = vunpack.c.h.b16 %v73
  %v718 = vunpack.c.l.b16 %v74
  %v719 = vunpack.c.h.b16 %v74
  %v720 = vunpack.c.l.b16 %v75
  %v721 = vunpack.c.h.b16 %v75
  %v722 = vunpack.c.l.b16 %v76
  %v723 = vunpack.c.h.b16 %v76
  %v724 = vunpack.c.l.b16 %v77
  %v725 = vunpack.c.h.b16 %v77
  %v726 = vunpack.c.l.b16 %v78
  %v727 = vunpack.c.h.b16 %v78
  %v728 = vunpack.c.l.b16 %v79
  %v729 = vunpack.c.h.b16 %v79
  %v730 = vunpack.c.l.b16 %v80
  %v731 = vunpack.c.h.b16 %v80
  %v732 = vunpack.c.l.b16 %v81
  %v733 = vunpack.c.h.b16 %v81
  %v734 = vunpack.c.l.b16 %v82
  %v735 = vunpack.c.h.b16 %v82
  %v736 = vunpack.c.l.b16 %v83
  %v737 = vunpack.c.h.b16 %v83
  %v738 = vunpack.c.l.b16 %v84
  %v739 = vunpack.c.h.b16 %v84
  %v740 = vunpack.c.l.b16 %v85
  %v741 = vunpack.c.h.b16 %v85
  %v742 = vunpack.c.l.b16 %v86
  %v743 = vunpack.c.h.b16 %v86
  %v744 = vunpack.c.l.b16 %v87
  %v745 = vunpack.c.h.b16 %v87
  %v746 = vunpack.c.l.b16 %v88
  %v747 = vunpack.c.h.b16 %v88
  %v748 = vunpack.c.l.b16 %v89
  %v749 = vunpack.c.h.b16 %v89
  %v750 = vunpack.c.l.b16 %v90
  %v751 = vunpack.c.h.b16 %v90
  %v752 = vunpack.c.l.b16 %v91
  %v753 = vunpack.c.h.b16 %v91
  %v754 = vunpack.c.l.b16 %v92
  %v755 = vunpack.c.h.b16 %v92
  %v756 = vunpack.c.l.b16 %v93
  %v757 = vunpack.c.h.b16 %v93
  %v758 = vunpack.c.l.b16 %v94
  %v759 = vunpack.c.h.b16 %v94
  %v760 = vunpack.c.l.b16 %v95
  %v761 = vunpack.c.h.b16 %v95
  %v762 = vunpack.c.l.b16 %v96
  %v763 = vunpack.c.h.b16 %v96
  %v764 = vunpack.c.l.b16 %v97
  %v765 = vunpack.c.h.b16 %v97
  %v766 = vunpack.c.l.b16 %v98
  %v767 = vunpack.c.h.b16 %v98
  %v768 = vunpack.c.l.b16 %v99
  %v769 = vunpack.c.h.b16 %v99
  %v770 = vunpack.c.l.b16 %v100
  %v771 = vunpack.c.h.b16 %v100
  %v772 = vunpack.c.l.b16 %v101
  %v773 = vunpack.c.h.b16 %v101
  %v774 = vunpack.c.l.b16 %v102
  %v775 = vunpack.c.h.b16 %v102
  %v776 = vunpack.c.l.b16 %v103
  %v777 = vunpack.c.h.b16 %v103
  %v778 = vunpack.c.l.b16 %v104
  %v779 = vunpack.c.h.b16 %v104
  %v780 = vunpack.c.l.b16 %v105
  %v781 = vunpack.c.h.b16 %v105
  %v782 = vunpack.c.l.b16 %v106
  %v783 = vunpack.c.h.b16 %v106
  %v784 = vunpack.c.l.b16 %v107
  %v785 = vunpack.c.h.b16 %v107
  %v786 = vunpack.c.l.b16 %v108
  %v787 = vunpack.c.h.b16 %v108
  %v788 = vunpack.c.l.b16 %v109
  %v789 = vunpack.c.h.b16 %v109
  %v790 = vunpack.c.l.b16 %v110
  %v791 = vunpack.c.h.b16 %v110
  %v792 = vunpack.c.l.b16 %v111
  %v793 = vunpack.c.h.b16 %v111
  %v794 = vunpack.c.l.b16 %v112
  %v795 = vunpack.c.h.b16 %v112
  %v796 = vunpack.c.l.b16 %v113
  %v797 = vunpack.c.h.b16 %v113
  %v798 = vunpack.c.l.b16 %v114
  %v799 = vunpack.c.h.b16 %v114
  %v800 = vunpack.c.l.b16 %v115
  %v801 = vunpack.c.h.b16 %v115
  %v802 = vunpack.c.l.b16 %v116
  %v803 = vunpack.c.h.b16 %v116
  %v804 = vunpack.c.l.b16 %v117
  %v805 = vunpack.c.h.b16 %v117
  %v806 = vunpack.c.l.b16 %v118
  %v807 = vunpack.c.h.b16 %v118
  %v808 = vunpack.c.l.b16 %v119
  %v809 = vunpack.c.h.b16 %v119
  %v810 = vunpack.c.l.b16 %v120
  %v811 = vunpack.c.h.b16 %v120
  %v812 = vunpack.c.l.b16 %v121
  %v813 = vunpack.c.h.b16 %v121
  %v814 = vunpack.c.l.b16 %v122
  %v815 = vunpack.c.h.b16 %v122
  %v816 = vunpack.c.l.b16 %v123
  %v817 = vunpack.c.h.b16 %v123
  %v818 = vunpack.c.l.b16 %v124
  %v819 = vunpack.c.h.b16 %v124
  %v820 = vunpack.c.l.b16 %v125
  %v821 = vunpack.c.h.b16 %v125
  %v822 = vunpack.c.l.b16 %v126
  %v823 = vunpack.c.h.b16 %v126
  %v824 = vunpack.c.l.b16 %v127
  %v825 = vunpack.c.h.b16 %v127
  %v826 = vunpack.c.l.b16 %v128
  %v827 = vunpack.c.h.b16 %v128
  %v828 = vunpack.c.l.b16 %v129
  %v829 = vunpack.c.h.b16 %v129
  %v830 = vunpack.c.l.b16 %v130
  %v831 = vunpack.c.h.b16 %v130
  %v832 = vunpack.c.l.b16 %v131
  %v833 = vunpack.c.h.b16 %v131
  %v834 = vunpack.c.l.b16 %v132
  %v835 = vunpack.c.h.b16 %v132
  %v836 = vunpack.c.l.b16 %v133
  %v837 = vunpack.c.h.b16 %v133
  %v838 = vunpack.c.l.b16 %v134
  %v839 = vunpack.c.h.b16 %v134
  %v840 = vunpack.c.l.b16 %v135
  %v841 = vunpack.c.h.b16 %v135
  %v842 = vunpack.c.l.b16 %v136
  %v843 = vunpack.c.h.b16 %v136
  %v844 = vunpack.c.l.b16 %v137
  %v845 = vunpack.c.h.b16 %v137
  %v846 = vunpack.c.l.b16 %v138
  %v847 = vunpack.c.h.b16 %v138
  %v848 = vunpack.c.l.b16 %v139
  %v849 = vunpack.c.h.b16 %v139
  %v850 = vunpack.c.l.b16 %v140
  %v851 = vunpack.c.h.b16 %v140
  %v852 = vunpack.c.l.b16 %v141
  %v853 = vunpack.c.h.b16 %v141
  %v854 = vunpack.c.l.b16 %v142
  %v855 = vunpack.c.h.b16 %v142
  %v856 = vunpack.c.l.b16 %v143
  %v857 = vunpack.c.h.b16 %v143
  %v858 = vunpack.c.l.b16 %v144
  %v859 = vunpack.c.h.b16 %v144
  %v860 = vunpack.c.l.b16 %v145
  %v861 = vunpack.c.h.b16 %v145
  %v862 = vunpack.c.l.b16 %v146
  %v863 = vunpack.c.h.b16 %v146
  %v864 = vunpack.c.l.b16 %v147
  %v865 = vunpack.c.h.b16 %v147
  %v866 = vunpack.c.l.b16 %v148
  %v867 = vunpack.c.h.b16 %v148
  %v868 = vunpack.c.l.b16 %v149
  %v869 = vunpack.c.h.b16 %v149
  %v870 = vunpack.c.l.b16 %v150
  %v871 = vunpack.c.h.b16 %v150
  %v872 = vunpack.c.l.b16 %v151
  %v873 = vunpack.c.h.b16 %v151
  %v874 = vunpack.c.l.b16 %v152
  %v875 = vunpack.c.h.b16 %v152
  %v876 = vunpack.c.l.b16 %v153
  %v877 = vunpack.c.h.b16 %v153
  %v878 = vunpack.c.l.b16 %v154
  %v879 = vunpack.c.h.b16 %v154
  %v880 = vunpack.c.l.b16 %v155
  %v881 = vunpack.c.h.b16 %v155
  %v882 = vunpack.c.l.b16 %v156
  %v883 = vunpack.c.h.b16 %v156
  %v884 = vunpack.c.l.b16 %v157
  %v885 = vunpack.c.h.b16 %v157
  %v886 = vunpack.c.l.b16 %v158
  %v887 = vunpack.c.h.b16 %v158
  %v888 = vunpack.c.l.b16 %v159
  %v889 = vunpack.c.h.b16 %v159
  %v890 = vunpack.c.l.b16 %v160
  %v891 = vunpack.c.h.b16 %v160
  %v892 = vunpack.c.l.b16 %v161
  %v893 = vunpack.c.h.b16 %v161
  %v894 = vunpack.c.l.b16 %v162
  %v895 = vunpack.c.h.b16 %v162
  %v896 = vunpack.c.l.b16 %v163
  %v897 = vunpack.c.h.b16 %v163
  %v898 = vunpack.c.l.b16 %v164
  %v899 = vunpack.c.h.b16 %v164
  %v900 = vunpack.c.l.b16 %v165
  %v901 = vunpack.c.h.b16 %v165
  %v902 = vunpack.c.l.b16 %v166
  %v903 = vunpack.c.h.b16 %v166
  %v904 = vunpack.c.l.b16 %v167
  %v905 = vunpack.c.h.b16 %v167
  %v906 = vunpack.c.l.b16 %v168
  %v907 = vunpack.c.h.b16 %v168
  %v908 = vunpack.c.l.b16 %v169
  %v909 = vunpack.c.h.b16 %v169
  %v910 = vunpack.c.l.b16 %v170
  %v911 = vunpack.c.h.b16 %v170
  %v912 = vunpack.c.l.b16 %v171
  %v913 = vunpack.c.h.b16 %v171
  %v914 = vunpack.c.l.b16 %v172
  %v915 = vunpack.c.h.b16 %v172
  %v916 = vunpack.c.l.b16 %v173
  %v917 = vunpack.c.h.b16 %v173
  %v918 = vunpack.c.l.b16 %v174
  %v919 = vunpack.c.h.b16 %v174
  %v920 = vunpack.c.l.b16 %v175
  %v921 = vunpack.c.h.b16 %v175
  %v922 = vunpack.c.l.b16 %v176
  %v923 = vunpack.c.h.b16 %v176
  %v924 = vunpack.c.l.b16 %v177
  %v925 = vunpack.c.h.b16 %v177
  %v926 = vunpack.c.l.b16 %v178
  %v927 = vunpack.c.h.b16 %v178
  %v928 = vunpack.c.l.b16 %v179
  %v929 = vunpack.c.h.b16 %v179
  %v930 = vunpack.c.l.b16 %v180
  %v931 = vunpack.c.h.b16 %v180
  %v932 = vunpack.c.l.b16 %v181
  %v933 = vunpack.c.h.b16 %v181
  %v934 = vunpack.c.l.b16 %v182
  %v935 = vunpack.c.h.b16 %v182
  %v936 = vunpack.c.l.b16 %v183
  %v937 = vunpack.c.h.b16 %v183
  %v938 = vunpack.c.l.b16 %v184
  %v939 = vunpack.c.h.b16 %v184
  %v940 = vunpack.c.l.b16 %v185
  %v941 = vunpack.c.h.b16 %v185
  %v942 = vunpack.c.l.b16 %v186
  %v943 = vunpack.c.h.b16 %v186
  %v944 = vunpack.c.l.b16 %v187
  %v945 = vunpack.c.h.b16 %v187
  %v946 = vunpack.c.l.b16 %v188
  %v947 = vunpack.c.h.b16 %v188
  %v948 = vunpack.c.l.b16 %v189
  %v949 = vunpack.c.h.b16 %v189
  %v950 = vunpack.c.l.b16 %v190
  %v951 = vunpack.c.h.b16 %v190
  %v952 = vunpack.c.l.b16 %v191
  %v953 = vunpack.c.h.b16 %v191
  %v954 = vunpack.c.l.b16 %v192
  %v955 = vunpack.c.h.b16 %v192
  %v956 = vunpack.c.l.b16 %v193
  %v957 = vunpack.c.h.b16 %v193
  %v958 = vunpack.c.l.b16 %v194
  %v959 = vunpack.c.h.b16 %v194
  %v960 = vunpack.c.l.b16 %v195
  %v961 = vunpack.c.h.b16 %v195
  %v962 = vunpack.c.l.b16 %v196
  %v963 = vunpack.c.h.b16 %v196
  %v964 = vunpack.c.l.b16 %v197
  %v965 = vunpack.c.h.b16 %v197
  %v966 = vunpack.c.l.b16 %v198
  %v967 = vunpack.c.h.b16 %v198
  %v968 = vunpack.c.l.b16 %v199
  %v969 = vunpack.c.h.b16 %v199
  %v970 = vunpack.c.l.b16 %v200
  %v971 = vunpack.c.h.b16 %v200
  %v972 = vunpack.c.l.b16 %v201
  %v973 = vunpack.c.h.b16 %v201
  %v974 = vunpack.c.l.b16 %v202
  %v975 = vunpack.c.h.b16 %v202
  %v976 = vunpack.c.l.b16 %v203
  %v977 = vunpack.c.h.b16 %v203
  %v978 = vunpack.c.l.b16 %v204
  %v979 = vunpack.c.h.b16 %v204
  %v980 = vunpack.c.l.b16 %v205
  %v981 = vunpack.c.h.b16 %v205
  %v982 = vunpack.c.l.b16 %v206
  %v983 = vunpack.c.h.b16 %v206
  %v984 = vunpack.c.l.b16 %v207
  %v985 = vunpack.c.h.b16 %v207
  %v986 = vunpack.c.l.b16 %v208
  %v987 = vunpack.c.h.b16 %v208
  %v988 = vunpack.c.l.b16 %v209
  %v989 = vunpack.c.h.b16 %v209
  %v990 = vunpack.c.l.b16 %v210
  %v991 = vunpack.c.h.b16 %v210
  %v992 = vunpack.c.l.b16 %v211
  %v993 = vunpack.c.h.b16 %v211
  %v994 = vunpack.c.l.b16 %v212
  %v995 = vunpack.c.h.b16 %v212
  %v996 = vunpack.c.l.b16 %v213
  %v997 = vunpack.c.h.b16 %v213
  %v998 = vunpack.c.l.b16 %v214
  %v999 = vunpack.c.h.b16 %v214
  %v1000 = vunpack.c.l.b16 %v215
  %v1001 = vunpack.c.h.b16 %v215
  %v1002 = vunpack.c.l.b16 %v216
  %v1003 = vunpack.c.h.b16 %v216
  %v1004 = vunpack.c.l.b16 %v217
  %v1005 = vunpack.c.h.b16 %v217
  %v1006 = vunpack.c.l.b16 %v218
  %v1007 = vunpack.c.h.b16 %v218
  %v1008 = vunpack.c.l.b16 %v219
  %v1009 = vunpack.c.h.b16 %v219
  %v1010 = vunpack.c.l.b16 %v220
  %v1011 = vunpack.c.h.b16 %v220
  %v1012 = vunpack.c.l.b16 %v221
  %v1013 = vunpack.c.h.b16 %v221
  %v1014 = vunpack.c.l.b16 %v222
  %v1015 = vunpack.c.h.b16 %v222
  %v1016 = vunpack.c.l.b16 %v223
  %v1017 = vunpack.c.h.b16 %v223
  %v1018 = vunpack.c.l.b16 %v224
  %v1019 = vunpack.c.h.b16 %v224
  %v1020 = vunpack.c.l.b16 %v225
  %v1021 = vunpack.c.h.b16 %v225
  %v1022 = vunpack.c.l.b16 %v226
  %v1023 = vunpack.c.h.b16 %v226
  %v1024 = vunpack.c.l.b16 %v227
  %v1025 = vunpack.c.h.b16 %v227
  %v1026 = vunpack.c.l.b16 %v228
  %v1027 = vunpack.c.h.b16 %v228
  %v1028 = vunpack.c.l.b16 %v229
  %v1029 = vunpack.c.h.b16 %v229
  %v1030 = vunpack.c.l.b16 %v230
  %v1031 = vunpack.c.h.b16 %v230
  %v1032 = vunpack.c.l.b16 %v231
  %v1033 = vunpack.c.h.b16 %v231
  %v1034 = vunpack.c.l.b16 %v232
  %v1035 = vunpack.c.h.b16 %v232
  %v1036 = vunpack.c.l.b16 %v233
  %v1037 = vunpack.c.h.b16 %v233
  %v1038 = vunpack.c.l.b16 %v234
  %v1039 = vunpack.c.h.b16 %v234
  %v1040 = vunpack.c.l.b16 %v235
  %v1041 = vunpack.c.h.b16 %v235
  %v1042 = vunpack.c.l.b16 %v236
  %v1043 = vunpack.c.h.b16 %v236
  %v1044 = vunpack.c.l.b16 %v237
  %v1045 = vunpack.c.h.b16 %v237
  %v1046 = vunpack.c.l.b16 %v238
  %v1047 = vunpack.c.h.b16 %v238
  %v1048 = vunpack.c.l.b16 %v239
  %v1049 = vunpack.c.h.b16 %v239
  %v1050 = vunpack.c.l.b16 %v240
  %v1051 = vunpack.c.h.b16 %v240
  %v1052 = vunpack.c.l.b16 %v241
  %v1053 = vunpack.c.h.b16 %v241
  %v1054 = vunpack.c.l.b16 %v242
  %v1055 = vunpack.c.h.b16 %v242
  %v1056 = vunpack.c.l.b16 %v243
  %v1057 = vunpack.c.h.b16 %v243
  %v1058 = vunpack.c.l.b16 %v244
  %v1059 = vunpack.c.h.b16 %v244
  %v1060 = vunpack.c.l.b16 %v245
  %v1061 = vunpack.c.h.b16 %v245
  %v1062 = vunpack.c.l.b16 %v246
  %v1063 = vunpack.c.h.b16 %v246
  %v1064 = vunpack.c.l.b16 %v247
  %v1065 = vunpack.c.h.b16 %v247
  %v1066 = vunpack.c.l.b16 %v248
  %v1067 = vunpack.c.h.b16 %v248
  %v1068 = vunpack.c.l.b16 %v249
  %v1069 = vunpack.c.h.b16 %v249
  %v1070 = vunpack.c.l.b16 %v250
  %v1071 = vunpack.c.h.b16 %v250
  %v1072 = vunpack.c.l.b16 %v251
  %v1073 = vunpack.c.h.b16 %v251
  %v1074 = vunpack.c.l.b16 %v252
  %v1075 = vunpack.c.h.b16 %v252
  %v1076 = vunpack.c.l.b16 %v253
  %v1077 = vunpack.c.h.b16 %v253
  %v1078 = vunpack.c.l.b16 %v254
  %v1079 = vunpack.c.h.b16 %v254
  %v1080 = vunpack.c.l.b16 %v255
  %v1081 = vunpack.c.h.b16 %v255
  %v1082 = vunpack.c.l.b16 %v256
  %v1083 = vunpack.c.h.b16 %v256
  %v1084 = vunpack.c.l.b16 %v257
  %v1085 = vunpack.c.h.b16 %v257
  %v1086 = vunpack.c.l.b16 %v258
  %v1087 = vunpack.c.h.b16 %v258
  %v1088 = vunpack.c.l.b16 %v259
  %v1089 = vunpack.c.h.b16 %v259
  %v1090 = vunpack.c.l.b16 %v260
  %v1091 = vunpack.c.h.b16 %v260
  %v1092 = vunpack.c.l.b16 %v261
  %v1093 = vunpack.c.h.b16 %v261
  %v1094 = vunpack.c.l.b16 %v262
  %v1095 = vunpack.c.h.b16 %v262
  %v1096 = vunpack.c.l.b16 %v263
  %v1097 = vunpack.c.h.b16 %v263
  %v1098 = vunpack.c.l.b16 %v264
  %v1099 = vunpack.c.h.b16 %v264
  %v1100 = vunpack.c.l.b16 %v265
  %v1101 = vunpack.c.h.b16 %v265
  %v1102 = vunpack.c.l.b16 %v266
  %v1103 = vunpack.c.h.b16 %v266
  %v1104 = vunpack.c.l.b16 %v267
  %v1105 = vunpack.c.h.b16 %v267
  %v1106 = vunpack.c.l.b16 %v268
  %v1107 = vunpack.c.h.b16 %v268
  %v1108 = vunpack.c.l.b16 %v269
  %v1109 = vunpack.c.h.b16 %v269
  %v1110 = vunpack.c.l.b16 %v270
  %v1111 = vunpack.c.h.b16 %v270
  %v1112 = vunpack.c.l.b16 %v271
  %v1113 = vunpack.c.h.b16 %v271
  %v1114 = vunpack.c.l.b16 %v272
  %v1115 = vunpack.c.h.b16 %v272
  %v1116 = vunpack.c.l.b16 %v273
  %v1117 = vunpack.c.h.b16 %v273
  %v1118 = vunpack.c.l.b16 %v274
  %v1119 = vunpack.c.h.b16 %v274
  %v1120 = vunpack.c.l.b16 %v275
  %v1121 = vunpack.c.h.b16 %v275
  %v1122 = vunpack.c.l.b16 %v276
  %v1123 = vunpack.c.h.b16 %v276
  %v1124 = vunpack.c.l.b16 %v277
  %v1125 = vunpack.c.h.b16 %v277
  %v1126 = vunpack.c.l.b16 %v278
  %v1127 = vunpack.c.h.b16 %v278
  %v1128 = vunpack.c.l.b16 %v279
  %v1129 = vunpack.c.h.b16 %v279
  %v1130 = vunpack.c.l.b16 %v280
  %v1131 = vunpack.c.h.b16 %v280
  %v1132 = vunpack.c.l.b16 %v281
  %v1133 = vunpack.c.h.b16 %v281
  %v1134 = vpack.c.b16 %v638, %v622
  %v1135 = vpack.c.b16 %v639, %v623
  %v1136 = vpack.c.b16 %v640, %v624
  %v1137 = vpack.c.b16 %v641, %v625
  %v1138 = vpack.c.b16 %v642, %v626
  %v1139 = vpack.c.b16 %v643, %v627
  %v1140 = vpack.c.b16 %v644, %v628
  %v1141 = vpack.c.b16 %v645, %v629
  %v1142 = vpack.c.b16 %v646, %v630
  %v1143 = vpack.c.b16 %v647, %v631
  %v1144 = vpack.c.b16 %v648, %v632
  %v1145 = vpack.c.b16 %v649, %v633
  %v1146 = vpack.c.b16 %v650, %v634
  %v1147 = vpack.c.b16 %v651, %v635
  %v1148 = vpack.c.b16 %v652, %v636
  %v1149 = vpack.c.b16 %v653, %v637
  %v1150 = vpack.c.b16 %v670, %v654
  %v1151 = vpack.c.b16 %v671, %v655
  %v1152 = vpack.c.b16 %v672, %v656
  %v1153 = vpack.c.b16 %v673, %v657
  %v1154 = vpack.c.b16 %v674, %v658
  %v1155 = vpack.c.b16 %v675, %v659
  %v1156 = vpack.c.b16 %v676, %v660
  %v1157 = vpack.c.b16 %v677, %v661
  %v1158 = vpack.c.b16 %v678, %v662
  %v1159 = vpack.c.b16 %v679, %v663
  %v1160 = vpack.c.b16 %v680, %v664
  %v1161 = vpack.c.b16 %v681, %v665
  %v1162 = vpack.c.b16 %v682, %v666
  %v1163 = vpack.c.b16 %v683, %v667
  %v1164 = vpack.c.b16 %v684, %v668
  %v1165 = vpack.c.b16 %v685, %v669
  %v1166 = vpack.c.b16 %v702, %v686
  %v1167 = vpack.c.b16 %v703, %v687
  %v1168 = vpack.c.b16 %v704, %v688
  %v1169 = vpack.c.b16 %v705, %v689
  %v1170 = vpack.c.b16 %v706, %v690
  %v1171 = vpack.c.b16 %v707, %v691
  %v1172 = vpack.c.b16 %v708, %v692
  %v1173 = vpack.c.b16 %v709, %v693
  %v1174 = vpack.c.b16 %v710, %v694
  %v1175 = vpack.c.b16 %v711, %v695
  %v1176 = vpack.c.b16 %v712, %v696
  %v1177 = vpack.c.b16 %v713, %v697
  %v1178 = vpack.c.b16 %v714, %v698
  %v1179 = vpack.c.b16 %v715, %v699
  %v1180 = vpack.c.b16 %v716, %v700
  %v1181 = vpack.c.b16 %v717, %v701
  %v1182 = vpack.c.b16 %v734, %v718
  %v1183 = vpack.c.b16 %v735, %v719
  %v1184 = vpack.c.b16 %v736, %v720
  %v1185 = vpack.c.b16 %v737, %v721
  %v1186 = vpack.c.b16 %v738, %v722
  %v1187 = vpack.c.b16 %v739, %v723
  %v1188 = vpack.c.b16 %v740, %v724
  %v1189 = vpack.c.b16 %v741, %v725
  %v1190 = vpack.c.b16 %v742, %v726
  %v1191 = vpack.c.b16 %v743, %v727
  %v1192 = vpack.c.b16 %v744, %v728
  %v1193 = vpack.c.b16 %v745, %v729
  %v1194 = vpack.c.b16 %v746, %v730
  %v1195 = vpack.c.b16 %v747, %v731
  %v1196 = vpack.c.b16 %v748, %v732
  %v1197 = vpack.c.b16 %v749, %v733
  %v1198 = vpack.c.b16 %v766, %v750
  %v1199 = vpack.c.b16 %v767, %v751
  %v1200 = vpack.c.b16 %v768, %v752
  %v1201 = vpack.c.b16 %v769, %v753
  %v1202 = vpack.c.b16 %v770, %v754
  %v1203 = vpack.c.b16 %v771, %v755
  %v1204 = vpack.c.b16 %v772, %v756
  %v1205 = vpack.c.b16 %v773, %v757
  %v1206 = vpack.c.b16 %v774, %v758
  %v1207 = vpack.c.b16 %v775, %v759
  %v1208 = vpack.c.b16 %v776, %v760
  %v1209 = vpack.c.b16 %v777, %v761
  %v1210 = vpack.c.b16 %v778, %v762
  %v1211 = vpack.c.b16 %v779, %v763
  %v1212 = vpack.c.b16 %v780, %v764
  %v1213 = vpack.c.b16 %v781, %v765
  %v1214 = vpack.c.b16 %v798, %v782
  %v1215 = vpack.c.b16 %v799, %v783
  %v1216 = vpack.c.b16 %v800, %v784
  %v1217 = vpack.c.b16 %v801, %v785
  %v1218 = vpack.c.b16 %v802, %v786
  %v1219 = vpack.c.b16 %v803, %v787
  %v1220 = vpack.c.b16 %v804, %v788
  %v1221 = vpack.c.b16 %v805, %v789
  %v1222 = vpack.c.b16 %v806, %v790
  %v1223 = vpack.c.b16 %v807, %v791
  %v1224 = vpack.c.b16 %v808, %v792
  %v1225 = vpack.c.b16 %v809, %v793
  %v1226 = vpack.c.b16 %v810, %v794
  %v1227 = vpack.c.b16 %v811, %v795
  %v1228 = vpack.c.b16 %v812, %v796
  %v1229 = vpack.c.b16 %v813, %v797
  %v1230 = vpack.c.b16 %v830, %v814
  %v1231 = vpack.c.b16 %v831, %v815
  %v1232 = vpack.c.b16 %v832, %v816
  %v1233 = vpack.c.b16 %v833, %v817
  %v1234 = vpack.c.b16 %v834, %v818
  %v1235 = vpack.c.b16 %v835, %v819
  %v1236 = vpack.c.b16 %v836, %v820
  %v1237 = vpack.c.b16 %v837, %v821
  %v1238 = vpack.c.b16 %v838, %v822
  %v1239 = vpack.c.b16 %v839, %v823
  %v1240 = vpack.c.b16 %v840, %v824
  %v1241 = vpack.c.b16 %v841, %v825
  %v1242 = vpack.c.b16 %v842, %v826
  %v1243 = vpack.c.b16 %v843, %v827
  %v1244 = vpack.c.b16 %v844, %v828
  %v1245 = vpack.c.b16 %v845, %v829
  %v1246 = vpack.c.b16 %v862, %v846
  %v1247 = vpack.c.b16 %v863, %v847
  %v1248 = vpack.c.b16 %v864, %v848
  %v1249 = vpack.c.b16 %v865, %v849
  %v1250 = vpack.c.b16 %v866, %v850
  %v1251 = vpack.c.b16 %v867, %v851
  %v1252 = vpack.c.b16 %v868, %v852
  %v1253 = vpack.c.b16 %v869, %v853
  %v1254 = vpack.c.b16 %v870, %v854
  %v1255 = vpack.c.b16 %v871, %v855
  %v1256 = vpack.c.b16 %v872, %v856
  %v1257 = vpack.c.b16 %v873, %v857
  %v1258 = vpack.c.b16 %v874, %v858
  %v1259 = vpack.c.b16 %v875, %v859
  %v1260 = vpack.c.b16 %v876, %v860
  %v1261 = vpack.c.b16 %v877, %v861
  %v1262 = vpack.c.b16 %v894, %v878
  %v1263 = vpack.c.b16 %v895, %v879
  %v1264 = vpack.c.b16 %v896, %v880
  %v1265 = vpack.c.b16 %v897, %v881
  %v1266 = vpack.c.b16 %v898, %v882
  %v1267 = vpack.c.b16 %v899, %v883
  %v1268 = vpack.c.b16 %v900, %v884
  %v1269 = vpack.c.b16 %v901, %v885
  %v1270 = vpack.c.b16 %v902, %v886
  %v1271 = vpack.c.b16 %v903, %v887
  %v1272 = vpack.c.b16 %v904, %v888
  %v1273 = vpack.c.b16 %v905, %v889
  %v1274 = vpack.c.b16 %v906, %v890
  %v1275 = vpack.c.b16 %v907, %v891
  %v1276 = vpack.c.b16 %v908, %v892
  %v1277 = vpack.c.b16 %v909, %v893
  %v1278 = vpack.c.b16 %v926, %v910
  %v1279 = vpack.c.b16 %v927, %v911
  %v1280 = vpack.c.b16 %v928, %v912
  %v1281 = vpack.c.b16 %v929, %v913
  %v1282 = vpack.c.b16 %v930, %v914
  %v1283 = vpack.c.b16 %v931, %v915
  %v1284 = vpack.c.b16 %v932, %v916
  %v1285 = vpack.c.b16 %v933, %v917
  %v1286 = vpack.c.b16 %v934, %v918
  %v1287 = vpack.c.b16 %v935, %v919
  %v1288 = vpack.c.b16 %v936, %v920
  %v1289 = vpack.c.b16 %v937, %v921
  %v1290 = vpack.c.b16 %v938, %v922
  %v1291 = vpack.c.b16 %v939, %v923
  %v1292 = vpack.c.b16 %v940, %v924
  %v1293 = vpack.c.b16 %v941, %v925
  %v1294 = vpack.c.b16 %v958, %v942
  %v1295 = vpack.c.b16 %v959, %v943
  %v1296 = vpack.c.b16 %v960, %v944
  %v1297 = vpack.c.b16 %v961, %v945
  %v1298 = vpack.c.b16 %v962, %v946
  %v1299 = vpack.c.b16 %v963, %v947
  %v1300 = vpack.c.b16 %v964, %v948
  %v1301 = vpack.c.b16 %v965, %v949
  %v1302 = vpack.c.b16 %v966, %v950
  %v1303 = vpack.c.b16 %v967, %v951
  %v1304 = vpack.c.b16 %v968, %v952
  %v1305 = vpack.c.b16 %v969, %v953
  %v1306 = vpack.c.b16 %v970, %v954
  %v1307 = vpack.c.b16 %v971, %v955
  %v1308 = vpack.c.b16 %v972, %v956
  %v1309 = vpack.c.b16 %v973, %v957
  %v1310 = vpack.c.b16 %v990, %v974
  %v1311 = vpack.c.b16 %v991, %v975
  %v1312 = vpack.c.b16 %v992, %v976
  %v1313 = vpack.c.b16 %v993, %v977
  %v1314 = vpack.c.b16 %v994, %v978
  %v1315 = vpack.c.b16 %v995, %v979
  %v1316 = vpack.c.b16 %v996, %v980
  %v1317 = vpack.c.b16 %v997, %v981
  %v1318 = vpack.c.b16 %v998, %v982
  %v1319 = vpack.c.b16 %v999, %v983
  %v1320 = vpack.c.b16 %v1000, %v984
  %v1321 = vpack.c.b16 %v1001, %v985
  %v1322 = vpack.c.b16 %v1002, %v986
  %v1323 = vpack.c.b16 %v1003, %v987
  %v1324 = vpack.c.b16 %v1004, %v988
  %v1325 = vpack.c.b16 %v1005, %v989
  %v1326 = vpack.c.b16 %v1022, %v1006
  %v1327 = vpack.c.b16 %v1023, %v1007
  %v1328 = vpack.c.b16 %v1024, %v1008
  %v1329 = vpack.c.b16 %v1025, %v1009
  %v1330 = vpack.c.b16 %v1026, %v1010
  %v1331 = vpack.c.b16 %v1027, %v1011
  %v1332 = vpack.c.b16 %v1028, %v1012
  %v1333 = vpack.c.b16 %v1029, %v1013
  %v1334 = vpack.c.b16 %v1030, %v1014
  %v1335 = vpack.c.b16 %v1031, %v1015
  %v1336 = vpack.c.b16 %v1032, %v1016
  %v1337 = vpack.c.b16 %v1033, %v1017
  %v1338 = vpack.c.b16 %v1034, %v1018
  %v1339 = vpack.c.b16 %v1035, %v1019
  %v1340 = vpack.c.b16 %v1036, %v1020
  %v1341 = vpack.c.b16 %v1037, %v1021
  %v1342 = vpack.c.b16 %v1054, %v1038
  %v1343 = vpack.c.b16 %v1055, %v1039
  %v1344 = vpack.c.b16 %v1056, %v1040
  %v1345 = vpack.c.b16 %v1057, %v1041
  %v1346 = vpack.c.b16 %v1058, %v1042
  %v1347 = vpack.c.b16 %v1059, %v1043
  %v1348 = vpack.c.b16 %v1060, %v1044
  %v1349 = vpack.c.b16 %v1061, %v1045
  %v1350 = vpack.c.b16 %v1062, %v1046
  %v1351 = vpack.c.b16 %v1063, %v1047
  %v1352 = vpack.c.b16 %v1064, %v1048
  %v1353 = vpack.c.b16 %v1065, %v1049
  %v1354 = vpack.c.b16 %v1066, %v1050
  %v1355 = vpack.c.b16 %v1067, %v1051
  %v1356 = vpack.c.b16 %v1068, %v1052
  %v1357 = vpack.c.b16 %v1069, %v1053
  %v1358 = vpack.c.b16 %v1086, %v1070
  %v1359 = vpack.c.b16 %v1087, %v1071
  %v1360 = vpack.c.b16 %v1088, %v1072
  %v1361 = vpack.c.b16 %v1089, %v1073
  %v1362 = vpack.c.b16 %v1090, %v1074
  %v1363 = vpack.c.b16 %v1091, %v1075
  %v1364 = vpack.c.b16 %v1092, %v1076
  %v1365 = vpack.c.b16 %v1093, %v1077
  %v1366 = vpack.c.b16 %v1094, %v1078
  %v1367 = vpack.c.b16 %v1095, %v1079
  %v1368 = vpack.c.b16 %v1096, %v1080
  %v1369 = vpack.c.b16 %v1097, %v1081
  %v1370 = vpack.c.b16 %v1098, %v1082
  %v1371 = vpack.c.b16 %v1099, %v1083
  %v1372 = vpack.c.b16 %v1100, %v1084
  %v1373 = vpack.c.b16 %v1101, %v1085
  %v1374 = vpack.c.b16 %v1118, %v1102
  %v1375 = vpack.c.b16 %v1119, %v1103
  %v1376 = vpack.c.b16 %v1120, %v1104
  %v1377 = vpack.c.b16 %v1121, %v1105
  %v1378 = vpack.c.b16 %v1122, %v1106
  %v1379 = vpack.c.b16 %v1123, %v1107
  %v1380 = vpack.c.b16 %v1124, %v1108
  %v1381 = vpack.c.b16 %v1125, %v1109
  %v1382 = vpack.c.b16 %v1126, %v1110
  %v1383 = vpack.c.b16 %v1127, %v1111
  %v1384 = vpack.c.b16 %v1128, %v1112
  %v1385 = vpack.c.b16 %v1129, %v1113
  %v1386 = vpack.c.b16 %v1130, %v1114
  %v1387 = vpack.c.b16 %v1131, %v1115
  %v1388 = vpack.c.b16 %v1132, %v1116
  %v1389 = vpack.c.b16 %v1133, %v1117
  %1646 = vmatprep.subr.bf16.mxu0 %v1135
  %1647 = vmatpush1.bf16.msra.mxu0 %v1134
  %1648 = vmatprep.subr.bf16.mxu0 %v1151
  %1649 = vmatpush1.bf16.msra.mxu0 %v1150
  %1650 = vmatprep.subr.bf16.mxu0 %v1167
  %1651 = vmatpush1.bf16.msra.mxu0 %v1166
  %1652 = vmatprep.subr.bf16.mxu0 %v1183
  %1653 = vmatpush1.bf16.msra.mxu0 %v1182
  %1654 = vmatprep.subr.bf16.mxu0 %v1199
  %1655 = vmatpush1.bf16.msra.mxu0 %v1198
  %1656 = vmatprep.subr.bf16.mxu0 %v1215
  %1657 = vmatpush1.bf16.msra.mxu0 %v1214
  %1658 = vmatprep.subr.bf16.mxu0 %v1231
  %1659 = vmatpush1.bf16.msra.mxu0 %v1230
  %1660 = vmatprep.subr.bf16.mxu0 %v1247
  %1661 = vmatpush1.bf16.msra.mxu0 %v1246
  %1662 = vmatprep.subr.bf16.mxu0 %v1263
  %1663 = vmatpush1.bf16.msra.mxu0 %v1262
  %1664 = vmatprep.subr.bf16.mxu0 %v1279
  %1665 = vmatpush1.bf16.msra.mxu0 %v1278
  %1666 = vmatprep.subr.bf16.mxu0 %v1295
  %1667 = vmatpush1.bf16.msra.mxu0 %v1294
  %1668 = vmatprep.subr.bf16.mxu0 %v1311
  %1669 = vmatpush1.bf16.msra.mxu0 %v1310
  %1670 = vmatprep.subr.bf16.mxu0 %v1327
  %1671 = vmatpush1.bf16.msra.mxu0 %v1326
  %1672 = vmatprep.subr.bf16.mxu0 %v1343
  %1673 = vmatpush1.bf16.msra.mxu0 %v1342
  %1674 = vmatprep.subr.bf16.mxu0 %v1359
  %1675 = vmatpush1.bf16.msra.mxu0 %v1358
  %1676 = vmatprep.subr.bf16.mxu0 %v1375
  %1677 = vmatpush1.bf16.msra.mxu0 %v1374
  %1678 = vmatprep.mubr.bf16.mxu0 %v23
  %1679 = vmatmul.mubr.bf16.gmra.mrb[0].mxu0 %v22
  %v1680 = vpop.f32.mrb[0].mxu0
  %v1681 = vadd.f32 %v289, %v1680
  %v1682 = vpop.f32.mrb[0].mxu0
  %v1683 = vadd.f32 %v293, %v1682
  %v1684 = vpop.f32.mrb[0].mxu0
  %v1685 = vadd.f32 %v289, %v1684
  %v1686 = vpop.f32.mrb[0].mxu0
  %v1687 = vadd.f32 %v293, %v1686
  %1688 = vmatprep.mubr.bf16.mxu0 %v25
  %1689 = vmatmul.mubr.bf16.gmra.mrb[0].mxu0 %v24
  %v1690 = vpop.f32.mrb[0].mxu0
  %v1691 = vadd.f32 %v289, %v1690
  %v1692 = vpop.f32.mrb[0].mxu0
  %v1693 = vadd.f32 %v293, %v1692
  %v1694 = vpop.f32.mrb[0].mxu0
  %v1695 = vadd.f32 %v289, %v1694
  %v1696 = vpop.f32.mrb[0].mxu0
  %v1697 = vadd.f32 %v293, %v1696
  %1698 = vdwg.mxu0
  %1699 = vmatprep.subr.bf16.mxu0 %v1137
  %1700 = vmatpush1.bf16.msra.mxu0 %v1136
  %1701 = vmatprep.subr.bf16.mxu0 %v1153
  %1702 = vmatpush1.bf16.msra.mxu0 %v1152
  %1703 = vmatprep.subr.bf16.mxu0 %v1169
  %1704 = vmatpush1.bf16.msra.mxu0 %v1168
  %1705 = vmatprep.subr.bf16.mxu0 %v1185
  %1706 = vmatpush1.bf16.msra.mxu0 %v1184
  %1707 = vmatprep.subr.bf16.mxu0 %v1201
  %1708 = vmatpush1.bf16.msra.mxu0 %v1200
  %1709 = vmatprep.subr.bf16.mxu0 %v1217
  %1710 = vmatpush1.bf16.msra.mxu0 %v1216
  %1711 = vmatprep.subr.bf16.mxu0 %v1233
  %1712 = vmatpush1.bf16.msra.mxu0 %v1232
  %1713 = vmatprep.subr.bf16.mxu0 %v1249
  %1714 = vmatpush1.bf16.msra.mxu0 %v1248
  %1715 = vmatprep.subr.bf16.mxu0 %v1265
  %1716 = vmatpush1.bf16.msra.mxu0 %v1264
  %1717 = vmatprep.subr.bf16.mxu0 %v1281
  %1718 = vmatpush1.bf16.msra.mxu0 %v1280
  %1719 = vmatprep.subr.bf16.mxu0 %v1297
  %1720 = vmatpush1.bf16.msra.mxu0 %v1296
  %1721 = vmatprep.subr.bf16.mxu0 %v1313
  %1722 = vmatpush1.bf16.msra.mxu0 %v1312
  %1723 = vmatprep.subr.bf16.mxu0 %v1329
  %1724 = vmatpush1.bf16.msra.mxu0 %v1328
  %1725 = vmatprep.subr.bf16.mxu0 %v1345
  %1726 = vmatpush1.bf16.msra.mxu0 %v1344
  %1727 = vmatprep.subr.bf16.mxu0 %v1361
  %1728 = vmatpush1.bf16.msra.mxu0 %v1360
  %1729 = vmatprep.subr.bf16.mxu0 %v1377
  %1730 = vmatpush1.bf16.msra.mxu0 %v1376
  %1731 = vmatprep.mubr.bf16.mxu0 %v23
  %1732 = vmatmul.mubr.bf16.gmra.mrb[0].mxu0 %v22
  %v1733 = vpop.f32.mrb[0].mxu0
  %v1734 = vadd.f32 %v297, %v1733
  %v1735 = vpop.f32.mrb[0].mxu0
  %v1736 = vadd.f32 %v301, %v1735
  %v1737 = vpop.f32.mrb[0].mxu0
  %v1738 = vadd.f32 %v297, %v1737
  %v1739 = vpop.f32.mrb[0].mxu0
  %v1740 = vadd.f32 %v301, %v1739
  %1741 = vmatprep.mubr.bf16.mxu0 %v25
  %1742 = vmatmul.mubr.bf16.gmra.mrb[0].mxu0 %v24
  %v1743 = vpop.f32.mrb[0].mxu0
  %v1744 = vadd.f32 %v297, %v1743
  %v1745 = vpop.f32.mrb[0].mxu0
  %v1746 = vadd.f32 %v301, %v1745
  %v1747 = vpop.f32.mrb[0].mxu0
  %v1748 = vadd.f32 %v297, %v1747
  %v1749 = vpop.f32.mrb[0].mxu0
  %v1750 = vadd.f32 %v301, %v1749
  %1751 = vdwg.mxu0
  %1752 = vmatprep.subr.bf16.mxu0 %v1139
  %1753 = vmatpush1.bf16.msra.mxu0 %v1138
  %1754 = vmatprep.subr.bf16.mxu0 %v1155
  %1755 = vmatpush1.bf16.msra.mxu0 %v1154
  %1756 = vmatprep.subr.bf16.mxu0 %v1171
  %1757 = vmatpush1.bf16.msra.mxu0 %v1170
  %1758 = vmatprep.subr.bf16.mxu0 %v1187
  %1759 = vmatpush1.bf16.msra.mxu0 %v1186
  %1760 = vmatprep.subr.bf16.mxu0 %v1203
  %1761 = vmatpush1.bf16.msra.mxu0 %v1202
  %1762 = vmatprep.subr.bf16.mxu0 %v1219
  %1763 = vmatpush1.bf16.msra.mxu0 %v1218
  %1764 = vmatprep.subr.bf16.mxu0 %v1235
  %1765 = vmatpush1.bf16.msra.mxu0 %v1234
  %1766 = vmatprep.subr.bf16.mxu0 %v1251
  %1767 = vmatpush1.bf16.msra.mxu0 %v1250
  %1768 = vmatprep.subr.bf16.mxu0 %v1267
  %1769 = vmatpush1.bf16.msra.mxu0 %v1266
  %1770 = vmatprep.subr.bf16.mxu0 %v1283
  %1771 = vmatpush1.bf16.msra.mxu0 %v1282
  %1772 = vmatprep.subr.bf16.mxu0 %v1299
  %1773 = vmatpush1.bf16.msra.mxu0 %v1298
  %1774 = vmatprep.subr.bf16.mxu0 %v1315
  %1775 = vmatpush1.bf16.msra.mxu0 %v1314
  %1776 = vmatprep.subr.bf16.mxu0 %v1331
  %1777 = vmatpush1.bf16.msra.mxu0 %v1330
  %1778 = vmatprep.subr.bf16.mxu0 %v1347
  %1779 = vmatpush1.bf16.msra.mxu0 %v1346
  %1780 = vmatprep.subr.bf16.mxu0 %v1363
  %1781 = vmatpush1.bf16.msra.mxu0 %v1362
  %1782 = vmatprep.subr.bf16.mxu0 %v1379
  %1783 = vmatpush1.bf16.msra.mxu0 %v1378
  %1784 = vmatprep.mubr.bf16.mxu0 %v23
  %1785 = vmatmul.mubr.bf16.gmra.mrb[0].mxu0 %v22
  %v1786 = vpop.f32.mrb[0].mxu0
  %v1787 = vadd.f32 %v305, %v1786
  %v1788 = vpop.f32.mrb[0].mxu0
  %v1789 = vadd.f32 %v309, %v1788
  %v1790 = vpop.f32.mrb[0].mxu0
  %v1791 = vadd.f32 %v305, %v1790
  %v1792 = vpop.f32.mrb[0].mxu0
  %v1793 = vadd.f32 %v309, %v1792
  %1794 = vmatprep.mubr.bf16.mxu0 %v25
  %1795 = vmatmul.mubr.bf16.gmra.mrb[0].mxu0 %v24
  %v1796 = vpop.f32.mrb[0].mxu0
  %v1797 = vadd.f32 %v305, %v1796
  %v1798 = vpop.f32.mrb[0].mxu0
  %v1799 = vadd.f32 %v309, %v1798
  %v1800 = vpop.f32.mrb[0].mxu0
  %v1801 = vadd.f32 %v305, %v1800
  %v1802 = vpop.f32.mrb[0].mxu0
  %v1803 = vadd.f32 %v309, %v1802
  %1804 = vdwg.mxu0
  %1805 = vmatprep.subr.bf16.mxu0 %v1141
  %1806 = vmatpush1.bf16.msra.mxu0 %v1140
  %1807 = vmatprep.subr.bf16.mxu0 %v1157
  %1808 = vmatpush1.bf16.msra.mxu0 %v1156
  %1809 = vmatprep.subr.bf16.mxu0 %v1173
  %1810 = vmatpush1.bf16.msra.mxu0 %v1172
  %1811 = vmatprep.subr.bf16.mxu0 %v1189
  %1812 = vmatpush1.bf16.msra.mxu0 %v1188
  %1813 = vmatprep.subr.bf16.mxu0 %v1205
  %1814 = vmatpush1.bf16.msra.mxu0 %v1204
  %1815 = vmatprep.subr.bf16.mxu0 %v1221
  %1816 = vmatpush1.bf16.msra.mxu0 %v1220
  %1817 = vmatprep.subr.bf16.mxu0 %v1237
  %1818 = vmatpush1.bf16.msra.mxu0 %v1236
  %1819 = vmatprep.subr.bf16.mxu0 %v1253
  %1820 = vmatpush1.bf16.msra.mxu0 %v1252
  %1821 = vmatprep.subr.bf16.mxu0 %v1269
  %1822 = vmatpush1.bf16.msra.mxu0 %v1268
  %1823 = vmatprep.subr.bf16.mxu0 %v1285
  %1824 = vmatpush1.bf16.msra.mxu0 %v1284
  %1825 = vmatprep.subr.bf16.mxu0 %v1301
  %1826 = vmatpush1.bf16.msra.mxu0 %v1300
  %1827 = vmatprep.subr.bf16.mxu0 %v1317
  %1828 = vmatpush1.bf16.msra.mxu0 %v1316
  %1829 = vmatprep.subr.bf16.mxu0 %v1333
  %1830 = vmatpush1.bf16.msra.mxu0 %v1332
  %1831 = vmatprep.subr.bf16.mxu0 %v1349
  %1832 = vmatpush1.bf16.msra.mxu0 %v1348
  %1833 = vmatprep.subr.bf16.mxu0 %v1365
  %1834 = vmatpush1.bf16.msra.mxu0 %v1364
  %1835 = vmatprep.subr.bf16.mxu0 %v1381
  %1836 = vmatpush1.bf16.msra.mxu0 %v1380
  %1837 = vmatprep.mubr.bf16.mxu0 %v23
  %1838 = vmatmul.mubr.bf16.gmra.mrb[0].mxu0 %v22
  %v1839 = vpop.f32.mrb[0].mxu0
  %v1840 = vadd.f32 %v313, %v1839
  %v1841 = vpop.f32.mrb[0].mxu0
  %v1842 = vadd.f32 %v317, %v1841
  %v1843 = vpop.f32.mrb[0].mxu0
  %v1844 = vadd.f32 %v313, %v1843
  %v1845 = vpop.f32.mrb[0].mxu0
  %v1846 = vadd.f32 %v317, %v1845
  %1847 = vmatprep.mubr.bf16.mxu0 %v25
  %1848 = vmatmul.mubr.bf16.gmra.mrb[0].mxu0 %v24
  %v1849 = vpop.f32.mrb[0].mxu0
  %v1850 = vadd.f32 %v313, %v1849
  %v1851 = vpop.f32.mrb[0].mxu0
  %v1852 = vadd.f32 %v317, %v1851
  %v1853 = vpop.f32.mrb[0].mxu0
  %v1854 = vadd.f32 %v313, %v1853
  %v1855 = vpop.f32.mrb[0].mxu0
  %v1856 = vadd.f32 %v317, %v1855
  %1857 = vdwg.mxu0
  %1858 = vmatprep.subr.bf16.mxu0 %v1143
  %1859 = vmatpush1.bf16.msra.mxu0 %v1142
  %1860 = vmatprep.subr.bf16.mxu0 %v1159
  %1861 = vmatpush1.bf16.msra.mxu0 %v1158
  %1862 = vmatprep.subr.bf16.mxu0 %v1175
  %1863 = vmatpush1.bf16.msra.mxu0 %v1174
  %1864 = vmatprep.subr.bf16.mxu0 %v1191
  %1865 = vmatpush1.bf16.msra.mxu0 %v1190
  %1866 = vmatprep.subr.bf16.mxu0 %v1207
  %1867 = vmatpush1.bf16.msra.mxu0 %v1206
  %1868 = vmatprep.subr.bf16.mxu0 %v1223
  %1869 = vmatpush1.bf16.msra.mxu0 %v1222
  %1870 = vmatprep.subr.bf16.mxu0 %v1239
  %1871 = vmatpush1.bf16.msra.mxu0 %v1238
  %1872 = vmatprep.subr.bf16.mxu0 %v1255
  %1873 = vmatpush1.bf16.msra.mxu0 %v1254
  %1874 = vmatprep.subr.bf16.mxu0 %v1271
  %1875 = vmatpush1.bf16.msra.mxu0 %v1270
  %1876 = vmatprep.subr.bf16.mxu0 %v1287
  %1877 = vmatpush1.bf16.msra.mxu0 %v1286
  %1878 = vmatprep.subr.bf16.mxu0 %v1303
  %1879 = vmatpush1.bf16.msra.mxu0 %v1302
  %1880 = vmatprep.subr.bf16.mxu0 %v1319
  %1881 = vmatpush1.bf16.msra.mxu0 %v1318
  %1882 = vmatprep.subr.bf16.mxu0 %v1335
  %1883 = vmatpush1.bf16.msra.mxu0 %v1334
  %1884 = vmatprep.subr.bf16.mxu0 %v1351
  %1885 = vmatpush1.bf16.msra.mxu0 %v1350
  %1886 = vmatprep.subr.bf16.mxu0 %v1367
  %1887 = vmatpush1.bf16.msra.mxu0 %v1366
  %1888 = vmatprep.subr.bf16.mxu0 %v1383
  %1889 = vmatpush1.bf16.msra.mxu0 %v1382
  %1890 = vmatprep.mubr.bf16.mxu0 %v23
  %1891 = vmatmul.mubr.bf16.gmra.mrb[0].mxu0 %v22
  %v1892 = vpop.f32.mrb[0].mxu0
  %v1893 = vadd.f32 %v321, %v1892
  %v1894 = vpop.f32.mrb[0].mxu0
  %v1895 = vadd.f32 %v325, %v1894
  %v1896 = vpop.f32.mrb[0].mxu0
  %v1897 = vadd.f32 %v321, %v1896
  %v1898 = vpop.f32.mrb[0].mxu0
  %v1899 = vadd.f32 %v325, %v1898
  %1900 = vmatprep.mubr.bf16.mxu0 %v25
  %1901 = vmatmul.mubr.bf16.gmra.mrb[0].mxu0 %v24
  %v1902 = vpop.f32.mrb[0].mxu0
  %v1903 = vadd.f32 %v321, %v1902
  %v1904 = vpop.f32.mrb[0].mxu0
  %v1905 = vadd.f32 %v325, %v1904
  %v1906 = vpop.f32.mrb[0].mxu0
  %v1907 = vadd.f32 %v321, %v1906
  %v1908 = vpop.f32.mrb[0].mxu0
  %v1909 = vadd.f32 %v325, %v1908
  %1910 = vdwg.mxu0
  %1911 = vmatprep.subr.bf16.mxu0 %v1145
  %1912 = vmatpush1.bf16.msra.mxu0 %v1144
  %1913 = vmatprep.subr.bf16.mxu0 %v1161
  %1914 = vmatpush1.bf16.msra.mxu0 %v1160
  %1915 = vmatprep.subr.bf16.mxu0 %v1177
  %1916 = vmatpush1.bf16.msra.mxu0 %v1176
  %1917 = vmatprep.subr.bf16.mxu0 %v1193
  %1918 = vmatpush1.bf16.msra.mxu0 %v1192
  %1919 = vmatprep.subr.bf16.mxu0 %v1209
  %1920 = vmatpush1.bf16.msra.mxu0 %v1208
  %1921 = vmatprep.subr.bf16.mxu0 %v1225
  %1922 = vmatpush1.bf16.msra.mxu0 %v1224
  %1923 = vmatprep.subr.bf16.mxu0 %v1241
  %1924 = vmatpush1.bf16.msra.mxu0 %v1240
  %1925 = vmatprep.subr.bf16.mxu0 %v1257
  %1926 = vmatpush1.bf16.msra.mxu0 %v1256
  %1927 = vmatprep.subr.bf16.mxu0 %v1273
  %1928 = vmatpush1.bf16.msra.mxu0 %v1272
  %1929 = vmatprep.subr.bf16.mxu0 %v1289
  %1930 = vmatpush1.bf16.msra.mxu0 %v1288
  %1931 = vmatprep.subr.bf16.mxu0 %v1305
  %1932 = vmatpush1.bf16.msra.mxu0 %v1304
  %1933 = vmatprep.subr.bf16.mxu0 %v1321
  %1934 = vmatpush1.bf16.msra.mxu0 %v1320
  %1935 = vmatprep.subr.bf16.mxu0 %v1337
  %1936 = vmatpush1.bf16.msra.mxu0 %v1336
  %1937 = vmatprep.subr.bf16.mxu0 %v1353
  %1938 = vmatpush1.bf16.msra.mxu0 %v1352
  %1939 = vmatprep.subr.bf16.mxu0 %v1369
  %1940 = vmatpush1.bf16.msra.mxu0 %v1368
  %1941 = vmatprep.subr.bf16.mxu0 %v1385
  %1942 = vmatpush1.bf16.msra.mxu0 %v1384
  %1943 = vmatprep.mubr.bf16.mxu0 %v23
  %1944 = vmatmul.mubr.bf16.gmra.mrb[0].mxu0 %v22
  %v1945 = vpop.f32.mrb[0].mxu0
  %v1946 = vadd.f32 %v329, %v1945
  %v1947 = vpop.f32.mrb[0].mxu0
  %v1948 = vadd.f32 %v333, %v1947
  %v1949 = vpop.f32.mrb[0].mxu0
  %v1950 = vadd.f32 %v329, %v1949
  %v1951 = vpop.f32.mrb[0].mxu0
  %v1952 = vadd.f32 %v333, %v1951
  %1953 = vmatprep.mubr.bf16.mxu0 %v25
  %1954 = vmatmul.mubr.bf16.gmra.mrb[0].mxu0 %v24
  %v1955 = vpop.f32.mrb[0].mxu0
  %v1956 = vadd.f32 %v329, %v1955
  %v1957 = vpop.f32.mrb[0].mxu0
  %v1958 = vadd.f32 %v333, %v1957
  %v1959 = vpop.f32.mrb[0].mxu0
  %v1960 = vadd.f32 %v329, %v1959
  %v1961 = vpop.f32.mrb[0].mxu0
  %v1962 = vadd.f32 %v333, %v1961
  %1963 = vdwg.mxu0
  %1964 = vmatprep.subr.bf16.mxu0 %v1147
  %1965 = vmatpush1.bf16.msra.mxu0 %v1146
  %1966 = vmatprep.subr.bf16.mxu0 %v1163
  %1967 = vmatpush1.bf16.msra.mxu0 %v1162
  %1968 = vmatprep.subr.bf16.mxu0 %v1179
  %1969 = vmatpush1.bf16.msra.mxu0 %v1178
  %1970 = vmatprep.subr.bf16.mxu0 %v1195
  %1971 = vmatpush1.bf16.msra.mxu0 %v1194
  %1972 = vmatprep.subr.bf16.mxu0 %v1211
  %1973 = vmatpush1.bf16.msra.mxu0 %v1210
  %1974 = vmatprep.subr.bf16.mxu0 %v1227
  %1975 = vmatpush1.bf16.msra.mxu0 %v1226
  %1976 = vmatprep.subr.bf16.mxu0 %v1243
  %1977 = vmatpush1.bf16.msra.mxu0 %v1242
  %1978 = vmatprep.subr.bf16.mxu0 %v1259
  %1979 = vmatpush1.bf16.msra.mxu0 %v1258
  %1980 = vmatprep.subr.bf16.mxu0 %v1275
  %1981 = vmatpush1.bf16.msra.mxu0 %v1274
  %1982 = vmatprep.subr.bf16.mxu0 %v1291
  %1983 = vmatpush1.bf16.msra.mxu0 %v1290
  %1984 = vmatprep.subr.bf16.mxu0 %v1307
  %1985 = vmatpush1.bf16.msra.mxu0 %v1306
  %1986 = vmatprep.subr.bf16.mxu0 %v1323
  %1987 = vmatpush1.bf16.msra.mxu0 %v1322
  %1988 = vmatprep.subr.bf16.mxu0 %v1339
  %1989 = vmatpush1.bf16.msra.mxu0 %v1338
  %1990 = vmatprep.subr.bf16.mxu0 %v1355
  %1991 = vmatpush1.bf16.msra.mxu0 %v1354
  %1992 = vmatprep.subr.bf16.mxu0 %v1371
  %1993 = vmatpush1.bf16.msra.mxu0 %v1370
  %1994 = vmatprep.subr.bf16.mxu0 %v1387
  %1995 = vmatpush1.bf16.msra.mxu0 %v1386
  %1996 = vmatprep.mubr.bf16.mxu0 %v23
  %1997 = vmatmul.mubr.bf16.gmra.mrb[0].mxu0 %v22
  %v1998 = vpop.f32.mrb[0].mxu0
  %v1999 = vadd.f32 %v337, %v1998
  %v2000 = vpop.f32.mrb[0].mxu0
  %v2001 = vadd.f32 %v341, %v2000
  %v2002 = vpop.f32.mrb[0].mxu0
  %v2003 = vadd.f32 %v337, %v2002
  %v2004 = vpop.f32.mrb[0].mxu0
  %v2005 = vadd.f32 %v341, %v2004
  %2006 = vmatprep.mubr.bf16.mxu0 %v25
  %2007 = vmatmul.mubr.bf16.gmra.mrb[0].mxu0 %v24
  %v2008 = vpop.f32.mrb[0].mxu0
  %v2009 = vadd.f32 %v337, %v2008
  %v2010 = vpop.f32.mrb[0].mxu0
  %v2011 = vadd.f32 %v341, %v2010
  %v2012 = vpop.f32.mrb[0].mxu0
  %v2013 = vadd.f32 %v337, %v2012
  %v2014 = vpop.f32.mrb[0].mxu0
  %v2015 = vadd.f32 %v341, %v2014
  %2016 = vdwg.mxu0
  %2017 = vmatprep.subr.bf16.mxu0 %v1149
  %2018 = vmatpush1.bf16.msra.mxu0 %v1148
  %2019 = vmatprep.subr.bf16.mxu0 %v1165
  %2020 = vmatpush1.bf16.msra.mxu0 %v1164
  %2021 = vmatprep.subr.bf16.mxu0 %v1181
  %2022 = vmatpush1.bf16.msra.mxu0 %v1180
  %2023 = vmatprep.subr.bf16.mxu0 %v1197
  %2024 = vmatpush1.bf16.msra.mxu0 %v1196
  %2025 = vmatprep.subr.bf16.mxu0 %v1213
  %2026 = vmatpush1.bf16.msra.mxu0 %v1212
  %2027 = vmatprep.subr.bf16.mxu0 %v1229
  %2028 = vmatpush1.bf16.msra.mxu0 %v1228
  %2029 = vmatprep.subr.bf16.mxu0 %v1245
  %2030 = vmatpush1.bf16.msra.mxu0 %v1244
  %2031 = vmatprep.subr.bf16.mxu0 %v1261
  %2032 = vmatpush1.bf16.msra.mxu0 %v1260
  %2033 = vmatprep.subr.bf16.mxu0 %v1277
  %2034 = vmatpush1.bf16.msra.mxu0 %v1276
  %2035 = vmatprep.subr.bf16.mxu0 %v1293
  %2036 = vmatpush1.bf16.msra.mxu0 %v1292
  %2037 = vmatprep.subr.bf16.mxu0 %v1309
  %2038 = vmatpush1.bf16.msra.mxu0 %v1308
  %2039 = vmatprep.subr.bf16.mxu0 %v1325
  %2040 = vmatpush1.bf16.msra.mxu0 %v1324
  %2041 = vmatprep.subr.bf16.mxu0 %v1341
  %2042 = vmatpush1.bf16.msra.mxu0 %v1340
  %2043 = vmatprep.subr.bf16.mxu0 %v1357
  %2044 = vmatpush1.bf16.msra.mxu0 %v1356
  %2045 = vmatprep.subr.bf16.mxu0 %v1373
  %2046 = vmatpush1.bf16.msra.mxu0 %v1372
  %2047 = vmatprep.subr.bf16.mxu0 %v1389
  %2048 = vmatpush1.bf16.msra.mxu0 %v1388
  %2049 = vmatprep.mubr.bf16.mxu0 %v23
  %2050 = vmatmul.mubr.bf16.gmra.mrb[0].mxu0 %v22
  %v2051 = vpop.f32.mrb[0].mxu0
  %v2052 = vadd.f32 %v345, %v2051
  %v2053 = vpop.f32.mrb[0].mxu0
  %v2054 = vadd.f32 %v349, %v2053
  %v2055 = vpop.f32.mrb[0].mxu0
  %v2056 = vadd.f32 %v345, %v2055
  %v2057 = vpop.f32.mrb[0].mxu0
  %v2058 = vadd.f32 %v349, %v2057
  %2059 = vmatprep.mubr.bf16.mxu0 %v25
  %2060 = vmatmul.mubr.bf16.gmra.mrb[0].mxu0 %v24
  %v2061 = vpop.f32.mrb[0].mxu0
  %v2062 = vadd.f32 %v345, %v2061
  %v2063 = vpop.f32.mrb[0].mxu0
  %v2064 = vadd.f32 %v349, %v2063
  %v2065 = vpop.f32.mrb[0].mxu0
  %v2066 = vadd.f32 %v345, %v2065
  %v2067 = vpop.f32.mrb[0].mxu0
  %v2068 = vadd.f32 %v349, %v2067
  %2069 = vdwg.mxu0
  %v2070 = vmax.f32 %v1681, %v1683
  %v2071 = vmax.f32 %v2070, %v1734
  %v2072 = vmax.f32 %v2071, %v1736
  %v2073 = vmax.f32 %v2072, %v1787
  %v2074 = vmax.f32 %v2073, %v1789
  %v2075 = vmax.f32 %v2074, %v1840
  %v2076 = vmax.f32 %v2075, %v1842
  %v2077 = vmax.f32 %v2076, %v1893
  %v2078 = vmax.f32 %v2077, %v1895
  %v2079 = vmax.f32 %v2078, %v1946
  %v2080 = vmax.f32 %v2079, %v1948
  %v2081 = vmax.f32 %v2080, %v1999
  %v2082 = vmax.f32 %v2081, %v2001
  %v2083 = vmax.f32 %v2082, %v2052
  %v2084 = vmax.f32 %v2083, %v2054
  %2085 = vmax.xlane.f32.xlu0 %v2084
  %v2086 = vpop.xlane.xlu0 %2085
  %v2087 = vmax.f32 %v1685, %v1687
  %v2088 = vmax.f32 %v2087, %v1738
  %v2089 = vmax.f32 %v2088, %v1740
  %v2090 = vmax.f32 %v2089, %v1791
  %v2091 = vmax.f32 %v2090, %v1793
  %v2092 = vmax.f32 %v2091, %v1844
  %v2093 = vmax.f32 %v2092, %v1846
  %v2094 = vmax.f32 %v2093, %v1897
  %v2095 = vmax.f32 %v2094, %v1899
  %v2096 = vmax.f32 %v2095, %v1950
  %v2097 = vmax.f32 %v2096, %v1952
  %v2098 = vmax.f32 %v2097, %v2003
  %v2099 = vmax.f32 %v2098, %v2005
  %v2100 = vmax.f32 %v2099, %v2056
  %v2101 = vmax.f32 %v2100, %v2058
  %2102 = vmax.xlane.f32.xlu0 %v2101
  %v2103 = vpop.xlane.xlu0 %2102
  %v2104 = vmax.f32 %v1691, %v1693
  %v2105 = vmax.f32 %v2104, %v1744
  %v2106 = vmax.f32 %v2105, %v1746
  %v2107 = vmax.f32 %v2106, %v1797
  %v2108 = vmax.f32 %v2107, %v1799
  %v2109 = vmax.f32 %v2108, %v1850
  %v2110 = vmax.f32 %v2109, %v1852
  %v2111 = vmax.f32 %v2110, %v1903
  %v2112 = vmax.f32 %v2111, %v1905
  %v2113 = vmax.f32 %v2112, %v1956
  %v2114 = vmax.f32 %v2113, %v1958
  %v2115 = vmax.f32 %v2114, %v2009
  %v2116 = vmax.f32 %v2115, %v2011
  %v2117 = vmax.f32 %v2116, %v2062
  %v2118 = vmax.f32 %v2117, %v2064
  %2119 = vmax.xlane.f32.xlu0 %v2118
  %v2120 = vpop.xlane.xlu0 %2119
  %v2121 = vmax.f32 %v1695, %v1697
  %v2122 = vmax.f32 %v2121, %v1748
  %v2123 = vmax.f32 %v2122, %v1750
  %v2124 = vmax.f32 %v2123, %v1801
  %v2125 = vmax.f32 %v2124, %v1803
  %v2126 = vmax.f32 %v2125, %v1854
  %v2127 = vmax.f32 %v2126, %v1856
  %v2128 = vmax.f32 %v2127, %v1907
  %v2129 = vmax.f32 %v2128, %v1909
  %v2130 = vmax.f32 %v2129, %v1960
  %v2131 = vmax.f32 %v2130, %v1962
  %v2132 = vmax.f32 %v2131, %v2013
  %v2133 = vmax.f32 %v2132, %v2015
  %v2134 = vmax.f32 %v2133, %v2066
  %v2135 = vmax.f32 %v2134, %v2068
  %2136 = vmax.xlane.f32.xlu0 %v2135
  %v2137 = vpop.xlane.xlu0 %2136
  %v2138 = vlaneseq
  %v2139 = vand.u32 %v2138, 127
  %v2140 = vadd.s32 %v2139, 128
  %v2141 = vadd.s32 %v2139, 256
  %v2142 = vadd.s32 %v2139, 384
  %v2143 = vadd.s32 %v2139, 512
  %v2144 = vadd.s32 %v2139, 640
  %v2145 = vadd.s32 %v2139, 768
  %v2146 = vadd.s32 %v2139, 896
  %v2147 = vadd.s32 %v2139, 1024
  %v2148 = vadd.s32 %v2139, 1152
  %v2149 = vadd.s32 %v2139, 1280
  %v2150 = vadd.s32 %v2139, 1408
  %v2151 = vadd.s32 %v2139, 1536
  %v2152 = vadd.s32 %v2139, 1664
  %v2153 = vadd.s32 %v2139, 1792
  %v2154 = vadd.s32 %v2139, 1920
  %vm2155 = vcmp.eq.f32.partialorder %v1681, %v2086
  %vm2156 = vcmp.eq.f32.partialorder %v1683, %v2086
  %vm2157 = vcmp.eq.f32.partialorder %v1734, %v2086
  %vm2158 = vcmp.eq.f32.partialorder %v1736, %v2086
  %vm2159 = vcmp.eq.f32.partialorder %v1787, %v2086
  %vm2160 = vcmp.eq.f32.partialorder %v1789, %v2086
  %vm2161 = vcmp.eq.f32.partialorder %v1840, %v2086
  %vm2162 = vcmp.eq.f32.partialorder %v1842, %v2086
  %vm2163 = vcmp.eq.f32.partialorder %v1893, %v2086
  %vm2164 = vcmp.eq.f32.partialorder %v1895, %v2086
  %vm2165 = vcmp.eq.f32.partialorder %v1946, %v2086
  %vm2166 = vcmp.eq.f32.partialorder %v1948, %v2086
  %vm2167 = vcmp.eq.f32.partialorder %v1999, %v2086
  %vm2168 = vcmp.eq.f32.partialorder %v2001, %v2086
  %vm2169 = vcmp.eq.f32.partialorder %v2052, %v2086
  %vm2170 = vcmp.eq.f32.partialorder %v2054, %v2086
  %vm2171 = vcmp.eq.f32.partialorder %v1685, %v2103
  %vm2172 = vcmp.eq.f32.partialorder %v1687, %v2103
  %vm2173 = vcmp.eq.f32.partialorder %v1738, %v2103
  %vm2174 = vcmp.eq.f32.partialorder %v1740, %v2103
  %vm2175 = vcmp.eq.f32.partialorder %v1791, %v2103
  %vm2176 = vcmp.eq.f32.partialorder %v1793, %v2103
  %vm2177 = vcmp.eq.f32.partialorder %v1844, %v2103
  %vm2178 = vcmp.eq.f32.partialorder %v1846, %v2103
  %vm2179 = vcmp.eq.f32.partialorder %v1897, %v2103
  %vm2180 = vcmp.eq.f32.partialorder %v1899, %v2103
  %vm2181 = vcmp.eq.f32.partialorder %v1950, %v2103
  %vm2182 = vcmp.eq.f32.partialorder %v1952, %v2103
  %vm2183 = vcmp.eq.f32.partialorder %v2003, %v2103
  %vm2184 = vcmp.eq.f32.partialorder %v2005, %v2103
  %vm2185 = vcmp.eq.f32.partialorder %v2056, %v2103
  %vm2186 = vcmp.eq.f32.partialorder %v2058, %v2103
  %vm2187 = vcmp.eq.f32.partialorder %v1691, %v2120
  %vm2188 = vcmp.eq.f32.partialorder %v1693, %v2120
  %vm2189 = vcmp.eq.f32.partialorder %v1744, %v2120
  %vm2190 = vcmp.eq.f32.partialorder %v1746, %v2120
  %vm2191 = vcmp.eq.f32.partialorder %v1797, %v2120
  %vm2192 = vcmp.eq.f32.partialorder %v1799, %v2120
  %vm2193 = vcmp.eq.f32.partialorder %v1850, %v2120
  %vm2194 = vcmp.eq.f32.partialorder %v1852, %v2120
  %vm2195 = vcmp.eq.f32.partialorder %v1903, %v2120
  %vm2196 = vcmp.eq.f32.partialorder %v1905, %v2120
  %vm2197 = vcmp.eq.f32.partialorder %v1956, %v2120
  %vm2198 = vcmp.eq.f32.partialorder %v1958, %v2120
  %vm2199 = vcmp.eq.f32.partialorder %v2009, %v2120
  %vm2200 = vcmp.eq.f32.partialorder %v2011, %v2120
  %vm2201 = vcmp.eq.f32.partialorder %v2062, %v2120
  %vm2202 = vcmp.eq.f32.partialorder %v2064, %v2120
  %vm2203 = vcmp.eq.f32.partialorder %v1695, %v2137
  %vm2204 = vcmp.eq.f32.partialorder %v1697, %v2137
  %vm2205 = vcmp.eq.f32.partialorder %v1748, %v2137
  %vm2206 = vcmp.eq.f32.partialorder %v1750, %v2137
  %vm2207 = vcmp.eq.f32.partialorder %v1801, %v2137
  %vm2208 = vcmp.eq.f32.partialorder %v1803, %v2137
  %vm2209 = vcmp.eq.f32.partialorder %v1854, %v2137
  %vm2210 = vcmp.eq.f32.partialorder %v1856, %v2137
  %vm2211 = vcmp.eq.f32.partialorder %v1907, %v2137
  %vm2212 = vcmp.eq.f32.partialorder %v1909, %v2137
  %vm2213 = vcmp.eq.f32.partialorder %v1960, %v2137
  %vm2214 = vcmp.eq.f32.partialorder %v1962, %v2137
  %vm2215 = vcmp.eq.f32.partialorder %v2013, %v2137
  %vm2216 = vcmp.eq.f32.partialorder %v2015, %v2137
  %vm2217 = vcmp.eq.f32.partialorder %v2066, %v2137
  %vm2218 = vcmp.eq.f32.partialorder %v2068, %v2137
  %v2219 = vsel %vm2155, %v2139, 2048
  %v2220 = vsel %vm2156, %v2140, 2048
  %v2221 = vsel %vm2157, %v2141, 2048
  %v2222 = vsel %vm2158, %v2142, 2048
  %v2223 = vsel %vm2159, %v2143, 2048
  %v2224 = vsel %vm2160, %v2144, 2048
  %v2225 = vsel %vm2161, %v2145, 2048
  %v2226 = vsel %vm2162, %v2146, 2048
  %v2227 = vsel %vm2163, %v2147, 2048
  %v2228 = vsel %vm2164, %v2148, 2048
  %v2229 = vsel %vm2165, %v2149, 2048
  %v2230 = vsel %vm2166, %v2150, 2048
  %v2231 = vsel %vm2167, %v2151, 2048
  %v2232 = vsel %vm2168, %v2152, 2048
  %v2233 = vsel %vm2169, %v2153, 2048
  %v2234 = vsel %vm2170, %v2154, 2048
  %v2235 = vsel %vm2171, %v2139, 2048
  %v2236 = vsel %vm2172, %v2140, 2048
  %v2237 = vsel %vm2173, %v2141, 2048
  %v2238 = vsel %vm2174, %v2142, 2048
  %v2239 = vsel %vm2175, %v2143, 2048
  %v2240 = vsel %vm2176, %v2144, 2048
  %v2241 = vsel %vm2177, %v2145, 2048
  %v2242 = vsel %vm2178, %v2146, 2048
  %v2243 = vsel %vm2179, %v2147, 2048
  %v2244 = vsel %vm2180, %v2148, 2048
  %v2245 = vsel %vm2181, %v2149, 2048
  %v2246 = vsel %vm2182, %v2150, 2048
  %v2247 = vsel %vm2183, %v2151, 2048
  %v2248 = vsel %vm2184, %v2152, 2048
  %v2249 = vsel %vm2185, %v2153, 2048
  %v2250 = vsel %vm2186, %v2154, 2048
  %v2251 = vsel %vm2187, %v2139, 2048
  %v2252 = vsel %vm2188, %v2140, 2048
  %v2253 = vsel %vm2189, %v2141, 2048
  %v2254 = vsel %vm2190, %v2142, 2048
  %v2255 = vsel %vm2191, %v2143, 2048
  %v2256 = vsel %vm2192, %v2144, 2048
  %v2257 = vsel %vm2193, %v2145, 2048
  %v2258 = vsel %vm2194, %v2146, 2048
  %v2259 = vsel %vm2195, %v2147, 2048
  %v2260 = vsel %vm2196, %v2148, 2048
  %v2261 = vsel %vm2197, %v2149, 2048
  %v2262 = vsel %vm2198, %v2150, 2048
  %v2263 = vsel %vm2199, %v2151, 2048
  %v2264 = vsel %vm2200, %v2152, 2048
  %v2265 = vsel %vm2201, %v2153, 2048
  %v2266 = vsel %vm2202, %v2154, 2048
  %v2267 = vsel %vm2203, %v2139, 2048
  %v2268 = vsel %vm2204, %v2140, 2048
  %v2269 = vsel %vm2205, %v2141, 2048
  %v2270 = vsel %vm2206, %v2142, 2048
  %v2271 = vsel %vm2207, %v2143, 2048
  %v2272 = vsel %vm2208, %v2144, 2048
  %v2273 = vsel %vm2209, %v2145, 2048
  %v2274 = vsel %vm2210, %v2146, 2048
  %v2275 = vsel %vm2211, %v2147, 2048
  %v2276 = vsel %vm2212, %v2148, 2048
  %v2277 = vsel %vm2213, %v2149, 2048
  %v2278 = vsel %vm2214, %v2150, 2048
  %v2279 = vsel %vm2215, %v2151, 2048
  %v2280 = vsel %vm2216, %v2152, 2048
  %v2281 = vsel %vm2217, %v2153, 2048
  %v2282 = vsel %vm2218, %v2154, 2048
  %vm2283 = vcmp.lt.s32.totalorder %v2219, %v2220
  %v2284 = vsel %vm2283, %v2219, %v2220
  %vm2285 = vcmp.lt.s32.totalorder %v2284, %v2221
  %v2286 = vsel %vm2285, %v2284, %v2221
  %vm2287 = vcmp.lt.s32.totalorder %v2286, %v2222
  %v2288 = vsel %vm2287, %v2286, %v2222
  %vm2289 = vcmp.lt.s32.totalorder %v2288, %v2223
  %v2290 = vsel %vm2289, %v2288, %v2223
  %vm2291 = vcmp.lt.s32.totalorder %v2290, %v2224
  %v2292 = vsel %vm2291, %v2290, %v2224
  %vm2293 = vcmp.lt.s32.totalorder %v2292, %v2225
  %v2294 = vsel %vm2293, %v2292, %v2225
  %vm2295 = vcmp.lt.s32.totalorder %v2294, %v2226
  %v2296 = vsel %vm2295, %v2294, %v2226
  %vm2297 = vcmp.lt.s32.totalorder %v2296, %v2227
  %v2298 = vsel %vm2297, %v2296, %v2227
  %vm2299 = vcmp.lt.s32.totalorder %v2298, %v2228
  %v2300 = vsel %vm2299, %v2298, %v2228
  %vm2301 = vcmp.lt.s32.totalorder %v2300, %v2229
  %v2302 = vsel %vm2301, %v2300, %v2229
  %vm2303 = vcmp.lt.s32.totalorder %v2302, %v2230
  %v2304 = vsel %vm2303, %v2302, %v2230
  %vm2305 = vcmp.lt.s32.totalorder %v2304, %v2231
  %v2306 = vsel %vm2305, %v2304, %v2231
  %vm2307 = vcmp.lt.s32.totalorder %v2306, %v2232
  %v2308 = vsel %vm2307, %v2306, %v2232
  %vm2309 = vcmp.lt.s32.totalorder %v2308, %v2233
  %v2310 = vsel %vm2309, %v2308, %v2233
  %vm2311 = vcmp.lt.s32.totalorder %v2310, %v2234
  %v2312 = vsel %vm2311, %v2310, %v2234
  %v2313 = vand.u32 %v2312, 65535
  %v2314 = vshra.s32 %v2312, 16
  %v2315 = vcvt.s32.f32 %v2313
  %v2316 = vcvt.s32.f32 %v2314
  %2317 = vmin.xlane.f32.xlu0 %v2316
  %v2318 = vpop.xlane.xlu0 %2317
  %vm2319 = vcmp.eq.f32.partialorder %v2316, %v2318
  %v2320 = vsel %vm2319, %v2315, inf
  %2321 = vmin.xlane.f32.xlu0 %v2320
  %v2322 = vpop.xlane.xlu0 %2321
  %v2323 = vcvt.f32.s32 %v2322
  %v2324 = vcvt.f32.s32 %v2318
  %v2325 = vshll.u32 %v2324, 16
  %v2326 = vadd.s32 %v2325, %v2323
  %vm2327 = vcmp.lt.s32.totalorder %v2235, %v2236
  %v2328 = vsel %vm2327, %v2235, %v2236
  %vm2329 = vcmp.lt.s32.totalorder %v2328, %v2237
  %v2330 = vsel %vm2329, %v2328, %v2237
  %vm2331 = vcmp.lt.s32.totalorder %v2330, %v2238
  %v2332 = vsel %vm2331, %v2330, %v2238
  %vm2333 = vcmp.lt.s32.totalorder %v2332, %v2239
  %v2334 = vsel %vm2333, %v2332, %v2239
  %vm2335 = vcmp.lt.s32.totalorder %v2334, %v2240
  %v2336 = vsel %vm2335, %v2334, %v2240
  %vm2337 = vcmp.lt.s32.totalorder %v2336, %v2241
  %v2338 = vsel %vm2337, %v2336, %v2241
  %vm2339 = vcmp.lt.s32.totalorder %v2338, %v2242
  %v2340 = vsel %vm2339, %v2338, %v2242
  %vm2341 = vcmp.lt.s32.totalorder %v2340, %v2243
  %v2342 = vsel %vm2341, %v2340, %v2243
  %vm2343 = vcmp.lt.s32.totalorder %v2342, %v2244
  %v2344 = vsel %vm2343, %v2342, %v2244
  %vm2345 = vcmp.lt.s32.totalorder %v2344, %v2245
  %v2346 = vsel %vm2345, %v2344, %v2245
  %vm2347 = vcmp.lt.s32.totalorder %v2346, %v2246
  %v2348 = vsel %vm2347, %v2346, %v2246
  %vm2349 = vcmp.lt.s32.totalorder %v2348, %v2247
  %v2350 = vsel %vm2349, %v2348, %v2247
  %vm2351 = vcmp.lt.s32.totalorder %v2350, %v2248
  %v2352 = vsel %vm2351, %v2350, %v2248
  %vm2353 = vcmp.lt.s32.totalorder %v2352, %v2249
  %v2354 = vsel %vm2353, %v2352, %v2249
  %vm2355 = vcmp.lt.s32.totalorder %v2354, %v2250
  %v2356 = vsel %vm2355, %v2354, %v2250
  %v2357 = vand.u32 %v2356, 65535
  %v2358 = vshra.s32 %v2356, 16
  %v2359 = vcvt.s32.f32 %v2357
  %v2360 = vcvt.s32.f32 %v2358
  %2361 = vmin.xlane.f32.xlu0 %v2360
  %v2362 = vpop.xlane.xlu0 %2361
  %vm2363 = vcmp.eq.f32.partialorder %v2360, %v2362
  %v2364 = vsel %vm2363, %v2359, inf
  %2365 = vmin.xlane.f32.xlu0 %v2364
  %v2366 = vpop.xlane.xlu0 %2365
  %v2367 = vcvt.f32.s32 %v2366
  %v2368 = vcvt.f32.s32 %v2362
  %v2369 = vshll.u32 %v2368, 16
  %v2370 = vadd.s32 %v2369, %v2367
  %vm2371 = vcmp.lt.s32.totalorder %v2251, %v2252
  %v2372 = vsel %vm2371, %v2251, %v2252
  %vm2373 = vcmp.lt.s32.totalorder %v2372, %v2253
  %v2374 = vsel %vm2373, %v2372, %v2253
  %vm2375 = vcmp.lt.s32.totalorder %v2374, %v2254
  %v2376 = vsel %vm2375, %v2374, %v2254
  %vm2377 = vcmp.lt.s32.totalorder %v2376, %v2255
  %v2378 = vsel %vm2377, %v2376, %v2255
  %vm2379 = vcmp.lt.s32.totalorder %v2378, %v2256
  %v2380 = vsel %vm2379, %v2378, %v2256
  %vm2381 = vcmp.lt.s32.totalorder %v2380, %v2257
  %v2382 = vsel %vm2381, %v2380, %v2257
  %vm2383 = vcmp.lt.s32.totalorder %v2382, %v2258
  %v2384 = vsel %vm2383, %v2382, %v2258
  %vm2385 = vcmp.lt.s32.totalorder %v2384, %v2259
  %v2386 = vsel %vm2385, %v2384, %v2259
  %vm2387 = vcmp.lt.s32.totalorder %v2386, %v2260
  %v2388 = vsel %vm2387, %v2386, %v2260
  %vm2389 = vcmp.lt.s32.totalorder %v2388, %v2261
  %v2390 = vsel %vm2389, %v2388, %v2261
  %vm2391 = vcmp.lt.s32.totalorder %v2390, %v2262
  %v2392 = vsel %vm2391, %v2390, %v2262
  %vm2393 = vcmp.lt.s32.totalorder %v2392, %v2263
  %v2394 = vsel %vm2393, %v2392, %v2263
  %vm2395 = vcmp.lt.s32.totalorder %v2394, %v2264
  %v2396 = vsel %vm2395, %v2394, %v2264
  %vm2397 = vcmp.lt.s32.totalorder %v2396, %v2265
  %v2398 = vsel %vm2397, %v2396, %v2265
  %vm2399 = vcmp.lt.s32.totalorder %v2398, %v2266
  %v2400 = vsel %vm2399, %v2398, %v2266
  %v2401 = vand.u32 %v2400, 65535
  %v2402 = vshra.s32 %v2400, 16
  %v2403 = vcvt.s32.f32 %v2401
  %v2404 = vcvt.s32.f32 %v2402
  %2405 = vmin.xlane.f32.xlu0 %v2404
  %v2406 = vpop.xlane.xlu0 %2405
  %vm2407 = vcmp.eq.f32.partialorder %v2404, %v2406
  %v2408 = vsel %vm2407, %v2403, inf
  %2409 = vmin.xlane.f32.xlu0 %v2408
  %v2410 = vpop.xlane.xlu0 %2409
  %v2411 = vcvt.f32.s32 %v2410
  %v2412 = vcvt.f32.s32 %v2406
  %v2413 = vshll.u32 %v2412, 16
  %v2414 = vadd.s32 %v2413, %v2411
  %vm2415 = vcmp.lt.s32.totalorder %v2267, %v2268
  %v2416 = vsel %vm2415, %v2267, %v2268
  %vm2417 = vcmp.lt.s32.totalorder %v2416, %v2269
  %v2418 = vsel %vm2417, %v2416, %v2269
  %vm2419 = vcmp.lt.s32.totalorder %v2418, %v2270
  %v2420 = vsel %vm2419, %v2418, %v2270
  %vm2421 = vcmp.lt.s32.totalorder %v2420, %v2271
  %v2422 = vsel %vm2421, %v2420, %v2271
  %vm2423 = vcmp.lt.s32.totalorder %v2422, %v2272
  %v2424 = vsel %vm2423, %v2422, %v2272
  %vm2425 = vcmp.lt.s32.totalorder %v2424, %v2273
  %v2426 = vsel %vm2425, %v2424, %v2273
  %vm2427 = vcmp.lt.s32.totalorder %v2426, %v2274
  %v2428 = vsel %vm2427, %v2426, %v2274
  %vm2429 = vcmp.lt.s32.totalorder %v2428, %v2275
  %v2430 = vsel %vm2429, %v2428, %v2275
  %vm2431 = vcmp.lt.s32.totalorder %v2430, %v2276
  %v2432 = vsel %vm2431, %v2430, %v2276
  %vm2433 = vcmp.lt.s32.totalorder %v2432, %v2277
  %v2434 = vsel %vm2433, %v2432, %v2277
  %vm2435 = vcmp.lt.s32.totalorder %v2434, %v2278
  %v2436 = vsel %vm2435, %v2434, %v2278
  %vm2437 = vcmp.lt.s32.totalorder %v2436, %v2279
  %v2438 = vsel %vm2437, %v2436, %v2279
  %vm2439 = vcmp.lt.s32.totalorder %v2438, %v2280
  %v2440 = vsel %vm2439, %v2438, %v2280
  %vm2441 = vcmp.lt.s32.totalorder %v2440, %v2281
  %v2442 = vsel %vm2441, %v2440, %v2281
  %vm2443 = vcmp.lt.s32.totalorder %v2442, %v2282
  %v2444 = vsel %vm2443, %v2442, %v2282
  %v2445 = vand.u32 %v2444, 65535
  %v2446 = vshra.s32 %v2444, 16
  %v2447 = vcvt.s32.f32 %v2445
  %v2448 = vcvt.s32.f32 %v2446
  %2449 = vmin.xlane.f32.xlu0 %v2448
  %v2450 = vpop.xlane.xlu0 %2449
  %vm2451 = vcmp.eq.f32.partialorder %v2448, %v2450
  %v2452 = vsel %vm2451, %v2447, inf
  %2453 = vmin.xlane.f32.xlu0 %v2452
  %v2454 = vpop.xlane.xlu0 %2453
  %v2455 = vcvt.f32.s32 %v2454
  %v2456 = vcvt.f32.s32 %v2450
  %v2457 = vshll.u32 %v2456, 16
  %v2458 = vadd.s32 %v2457, %v2455
  %vm2459 = vcmask 7168
  %2460 = vst.msk [vmem:[%s3] sm:$0xff] %vm2459, %v2326
  %2461 = vst.msk [vmem:[%s3 + $0x8] sm:$0xff] %vm2459, %v2370
  %2462 = vst.msk [vmem:[%s3 + $0x10] sm:$0xff] %vm2459, %v2414
  %2463 = vst.msk [vmem:[%s3 + $0x18] sm:$0xff] %vm2459, %v2458
  // Predicated region
  $region14: #{pmodel_forward.3} parent=0 // pred_check
    _
  $region15: #{pmodel_forward.3} parent=0 // pred_check_branch
    %2465 = sbr.rel (0) target = $region17
  $region16: #{pmodel_forward.3} parent=0 // pred_region
    _
  $region17: #{pmodel_forward.3} parent=0 // pred_fallthru
    _
  // Predicated region
  $region18: #{pmodel_forward.3} parent=0 // pred_check
    _
  $region19: #{pmodel_forward.3} parent=0 // pred_check_branch
    %2467 = sbr.rel (0) target = $region21
  $region20: #{pmodel_forward.3} parent=0 // pred_region
    _
  $region21: #{pmodel_forward.3} parent=0 // pred_fallthru
    _

// kernel: pmodel_forward.2
$region0: #{pmodel_forward.2}
  #allocation0 [shape = 'u32[]', space=smem, size = 0x4, offset = 0x4, fixed_abs, tag = 'smem constant byte address 0x4 - core index']
  #allocation1 [shape = 'u32[144,128]{1,0:T(1,128)}', space=vmem, size = 0x12000, scoped, tag = 'internal scratch']
  #allocation2 [shape = 'f32[32,256]{1,0:T(8,128)}', space=vmem, size = 0x8000, scoped, tag = 'scratch operand']
  %s0 = inlined_call_operand.vmem [shape: f32[32,256], index: 0, kind: input, shape index: {}]
  %s1 = inlined_call_operand.vmem [shape: f32[2,16], index: 1, kind: input, shape index: {}]
  %s2 = inlined_call_operand.hbm [shape: bf16[2,256,768], index: 2, kind: input, shape index: {}]
  %s3 = inlined_call_operand.hbm [shape: f32[2,1,768], index: 3, kind: input, shape index: {}]
  %s4 = inlined_call_operand.hbm [shape: bf16[2,256,256], index: 4, kind: input, shape index: {}]
  %s5 = inlined_call_operand.hbm [shape: f32[2,1,256], index: 5, kind: input, shape index: {}]
  %s6 = inlined_call_operand.hbm [shape: f32[2,1,256], index: 6, kind: input, shape index: {}]
  %s7 = inlined_call_operand.hbm [shape: f32[2,1,256], index: 7, kind: input, shape index: {}]
  %s8 = inlined_call_operand.hbm [shape: bf16[2,256,1024], index: 8, kind: input, shape index: {}]
  %s9 = inlined_call_operand.hbm [shape: f32[2,1,1024], index: 9, kind: input, shape index: {}]
  %s10 = inlined_call_operand.hbm [shape: bf16[2,1024,256], index: 10, kind: input, shape index: {}]
  %s11 = inlined_call_operand.hbm [shape: f32[2,1,256], index: 11, kind: input, shape index: {}]
  %s12 = inlined_call_operand.hbm [shape: f32[2,1,256], index: 12, kind: input, shape index: {}]
  %s13 = inlined_call_operand.hbm [shape: f32[2,1,256], index: 13, kind: input, shape index: {}]
  %s14 = inlined_call_operand.vmem [shape: f32[32,256], index: 14, kind: output, shape index: {}]
  %s15 = sld [smem:[#allocation0]]
  $region145: #{pmodel_forward.2} parent=0
    _
  %s17 = ssub.s32 1, %s15
  %s18 = scalar_select 0, %s17, %s15
  $region1: #{pmodel_forward.2} parent=0
    #allocation3 [shape = 'u8[786432]{0}', space=vmem, size = 0xc0000, scoped, tag = 'input window, operand 2']
    #allocation4 [shape = 's32[2]{0}', space=sflag, size = 0x8, scoped, tag = 'scoped memory for pmodel_forward.2']
    #allocation5 [shape = 'u8[6144]{0}', space=vmem, size = 0x1800, scoped, tag = 'input window, operand 3']
    #allocation6 [shape = 's32[2]{0}', space=sflag, size = 0x8, scoped, tag = 'scoped memory for pmodel_forward.2']
    #allocation7 [shape = 'u8[262144]{0}', space=vmem, size = 0x40000, scoped, tag = 'input window, operand 4']
    #allocation8 [shape = 'u8[2048]{0}', space=vmem, size = 0x800, scoped, tag = 'input window, operand 5']
    #allocation9 [shape = 's32[2]{0}', space=sflag, size = 0x8, scoped, tag = 'scoped memory for pmodel_forward.2']
    #allocation10 [shape = 'u8[2048]{0}', space=vmem, size = 0x800, scoped, tag = 'input window, operand 6']
    #allocation11 [shape = 'u8[2048]{0}', space=vmem, size = 0x800, scoped, tag = 'input window, operand 7']
    #allocation12 [shape = 's32[2]{0}', space=sflag, size = 0x8, scoped, tag = 'scoped memory for pmodel_forward.2']
    #allocation13 [shape = 'u8[1048576]{0}', space=vmem, size = 0x100000, scoped, tag = 'input window, operand 8']
    #allocation14 [shape = 'u8[8192]{0}', space=vmem, size = 0x2000, scoped, tag = 'input window, operand 9']
    #allocation15 [shape = 's32[2]{0}', space=sflag, size = 0x8, scoped, tag = 'scoped memory for pmodel_forward.2']
    #allocation16 [shape = 'u8[1048576]{0}', space=vmem, size = 0x100000, scoped, tag = 'input window, operand 10']
    #allocation17 [shape = 'u8[2048]{0}', space=vmem, size = 0x800, scoped, tag = 'input window, operand 11']
    #allocation18 [shape = 's32[2]{0}', space=sflag, size = 0x8, scoped, tag = 'scoped memory for pmodel_forward.2']
    #allocation19 [shape = 'u8[2048]{0}', space=vmem, size = 0x800, scoped, tag = 'input window, operand 12']
    #allocation20 [shape = 'u8[2048]{0}', space=vmem, size = 0x800, scoped, tag = 'input window, operand 13']
    #allocation21 [shape = 's32[2]{0}', space=sflag, size = 0x8, scoped, tag = 'scoped memory for pmodel_forward.2']
    %19 = vsyncpa [#allocation4], 0
    %s20 = scalar_lea.sflag [#allocation4], 1
    %21 = vsyncpa %s20, 0
    %22 = vsyncpa [#allocation6], 0
    %s23 = scalar_lea.sflag [#allocation6], 1
    %24 = vsyncpa %s23, 0
    %25 = vsyncpa [#allocation9], 0
    %s26 = scalar_lea.sflag [#allocation9], 1
    %27 = vsyncpa %s26, 0
    %28 = vsyncpa [#allocation12], 0
    %s29 = scalar_lea.sflag [#allocation12], 1
    %30 = vsyncpa %s29, 0
    %31 = vsyncpa [#allocation15], 0
    %s32 = scalar_lea.sflag [#allocation15], 1
    %33 = vsyncpa %s32, 0
    %34 = vsyncpa [#allocation18], 0
    %s35 = scalar_lea.sflag [#allocation18], 1
    %36 = vsyncpa %s35, 0
    %37 = vsyncpa [#allocation21], 0
    %s38 = scalar_lea.sflag [#allocation21], 1
    %39 = vsyncpa %s38, 0
    loop: start=0, step=1, limit=4
    $region2: #{pmodel_forward.2} parent=1 // loop_pre_header
      _
    $region3: #{pmodel_forward.2} parent=1 // loop_header
      %s41 = sphi 0, %s45
      %p42 = scmp.ge.s32.totalorder %s41, 4
      %s49 = sphi 0, %s49
      %s51 = sphi 0, %s49
      %s52 = sphi 0, %s51
      %s66 = sphi 0, %s52
      %s70 = sphi 0, %s70
      %s72 = sphi 0, %s70
      %s73 = sphi 0, %s72
      %s87 = sphi 0, %s73
      %s93 = sphi 0, %s95
      %s96 = sphi 0, %s93
      %s97 = sphi 0, %s96
      %s113 = sphi 0, %s97
      %s119 = sphi 0, %s121
      %s122 = sphi 0, %s119
      %s123 = sphi 0, %s122
      %s139 = sphi 0, %s123
      %s145 = sphi 0, %s147
      %s148 = sphi 0, %s145
      %s149 = sphi 0, %s148
      %s165 = sphi 0, %s149
      %s171 = sphi 0, %s173
      %s174 = sphi 0, %s171
      %s175 = sphi 0, %s174
      %s191 = sphi 0, %s175
      %s197 = sphi 0, %s199
      %s200 = sphi 0, %s197
      %s201 = sphi 0, %s200
      %s217 = sphi 0, %s201
      %s223 = sphi 0, %s225
      %s226 = sphi 0, %s223
      %s227 = sphi 0, %s226
      %s243 = sphi 0, %s227
      %s249 = sphi 0, %s251
      %s252 = sphi 0, %s249
      %s253 = sphi 0, %s252
      %s269 = sphi 0, %s253
      %s275 = sphi 0, %s277
      %s278 = sphi 0, %s275
      %s279 = sphi 0, %s278
      %s295 = sphi 0, %s279
      %s301 = sphi 0, %s303
      %s304 = sphi 0, %s301
      %s305 = sphi 0, %s304
      %s321 = sphi 0, %s305
      %s327 = sphi 0, %s329
      %s330 = sphi 0, %s327
      %s331 = sphi 0, %s330
      %s347 = sphi 0, %s331
      %s353 = sphi 0, %s355
      %s356 = sphi 0, %s353
      %s357 = sphi 0, %s356
      %s373 = sphi 0, %s357
      %s379 = sphi 0, %s381
      %s382 = sphi 0, %s379
      %s383 = sphi 0, %s382
      %s399 = sphi 0, %s383
      %s403 = sphi 0, %s403
      %s405 = sphi 0, %s403
      %s406 = sphi 0, %s405
      %s420 = sphi 0, %s406
    $region4: #{pmodel_forward.2} parent=1 // loop_header_branch
      %44 = sbr.rel (%p42) target = $region8
    $region5: #{pmodel_forward.2} parent=1 // loop_body
      %s46 = ssub.s32 %s41, 1
      %s47 = ssub.s32 %s41, 2
      %s48 = sadd.s32 %s41, 1
      %s50 = sadd.s32 %s49, 1
      %p53 = scmp.eq.s32.totalorder %s41, 1
      %p54 = scmp.ne.s32.totalorder %s49, %s51
      %p55 = scmp.eq.s32.totalorder %s41, 0
      %p56 = por %p54, %p55
      %p57 = scmp.ne.s32.totalorder %s49, %s51
      %p58 = scmp.eq.s32.totalorder %s46, 1
      %p59 = por %p57, %p58
      %p60 = scmp.ne.s32.totalorder %s51, %s52
      %p61 = scmp.eq.s32.totalorder %s46, 0
      %p62 = por %p60, %p61
      %p63 = scmp.ne.s32.totalorder %s51, %s52
      %p64 = scmp.eq.s32.totalorder %s47, 1
      %p65 = por %p63, %p64
      %p67 = scmp.ne.s32.totalorder %s52, %s66
      %p68 = scmp.eq.s32.totalorder %s47, 0
      %p69 = por %p67, %p68
      %s71 = sadd.s32 %s70, 1
      %p74 = scmp.eq.s32.totalorder %s41, 1
      %p75 = scmp.ne.s32.totalorder %s70, %s72
      %p76 = scmp.eq.s32.totalorder %s41, 0
      %p77 = por %p75, %p76
      %p78 = scmp.ne.s32.totalorder %s70, %s72
      %p79 = scmp.eq.s32.totalorder %s46, 1
      %p80 = por %p78, %p79
      %p81 = scmp.ne.s32.totalorder %s72, %s73
      %p82 = scmp.eq.s32.totalorder %s46, 0
      %p83 = por %p81, %p82
      %p84 = scmp.ne.s32.totalorder %s72, %s73
      %p85 = scmp.eq.s32.totalorder %s47, 1
      %p86 = por %p84, %p85
      %p88 = scmp.ne.s32.totalorder %s73, %s87
      %p89 = scmp.eq.s32.totalorder %s47, 0
      %p90 = por %p88, %p89
      %s91 = ssub.s32 %s41, %s48
      %p92 = scmp.eq.s32.totalorder %s91, 0
      %s94 = sadd.s32 %s93, 1
      %s95 = scalar_select %p92, %s93, %s94
      %p98 = pneg %p92
      %p99 = scmp.eq.s32.totalorder %s41, 1
      %p100 = por %p98, %p99
      %p101 = scmp.ne.s32.totalorder %s93, %s96
      %p102 = scmp.eq.s32.totalorder %s41, 0
      %p103 = por %p101, %p102
      %p104 = scmp.ne.s32.totalorder %s93, %s96
      %p105 = scmp.eq.s32.totalorder %s46, 1
      %p106 = por %p104, %p105
      %p107 = scmp.ne.s32.totalorder %s96, %s97
      %p108 = scmp.eq.s32.totalorder %s46, 0
      %p109 = por %p107, %p108
      %p110 = scmp.ne.s32.totalorder %s96, %s97
      %p111 = scmp.eq.s32.totalorder %s47, 1
      %p112 = por %p110, %p111
      %p114 = scmp.ne.s32.totalorder %s97, %s113
      %p115 = scmp.eq.s32.totalorder %s47, 0
      %p116 = por %p114, %p115
      %s117 = ssub.s32 %s41, %s48
      %p118 = scmp.eq.s32.totalorder %s117, 0
      %s120 = sadd.s32 %s119, 1
      %s121 = scalar_select %p118, %s119, %s120
      %p124 = pneg %p118
      %p125 = scmp.eq.s32.totalorder %s41, 1
      %p126 = por %p124, %p125
      %p127 = scmp.ne.s32.totalorder %s119, %s122
      %p128 = scmp.eq.s32.totalorder %s41, 0
      %p129 = por %p127, %p128
      %p130 = scmp.ne.s32.totalorder %s119, %s122
      %p131 = scmp.eq.s32.totalorder %s46, 1
      %p132 = por %p130, %p131
      %p133 = scmp.ne.s32.totalorder %s122, %s123
      %p134 = scmp.eq.s32.totalorder %s46, 0
      %p135 = por %p133, %p134
      %p136 = scmp.ne.s32.totalorder %s122, %s123
      %p137 = scmp.eq.s32.totalorder %s47, 1
      %p138 = por %p136, %p137
      %p140 = scmp.ne.s32.totalorder %s123, %s139
      %p141 = scmp.eq.s32.totalorder %s47, 0
      %p142 = por %p140, %p141
      %s143 = ssub.s32 %s41, %s48
      %p144 = scmp.eq.s32.totalorder %s143, 0
      %s146 = sadd.s32 %s145, 1
      %s147 = scalar_select %p144, %s145, %s146
      %p150 = pneg %p144
      %p151 = scmp.eq.s32.totalorder %s41, 1
      %p152 = por %p150, %p151
      %p153 = scmp.ne.s32.totalorder %s145, %s148
      %p154 = scmp.eq.s32.totalorder %s41, 0
      %p155 = por %p153, %p154
      %p156 = scmp.ne.s32.totalorder %s145, %s148
      %p157 = scmp.eq.s32.totalorder %s46, 1
      %p158 = por %p156, %p157
      %p159 = scmp.ne.s32.totalorder %s148, %s149
      %p160 = scmp.eq.s32.totalorder %s46, 0
      %p161 = por %p159, %p160
      %p162 = scmp.ne.s32.totalorder %s148, %s149
      %p163 = scmp.eq.s32.totalorder %s47, 1
      %p164 = por %p162, %p163
      %p166 = scmp.ne.s32.totalorder %s149, %s165
      %p167 = scmp.eq.s32.totalorder %s47, 0
      %p168 = por %p166, %p167
      %s169 = ssub.s32 %s41, %s48
      %p170 = scmp.eq.s32.totalorder %s169, 0
      %s172 = sadd.s32 %s171, 1
      %s173 = scalar_select %p170, %s171, %s172
      %p176 = pneg %p170
      %p177 = scmp.eq.s32.totalorder %s41, 1
      %p178 = por %p176, %p177
      %p179 = scmp.ne.s32.totalorder %s171, %s174
      %p180 = scmp.eq.s32.totalorder %s41, 0
      %p181 = por %p179, %p180
      %p182 = scmp.ne.s32.totalorder %s171, %s174
      %p183 = scmp.eq.s32.totalorder %s46, 1
      %p184 = por %p182, %p183
      %p185 = scmp.ne.s32.totalorder %s174, %s175
      %p186 = scmp.eq.s32.totalorder %s46, 0
      %p187 = por %p185, %p186
      %p188 = scmp.ne.s32.totalorder %s174, %s175
      %p189 = scmp.eq.s32.totalorder %s47, 1
      %p190 = por %p188, %p189
      %p192 = scmp.ne.s32.totalorder %s175, %s191
      %p193 = scmp.eq.s32.totalorder %s47, 0
      %p194 = por %p192, %p193
      %s195 = ssub.s32 %s41, %s48
      %p196 = scmp.eq.s32.totalorder %s195, 0
      %s198 = sadd.s32 %s197, 1
      %s199 = scalar_select %p196, %s197, %s198
      %p202 = pneg %p196
      %p203 = scmp.eq.s32.totalorder %s41, 1
      %p204 = por %p202, %p203
      %p205 = scmp.ne.s32.totalorder %s197, %s200
      %p206 = scmp.eq.s32.totalorder %s41, 0
      %p207 = por %p205, %p206
      %p208 = scmp.ne.s32.totalorder %s197, %s200
      %p209 = scmp.eq.s32.totalorder %s46, 1
      %p210 = por %p208, %p209
      %p211 = scmp.ne.s32.totalorder %s200, %s201
      %p212 = scmp.eq.s32.totalorder %s46, 0
      %p213 = por %p211, %p212
      %p214 = scmp.ne.s32.totalorder %s200, %s201
      %p215 = scmp.eq.s32.totalorder %s47, 1
      %p216 = por %p214, %p215
      %p218 = scmp.ne.s32.totalorder %s201, %s217
      %p219 = scmp.eq.s32.totalorder %s47, 0
      %p220 = por %p218, %p219
      %s221 = ssub.s32 %s41, %s48
      %p222 = scmp.eq.s32.totalorder %s221, 0
      %s224 = sadd.s32 %s223, 1
      %s225 = scalar_select %p222, %s223, %s224
      %p228 = pneg %p222
      %p229 = scmp.eq.s32.totalorder %s41, 1
      %p230 = por %p228, %p229
      %p231 = scmp.ne.s32.totalorder %s223, %s226
      %p232 = scmp.eq.s32.totalorder %s41, 0
      %p233 = por %p231, %p232
      %p234 = scmp.ne.s32.totalorder %s223, %s226
      %p235 = scmp.eq.s32.totalorder %s46, 1
      %p236 = por %p234, %p235
      %p237 = scmp.ne.s32.totalorder %s226, %s227
      %p238 = scmp.eq.s32.totalorder %s46, 0
      %p239 = por %p237, %p238
      %p240 = scmp.ne.s32.totalorder %s226, %s227
      %p241 = scmp.eq.s32.totalorder %s47, 1
      %p242 = por %p240, %p241
      %p244 = scmp.ne.s32.totalorder %s227, %s243
      %p245 = scmp.eq.s32.totalorder %s47, 0
      %p246 = por %p244, %p245
      %s247 = ssub.s32 %s41, %s48
      %p248 = scmp.eq.s32.totalorder %s247, 0
      %s250 = sadd.s32 %s249, 1
      %s251 = scalar_select %p248, %s249, %s250
      %p254 = pneg %p248
      %p255 = scmp.eq.s32.totalorder %s41, 1
      %p256 = por %p254, %p255
      %p257 = scmp.ne.s32.totalorder %s249, %s252
      %p258 = scmp.eq.s32.totalorder %s41, 0
      %p259 = por %p257, %p258
      %p260 = scmp.ne.s32.totalorder %s249, %s252
      %p261 = scmp.eq.s32.totalorder %s46, 1
      %p262 = por %p260, %p261
      %p263 = scmp.ne.s32.totalorder %s252, %s253
      %p264 = scmp.eq.s32.totalorder %s46, 0
      %p265 = por %p263, %p264
      %p266 = scmp.ne.s32.totalorder %s252, %s253
      %p267 = scmp.eq.s32.totalorder %s47, 1
      %p268 = por %p266, %p267
      %p270 = scmp.ne.s32.totalorder %s253, %s269
      %p271 = scmp.eq.s32.totalorder %s47, 0
      %p272 = por %p270, %p271
      %s273 = ssub.s32 %s41, %s48
      %p274 = scmp.eq.s32.totalorder %s273, 0
      %s276 = sadd.s32 %s275, 1
      %s277 = scalar_select %p274, %s275, %s276
      %p280 = pneg %p274
      %p281 = scmp.eq.s32.totalorder %s41, 1
      %p282 = por %p280, %p281
      %p283 = scmp.ne.s32.totalorder %s275, %s278
      %p284 = scmp.eq.s32.totalorder %s41, 0
      %p285 = por %p283, %p284
      %p286 = scmp.ne.s32.totalorder %s275, %s278
      %p287 = scmp.eq.s32.totalorder %s46, 1
      %p288 = por %p286, %p287
      %p289 = scmp.ne.s32.totalorder %s278, %s279
      %p290 = scmp.eq.s32.totalorder %s46, 0
      %p291 = por %p289, %p290
      %p292 = scmp.ne.s32.totalorder %s278, %s279
      %p293 = scmp.eq.s32.totalorder %s47, 1
      %p294 = por %p292, %p293
      %p296 = scmp.ne.s32.totalorder %s279, %s295
      %p297 = scmp.eq.s32.totalorder %s47, 0
      %p298 = por %p296, %p297
      %s299 = ssub.s32 %s41, %s48
      %p300 = scmp.eq.s32.totalorder %s299, 0
      %s302 = sadd.s32 %s301, 1
      %s303 = scalar_select %p300, %s301, %s302
      %p306 = pneg %p300
      %p307 = scmp.eq.s32.totalorder %s41, 1
      %p308 = por %p306, %p307
      %p309 = scmp.ne.s32.totalorder %s301, %s304
      %p310 = scmp.eq.s32.totalorder %s41, 0
      %p311 = por %p309, %p310
      %p312 = scmp.ne.s32.totalorder %s301, %s304
      %p313 = scmp.eq.s32.totalorder %s46, 1
      %p314 = por %p312, %p313
      %p315 = scmp.ne.s32.totalorder %s304, %s305
      %p316 = scmp.eq.s32.totalorder %s46, 0
      %p317 = por %p315, %p316
      %p318 = scmp.ne.s32.totalorder %s304, %s305
      %p319 = scmp.eq.s32.totalorder %s47, 1
      %p320 = por %p318, %p319
      %p322 = scmp.ne.s32.totalorder %s305, %s321
      %p323 = scmp.eq.s32.totalorder %s47, 0
      %p324 = por %p322, %p323
      %s325 = ssub.s32 %s41, %s48
      %p326 = scmp.eq.s32.totalorder %s325, 0
      %s328 = sadd.s32 %s327, 1
      %s329 = scalar_select %p326, %s327, %s328
      %p332 = pneg %p326
      %p333 = scmp.eq.s32.totalorder %s41, 1
      %p334 = por %p332, %p333
      %p335 = scmp.ne.s32.totalorder %s327, %s330
      %p336 = scmp.eq.s32.totalorder %s41, 0
      %p337 = por %p335, %p336
      %p338 = scmp.ne.s32.totalorder %s327, %s330
      %p339 = scmp.eq.s32.totalorder %s46, 1
      %p340 = por %p338, %p339
      %p341 = scmp.ne.s32.totalorder %s330, %s331
      %p342 = scmp.eq.s32.totalorder %s46, 0
      %p343 = por %p341, %p342
      %p344 = scmp.ne.s32.totalorder %s330, %s331
      %p345 = scmp.eq.s32.totalorder %s47, 1
      %p346 = por %p344, %p345
      %p348 = scmp.ne.s32.totalorder %s331, %s347
      %p349 = scmp.eq.s32.totalorder %s47, 0
      %p350 = por %p348, %p349
      %s351 = ssub.s32 %s41, %s48
      %p352 = scmp.eq.s32.totalorder %s351, 0
      %s354 = sadd.s32 %s353, 1
      %s355 = scalar_select %p352, %s353, %s354
      %p358 = pneg %p352
      %p359 = scmp.eq.s32.totalorder %s41, 1
      %p360 = por %p358, %p359
      %p361 = scmp.ne.s32.totalorder %s353, %s356
      %p362 = scmp.eq.s32.totalorder %s41, 0
      %p363 = por %p361, %p362
      %p364 = scmp.ne.s32.totalorder %s353, %s356
      %p365 = scmp.eq.s32.totalorder %s46, 1
      %p366 = por %p364, %p365
      %p367 = scmp.ne.s32.totalorder %s356, %s357
      %p368 = scmp.eq.s32.totalorder %s46, 0
      %p369 = por %p367, %p368
      %p370 = scmp.ne.s32.totalorder %s356, %s357
      %p371 = scmp.eq.s32.totalorder %s47, 1
      %p372 = por %p370, %p371
      %p374 = scmp.ne.s32.totalorder %s357, %s373
      %p375 = scmp.eq.s32.totalorder %s47, 0
      %p376 = por %p374, %p375
      %s377 = ssub.s32 %s41, %s48
      %p378 = scmp.eq.s32.totalorder %s377, 0
      %s380 = sadd.s32 %s379, 1
      %s381 = scalar_select %p378, %s379, %s380
      %p384 = pneg %p378
      %p385 = scmp.eq.s32.totalorder %s41, 1
      %p386 = por %p384, %p385
      %p387 = scmp.ne.s32.totalorder %s379, %s382
      %p388 = scmp.eq.s32.totalorder %s41, 0
      %p389 = por %p387, %p388
      %p390 = scmp.ne.s32.totalorder %s379, %s382
      %p391 = scmp.eq.s32.totalorder %s46, 1
      %p392 = por %p390, %p391
      %p393 = scmp.ne.s32.totalorder %s382, %s383
      %p394 = scmp.eq.s32.totalorder %s46, 0
      %p395 = por %p393, %p394
      %p396 = scmp.ne.s32.totalorder %s382, %s383
      %p397 = scmp.eq.s32.totalorder %s47, 1
      %p398 = por %p396, %p397
      %p400 = scmp.ne.s32.totalorder %s383, %s399
      %p401 = scmp.eq.s32.totalorder %s47, 0
      %p402 = por %p400, %p401
      %s404 = sadd.s32 %s403, 1
      %p407 = scmp.eq.s32.totalorder %s41, 1
      %p408 = scmp.ne.s32.totalorder %s403, %s405
      %p409 = scmp.eq.s32.totalorder %s41, 0
      %p410 = por %p408, %p409
      %p411 = scmp.ne.s32.totalorder %s403, %s405
      %p412 = scmp.eq.s32.totalorder %s46, 1
      %p413 = por %p411, %p412
      %p414 = scmp.ne.s32.totalorder %s405, %s406
      %p415 = scmp.eq.s32.totalorder %s46, 0
      %p416 = por %p414, %p415
      %p417 = scmp.ne.s32.totalorder %s405, %s406
      %p418 = scmp.eq.s32.totalorder %s47, 1
      %p419 = por %p417, %p418
      %p421 = scmp.ne.s32.totalorder %s406, %s420
      %p422 = scmp.eq.s32.totalorder %s47, 0
      %p423 = por %p421, %p422
      %p424 = scmp.le.s32.totalorder 1, %s41
      %p425 = scmp.lt.s32.totalorder %s41, 3
      %p426 = pnand %p424, %p425
      %p427 = pneg %p426
      // Predicated region
      $region9: #{pmodel_forward.2} parent=5 // pred_check
        _
      $region10: #{pmodel_forward.2} parent=5 // pred_check_branch
        %429 = sbr.rel (%p426) target = $region12
      $region11: #{pmodel_forward.2} parent=5 // pred_region
        %s430 = ssub.s32 %s41, 1
        // Predicated region
        $region13: #{pmodel_forward.2} parent=11 // pred_check
          %p431 = pneg %p62
        $region14: #{pmodel_forward.2} parent=11 // pred_check_branch
          %433 = sbr.rel (%p431) target = $region16
        $region15: #{pmodel_forward.2} parent=11 // pred_region
          _
        $region16: #{pmodel_forward.2} parent=11 // pred_fallthru
          _
        // Predicated region
        $region17: #{pmodel_forward.2} parent=11 // pred_check
          %p434 = pneg %p83
        $region18: #{pmodel_forward.2} parent=11 // pred_check_branch
          %436 = sbr.rel (%p434) target = $region20
        $region19: #{pmodel_forward.2} parent=11 // pred_region
          _
        $region20: #{pmodel_forward.2} parent=11 // pred_fallthru
          _
      $region12: #{pmodel_forward.2} parent=5 // pred_fallthru
        _
      %p437 = scmp.lt.s32.totalorder %s41, 2
      // Predicated region
      $region21: #{pmodel_forward.2} parent=5 // pred_check
        %p438 = pneg %p437
      $region22: #{pmodel_forward.2} parent=5 // pred_check_branch
        %440 = sbr.rel (%p438) target = $region24
      $region23: #{pmodel_forward.2} parent=5 // pred_region
        // Predicated region
        $region25: #{pmodel_forward.2} parent=23 // pred_check
          %p441 = pneg %p103
        $region26: #{pmodel_forward.2} parent=23 // pred_check_branch
          %443 = sbr.rel (%p441) target = $region28
        $region27: #{pmodel_forward.2} parent=23 // pred_region
          %s444 = sand.u32 %s93, 1
          %s445 = scalar_lea.sflag [#allocation4], %s444
          %s446 = sand.u32 %s93, 1
          %s447 = smul.addr %s446, 768
          %s448 = scalar_lea.vmem [#allocation3], %s447
          %s450 = ssub.s32 12288, 12288
          %451 = vsyncadd %s445, %s450
          %s452 = smul.addr %s41, 192
          %s453 = smul.addr %s452, 64
          %s454 = scalar_lea.hbm %s2, %s453
          %s455 = sshll.u32 %s448, 4
          %s456 = int_to_ptr.vmem [resolvable:$true] %s455
          %461 = dma.hbm_to_vmem [thread:$0]  %s454, 12288, %s456, %s445, 384, 384, 24
        $region28: #{pmodel_forward.2} parent=23 // pred_fallthru
          _
        // Predicated region
        $region29: #{pmodel_forward.2} parent=23 // pred_check
          %p462 = pneg %p129
        $region30: #{pmodel_forward.2} parent=23 // pred_check_branch
          %464 = sbr.rel (%p462) target = $region32
        $region31: #{pmodel_forward.2} parent=23 // pred_region
          %s465 = sand.u32 %s41, 1
          %s466 = scalar_lea.sflag [#allocation6], %s465
          %s467 = sand.u32 %s119, 1
          %s468 = smul.addr %s467, 6
          %s469 = scalar_lea.vmem [#allocation5], %s468
          %s471 = ssub.s32 96, 96
          %472 = vsyncadd %s466, %s471
          %s473 = smul.addr %s41, 6
          %s474 = smul.addr %s473, 16
          %s475 = scalar_lea.hbm %s3, %s474
          %s477 = sshll.u32 %s469, 4
          %s478 = int_to_ptr.vmem [resolvable:$true] %s477
          %480 = dma.hbm_to_vmem [thread:$0]  %s475, 96, %s478, %s466
        $region32: #{pmodel_forward.2} parent=23 // pred_fallthru
          _
        // Predicated region
        $region33: #{pmodel_forward.2} parent=23 // pred_check
          %p481 = pneg %p155
        $region34: #{pmodel_forward.2} parent=23 // pred_check_branch
          %483 = sbr.rel (%p481) target = $region36
        $region35: #{pmodel_forward.2} parent=23 // pred_region
          %s484 = sand.u32 %s41, 1
          %s485 = scalar_lea.sflag [#allocation6], %s484
          %s486 = sand.u32 %s145, 1
          %s487 = smul.addr %s486, 256
          %s488 = scalar_lea.vmem [#allocation7], %s487
          %s490 = ssub.s32 4096, 4096
          %491 = vsyncadd %s485, %s490
          %s492 = smul.addr %s41, 64
          %s493 = smul.addr %s492, 64
          %s494 = scalar_lea.hbm %s4, %s493
          %s495 = sshll.u32 %s488, 4
          %s496 = int_to_ptr.vmem [resolvable:$true] %s495
          %501 = dma.hbm_to_vmem [thread:$0]  %s494, 4096, %s496, %s485, 128, 128, 8
        $region36: #{pmodel_forward.2} parent=23 // pred_fallthru
          _
        // Predicated region
        $region37: #{pmodel_forward.2} parent=23 // pred_check
          %p502 = pneg %p181
        $region38: #{pmodel_forward.2} parent=23 // pred_check_branch
          %504 = sbr.rel (%p502) target = $region40
        $region39: #{pmodel_forward.2} parent=23 // pred_region
          %s505 = sand.u32 %s41, 1
          %s506 = scalar_lea.sflag [#allocation9], %s505
          %s507 = sand.u32 %s171, 1
          %s508 = smul.addr %s507, 2
          %s509 = scalar_lea.vmem [#allocation8], %s508
          %s511 = ssub.s32 32, 32
          %512 = vsyncadd %s506, %s511
          %s513 = smul.addr %s41, 2
          %s514 = smul.addr %s513, 16
          %s515 = scalar_lea.hbm %s5, %s514
          %s517 = sshll.u32 %s509, 4
          %s518 = int_to_ptr.vmem [resolvable:$true] %s517
          %520 = dma.hbm_to_vmem [thread:$0]  %s515, 32, %s518, %s506
        $region40: #{pmodel_forward.2} parent=23 // pred_fallthru
          _
        // Predicated region
        $region41: #{pmodel_forward.2} parent=23 // pred_check
          %p521 = pneg %p207
        $region42: #{pmodel_forward.2} parent=23 // pred_check_branch
          %523 = sbr.rel (%p521) target = $region44
        $region43: #{pmodel_forward.2} parent=23 // pred_region
          %s524 = sand.u32 %s41, 1
          %s525 = scalar_lea.sflag [#allocation9], %s524
          %s526 = sand.u32 %s197, 1
          %s527 = smul.addr %s526, 2
          %s528 = scalar_lea.vmem [#allocation10], %s527
          %s530 = ssub.s32 32, 32
          %531 = vsyncadd %s525, %s530
          %s532 = smul.addr %s41, 2
          %s533 = smul.addr %s532, 16
          %s534 = scalar_lea.hbm %s6, %s533
          %s536 = sshll.u32 %s528, 4
          %s537 = int_to_ptr.vmem [resolvable:$true] %s536
          %539 = dma.hbm_to_vmem [thread:$0]  %s534, 32, %s537, %s525
        $region44: #{pmodel_forward.2} parent=23 // pred_fallthru
          _
        // Predicated region
        $region45: #{pmodel_forward.2} parent=23 // pred_check
          %p540 = pneg %p233
        $region46: #{pmodel_forward.2} parent=23 // pred_check_branch
          %542 = sbr.rel (%p540) target = $region48
        $region47: #{pmodel_forward.2} parent=23 // pred_region
          %s543 = sand.u32 %s41, 1
          %s544 = scalar_lea.sflag [#allocation12], %s543
          %s545 = sand.u32 %s223, 1
          %s546 = smul.addr %s545, 2
          %s547 = scalar_lea.vmem [#allocation11], %s546
          %s549 = ssub.s32 32, 32
          %550 = vsyncadd %s544, %s549
          %s551 = smul.addr %s41, 2
          %s552 = smul.addr %s551, 16
          %s553 = scalar_lea.hbm %s7, %s552
          %s555 = sshll.u32 %s547, 4
          %s556 = int_to_ptr.vmem [resolvable:$true] %s555
          %558 = dma.hbm_to_vmem [thread:$0]  %s553, 32, %s556, %s544
        $region48: #{pmodel_forward.2} parent=23 // pred_fallthru
          _
        // Predicated region
        $region49: #{pmodel_forward.2} parent=23 // pred_check
          %p559 = pneg %p259
        $region50: #{pmodel_forward.2} parent=23 // pred_check_branch
          %561 = sbr.rel (%p559) target = $region52
        $region51: #{pmodel_forward.2} parent=23 // pred_region
          %s562 = sand.u32 %s41, 1
          %s563 = scalar_lea.sflag [#allocation12], %s562
          %s564 = sand.u32 %s249, 1
          %s565 = smul.addr %s564, 1024
          %s566 = scalar_lea.vmem [#allocation13], %s565
          %s568 = ssub.s32 16384, 16384
          %569 = vsyncadd %s563, %s568
          %s570 = smul.addr %s41, 256
          %s571 = smul.addr %s570, 64
          %s572 = scalar_lea.hbm %s8, %s571
          %s573 = sshll.u32 %s566, 4
          %s574 = int_to_ptr.vmem [resolvable:$true] %s573
          %579 = dma.hbm_to_vmem [thread:$0]  %s572, 16384, %s574, %s563, 512, 512, 32
        $region52: #{pmodel_forward.2} parent=23 // pred_fallthru
          _
        // Predicated region
        $region53: #{pmodel_forward.2} parent=23 // pred_check
          %p580 = pneg %p285
        $region54: #{pmodel_forward.2} parent=23 // pred_check_branch
          %582 = sbr.rel (%p580) target = $region56
        $region55: #{pmodel_forward.2} parent=23 // pred_region
          %s583 = sand.u32 %s41, 1
          %s584 = scalar_lea.sflag [#allocation15], %s583
          %s585 = sand.u32 %s275, 1
          %s586 = smul.addr %s585, 8
          %s587 = scalar_lea.vmem [#allocation14], %s586
          %s589 = ssub.s32 128, 128
          %590 = vsyncadd %s584, %s589
          %s591 = smul.addr %s41, 8
          %s592 = smul.addr %s591, 16
          %s593 = scalar_lea.hbm %s9, %s592
          %s595 = sshll.u32 %s587, 4
          %s596 = int_to_ptr.vmem [resolvable:$true] %s595
          %598 = dma.hbm_to_vmem [thread:$0]  %s593, 128, %s596, %s584
        $region56: #{pmodel_forward.2} parent=23 // pred_fallthru
          _
        // Predicated region
        $region57: #{pmodel_forward.2} parent=23 // pred_check
          %p599 = pneg %p311
        $region58: #{pmodel_forward.2} parent=23 // pred_check_branch
          %601 = sbr.rel (%p599) target = $region60
        $region59: #{pmodel_forward.2} parent=23 // pred_region
          %s602 = sand.u32 %s41, 1
          %s603 = scalar_lea.sflag [#allocation15], %s602
          %s604 = sand.u32 %s301, 1
          %s605 = smul.addr %s604, 1024
          %s606 = scalar_lea.vmem [#allocation16], %s605
          %s608 = ssub.s32 16384, 16384
          %609 = vsyncadd %s603, %s608
          %s610 = smul.addr %s41, 256
          %s611 = smul.addr %s610, 64
          %s612 = scalar_lea.hbm %s10, %s611
          %s613 = sshll.u32 %s606, 4
          %s614 = int_to_ptr.vmem [resolvable:$true] %s613
          %619 = dma.hbm_to_vmem [thread:$0]  %s612, 16384, %s614, %s603, 128, 128, 8
        $region60: #{pmodel_forward.2} parent=23 // pred_fallthru
          _
        // Predicated region
        $region61: #{pmodel_forward.2} parent=23 // pred_check
          %p620 = pneg %p337
        $region62: #{pmodel_forward.2} parent=23 // pred_check_branch
          %622 = sbr.rel (%p620) target = $region64
        $region63: #{pmodel_forward.2} parent=23 // pred_region
          %s623 = sand.u32 %s41, 1
          %s624 = scalar_lea.sflag [#allocation18], %s623
          %s625 = sand.u32 %s327, 1
          %s626 = smul.addr %s625, 2
          %s627 = scalar_lea.vmem [#allocation17], %s626
          %s629 = ssub.s32 32, 32
          %630 = vsyncadd %s624, %s629
          %s631 = smul.addr %s41, 2
          %s632 = smul.addr %s631, 16
          %s633 = scalar_lea.hbm %s11, %s632
          %s635 = sshll.u32 %s627, 4
          %s636 = int_to_ptr.vmem [resolvable:$true] %s635
          %638 = dma.hbm_to_vmem [thread:$0]  %s633, 32, %s636, %s624
        $region64: #{pmodel_forward.2} parent=23 // pred_fallthru
          _
        // Predicated region
        $region65: #{pmodel_forward.2} parent=23 // pred_check
          %p639 = pneg %p363
        $region66: #{pmodel_forward.2} parent=23 // pred_check_branch
          %641 = sbr.rel (%p639) target = $region68
        $region67: #{pmodel_forward.2} parent=23 // pred_region
          %s642 = sand.u32 %s41, 1
          %s643 = scalar_lea.sflag [#allocation18], %s642
          %s644 = sand.u32 %s353, 1
          %s645 = smul.addr %s644, 2
          %s646 = scalar_lea.vmem [#allocation19], %s645
          %s648 = ssub.s32 32, 32
          %649 = vsyncadd %s643, %s648
          %s650 = smul.addr %s41, 2
          %s651 = smul.addr %s650, 16
          %s652 = scalar_lea.hbm %s12, %s651
          %s654 = sshll.u32 %s646, 4
          %s655 = int_to_ptr.vmem [resolvable:$true] %s654
          %657 = dma.hbm_to_vmem [thread:$0]  %s652, 32, %s655, %s643
        $region68: #{pmodel_forward.2} parent=23 // pred_fallthru
          _
        // Predicated region
        $region69: #{pmodel_forward.2} parent=23 // pred_check
          %p658 = pneg %p389
        $region70: #{pmodel_forward.2} parent=23 // pred_check_branch
          %660 = sbr.rel (%p658) target = $region72
        $region71: #{pmodel_forward.2} parent=23 // pred_region
          %s661 = sand.u32 %s379, 1
          %s662 = scalar_lea.sflag [#allocation21], %s661
          %s663 = sand.u32 %s379, 1
          %s664 = smul.addr %s663, 2
          %s665 = scalar_lea.vmem [#allocation20], %s664
          %s667 = ssub.s32 32, 32
          %668 = vsyncadd %s662, %s667
          %s669 = smul.addr %s41, 2
          %s670 = smul.addr %s669, 16
          %s671 = scalar_lea.hbm %s13, %s670
          %s673 = sshll.u32 %s665, 4
          %s674 = int_to_ptr.vmem [resolvable:$true] %s673
          %676 = dma.hbm_to_vmem [thread:$0]  %s671, 32, %s674, %s662
        $region72: #{pmodel_forward.2} parent=23 // pred_fallthru
          _
      $region24: #{pmodel_forward.2} parent=5 // pred_fallthru
        _
      %p677 = scmp.le.s32.totalorder 1, %s41
      %p678 = scmp.lt.s32.totalorder %s41, 3
      %p679 = pnand %p677, %p678
      %p680 = pneg %p679
      // Predicated region
      $region73: #{pmodel_forward.2} parent=5 // pred_check
        _
      $region74: #{pmodel_forward.2} parent=5 // pred_check_branch
        %682 = sbr.rel (%p679) target = $region76
      $region75: #{pmodel_forward.2} parent=5 // pred_region
        %s683 = ssub.s32 %s41, 1
        %s684 = sand.u32 %s96, 1
        %s685 = scalar_lea.sflag [#allocation4], %s684
        %s686 = sand.u32 %s96, 1
        %s687 = smul.addr %s686, 768
        %s688 = scalar_lea.vmem [#allocation3], %s687
        // Predicated region
        $region77: #{pmodel_forward.2} parent=75 // pred_check
          %p689 = pneg %p109
        $region78: #{pmodel_forward.2} parent=75 // pred_check_branch
          %691 = sbr.rel (%p689) target = $region80
        $region79: #{pmodel_forward.2} parent=75 // pred_region
          %692 = dma.done %s685, 12288
        $region80: #{pmodel_forward.2} parent=75 // pred_fallthru
          _
        %s693 = sand.u32 %s46, 1
        %s694 = scalar_lea.sflag [#allocation6], %s693
        %s695 = sand.u32 %s122, 1
        %s696 = smul.addr %s695, 6
        %s697 = scalar_lea.vmem [#allocation5], %s696
        // Predicated region
        $region81: #{pmodel_forward.2} parent=75 // pred_check
          %p698 = pneg %p135
        $region82: #{pmodel_forward.2} parent=75 // pred_check_branch
          %700 = sbr.rel (%p698) target = $region84
        $region83: #{pmodel_forward.2} parent=75 // pred_region
          %701 = dma.done %s694, 96
        $region84: #{pmodel_forward.2} parent=75 // pred_fallthru
          _
        %s702 = sand.u32 %s46, 1
        %s703 = scalar_lea.sflag [#allocation6], %s702
        %s704 = sand.u32 %s148, 1
        %s705 = smul.addr %s704, 256
        %s706 = scalar_lea.vmem [#allocation7], %s705
        // Predicated region
        $region85: #{pmodel_forward.2} parent=75 // pred_check
          %p707 = pneg %p161
        $region86: #{pmodel_forward.2} parent=75 // pred_check_branch
          %709 = sbr.rel (%p707) target = $region88
        $region87: #{pmodel_forward.2} parent=75 // pred_region
          %710 = dma.done %s703, 4096
        $region88: #{pmodel_forward.2} parent=75 // pred_fallthru
          _
        %s711 = sand.u32 %s46, 1
        %s712 = scalar_lea.sflag [#allocation9], %s711
        %s713 = sand.u32 %s174, 1
        %s714 = smul.addr %s713, 2
        %s715 = scalar_lea.vmem [#allocation8], %s714
        // Predicated region
        $region89: #{pmodel_forward.2} parent=75 // pred_check
          %p716 = pneg %p187
        $region90: #{pmodel_forward.2} parent=75 // pred_check_branch
          %718 = sbr.rel (%p716) target = $region92
        $region91: #{pmodel_forward.2} parent=75 // pred_region
          %719 = dma.done %s712, 32
        $region92: #{pmodel_forward.2} parent=75 // pred_fallthru
          _
        %s720 = sand.u32 %s46, 1
        %s721 = scalar_lea.sflag [#allocation9], %s720
        %s722 = sand.u32 %s200, 1
        %s723 = smul.addr %s722, 2
        %s724 = scalar_lea.vmem [#allocation10], %s723
        // Predicated region
        $region93: #{pmodel_forward.2} parent=75 // pred_check
          %p725 = pneg %p213
        $region94: #{pmodel_forward.2} parent=75 // pred_check_branch
          %727 = sbr.rel (%p725) target = $region96
        $region95: #{pmodel_forward.2} parent=75 // pred_region
          %728 = dma.done %s721, 32
        $region96: #{pmodel_forward.2} parent=75 // pred_fallthru
          _
        %s729 = sand.u32 %s46, 1
        %s730 = scalar_lea.sflag [#allocation12], %s729
        %s731 = sand.u32 %s226, 1
        %s732 = smul.addr %s731, 2
        %s733 = scalar_lea.vmem [#allocation11], %s732
        // Predicated region
        $region97: #{pmodel_forward.2} parent=75 // pred_check
          %p734 = pneg %p239
        $region98: #{pmodel_forward.2} parent=75 // pred_check_branch
          %736 = sbr.rel (%p734) target = $region100
        $region99: #{pmodel_forward.2} parent=75 // pred_region
          %737 = dma.done %s730, 32
        $region100: #{pmodel_forward.2} parent=75 // pred_fallthru
          _
        %s738 = sand.u32 %s46, 1
        %s739 = scalar_lea.sflag [#allocation12], %s738
        %s740 = sand.u32 %s252, 1
        %s741 = smul.addr %s740, 1024
        %s742 = scalar_lea.vmem [#allocation13], %s741
        // Predicated region
        $region101: #{pmodel_forward.2} parent=75 // pred_check
          %p743 = pneg %p265
        $region102: #{pmodel_forward.2} parent=75 // pred_check_branch
          %745 = sbr.rel (%p743) target = $region104
        $region103: #{pmodel_forward.2} parent=75 // pred_region
          %746 = dma.done %s739, 16384
        $region104: #{pmodel_forward.2} parent=75 // pred_fallthru
          _
        %s747 = sand.u32 %s46, 1
        %s748 = scalar_lea.sflag [#allocation15], %s747
        %s749 = sand.u32 %s278, 1
        %s750 = smul.addr %s749, 8
        %s751 = scalar_lea.vmem [#allocation14], %s750
        // Predicated region
        $region105: #{pmodel_forward.2} parent=75 // pred_check
          %p752 = pneg %p291
        $region106: #{pmodel_forward.2} parent=75 // pred_check_branch
          %754 = sbr.rel (%p752) target = $region108
        $region107: #{pmodel_forward.2} parent=75 // pred_region
          %755 = dma.done %s748, 128
        $region108: #{pmodel_forward.2} parent=75 // pred_fallthru
          _
        %s756 = sand.u32 %s46, 1
        %s757 = scalar_lea.sflag [#allocation15], %s756
        %s758 = sand.u32 %s304, 1
        %s759 = smul.addr %s758, 1024
        %s760 = scalar_lea.vmem [#allocation16], %s759
        // Predicated region
        $region109: #{pmodel_forward.2} parent=75 // pred_check
          %p761 = pneg %p317
        $region110: #{pmodel_forward.2} parent=75 // pred_check_branch
          %763 = sbr.rel (%p761) target = $region112
        $region111: #{pmodel_forward.2} parent=75 // pred_region
          %764 = dma.done %s757, 16384
        $region112: #{pmodel_forward.2} parent=75 // pred_fallthru
          _
        %s765 = sand.u32 %s46, 1
        %s766 = scalar_lea.sflag [#allocation18], %s765
        %s767 = sand.u32 %s330, 1
        %s768 = smul.addr %s767, 2
        %s769 = scalar_lea.vmem [#allocation17], %s768
        // Predicated region
        $region113: #{pmodel_forward.2} parent=75 // pred_check
          %p770 = pneg %p343
        $region114: #{pmodel_forward.2} parent=75 // pred_check_branch
          %772 = sbr.rel (%p770) target = $region116
        $region115: #{pmodel_forward.2} parent=75 // pred_region
          %773 = dma.done %s766, 32
        $region116: #{pmodel_forward.2} parent=75 // pred_fallthru
          _
        %s774 = sand.u32 %s46, 1
        %s775 = scalar_lea.sflag [#allocation18], %s774
        %s776 = sand.u32 %s356, 1
        %s777 = smul.addr %s776, 2
        %s778 = scalar_lea.vmem [#allocation19], %s777
        // Predicated region
        $region117: #{pmodel_forward.2} parent=75 // pred_check
          %p779 = pneg %p369
        $region118: #{pmodel_forward.2} parent=75 // pred_check_branch
          %781 = sbr.rel (%p779) target = $region120
        $region119: #{pmodel_forward.2} parent=75 // pred_region
          %782 = dma.done %s775, 32
        $region120: #{pmodel_forward.2} parent=75 // pred_fallthru
          _
        %s783 = sand.u32 %s382, 1
        %s784 = scalar_lea.sflag [#allocation21], %s783
        %s785 = sand.u32 %s382, 1
        %s786 = smul.addr %s785, 2
        %s787 = scalar_lea.vmem [#allocation20], %s786
        // Predicated region
        $region121: #{pmodel_forward.2} parent=75 // pred_check
          %p788 = pneg %p395
        $region122: #{pmodel_forward.2} parent=75 // pred_check_branch
          %790 = sbr.rel (%p788) target = $region124
        $region123: #{pmodel_forward.2} parent=75 // pred_region
          %791 = dma.done %s784, 32
        $region124: #{pmodel_forward.2} parent=75 // pred_fallthru
          _
        %p792 = pneg %p62
        %p793 = pneg %p59
        %p794 = pneg %p83
        %p795 = pneg %p80
        %s796 = sand.u32 %s96, 1
        %s797 = scalar_lea.sflag [#allocation4], %s796
        %s798 = sand.u32 %s96, 1
        %s799 = smul.addr %s798, 768
        %s800 = scalar_lea.vmem [#allocation3], %s799
        %p801 = pneg %p109
        %p802 = pneg %p106
        %s803 = sand.u32 %s46, 1
        %s804 = scalar_lea.sflag [#allocation6], %s803
        %s805 = sand.u32 %s122, 1
        %s806 = smul.addr %s805, 6
        %s807 = scalar_lea.vmem [#allocation5], %s806
        %p808 = pneg %p135
        %p809 = pneg %p132
        %s810 = sand.u32 %s46, 1
        %s811 = scalar_lea.sflag [#allocation6], %s810
        %s812 = sand.u32 %s148, 1
        %s813 = smul.addr %s812, 256
        %s814 = scalar_lea.vmem [#allocation7], %s813
        %p815 = pneg %p161
        %p816 = pneg %p158
        %s817 = sand.u32 %s46, 1
        %s818 = scalar_lea.sflag [#allocation9], %s817
        %s819 = sand.u32 %s174, 1
        %s820 = smul.addr %s819, 2
        %s821 = scalar_lea.vmem [#allocation8], %s820
        %p822 = pneg %p187
        %p823 = pneg %p184
        %s824 = sand.u32 %s46, 1
        %s825 = scalar_lea.sflag [#allocation9], %s824
        %s826 = sand.u32 %s200, 1
        %s827 = smul.addr %s826, 2
        %s828 = scalar_lea.vmem [#allocation10], %s827
        %p829 = pneg %p213
        %p830 = pneg %p210
        %s831 = sand.u32 %s46, 1
        %s832 = scalar_lea.sflag [#allocation12], %s831
        %s833 = sand.u32 %s226, 1
        %s834 = smul.addr %s833, 2
        %s835 = scalar_lea.vmem [#allocation11], %s834
        %p836 = pneg %p239
        %p837 = pneg %p236
        %s838 = sand.u32 %s46, 1
        %s839 = scalar_lea.sflag [#allocation12], %s838
        %s840 = sand.u32 %s252, 1
        %s841 = smul.addr %s840, 1024
        %s842 = scalar_lea.vmem [#allocation13], %s841
        %p843 = pneg %p265
        %p844 = pneg %p262
        %s845 = sand.u32 %s46, 1
        %s846 = scalar_lea.sflag [#allocation15], %s845
        %s847 = sand.u32 %s278, 1
        %s848 = smul.addr %s847, 8
        %s849 = scalar_lea.vmem [#allocation14], %s848
        %p850 = pneg %p291
        %p851 = pneg %p288
        %s852 = sand.u32 %s46, 1
        %s853 = scalar_lea.sflag [#allocation15], %s852
        %s854 = sand.u32 %s304, 1
        %s855 = smul.addr %s854, 1024
        %s856 = scalar_lea.vmem [#allocation16], %s855
        %p857 = pneg %p317
        %p858 = pneg %p314
        %s859 = sand.u32 %s46, 1
        %s860 = scalar_lea.sflag [#allocation18], %s859
        %s861 = sand.u32 %s330, 1
        %s862 = smul.addr %s861, 2
        %s863 = scalar_lea.vmem [#allocation17], %s862
        %p864 = pneg %p343
        %p865 = pneg %p340
        %s866 = sand.u32 %s46, 1
        %s867 = scalar_lea.sflag [#allocation18], %s866
        %s868 = sand.u32 %s356, 1
        %s869 = smul.addr %s868, 2
        %s870 = scalar_lea.vmem [#allocation19], %s869
        %p871 = pneg %p369
        %p872 = pneg %p366
        %s873 = sand.u32 %s382, 1
        %s874 = scalar_lea.sflag [#allocation21], %s873
        %s875 = sand.u32 %s382, 1
        %s876 = smul.addr %s875, 2
        %s877 = scalar_lea.vmem [#allocation20], %s876
        %p878 = pneg %p395
        %p879 = pneg %p392
        %p880 = pneg %p416
        %p881 = pneg %p413
        %p883 = scmp.eq.s32.totalorder %s46, 0
        // Predicated region
        $region125: #{pmodel_forward.2} parent=75 // pred_check
          %p884 = pneg %p883
        $region126: #{pmodel_forward.2} parent=75 // pred_check_branch
          %886 = sbr.rel (%p884) target = $region128
        $region127: #{pmodel_forward.2} parent=75 // pred_region
          %v887 = vld [vmem:[%s0] sm:$0xff]
          %v888 = vld [vmem:[%s0 + $0x8] sm:$0xff]
          %v889 = vld [vmem:[%s0 + $0x10] sm:$0xff]
          %v890 = vld [vmem:[%s0 + $0x18] sm:$0xff]
          %v891 = vld [vmem:[%s0 + $0x20] sm:$0xff]
          %v892 = vld [vmem:[%s0 + $0x28] sm:$0xff]
          %v893 = vld [vmem:[%s0 + $0x30] sm:$0xff]
          %v894 = vld [vmem:[%s0 + $0x38] sm:$0xff]
          %895 = vst [vmem:[#allocation2] sm:$0xff] %v887
          %896 = vst [vmem:[#allocation2 + $0x8] sm:$0xff] %v888
          %897 = vst [vmem:[#allocation2 + $0x10] sm:$0xff] %v889
          %898 = vst [vmem:[#allocation2 + $0x18] sm:$0xff] %v890
          %899 = vst [vmem:[#allocation2 + $0x20] sm:$0xff] %v891
          %900 = vst [vmem:[#allocation2 + $0x28] sm:$0xff] %v892
          %901 = vst [vmem:[#allocation2 + $0x30] sm:$0xff] %v893
          %902 = vst [vmem:[#allocation2 + $0x38] sm:$0xff] %v894
        $region128: #{pmodel_forward.2} parent=75 // pred_fallthru
          _
        %v903 = vld [vmem:[#allocation2] sm:$0xff]
        %v904 = vld [vmem:[#allocation2 + $0x8] sm:$0xff]
        %v905 = vld [vmem:[#allocation2 + $0x10] sm:$0xff]
        %v906 = vld [vmem:[#allocation2 + $0x18] sm:$0xff]
        %v907 = vld [vmem:[#allocation2 + $0x20] sm:$0xff]
        %v908 = vld [vmem:[#allocation2 + $0x28] sm:$0xff]
        %v909 = vld [vmem:[#allocation2 + $0x30] sm:$0xff]
        %v910 = vld [vmem:[#allocation2 + $0x38] sm:$0xff]
        %v911 = vpack.c.bf16 %v905, %v903
        %v912 = vpack.c.bf16 %v906, %v904
        %v913 = vpack.c.bf16 %v909, %v907
        %v914 = vpack.c.bf16 %v910, %v908
        %v915 = vld [vmem:[%s688] sm:$0xff]
        %v916 = vld [vmem:[%s688 + $0x8] sm:$0xff]
        %v917 = vld [vmem:[%s688 + $0x10] sm:$0xff]
        %v918 = vld [vmem:[%s688 + $0x18] sm:$0xff]
        %v919 = vld [vmem:[%s688 + $0x20] sm:$0xff]
        %v920 = vld [vmem:[%s688 + $0x28] sm:$0xff]
        %v921 = vld [vmem:[%s688 + $0x30] sm:$0xff]
        %v922 = vld [vmem:[%s688 + $0x38] sm:$0xff]
        %v923 = vld [vmem:[%s688 + $0x40] sm:$0xff]
        %v924 = vld [vmem:[%s688 + $0x48] sm:$0xff]
        %v925 = vld [vmem:[%s688 + $0x50] sm:$0xff]
        %v926 = vld [vmem:[%s688 + $0x58] sm:$0xff]
        %v927 = vld [vmem:[%s688 + $0x60] sm:$0xff]
        %v928 = vld [vmem:[%s688 + $0x68] sm:$0xff]
        %v929 = vld [vmem:[%s688 + $0x70] sm:$0xff]
        %v930 = vld [vmem:[%s688 + $0x78] sm:$0xff]
        %v931 = vld [vmem:[%s688 + $0x80] sm:$0xff]
        %v932 = vld [vmem:[%s688 + $0x88] sm:$0xff]
        %v933 = vld [vmem:[%s688 + $0x90] sm:$0xff]
        %v934 = vld [vmem:[%s688 + $0x98] sm:$0xff]
        %v935 = vld [vmem:[%s688 + $0xa0] sm:$0xff]
        %v936 = vld [vmem:[%s688 + $0xa8] sm:$0xff]
        %v937 = vld [vmem:[%s688 + $0xb0] sm:$0xff]
        %v938 = vld [vmem:[%s688 + $0xb8] sm:$0xff]
        %v939 = vld [vmem:[%s688 + $0xc0] sm:$0xff]
        %v940 = vld [vmem:[%s688 + $0xc8] sm:$0xff]
        %v941 = vld [vmem:[%s688 + $0xd0] sm:$0xff]
        %v942 = vld [vmem:[%s688 + $0xd8] sm:$0xff]
        %v943 = vld [vmem:[%s688 + $0xe0] sm:$0xff]
        %v944 = vld [vmem:[%s688 + $0xe8] sm:$0xff]
        %v945 = vld [vmem:[%s688 + $0xf0] sm:$0xff]
        %v946 = vld [vmem:[%s688 + $0xf8] sm:$0xff]
        %v947 = vld [vmem:[%s688 + $0x100] sm:$0xff]
        %v948 = vld [vmem:[%s688 + $0x108] sm:$0xff]
        %v949 = vld [vmem:[%s688 + $0x110] sm:$0xff]
        %v950 = vld [vmem:[%s688 + $0x118] sm:$0xff]
        %v951 = vld [vmem:[%s688 + $0x120] sm:$0xff]
        %v952 = vld [vmem:[%s688 + $0x128] sm:$0xff]
        %v953 = vld [vmem:[%s688 + $0x130] sm:$0xff]
        %v954 = vld [vmem:[%s688 + $0x138] sm:$0xff]
        %v955 = vld [vmem:[%s688 + $0x140] sm:$0xff]
        %v956 = vld [vmem:[%s688 + $0x148] sm:$0xff]
        %v957 = vld [vmem:[%s688 + $0x150] sm:$0xff]
        %v958 = vld [vmem:[%s688 + $0x158] sm:$0xff]
        %v959 = vld [vmem:[%s688 + $0x160] sm:$0xff]
        %v960 = vld [vmem:[%s688 + $0x168] sm:$0xff]
        %v961 = vld [vmem:[%s688 + $0x170] sm:$0xff]
        %v962 = vld [vmem:[%s688 + $0x178] sm:$0xff]
        %v963 = vld [vmem:[%s688 + $0x180] sm:$0xff]
        %v964 = vld [vmem:[%s688 + $0x188] sm:$0xff]
        %v965 = vld [vmem:[%s688 + $0x190] sm:$0xff]
        %v966 = vld [vmem:[%s688 + $0x198] sm:$0xff]
        %v967 = vld [vmem:[%s688 + $0x1a0] sm:$0xff]
        %v968 = vld [vmem:[%s688 + $0x1a8] sm:$0xff]
        %v969 = vld [vmem:[%s688 + $0x1b0] sm:$0xff]
        %v970 = vld [vmem:[%s688 + $0x1b8] sm:$0xff]
        %v971 = vld [vmem:[%s688 + $0x1c0] sm:$0xff]
        %v972 = vld [vmem:[%s688 + $0x1c8] sm:$0xff]
        %v973 = vld [vmem:[%s688 + $0x1d0] sm:$0xff]
        %v974 = vld [vmem:[%s688 + $0x1d8] sm:$0xff]
        %v975 = vld [vmem:[%s688 + $0x1e0] sm:$0xff]
        %v976 = vld [vmem:[%s688 + $0x1e8] sm:$0xff]
        %v977 = vld [vmem:[%s688 + $0x1f0] sm:$0xff]
        %v978 = vld [vmem:[%s688 + $0x1f8] sm:$0xff]
        %v979 = vld [vmem:[%s688 + $0x200] sm:$0xff]
        %v980 = vld [vmem:[%s688 + $0x208] sm:$0xff]
        %v981 = vld [vmem:[%s688 + $0x210] sm:$0xff]
        %v982 = vld [vmem:[%s688 + $0x218] sm:$0xff]
        %v983 = vld [vmem:[%s688 + $0x220] sm:$0xff]
        %v984 = vld [vmem:[%s688 + $0x228] sm:$0xff]
        %v985 = vld [vmem:[%s688 + $0x230] sm:$0xff]
        %v986 = vld [vmem:[%s688 + $0x238] sm:$0xff]
        %v987 = vld [vmem:[%s688 + $0x240] sm:$0xff]
        %v988 = vld [vmem:[%s688 + $0x248] sm:$0xff]
        %v989 = vld [vmem:[%s688 + $0x250] sm:$0xff]
        %v990 = vld [vmem:[%s688 + $0x258] sm:$0xff]
        %v991 = vld [vmem:[%s688 + $0x260] sm:$0xff]
        %v992 = vld [vmem:[%s688 + $0x268] sm:$0xff]
        %v993 = vld [vmem:[%s688 + $0x270] sm:$0xff]
        %v994 = vld [vmem:[%s688 + $0x278] sm:$0xff]
        %v995 = vld [vmem:[%s688 + $0x280] sm:$0xff]
        %v996 = vld [vmem:[%s688 + $0x288] sm:$0xff]
        %v997 = vld [vmem:[%s688 + $0x290] sm:$0xff]
        %v998 = vld [vmem:[%s688 + $0x298] sm:$0xff]
        %v999 = vld [vmem:[%s688 + $0x2a0] sm:$0xff]
        %v1000 = vld [vmem:[%s688 + $0x2a8] sm:$0xff]
        %v1001 = vld [vmem:[%s688 + $0x2b0] sm:$0xff]
        %v1002 = vld [vmem:[%s688 + $0x2b8] sm:$0xff]
        %v1003 = vld [vmem:[%s688 + $0x2c0] sm:$0xff]
        %v1004 = vld [vmem:[%s688 + $0x2c8] sm:$0xff]
        %v1005 = vld [vmem:[%s688 + $0x2d0] sm:$0xff]
        %v1006 = vld [vmem:[%s688 + $0x2d8] sm:$0xff]
        %v1007 = vld [vmem:[%s688 + $0x2e0] sm:$0xff]
        %v1008 = vld [vmem:[%s688 + $0x2e8] sm:$0xff]
        %v1009 = vld [vmem:[%s688 + $0x2f0] sm:$0xff]
        %v1010 = vld [vmem:[%s688 + $0x2f8] sm:$0xff]
        %v1011 = vld [vmem:[%s697] sm:$0x3f]
        %v1013 = vlaneseq
        %v1014 = vshrl.u32 %v1013, 7
        %v1015 = vsub.s32 0, %v1014
        %v1016 = vrot.slane %v1011, %v1015
        %v1017 = vlaneseq
        %v1018 = vshrl.u32 %v1017, 7
        %v1019 = vsub.s32 1, %v1018
        %v1020 = vrot.slane %v1011, %v1019
        %v1021 = vlaneseq
        %v1022 = vshrl.u32 %v1021, 7
        %v1023 = vsub.s32 2, %v1022
        %v1024 = vrot.slane %v1011, %v1023
        %v1025 = vlaneseq
        %v1026 = vshrl.u32 %v1025, 7
        %v1027 = vsub.s32 3, %v1026
        %v1028 = vrot.slane %v1011, %v1027
        %v1029 = vlaneseq
        %v1030 = vshrl.u32 %v1029, 7
        %v1031 = vsub.s32 4, %v1030
        %v1032 = vrot.slane %v1011, %v1031
        %v1033 = vlaneseq
        %v1034 = vshrl.u32 %v1033, 7
        %v1035 = vsub.s32 5, %v1034
        %v1036 = vrot.slane %v1011, %v1035
        %v1139 = vunpack.c.l.b16 %v915
        %v1140 = vunpack.c.h.b16 %v915
        %v1141 = vunpack.c.l.b16 %v916
        %v1142 = vunpack.c.h.b16 %v916
        %v1143 = vunpack.c.l.b16 %v917
        %v1144 = vunpack.c.h.b16 %v917
        %v1145 = vunpack.c.l.b16 %v918
        %v1146 = vunpack.c.h.b16 %v918
        %v1147 = vunpack.c.l.b16 %v919
        %v1148 = vunpack.c.h.b16 %v919
        %v1149 = vunpack.c.l.b16 %v920
        %v1150 = vunpack.c.h.b16 %v920
        %v1151 = vunpack.c.l.b16 %v921
        %v1152 = vunpack.c.h.b16 %v921
        %v1153 = vunpack.c.l.b16 %v922
        %v1154 = vunpack.c.h.b16 %v922
        %v1155 = vunpack.c.l.b16 %v923
        %v1156 = vunpack.c.h.b16 %v923
        %v1157 = vunpack.c.l.b16 %v924
        %v1158 = vunpack.c.h.b16 %v924
        %v1159 = vunpack.c.l.b16 %v925
        %v1160 = vunpack.c.h.b16 %v925
        %v1161 = vunpack.c.l.b16 %v926
        %v1162 = vunpack.c.h.b16 %v926
        %v1163 = vunpack.c.l.b16 %v927
        %v1164 = vunpack.c.h.b16 %v927
        %v1165 = vunpack.c.l.b16 %v928
        %v1166 = vunpack.c.h.b16 %v928
        %v1167 = vunpack.c.l.b16 %v929
        %v1168 = vunpack.c.h.b16 %v929
        %v1169 = vunpack.c.l.b16 %v930
        %v1170 = vunpack.c.h.b16 %v930
        %v1171 = vunpack.c.l.b16 %v931
        %v1172 = vunpack.c.h.b16 %v931
        %v1173 = vunpack.c.l.b16 %v932
        %v1174 = vunpack.c.h.b16 %v932
        %v1175 = vunpack.c.l.b16 %v933
        %v1176 = vunpack.c.h.b16 %v933
        %v1177 = vunpack.c.l.b16 %v934
        %v1178 = vunpack.c.h.b16 %v934
        %v1179 = vunpack.c.l.b16 %v935
        %v1180 = vunpack.c.h.b16 %v935
        %v1181 = vunpack.c.l.b16 %v936
        %v1182 = vunpack.c.h.b16 %v936
        %v1183 = vunpack.c.l.b16 %v937
        %v1184 = vunpack.c.h.b16 %v937
        %v1185 = vunpack.c.l.b16 %v938
        %v1186 = vunpack.c.h.b16 %v938
        %v1187 = vunpack.c.l.b16 %v939
        %v1188 = vunpack.c.h.b16 %v939
        %v1189 = vunpack.c.l.b16 %v940
        %v1190 = vunpack.c.h.b16 %v940
        %v1191 = vunpack.c.l.b16 %v941
        %v1192 = vunpack.c.h.b16 %v941
        %v1193 = vunpack.c.l.b16 %v942
        %v1194 = vunpack.c.h.b16 %v942
        %v1195 = vunpack.c.l.b16 %v943
        %v1196 = vunpack.c.h.b16 %v943
        %v1197 = vunpack.c.l.b16 %v944
        %v1198 = vunpack.c.h.b16 %v944
        %v1199 = vunpack.c.l.b16 %v945
        %v1200 = vunpack.c.h.b16 %v945
        %v1201 = vunpack.c.l.b16 %v946
        %v1202 = vunpack.c.h.b16 %v946
        %v1203 = vunpack.c.l.b16 %v947
        %v1204 = vunpack.c.h.b16 %v947
        %v1205 = vunpack.c.l.b16 %v948
        %v1206 = vunpack.c.h.b16 %v948
        %v1207 = vunpack.c.l.b16 %v949
        %v1208 = vunpack.c.h.b16 %v949
        %v1209 = vunpack.c.l.b16 %v950
        %v1210 = vunpack.c.h.b16 %v950
        %v1211 = vunpack.c.l.b16 %v951
        %v1212 = vunpack.c.h.b16 %v951
        %v1213 = vunpack.c.l.b16 %v952
        %v1214 = vunpack.c.h.b16 %v952
        %v1215 = vunpack.c.l.b16 %v953
        %v1216 = vunpack.c.h.b16 %v953
        %v1217 = vunpack.c.l.b16 %v954
        %v1218 = vunpack.c.h.b16 %v954
        %v1219 = vunpack.c.l.b16 %v955
        %v1220 = vunpack.c.h.b16 %v955
        %v1221 = vunpack.c.l.b16 %v956
        %v1222 = vunpack.c.h.b16 %v956
        %v1223 = vunpack.c.l.b16 %v957
        %v1224 = vunpack.c.h.b16 %v957
        %v1225 = vunpack.c.l.b16 %v958
        %v1226 = vunpack.c.h.b16 %v958
        %v1227 = vunpack.c.l.b16 %v959
        %v1228 = vunpack.c.h.b16 %v959
        %v1229 = vunpack.c.l.b16 %v960
        %v1230 = vunpack.c.h.b16 %v960
        %v1231 = vunpack.c.l.b16 %v961
        %v1232 = vunpack.c.h.b16 %v961
        %v1233 = vunpack.c.l.b16 %v962
        %v1234 = vunpack.c.h.b16 %v962
        %v1235 = vunpack.c.l.b16 %v963
        %v1236 = vunpack.c.h.b16 %v963
        %v1237 = vunpack.c.l.b16 %v964
        %v1238 = vunpack.c.h.b16 %v964
        %v1239 = vunpack.c.l.b16 %v965
        %v1240 = vunpack.c.h.b16 %v965
        %v1241 = vunpack.c.l.b16 %v966
        %v1242 = vunpack.c.h.b16 %v966
        %v1243 = vunpack.c.l.b16 %v967
        %v1244 = vunpack.c.h.b16 %v967
        %v1245 = vunpack.c.l.b16 %v968
        %v1246 = vunpack.c.h.b16 %v968
        %v1247 = vunpack.c.l.b16 %v969
        %v1248 = vunpack.c.h.b16 %v969
        %v1249 = vunpack.c.l.b16 %v970
        %v1250 = vunpack.c.h.b16 %v970
        %v1251 = vunpack.c.l.b16 %v971
        %v1252 = vunpack.c.h.b16 %v971
        %v1253 = vunpack.c.l.b16 %v972
        %v1254 = vunpack.c.h.b16 %v972
        %v1255 = vunpack.c.l.b16 %v973
        %v1256 = vunpack.c.h.b16 %v973
        %v1257 = vunpack.c.l.b16 %v974
        %v1258 = vunpack.c.h.b16 %v974
        %v1259 = vunpack.c.l.b16 %v975
        %v1260 = vunpack.c.h.b16 %v975
        %v1261 = vunpack.c.l.b16 %v976
        %v1262 = vunpack.c.h.b16 %v976
        %v1263 = vunpack.c.l.b16 %v977
        %v1264 = vunpack.c.h.b16 %v977
        %v1265 = vunpack.c.l.b16 %v978
        %v1266 = vunpack.c.h.b16 %v978
        %v1267 = vunpack.c.l.b16 %v979
        %v1268 = vunpack.c.h.b16 %v979
        %v1269 = vunpack.c.l.b16 %v980
        %v1270 = vunpack.c.h.b16 %v980
        %v1271 = vunpack.c.l.b16 %v981
        %v1272 = vunpack.c.h.b16 %v981
        %v1273 = vunpack.c.l.b16 %v982
        %v1274 = vunpack.c.h.b16 %v982
        %v1275 = vunpack.c.l.b16 %v983
        %v1276 = vunpack.c.h.b16 %v983
        %v1277 = vunpack.c.l.b16 %v984
        %v1278 = vunpack.c.h.b16 %v984
        %v1279 = vunpack.c.l.b16 %v985
        %v1280 = vunpack.c.h.b16 %v985
        %v1281 = vunpack.c.l.b16 %v986
        %v1282 = vunpack.c.h.b16 %v986
        %v1283 = vunpack.c.l.b16 %v987
        %v1284 = vunpack.c.h.b16 %v987
        %v1285 = vunpack.c.l.b16 %v988
        %v1286 = vunpack.c.h.b16 %v988
        %v1287 = vunpack.c.l.b16 %v989
        %v1288 = vunpack.c.h.b16 %v989
        %v1289 = vunpack.c.l.b16 %v990
        %v1290 = vunpack.c.h.b16 %v990
        %v1291 = vunpack.c.l.b16 %v991
        %v1292 = vunpack.c.h.b16 %v991
        %v1293 = vunpack.c.l.b16 %v992
        %v1294 = vunpack.c.h.b16 %v992
        %v1295 = vunpack.c.l.b16 %v993
        %v1296 = vunpack.c.h.b16 %v993
        %v1297 = vunpack.c.l.b16 %v994
        %v1298 = vunpack.c.h.b16 %v994
        %v1299 = vunpack.c.l.b16 %v995
        %v1300 = vunpack.c.h.b16 %v995
        %v1301 = vunpack.c.l.b16 %v996
        %v1302 = vunpack.c.h.b16 %v996
        %v1303 = vunpack.c.l.b16 %v997
        %v1304 = vunpack.c.h.b16 %v997
        %v1305 = vunpack.c.l.b16 %v998
        %v1306 = vunpack.c.h.b16 %v998
        %v1307 = vunpack.c.l.b16 %v999
        %v1308 = vunpack.c.h.b16 %v999
        %v1309 = vunpack.c.l.b16 %v1000
        %v1310 = vunpack.c.h.b16 %v1000
        %v1311 = vunpack.c.l.b16 %v1001
        %v1312 = vunpack.c.h.b16 %v1001
        %v1313 = vunpack.c.l.b16 %v1002
        %v1314 = vunpack.c.h.b16 %v1002
        %v1315 = vunpack.c.l.b16 %v1003
        %v1316 = vunpack.c.h.b16 %v1003
        %v1317 = vunpack.c.l.b16 %v1004
        %v1318 = vunpack.c.h.b16 %v1004
        %v1319 = vunpack.c.l.b16 %v1005
        %v1320 = vunpack.c.h.b16 %v1005
        %v1321 = vunpack.c.l.b16 %v1006
        %v1322 = vunpack.c.h.b16 %v1006
        %v1323 = vunpack.c.l.b16 %v1007
        %v1324 = vunpack.c.h.b16 %v1007
        %v1325 = vunpack.c.l.b16 %v1008
        %v1326 = vunpack.c.h.b16 %v1008
        %v1327 = vunpack.c.l.b16 %v1009
        %v1328 = vunpack.c.h.b16 %v1009
        %v1329 = vunpack.c.l.b16 %v1010
        %v1330 = vunpack.c.h.b16 %v1010
        %v1331 = vpack.c.b16 %v1145, %v1139
        %v1332 = vpack.c.b16 %v1146, %v1140
        %v1333 = vpack.c.b16 %v1147, %v1141
        %v1334 = vpack.c.b16 %v1148, %v1142
        %v1335 = vpack.c.b16 %v1149, %v1143
        %v1336 = vpack.c.b16 %v1150, %v1144
        %v1337 = vpack.c.b16 %v1157, %v1151
        %v1338 = vpack.c.b16 %v1158, %v1152
        %v1339 = vpack.c.b16 %v1159, %v1153
        %v1340 = vpack.c.b16 %v1160, %v1154
        %v1341 = vpack.c.b16 %v1161, %v1155
        %v1342 = vpack.c.b16 %v1162, %v1156
        %v1343 = vpack.c.b16 %v1169, %v1163
        %v1344 = vpack.c.b16 %v1170, %v1164
        %v1345 = vpack.c.b16 %v1171, %v1165
        %v1346 = vpack.c.b16 %v1172, %v1166
        %v1347 = vpack.c.b16 %v1173, %v1167
        %v1348 = vpack.c.b16 %v1174, %v1168
        %v1349 = vpack.c.b16 %v1181, %v1175
        %v1350 = vpack.c.b16 %v1182, %v1176
        %v1351 = vpack.c.b16 %v1183, %v1177
        %v1352 = vpack.c.b16 %v1184, %v1178
        %v1353 = vpack.c.b16 %v1185, %v1179
        %v1354 = vpack.c.b16 %v1186, %v1180
        %v1355 = vpack.c.b16 %v1193, %v1187
        %v1356 = vpack.c.b16 %v1194, %v1188
        %v1357 = vpack.c.b16 %v1195, %v1189
        %v1358 = vpack.c.b16 %v1196, %v1190
        %v1359 = vpack.c.b16 %v1197, %v1191
        %v1360 = vpack.c.b16 %v1198, %v1192
        %v1361 = vpack.c.b16 %v1205, %v1199
        %v1362 = vpack.c.b16 %v1206, %v1200
        %v1363 = vpack.c.b16 %v1207, %v1201
        %v1364 = vpack.c.b16 %v1208, %v1202
        %v1365 = vpack.c.b16 %v1209, %v1203
        %v1366 = vpack.c.b16 %v1210, %v1204
        %v1367 = vpack.c.b16 %v1217, %v1211
        %v1368 = vpack.c.b16 %v1218, %v1212
        %v1369 = vpack.c.b16 %v1219, %v1213
        %v1370 = vpack.c.b16 %v1220, %v1214
        %v1371 = vpack.c.b16 %v1221, %v1215
        %v1372 = vpack.c.b16 %v1222, %v1216
        %v1373 = vpack.c.b16 %v1229, %v1223
        %v1374 = vpack.c.b16 %v1230, %v1224
        %v1375 = vpack.c.b16 %v1231, %v1225
        %v1376 = vpack.c.b16 %v1232, %v1226
        %v1377 = vpack.c.b16 %v1233, %v1227
        %v1378 = vpack.c.b16 %v1234, %v1228
        %v1379 = vpack.c.b16 %v1241, %v1235
        %v1380 = vpack.c.b16 %v1242, %v1236
        %v1381 = vpack.c.b16 %v1243, %v1237
        %v1382 = vpack.c.b16 %v1244, %v1238
        %v1383 = vpack.c.b16 %v1245, %v1239
        %v1384 = vpack.c.b16 %v1246, %v1240
        %v1385 = vpack.c.b16 %v1253, %v1247
        %v1386 = vpack.c.b16 %v1254, %v1248
        %v1387 = vpack.c.b16 %v1255, %v1249
        %v1388 = vpack.c.b16 %v1256, %v1250
        %v1389 = vpack.c.b16 %v1257, %v1251
        %v1390 = vpack.c.b16 %v1258, %v1252
        %v1391 = vpack.c.b16 %v1265, %v1259
        %v1392 = vpack.c.b16 %v1266, %v1260
        %v1393 = vpack.c.b16 %v1267, %v1261
        %v1394 = vpack.c.b16 %v1268, %v1262
        %v1395 = vpack.c.b16 %v1269, %v1263
        %v1396 = vpack.c.b16 %v1270, %v1264
        %v1397 = vpack.c.b16 %v1277, %v1271
        %v1398 = vpack.c.b16 %v1278, %v1272
        %v1399 = vpack.c.b16 %v1279, %v1273
        %v1400 = vpack.c.b16 %v1280, %v1274
        %v1401 = vpack.c.b16 %v1281, %v1275
        %v1402 = vpack.c.b16 %v1282, %v1276
        %v1403 = vpack.c.b16 %v1289, %v1283
        %v1404 = vpack.c.b16 %v1290, %v1284
        %v1405 = vpack.c.b16 %v1291, %v1285
        %v1406 = vpack.c.b16 %v1292, %v1286
        %v1407 = vpack.c.b16 %v1293, %v1287
        %v1408 = vpack.c.b16 %v1294, %v1288
        %v1409 = vpack.c.b16 %v1301, %v1295
        %v1410 = vpack.c.b16 %v1302, %v1296
        %v1411 = vpack.c.b16 %v1303, %v1297
        %v1412 = vpack.c.b16 %v1304, %v1298
        %v1413 = vpack.c.b16 %v1305, %v1299
        %v1414 = vpack.c.b16 %v1306, %v1300
        %v1415 = vpack.c.b16 %v1313, %v1307
        %v1416 = vpack.c.b16 %v1314, %v1308
        %v1417 = vpack.c.b16 %v1315, %v1309
        %v1418 = vpack.c.b16 %v1316, %v1310
        %v1419 = vpack.c.b16 %v1317, %v1311
        %v1420 = vpack.c.b16 %v1318, %v1312
        %v1421 = vpack.c.b16 %v1325, %v1319
        %v1422 = vpack.c.b16 %v1326, %v1320
        %v1423 = vpack.c.b16 %v1327, %v1321
        %v1424 = vpack.c.b16 %v1328, %v1322
        %v1425 = vpack.c.b16 %v1329, %v1323
        %v1426 = vpack.c.b16 %v1330, %v1324
        %1523 = vmatprep.subr.bf16.mxu0 %v1332
        %1524 = vmatpush1.bf16.msra.mxu0 %v1331
        %1525 = vmatprep.subr.bf16.mxu0 %v1338
        %1526 = vmatpush1.bf16.msra.mxu0 %v1337
        %1527 = vmatprep.subr.bf16.mxu0 %v1344
        %1528 = vmatpush1.bf16.msra.mxu0 %v1343
        %1529 = vmatprep.subr.bf16.mxu0 %v1350
        %1530 = vmatpush1.bf16.msra.mxu0 %v1349
        %1531 = vmatprep.subr.bf16.mxu0 %v1356
        %1532 = vmatpush1.bf16.msra.mxu0 %v1355
        %1533 = vmatprep.subr.bf16.mxu0 %v1362
        %1534 = vmatpush1.bf16.msra.mxu0 %v1361
        %1535 = vmatprep.subr.bf16.mxu0 %v1368
        %1536 = vmatpush1.bf16.msra.mxu0 %v1367
        %1537 = vmatprep.subr.bf16.mxu0 %v1374
        %1538 = vmatpush1.bf16.msra.mxu0 %v1373
        %1539 = vmatprep.subr.bf16.mxu0 %v1380
        %1540 = vmatpush1.bf16.msra.mxu0 %v1379
        %1541 = vmatprep.subr.bf16.mxu0 %v1386
        %1542 = vmatpush1.bf16.msra.mxu0 %v1385
        %1543 = vmatprep.subr.bf16.mxu0 %v1392
        %1544 = vmatpush1.bf16.msra.mxu0 %v1391
        %1545 = vmatprep.subr.bf16.mxu0 %v1398
        %1546 = vmatpush1.bf16.msra.mxu0 %v1397
        %1547 = vmatprep.subr.bf16.mxu0 %v1404
        %1548 = vmatpush1.bf16.msra.mxu0 %v1403
        %1549 = vmatprep.subr.bf16.mxu0 %v1410
        %1550 = vmatpush1.bf16.msra.mxu0 %v1409
        %1551 = vmatprep.subr.bf16.mxu0 %v1416
        %1552 = vmatpush1.bf16.msra.mxu0 %v1415
        %1553 = vmatprep.subr.bf16.mxu0 %v1422
        %1554 = vmatpush1.bf16.msra.mxu0 %v1421
        %1555 = vmatprep.mubr.bf16.mxu0 %v912
        %1556 = vmatmul.mubr.bf16.gmra.mrb[0].mxu0 %v911
        %v1557 = vpop.f32.mrb[0].mxu0
        %v1558 = vadd.f32 %v1016, %v1557
        %v1559 = vpop.f32.mrb[0].mxu0
        %v1560 = vadd.f32 %v1020, %v1559
        %v1561 = vpop.f32.mrb[0].mxu0
        %v1562 = vadd.f32 %v1016, %v1561
        %v1563 = vpop.f32.mrb[0].mxu0
        %v1564 = vadd.f32 %v1020, %v1563
        %1565 = vmatprep.mubr.bf16.mxu0 %v914
        %1566 = vmatmul.mubr.bf16.gmra.mrb[0].mxu0 %v913
        %v1567 = vpop.f32.mrb[0].mxu0
        %v1568 = vadd.f32 %v1016, %v1567
        %v1569 = vpop.f32.mrb[0].mxu0
        %v1570 = vadd.f32 %v1020, %v1569
        %v1571 = vpop.f32.mrb[0].mxu0
        %v1572 = vadd.f32 %v1016, %v1571
        %v1573 = vpop.f32.mrb[0].mxu0
        %v1574 = vadd.f32 %v1020, %v1573
        %1575 = vdwg.mxu0
        %1576 = vmatprep.subr.bf16.mxu0 %v1334
        %1577 = vmatpush1.bf16.msra.mxu0 %v1333
        %1578 = vmatprep.subr.bf16.mxu0 %v1340
        %1579 = vmatpush1.bf16.msra.mxu0 %v1339
        %1580 = vmatprep.subr.bf16.mxu0 %v1346
        %1581 = vmatpush1.bf16.msra.mxu0 %v1345
        %1582 = vmatprep.subr.bf16.mxu0 %v1352
        %1583 = vmatpush1.bf16.msra.mxu0 %v1351
        %1584 = vmatprep.subr.bf16.mxu0 %v1358
        %1585 = vmatpush1.bf16.msra.mxu0 %v1357
        %1586 = vmatprep.subr.bf16.mxu0 %v1364
        %1587 = vmatpush1.bf16.msra.mxu0 %v1363
        %1588 = vmatprep.subr.bf16.mxu0 %v1370
        %1589 = vmatpush1.bf16.msra.mxu0 %v1369
        %1590 = vmatprep.subr.bf16.mxu0 %v1376
        %1591 = vmatpush1.bf16.msra.mxu0 %v1375
        %1592 = vmatprep.subr.bf16.mxu0 %v1382
        %1593 = vmatpush1.bf16.msra.mxu0 %v1381
        %1594 = vmatprep.subr.bf16.mxu0 %v1388
        %1595 = vmatpush1.bf16.msra.mxu0 %v1387
        %1596 = vmatprep.subr.bf16.mxu0 %v1394
        %1597 = vmatpush1.bf16.msra.mxu0 %v1393
        %1598 = vmatprep.subr.bf16.mxu0 %v1400
        %1599 = vmatpush1.bf16.msra.mxu0 %v1399
        %1600 = vmatprep.subr.bf16.mxu0 %v1406
        %1601 = vmatpush1.bf16.msra.mxu0 %v1405
        %1602 = vmatprep.subr.bf16.mxu0 %v1412
        %1603 = vmatpush1.bf16.msra.mxu0 %v1411
        %1604 = vmatprep.subr.bf16.mxu0 %v1418
        %1605 = vmatpush1.bf16.msra.mxu0 %v1417
        %1606 = vmatprep.subr.bf16.mxu0 %v1424
        %1607 = vmatpush1.bf16.msra.mxu0 %v1423
        %1608 = vmatprep.mubr.bf16.mxu0 %v912
        %1609 = vmatmul.mubr.bf16.gmra.mrb[0].mxu0 %v911
        %v1610 = vpop.f32.mrb[0].mxu0
        %v1611 = vadd.f32 %v1024, %v1610
        %v1612 = vpop.f32.mrb[0].mxu0
        %v1613 = vadd.f32 %v1028, %v1612
        %v1614 = vpop.f32.mrb[0].mxu0
        %v1615 = vadd.f32 %v1024, %v1614
        %v1616 = vpop.f32.mrb[0].mxu0
        %v1617 = vadd.f32 %v1028, %v1616
        %1618 = vmatprep.mubr.bf16.mxu0 %v914
        %1619 = vmatmul.mubr.bf16.gmra.mrb[0].mxu0 %v913
        %v1620 = vpop.f32.mrb[0].mxu0
        %v1621 = vadd.f32 %v1024, %v1620
        %v1622 = vpop.f32.mrb[0].mxu0
        %v1623 = vadd.f32 %v1028, %v1622
        %v1624 = vpop.f32.mrb[0].mxu0
        %v1625 = vadd.f32 %v1024, %v1624
        %v1626 = vpop.f32.mrb[0].mxu0
        %v1627 = vadd.f32 %v1028, %v1626
        %1628 = vdwg.mxu0
        %1629 = vmatprep.subr.bf16.mxu0 %v1336
        %1630 = vmatpush1.bf16.msra.mxu0 %v1335
        %1631 = vmatprep.subr.bf16.mxu0 %v1342
        %1632 = vmatpush1.bf16.msra.mxu0 %v1341
        %1633 = vmatprep.subr.bf16.mxu0 %v1348
        %1634 = vmatpush1.bf16.msra.mxu0 %v1347
        %1635 = vmatprep.subr.bf16.mxu0 %v1354
        %1636 = vmatpush1.bf16.msra.mxu0 %v1353
        %1637 = vmatprep.subr.bf16.mxu0 %v1360
        %1638 = vmatpush1.bf16.msra.mxu0 %v1359
        %1639 = vmatprep.subr.bf16.mxu0 %v1366
        %1640 = vmatpush1.bf16.msra.mxu0 %v1365
        %1641 = vmatprep.subr.bf16.mxu0 %v1372
        %1642 = vmatpush1.bf16.msra.mxu0 %v1371
        %1643 = vmatprep.subr.bf16.mxu0 %v1378
        %1644 = vmatpush1.bf16.msra.mxu0 %v1377
        %1645 = vmatprep.subr.bf16.mxu0 %v1384
        %1646 = vmatpush1.bf16.msra.mxu0 %v1383
        %1647 = vmatprep.subr.bf16.mxu0 %v1390
        %1648 = vmatpush1.bf16.msra.mxu0 %v1389
        %1649 = vmatprep.subr.bf16.mxu0 %v1396
        %1650 = vmatpush1.bf16.msra.mxu0 %v1395
        %1651 = vmatprep.subr.bf16.mxu0 %v1402
        %1652 = vmatpush1.bf16.msra.mxu0 %v1401
        %1653 = vmatprep.subr.bf16.mxu0 %v1408
        %1654 = vmatpush1.bf16.msra.mxu0 %v1407
        %1655 = vmatprep.subr.bf16.mxu0 %v1414
        %1656 = vmatpush1.bf16.msra.mxu0 %v1413
        %1657 = vmatprep.subr.bf16.mxu0 %v1420
        %1658 = vmatpush1.bf16.msra.mxu0 %v1419
        %1659 = vmatprep.subr.bf16.mxu0 %v1426
        %1660 = vmatpush1.bf16.msra.mxu0 %v1425
        %1661 = vmatprep.mubr.bf16.mxu0 %v912
        %1662 = vmatmul.mubr.bf16.gmra.mrb[0].mxu0 %v911
        %v1663 = vpop.f32.mrb[0].mxu0
        %v1664 = vadd.f32 %v1032, %v1663
        %v1665 = vpop.f32.mrb[0].mxu0
        %v1666 = vadd.f32 %v1036, %v1665
        %v1667 = vpop.f32.mrb[0].mxu0
        %v1668 = vadd.f32 %v1032, %v1667
        %v1669 = vpop.f32.mrb[0].mxu0
        %v1670 = vadd.f32 %v1036, %v1669
        %1671 = vmatprep.mubr.bf16.mxu0 %v914
        %1672 = vmatmul.mubr.bf16.gmra.mrb[0].mxu0 %v913
        %v1673 = vpop.f32.mrb[0].mxu0
        %v1674 = vadd.f32 %v1032, %v1673
        %v1675 = vpop.f32.mrb[0].mxu0
        %v1676 = vadd.f32 %v1036, %v1675
        %v1677 = vpop.f32.mrb[0].mxu0
        %v1678 = vadd.f32 %v1032, %v1677
        %v1679 = vpop.f32.mrb[0].mxu0
        %v1680 = vadd.f32 %v1036, %v1679
        %1681 = vdwg.mxu0
        %v1682 = vpack.c.bf16 %v1562, %v1558
        %v1683 = vpack.c.bf16 %v1564, %v1560
        %v1684 = vpack.c.bf16 %v1615, %v1611
        %v1685 = vpack.c.bf16 %v1617, %v1613
        %v1686 = vpack.c.bf16 %v1668, %v1664
        %v1687 = vpack.c.bf16 %v1670, %v1666
        %v1688 = vpack.c.bf16 %v1572, %v1568
        %v1689 = vpack.c.bf16 %v1574, %v1570
        %v1690 = vpack.c.bf16 %v1625, %v1621
        %v1691 = vpack.c.bf16 %v1627, %v1623
        %v1692 = vpack.c.bf16 %v1678, %v1674
        %v1693 = vpack.c.bf16 %v1680, %v1676
        %v1694 = vld [vmem:[%s1] sm:$0x1]
        %vm1695 = vcmask 523264
        %v1697 = vsel %vm1695, %v1682, 0
        %v1700 = vsel %vm1695, %v1684, 0
        %1702 = vmatprep.subr.bf16.mxu0 0
        %1703 = vmatpush1.bf16.xpose.msra.mxu0 %v1700
        %1704 = vmatprep.subr.bf16.mxu0 0
        %1705 = vmatpush1.bf16.xpose.msra.mxu0 0
        %1706 = vmatprep.subr.bf16.mxu0 0
        %1707 = vmatpush1.bf16.xpose.msra.mxu0 0
        %1708 = vmatprep.subr.bf16.mxu0 0
        %1709 = vmatpush1.bf16.xpose.msra.mxu0 0
        %1710 = vmatprep.subr.bf16.mxu0 0
        %1711 = vmatpush1.bf16.xpose.msra.mxu0 0
        %1712 = vmatprep.subr.bf16.mxu0 0
        %1713 = vmatpush1.bf16.xpose.msra.mxu0 0
        %1714 = vmatprep.subr.bf16.mxu0 0
        %1715 = vmatpush1.bf16.xpose.msra.mxu0 0
        %1716 = vmatprep.subr.bf16.mxu0 0
        %1717 = vmatpush1.bf16.xpose.msra.mxu0 0
        %1718 = vmatprep.subr.bf16.mxu0 0
        %1719 = vmatpush1.bf16.xpose.msra.mxu0 0
        %1720 = vmatprep.subr.bf16.mxu0 0
        %1721 = vmatpush1.bf16.xpose.msra.mxu0 0
        %1722 = vmatprep.subr.bf16.mxu0 0
        %1723 = vmatpush1.bf16.xpose.msra.mxu0 0
        %1724 = vmatprep.subr.bf16.mxu0 0
        %1725 = vmatpush1.bf16.xpose.msra.mxu0 0
        %1726 = vmatprep.subr.bf16.mxu0 0
        %1727 = vmatpush1.bf16.xpose.msra.mxu0 0
        %1728 = vmatprep.subr.bf16.mxu0 0
        %1729 = vmatpush1.bf16.xpose.msra.mxu0 0
        %1730 = vmatprep.subr.bf16.mxu0 0
        %1731 = vmatpush1.bf16.xpose.msra.mxu0 0
        %1732 = vmatprep.subr.bf16.mxu0 0
        %1733 = vmatpush1.bf16.xpose.msra.mxu0 0
        %1734 = vmatprep.mubr.bf16.mxu0 0
        %1735 = vmatmul.mubr.bf16.gmra.mrb[0].mxu0 %v1697
        %v1736 = vpop.f32.mrb[0].mxu0
        %v1737 = vadd.f32 0.0, %v1736
        %v1738 = vpop.f32.mrb[0].mxu0
        %v1739 = vpop.f32.mrb[0].mxu0
        %v1740 = vadd.f32 0.0, %v1739
        %v1741 = vpop.f32.mrb[0].mxu0
        %1742 = vdwg.mxu0
        %v1743 = vmul.f32 %v1737, 0.125
        %v1744 = vmul.f32 %v1740, 0.125
        %v1745 = vlaneseq
        %v1746 = vshrl.u32 %v1745, 7
        %v1747 = vsub.s32 0, %v1746
        %v1748 = vrot.slane %v1694, %v1747
        %v1749 = vadd.f32 %v1743, %v1748
        %v1750 = vadd.f32 %v1744, %v1748
        %vm1751 = vcmask 130048
        %v1752 = vsel %vm1751, %v1749, -inf
        %1753 = vmax.xlane.f32.xlu0 %v1752
        %v1754 = vpop.xlane.xlu0 %1753
        %v1755 = vsel %vm1751, %v1750, -inf
        %1756 = vmax.xlane.f32.xlu0 %v1755
        %v1757 = vpop.xlane.xlu0 %1756
        %v1758 = vsub.f32 %v1749, %v1754
        %v1759 = vsub.f32 %v1750, %v1757
        %v1760 = vmul.f32 %v1758, 1.442695
        %v1761 = vpow.pop %v1760
        %v1762 = vmul.f32 %v1759, 1.442695
        %v1763 = vpow.pop %v1762
        %v1764 = vsel %vm1751, %v1761, 0.0
        %1765 = vadd.xlane.f32.xlu0 %v1764
        %v1766 = vpop.xlane.xlu0 %1765
        %v1767 = vsel %vm1751, %v1763, 0.0
        %1768 = vadd.xlane.f32.xlu0 %v1767
        %v1769 = vpop.xlane.xlu0 %1768
        %v1770 = vrcp.pop %v1766
        %v1771 = vmul.f32 %v1761, %v1770
        %v1772 = vrcp.pop %v1769
        %v1773 = vmul.f32 %v1763, %v1772
        %v1774 = vpack.c.bf16 %v1773, %v1771
        %v1776 = vsel %vm1751, %v1774, 0
        %1778 = vmatprep.subr.bf16.mxu0 0
        %1779 = vmatpush1.bf16.msra.mxu0 %v1686
        %1780 = vmatprep.subr.bf16.mxu0 0
        %1781 = vmatpush1.bf16.msra.mxu0 0
        %1782 = vmatprep.subr.bf16.mxu0 0
        %1783 = vmatpush1.bf16.msra.mxu0 0
        %1784 = vmatprep.subr.bf16.mxu0 0
        %1785 = vmatpush1.bf16.msra.mxu0 0
        %1786 = vmatprep.subr.bf16.mxu0 0
        %1787 = vmatpush1.bf16.msra.mxu0 0
        %1788 = vmatprep.subr.bf16.mxu0 0
        %1789 = vmatpush1.bf16.msra.mxu0 0
        %1790 = vmatprep.subr.bf16.mxu0 0
        %1791 = vmatpush1.bf16.msra.mxu0 0
        %1792 = vmatprep.subr.bf16.mxu0 0
        %1793 = vmatpush1.bf16.msra.mxu0 0
        %1794 = vmatprep.subr.bf16.mxu0 0
        %1795 = vmatpush1.bf16.msra.mxu0 0
        %1796 = vmatprep.subr.bf16.mxu0 0
        %1797 = vmatpush1.bf16.msra.mxu0 0
        %1798 = vmatprep.subr.bf16.mxu0 0
        %1799 = vmatpush1.bf16.msra.mxu0 0
        %1800 = vmatprep.subr.bf16.mxu0 0
        %1801 = vmatpush1.bf16.msra.mxu0 0
        %1802 = vmatprep.subr.bf16.mxu0 0
        %1803 = vmatpush1.bf16.msra.mxu0 0
        %1804 = vmatprep.subr.bf16.mxu0 0
        %1805 = vmatpush1.bf16.msra.mxu0 0
        %1806 = vmatprep.subr.bf16.mxu0 0
        %1807 = vmatpush1.bf16.msra.mxu0 0
        %1808 = vmatprep.subr.bf16.mxu0 0
        %1809 = vmatpush1.bf16.msra.mxu0 0
        %1810 = vmatprep.mubr.bf16.mxu0 0
        %1811 = vmatmul.mubr.bf16.gmra.mrb[0].mxu0 %v1776
        %v1812 = vpop.f32.mrb[0].mxu0
        %v1813 = vadd.f32 0.0, %v1812
        %v1814 = vpop.f32.mrb[0].mxu0
        %v1815 = vpop.f32.mrb[0].mxu0
        %v1816 = vadd.f32 0.0, %v1815
        %v1817 = vpop.f32.mrb[0].mxu0
        %1818 = vdwg.mxu0
        %v1819 = vpack.c.bf16 %v1816, %v1813
        %v1820 = vld [vmem:[%s706] sm:$0xff]
        %v1821 = vld [vmem:[%s706 + $0x8] sm:$0xff]
        %v1822 = vld [vmem:[%s706 + $0x10] sm:$0xff]
        %v1823 = vld [vmem:[%s706 + $0x18] sm:$0xff]
        %v1824 = vld [vmem:[%s706 + $0x20] sm:$0xff]
        %v1825 = vld [vmem:[%s706 + $0x28] sm:$0xff]
        %v1826 = vld [vmem:[%s706 + $0x30] sm:$0xff]
        %v1827 = vld [vmem:[%s706 + $0x38] sm:$0xff]
        %1829 = vrot.lane.b32.xlu0 %v1682, 64
        %v1830 = vpop.permute.xlu0 %1829
        %1832 = vrot.lane.b32.xlu0 %v1684, 64
        %v1833 = vpop.permute.xlu0 %1832
        %v1835 = vsel %vm1695, %v1830, 0
        %v1838 = vsel %vm1695, %v1833, 0
        %1840 = vmatprep.subr.bf16.mxu0 0
        %1841 = vmatpush1.bf16.xpose.msra.mxu0 %v1838
        %1842 = vmatprep.subr.bf16.mxu0 0
        %1843 = vmatpush1.bf16.xpose.msra.mxu0 0
        %1844 = vmatprep.subr.bf16.mxu0 0
        %1845 = vmatpush1.bf16.xpose.msra.mxu0 0
        %1846 = vmatprep.subr.bf16.mxu0 0
        %1847 = vmatpush1.bf16.xpose.msra.mxu0 0
        %1848 = vmatprep.subr.bf16.mxu0 0
        %1849 = vmatpush1.bf16.xpose.msra.mxu0 0
        %1850 = vmatprep.subr.bf16.mxu0 0
        %1851 = vmatpush1.bf16.xpose.msra.mxu0 0
        %1852 = vmatprep.subr.bf16.mxu0 0
        %1853 = vmatpush1.bf16.xpose.msra.mxu0 0
        %1854 = vmatprep.subr.bf16.mxu0 0
        %1855 = vmatpush1.bf16.xpose.msra.mxu0 0
        %1856 = vmatprep.subr.bf16.mxu0 0
        %1857 = vmatpush1.bf16.xpose.msra.mxu0 0
        %1858 = vmatprep.subr.bf16.mxu0 0
        %1859 = vmatpush1.bf16.xpose.msra.mxu0 0
        %1860 = vmatprep.subr.bf16.mxu0 0
        %1861 = vmatpush1.bf16.xpose.msra.mxu0 0
        %1862 = vmatprep.subr.bf16.mxu0 0
        %1863 = vmatpush1.bf16.xpose.msra.mxu0 0
        %1864 = vmatprep.subr.bf16.mxu0 0
        %1865 = vmatpush1.bf16.xpose.msra.mxu0 0
        %1866 = vmatprep.subr.bf16.mxu0 0
        %1867 = vmatpush1.bf16.xpose.msra.mxu0 0
        %1868 = vmatprep.subr.bf16.mxu0 0
        %1869 = vmatpush1.bf16.xpose.msra.mxu0 0
        %1870 = vmatprep.subr.bf16.mxu0 0
        %1871 = vmatpush1.bf16.xpose.msra.mxu0 0
        %1872 = vmatprep.mubr.bf16.mxu0 0
        %1873 = vmatmul.mubr.bf16.gmra.mrb[0].mxu0 %v1835
        %v1874 = vpop.f32.mrb[0].mxu0
        %v1875 = vadd.f32 0.0, %v1874
        %v1876 = vpop.f32.mrb[0].mxu0
        %v1877 = vpop.f32.mrb[0].mxu0
        %v1878 = vadd.f32 0.0, %v1877
        %v1879 = vpop.f32.mrb[0].mxu0
        %1880 = vdwg.mxu0
        %v1881 = vmul.f32 %v1875, 0.125
        %v1882 = vmul.f32 %v1878, 0.125
        %v1883 = vadd.f32 %v1881, %v1748
        %v1884 = vadd.f32 %v1882, %v1748
        %v1885 = vsel %vm1751, %v1883, -inf
        %1886 = vmax.xlane.f32.xlu0 %v1885
        %v1887 = vpop.xlane.xlu0 %1886
        %v1888 = vsel %vm1751, %v1884, -inf
        %1889 = vmax.xlane.f32.xlu0 %v1888
        %v1890 = vpop.xlane.xlu0 %1889
        %v1891 = vsub.f32 %v1883, %v1887
        %v1892 = vsub.f32 %v1884, %v1890
        %v1893 = vmul.f32 %v1891, 1.442695
        %v1894 = vpow.pop %v1893
        %v1895 = vmul.f32 %v1892, 1.442695
        %v1896 = vpow.pop %v1895
        %v1897 = vsel %vm1751, %v1894, 0.0
        %1898 = vadd.xlane.f32.xlu0 %v1897
        %v1899 = vpop.xlane.xlu0 %1898
        %v1900 = vsel %vm1751, %v1896, 0.0
        %1901 = vadd.xlane.f32.xlu0 %v1900
        %v1902 = vpop.xlane.xlu0 %1901
        %v1903 = vrcp.pop %v1899
        %v1904 = vmul.f32 %v1894, %v1903
        %v1905 = vrcp.pop %v1902
        %v1906 = vmul.f32 %v1896, %v1905
        %v1907 = vpack.c.bf16 %v1906, %v1904
        %1909 = vrot.lane.b32.xlu0 %v1686, 64
        %v1910 = vpop.permute.xlu0 %1909
        %v1913 = vsel %vm1751, %v1907, 0
        %1915 = vmatprep.subr.bf16.mxu0 0
        %1916 = vmatpush1.bf16.msra.mxu0 %v1910
        %1917 = vmatprep.subr.bf16.mxu0 0
        %1918 = vmatpush1.bf16.msra.mxu0 0
        %1919 = vmatprep.subr.bf16.mxu0 0
        %1920 = vmatpush1.bf16.msra.mxu0 0
        %1921 = vmatprep.subr.bf16.mxu0 0
        %1922 = vmatpush1.bf16.msra.mxu0 0
        %1923 = vmatprep.subr.bf16.mxu0 0
        %1924 = vmatpush1.bf16.msra.mxu0 0
        %1925 = vmatprep.subr.bf16.mxu0 0
        %1926 = vmatpush1.bf16.msra.mxu0 0
        %1927 = vmatprep.subr.bf16.mxu0 0
        %1928 = vmatpush1.bf16.msra.mxu0 0
        %1929 = vmatprep.subr.bf16.mxu0 0
        %1930 = vmatpush1.bf16.msra.mxu0 0
        %1931 = vmatprep.subr.bf16.mxu0 0
        %1932 = vmatpush1.bf16.msra.mxu0 0
        %1933 = vmatprep.subr.bf16.mxu0 0
        %1934 = vmatpush1.bf16.msra.mxu0 0
        %1935 = vmatprep.subr.bf16.mxu0 0
        %1936 = vmatpush1.bf16.msra.mxu0 0
        %1937 = vmatprep.subr.bf16.mxu0 0
        %1938 = vmatpush1.bf16.msra.mxu0 0
        %1939 = vmatprep.subr.bf16.mxu0 0
        %1940 = vmatpush1.bf16.msra.mxu0 0
        %1941 = vmatprep.subr.bf16.mxu0 0
        %1942 = vmatpush1.bf16.msra.mxu0 0
        %1943 = vmatprep.subr.bf16.mxu0 0
        %1944 = vmatpush1.bf16.msra.mxu0 0
        %1945 = vmatprep.subr.bf16.mxu0 0
        %1946 = vmatpush1.bf16.msra.mxu0 0
        %1947 = vmatprep.mubr.bf16.mxu0 0
        %1948 = vmatmul.mubr.bf16.gmra.mrb[0].mxu0 %v1913
        %v1949 = vpop.f32.mrb[0].mxu0
        %v1950 = vadd.f32 0.0, %v1949
        %v1951 = vpop.f32.mrb[0].mxu0
        %v1952 = vpop.f32.mrb[0].mxu0
        %v1953 = vadd.f32 0.0, %v1952
        %v1954 = vpop.f32.mrb[0].mxu0
        %1955 = vdwg.mxu0
        %v1956 = vpack.c.bf16 %v1953, %v1950
        %v1957 = vld [vmem:[%s706 + $0x40] sm:$0xff]
        %v1958 = vld [vmem:[%s706 + $0x48] sm:$0xff]
        %v1959 = vld [vmem:[%s706 + $0x50] sm:$0xff]
        %v1960 = vld [vmem:[%s706 + $0x58] sm:$0xff]
        %v1961 = vld [vmem:[%s706 + $0x60] sm:$0xff]
        %v1962 = vld [vmem:[%s706 + $0x68] sm:$0xff]
        %v1963 = vld [vmem:[%s706 + $0x70] sm:$0xff]
        %v1964 = vld [vmem:[%s706 + $0x78] sm:$0xff]
        %v1973 = vunpack.c.l.b16 %v1957
        %v1974 = vunpack.c.h.b16 %v1957
        %v1975 = vunpack.c.l.b16 %v1958
        %v1976 = vunpack.c.h.b16 %v1958
        %v1977 = vunpack.c.l.b16 %v1959
        %v1978 = vunpack.c.h.b16 %v1959
        %v1979 = vunpack.c.l.b16 %v1960
        %v1980 = vunpack.c.h.b16 %v1960
        %v1981 = vunpack.c.l.b16 %v1961
        %v1982 = vunpack.c.h.b16 %v1961
        %v1983 = vunpack.c.l.b16 %v1962
        %v1984 = vunpack.c.h.b16 %v1962
        %v1985 = vunpack.c.l.b16 %v1963
        %v1986 = vunpack.c.h.b16 %v1963
        %v1987 = vunpack.c.l.b16 %v1964
        %v1988 = vunpack.c.h.b16 %v1964
        %v1989 = vpack.c.b16 %v1975, %v1973
        %v1990 = vpack.c.b16 %v1976, %v1974
        %v1991 = vpack.c.b16 %v1979, %v1977
        %v1992 = vpack.c.b16 %v1980, %v1978
        %v1993 = vpack.c.b16 %v1983, %v1981
        %v1994 = vpack.c.b16 %v1984, %v1982
        %v1995 = vpack.c.b16 %v1987, %v1985
        %v1996 = vpack.c.b16 %v1988, %v1986
        %v2006 = vsel %vm1695, %v1956, 0
        %2008 = vmatprep.subr.bf16.mxu0 %v1990
        %2009 = vmatpush1.bf16.msra.mxu0 %v1989
        %2010 = vmatprep.subr.bf16.mxu0 %v1992
        %2011 = vmatpush1.bf16.msra.mxu0 %v1991
        %2012 = vmatprep.subr.bf16.mxu0 %v1994
        %2013 = vmatpush1.bf16.msra.mxu0 %v1993
        %2014 = vmatprep.subr.bf16.mxu0 %v1996
        %2015 = vmatpush1.bf16.msra.mxu0 %v1995
        %2016 = vmatprep.subr.bf16.mxu0 0
        %2017 = vmatpush1.bf16.msra.mxu0 0
        %2018 = vmatprep.subr.bf16.mxu0 0
        %2019 = vmatpush1.bf16.msra.mxu0 0
        %2020 = vmatprep.subr.bf16.mxu0 0
        %2021 = vmatpush1.bf16.msra.mxu0 0
        %2022 = vmatprep.subr.bf16.mxu0 0
        %2023 = vmatpush1.bf16.msra.mxu0 0
        %2024 = vmatprep.subr.bf16.mxu0 0
        %2025 = vmatpush1.bf16.msra.mxu0 0
        %2026 = vmatprep.subr.bf16.mxu0 0
        %2027 = vmatpush1.bf16.msra.mxu0 0
        %2028 = vmatprep.subr.bf16.mxu0 0
        %2029 = vmatpush1.bf16.msra.mxu0 0
        %2030 = vmatprep.subr.bf16.mxu0 0
        %2031 = vmatpush1.bf16.msra.mxu0 0
        %2032 = vmatprep.subr.bf16.mxu0 0
        %2033 = vmatpush1.bf16.msra.mxu0 0
        %2034 = vmatprep.subr.bf16.mxu0 0
        %2035 = vmatpush1.bf16.msra.mxu0 0
        %2036 = vmatprep.subr.bf16.mxu0 0
        %2037 = vmatpush1.bf16.msra.mxu0 0
        %2038 = vmatprep.subr.bf16.mxu0 0
        %2039 = vmatpush1.bf16.msra.mxu0 0
        %2040 = vmatprep.mubr.bf16.mxu0 0
        %2041 = vmatmul.mubr.bf16.gmra.mrb[0].mxu0 %v2006
        %v2042 = vpop.f32.mrb[0].mxu0
        %v2043 = vadd.f32 0.0, %v2042
        %v2044 = vpop.f32.mrb[0].mxu0
        %v2045 = vadd.f32 0.0, %v2044
        %v2046 = vpop.f32.mrb[0].mxu0
        %v2047 = vadd.f32 0.0, %v2046
        %v2048 = vpop.f32.mrb[0].mxu0
        %v2049 = vadd.f32 0.0, %v2048
        %2050 = vdwg.mxu0
        %v2059 = vunpack.c.l.b16 %v1820
        %v2060 = vunpack.c.h.b16 %v1820
        %v2061 = vunpack.c.l.b16 %v1821
        %v2062 = vunpack.c.h.b16 %v1821
        %v2063 = vunpack.c.l.b16 %v1822
        %v2064 = vunpack.c.h.b16 %v1822
        %v2065 = vunpack.c.l.b16 %v1823
        %v2066 = vunpack.c.h.b16 %v1823
        %v2067 = vunpack.c.l.b16 %v1824
        %v2068 = vunpack.c.h.b16 %v1824
        %v2069 = vunpack.c.l.b16 %v1825
        %v2070 = vunpack.c.h.b16 %v1825
        %v2071 = vunpack.c.l.b16 %v1826
        %v2072 = vunpack.c.h.b16 %v1826
        %v2073 = vunpack.c.l.b16 %v1827
        %v2074 = vunpack.c.h.b16 %v1827
        %v2075 = vpack.c.b16 %v2061, %v2059
        %v2076 = vpack.c.b16 %v2062, %v2060
        %v2077 = vpack.c.b16 %v2065, %v2063
        %v2078 = vpack.c.b16 %v2066, %v2064
        %v2079 = vpack.c.b16 %v2069, %v2067
        %v2080 = vpack.c.b16 %v2070, %v2068
        %v2081 = vpack.c.b16 %v2073, %v2071
        %v2082 = vpack.c.b16 %v2074, %v2072
        %v2092 = vsel %vm1695, %v1819, 0
        %2094 = vmatprep.subr.bf16.mxu0 %v2076
        %2095 = vmatpush1.bf16.msra.mxu0 %v2075
        %2096 = vmatprep.subr.bf16.mxu0 %v2078
        %2097 = vmatpush1.bf16.msra.mxu0 %v2077
        %2098 = vmatprep.subr.bf16.mxu0 %v2080
        %2099 = vmatpush1.bf16.msra.mxu0 %v2079
        %2100 = vmatprep.subr.bf16.mxu0 %v2082
        %2101 = vmatpush1.bf16.msra.mxu0 %v2081
        %2102 = vmatprep.subr.bf16.mxu0 0
        %2103 = vmatpush1.bf16.msra.mxu0 0
        %2104 = vmatprep.subr.bf16.mxu0 0
        %2105 = vmatpush1.bf16.msra.mxu0 0
        %2106 = vmatprep.subr.bf16.mxu0 0
        %2107 = vmatpush1.bf16.msra.mxu0 0
        %2108 = vmatprep.subr.bf16.mxu0 0
        %2109 = vmatpush1.bf16.msra.mxu0 0
        %2110 = vmatprep.subr.bf16.mxu0 0
        %2111 = vmatpush1.bf16.msra.mxu0 0
        %2112 = vmatprep.subr.bf16.mxu0 0
        %2113 = vmatpush1.bf16.msra.mxu0 0
        %2114 = vmatprep.subr.bf16.mxu0 0
        %2115 = vmatpush1.bf16.msra.mxu0 0
        %2116 = vmatprep.subr.bf16.mxu0 0
        %2117 = vmatpush1.bf16.msra.mxu0 0
        %2118 = vmatprep.subr.bf16.mxu0 0
        %2119 = vmatpush1.bf16.msra.mxu0 0
        %2120 = vmatprep.subr.bf16.mxu0 0
        %2121 = vmatpush1.bf16.msra.mxu0 0
        %2122 = vmatprep.subr.bf16.mxu0 0
        %2123 = vmatpush1.bf16.msra.mxu0 0
        %2124 = vmatprep.subr.bf16.mxu0 0
        %2125 = vmatpush1.bf16.msra.mxu0 0
        %2126 = vmatprep.mubr.bf16.mxu0 0
        %2127 = vmatmul.mubr.bf16.gmra.mrb[0].mxu0 %v2092
        %v2128 = vpop.f32.mrb[0].mxu0
        %v2129 = vadd.f32 %v2043, %v2128
        %v2130 = vpop.f32.mrb[0].mxu0
        %v2131 = vadd.f32 %v2045, %v2130
        %v2132 = vpop.f32.mrb[0].mxu0
        %v2133 = vadd.f32 %v2047, %v2132
        %v2134 = vpop.f32.mrb[0].mxu0
        %v2135 = vadd.f32 %v2049, %v2134
        %2136 = vdwg.mxu0
        %v2138 = vsel %vm1695, %v1683, 0
        %v2141 = vsel %vm1695, %v1685, 0
        %2143 = vmatprep.subr.bf16.mxu0 0
        %2144 = vmatpush1.bf16.xpose.msra.mxu0 %v2141
        %2145 = vmatprep.subr.bf16.mxu0 0
        %2146 = vmatpush1.bf16.xpose.msra.mxu0 0
        %2147 = vmatprep.subr.bf16.mxu0 0
        %2148 = vmatpush1.bf16.xpose.msra.mxu0 0
        %2149 = vmatprep.subr.bf16.mxu0 0
        %2150 = vmatpush1.bf16.xpose.msra.mxu0 0
        %2151 = vmatprep.subr.bf16.mxu0 0
        %2152 = vmatpush1.bf16.xpose.msra.mxu0 0
        %2153 = vmatprep.subr.bf16.mxu0 0
        %2154 = vmatpush1.bf16.xpose.msra.mxu0 0
        %2155 = vmatprep.subr.bf16.mxu0 0
        %2156 = vmatpush1.bf16.xpose.msra.mxu0 0
        %2157 = vmatprep.subr.bf16.mxu0 0
        %2158 = vmatpush1.bf16.xpose.msra.mxu0 0
        %2159 = vmatprep.subr.bf16.mxu0 0
        %2160 = vmatpush1.bf16.xpose.msra.mxu0 0
        %2161 = vmatprep.subr.bf16.mxu0 0
        %2162 = vmatpush1.bf16.xpose.msra.mxu0 0
        %2163 = vmatprep.subr.bf16.mxu0 0
        %2164 = vmatpush1.bf16.xpose.msra.mxu0 0
        %2165 = vmatprep.subr.bf16.mxu0 0
        %2166 = vmatpush1.bf16.xpose.msra.mxu0 0
        %2167 = vmatprep.subr.bf16.mxu0 0
        %2168 = vmatpush1.bf16.xpose.msra.mxu0 0
        %2169 = vmatprep.subr.bf16.mxu0 0
        %2170 = vmatpush1.bf16.xpose.msra.mxu0 0
        %2171 = vmatprep.subr.bf16.mxu0 0
        %2172 = vmatpush1.bf16.xpose.msra.mxu0 0
        %2173 = vmatprep.subr.bf16.mxu0 0
        %2174 = vmatpush1.bf16.xpose.msra.mxu0 0
        %2175 = vmatprep.mubr.bf16.mxu0 0
        %2176 = vmatmul.mubr.bf16.gmra.mrb[0].mxu0 %v2138
        %v2177 = vpop.f32.mrb[0].mxu0
        %v2178 = vadd.f32 0.0, %v2177
        %v2179 = vpop.f32.mrb[0].mxu0
        %v2180 = vpop.f32.mrb[0].mxu0
        %v2181 = vadd.f32 0.0, %v2180
        %v2182 = vpop.f32.mrb[0].mxu0
        %2183 = vdwg.mxu0
        %v2184 = vmul.f32 %v2178, 0.125
        %v2185 = vmul.f32 %v2181, 0.125
        %v2186 = vadd.f32 %v2184, %v1748
        %v2187 = vadd.f32 %v2185, %v1748
        %v2188 = vsel %vm1751, %v2186, -inf
        %2189 = vmax.xlane.f32.xlu0 %v2188
        %v2190 = vpop.xlane.xlu0 %2189
        %v2191 = vsel %vm1751, %v2187, -inf
        %2192 = vmax.xlane.f32.xlu0 %v2191
        %v2193 = vpop.xlane.xlu0 %2192
        %v2194 = vsub.f32 %v2186, %v2190
        %v2195 = vsub.f32 %v2187, %v2193
        %v2196 = vmul.f32 %v2194, 1.442695
        %v2197 = vpow.pop %v2196
        %v2198 = vmul.f32 %v2195, 1.442695
        %v2199 = vpow.pop %v2198
        %v2200 = vsel %vm1751, %v2197, 0.0
        %2201 = vadd.xlane.f32.xlu0 %v2200
        %v2202 = vpop.xlane.xlu0 %2201
        %v2203 = vsel %vm1751, %v2199, 0.0
        %2204 = vadd.xlane.f32.xlu0 %v2203
        %v2205 = vpop.xlane.xlu0 %2204
        %v2206 = vrcp.pop %v2202
        %v2207 = vmul.f32 %v2197, %v2206
        %v2208 = vrcp.pop %v2205
        %v2209 = vmul.f32 %v2199, %v2208
        %v2210 = vpack.c.bf16 %v2209, %v2207
        %v2212 = vsel %vm1751, %v2210, 0
        %2214 = vmatprep.subr.bf16.mxu0 0
        %2215 = vmatpush1.bf16.msra.mxu0 %v1687
        %2216 = vmatprep.subr.bf16.mxu0 0
        %2217 = vmatpush1.bf16.msra.mxu0 0
        %2218 = vmatprep.subr.bf16.mxu0 0
        %2219 = vmatpush1.bf16.msra.mxu0 0
        %2220 = vmatprep.subr.bf16.mxu0 0
        %2221 = vmatpush1.bf16.msra.mxu0 0
        %2222 = vmatprep.subr.bf16.mxu0 0
        %2223 = vmatpush1.bf16.msra.mxu0 0
        %2224 = vmatprep.subr.bf16.mxu0 0
        %2225 = vmatpush1.bf16.msra.mxu0 0
        %2226 = vmatprep.subr.bf16.mxu0 0
        %2227 = vmatpush1.bf16.msra.mxu0 0
        %2228 = vmatprep.subr.bf16.mxu0 0
        %2229 = vmatpush1.bf16.msra.mxu0 0
        %2230 = vmatprep.subr.bf16.mxu0 0
        %2231 = vmatpush1.bf16.msra.mxu0 0
        %2232 = vmatprep.subr.bf16.mxu0 0
        %2233 = vmatpush1.bf16.msra.mxu0 0
        %2234 = vmatprep.subr.bf16.mxu0 0
        %2235 = vmatpush1.bf16.msra.mxu0 0
        %2236 = vmatprep.subr.bf16.mxu0 0
        %2237 = vmatpush1.bf16.msra.mxu0 0
        %2238 = vmatprep.subr.bf16.mxu0 0
        %2239 = vmatpush1.bf16.msra.mxu0 0
        %2240 = vmatprep.subr.bf16.mxu0 0
        %2241 = vmatpush1.bf16.msra.mxu0 0
        %2242 = vmatprep.subr.bf16.mxu0 0
        %2243 = vmatpush1.bf16.msra.mxu0 0
        %2244 = vmatprep.subr.bf16.mxu0 0
        %2245 = vmatpush1.bf16.msra.mxu0 0
        %2246 = vmatprep.mubr.bf16.mxu0 0
        %2247 = vmatmul.mubr.bf16.gmra.mrb[0].mxu0 %v2212
        %v2248 = vpop.f32.mrb[0].mxu0
        %v2249 = vadd.f32 0.0, %v2248
        %v2250 = vpop.f32.mrb[0].mxu0
        %v2251 = vpop.f32.mrb[0].mxu0
        %v2252 = vadd.f32 0.0, %v2251
        %v2253 = vpop.f32.mrb[0].mxu0
        %2254 = vdwg.mxu0
        %v2255 = vpack.c.bf16 %v2252, %v2249
        %v2256 = vld [vmem:[%s706 + $0x80] sm:$0xff]
        %v2257 = vld [vmem:[%s706 + $0x88] sm:$0xff]
        %v2258 = vld [vmem:[%s706 + $0x90] sm:$0xff]
        %v2259 = vld [vmem:[%s706 + $0x98] sm:$0xff]
        %v2260 = vld [vmem:[%s706 + $0xa0] sm:$0xff]
        %v2261 = vld [vmem:[%s706 + $0xa8] sm:$0xff]
        %v2262 = vld [vmem:[%s706 + $0xb0] sm:$0xff]
        %v2263 = vld [vmem:[%s706 + $0xb8] sm:$0xff]
        %v2272 = vunpack.c.l.b16 %v2256
        %v2273 = vunpack.c.h.b16 %v2256
        %v2274 = vunpack.c.l.b16 %v2257
        %v2275 = vunpack.c.h.b16 %v2257
        %v2276 = vunpack.c.l.b16 %v2258
        %v2277 = vunpack.c.h.b16 %v2258
        %v2278 = vunpack.c.l.b16 %v2259
        %v2279 = vunpack.c.h.b16 %v2259
        %v2280 = vunpack.c.l.b16 %v2260
        %v2281 = vunpack.c.h.b16 %v2260
        %v2282 = vunpack.c.l.b16 %v2261
        %v2283 = vunpack.c.h.b16 %v2261
        %v2284 = vunpack.c.l.b16 %v2262
        %v2285 = vunpack.c.h.b16 %v2262
        %v2286 = vunpack.c.l.b16 %v2263
        %v2287 = vunpack.c.h.b16 %v2263
        %v2288 = vpack.c.b16 %v2274, %v2272
        %v2289 = vpack.c.b16 %v2275, %v2273
        %v2290 = vpack.c.b16 %v2278, %v2276
        %v2291 = vpack.c.b16 %v2279, %v2277
        %v2292 = vpack.c.b16 %v2282, %v2280
        %v2293 = vpack.c.b16 %v2283, %v2281
        %v2294 = vpack.c.b16 %v2286, %v2284
        %v2295 = vpack.c.b16 %v2287, %v2285
        %v2305 = vsel %vm1695, %v2255, 0
        %2307 = vmatprep.subr.bf16.mxu0 %v2289
        %2308 = vmatpush1.bf16.msra.mxu0 %v2288
        %2309 = vmatprep.subr.bf16.mxu0 %v2291
        %2310 = vmatpush1.bf16.msra.mxu0 %v2290
        %2311 = vmatprep.subr.bf16.mxu0 %v2293
        %2312 = vmatpush1.bf16.msra.mxu0 %v2292
        %2313 = vmatprep.subr.bf16.mxu0 %v2295
        %2314 = vmatpush1.bf16.msra.mxu0 %v2294
        %2315 = vmatprep.subr.bf16.mxu0 0
        %2316 = vmatpush1.bf16.msra.mxu0 0
        %2317 = vmatprep.subr.bf16.mxu0 0
        %2318 = vmatpush1.bf16.msra.mxu0 0
        %2319 = vmatprep.subr.bf16.mxu0 0
        %2320 = vmatpush1.bf16.msra.mxu0 0
        %2321 = vmatprep.subr.bf16.mxu0 0
        %2322 = vmatpush1.bf16.msra.mxu0 0
        %2323 = vmatprep.subr.bf16.mxu0 0
        %2324 = vmatpush1.bf16.msra.mxu0 0
        %2325 = vmatprep.subr.bf16.mxu0 0
        %2326 = vmatpush1.bf16.msra.mxu0 0
        %2327 = vmatprep.subr.bf16.mxu0 0
        %2328 = vmatpush1.bf16.msra.mxu0 0
        %2329 = vmatprep.subr.bf16.mxu0 0
        %2330 = vmatpush1.bf16.msra.mxu0 0
        %2331 = vmatprep.subr.bf16.mxu0 0
        %2332 = vmatpush1.bf16.msra.mxu0 0
        %2333 = vmatprep.subr.bf16.mxu0 0
        %2334 = vmatpush1.bf16.msra.mxu0 0
        %2335 = vmatprep.subr.bf16.mxu0 0
        %2336 = vmatpush1.bf16.msra.mxu0 0
        %2337 = vmatprep.subr.bf16.mxu0 0
        %2338 = vmatpush1.bf16.msra.mxu0 0
        %2339 = vmatprep.mubr.bf16.mxu0 0
        %2340 = vmatmul.mubr.bf16.gmra.mrb[0].mxu0 %v2305
        %v2341 = vpop.f32.mrb[0].mxu0
        %v2342 = vadd.f32 0.0, %v2341
        %v2343 = vpop.f32.mrb[0].mxu0
        %v2344 = vadd.f32 0.0, %v2343
        %v2345 = vpop.f32.mrb[0].mxu0
        %v2346 = vadd.f32 0.0, %v2345
        %v2347 = vpop.f32.mrb[0].mxu0
        %v2348 = vadd.f32 0.0, %v2347
        %2349 = vdwg.mxu0
        %v2350 = vadd.f32 %v2129, %v2342
        %v2351 = vadd.f32 %v2131, %v2344
        %v2352 = vadd.f32 %v2133, %v2346
        %v2353 = vadd.f32 %v2135, %v2348
        %2355 = vrot.lane.b32.xlu0 %v1683, 64
        %v2356 = vpop.permute.xlu0 %2355
        %2358 = vrot.lane.b32.xlu0 %v1685, 64
        %v2359 = vpop.permute.xlu0 %2358
        %v2361 = vsel %vm1695, %v2356, 0
        %v2364 = vsel %vm1695, %v2359, 0
        %2366 = vmatprep.subr.bf16.mxu0 0
        %2367 = vmatpush1.bf16.xpose.msra.mxu0 %v2364
        %2368 = vmatprep.subr.bf16.mxu0 0
        %2369 = vmatpush1.bf16.xpose.msra.mxu0 0
        %2370 = vmatprep.subr.bf16.mxu0 0
        %2371 = vmatpush1.bf16.xpose.msra.mxu0 0
        %2372 = vmatprep.subr.bf16.mxu0 0
        %2373 = vmatpush1.bf16.xpose.msra.mxu0 0
        %2374 = vmatprep.subr.bf16.mxu0 0
        %2375 = vmatpush1.bf16.xpose.msra.mxu0 0
        %2376 = vmatprep.subr.bf16.mxu0 0
        %2377 = vmatpush1.bf16.xpose.msra.mxu0 0
        %2378 = vmatprep.subr.bf16.mxu0 0
        %2379 = vmatpush1.bf16.xpose.msra.mxu0 0
        %2380 = vmatprep.subr.bf16.mxu0 0
        %2381 = vmatpush1.bf16.xpose.msra.mxu0 0
        %2382 = vmatprep.subr.bf16.mxu0 0
        %2383 = vmatpush1.bf16.xpose.msra.mxu0 0
        %2384 = vmatprep.subr.bf16.mxu0 0
        %2385 = vmatpush1.bf16.xpose.msra.mxu0 0
        %2386 = vmatprep.subr.bf16.mxu0 0
        %2387 = vmatpush1.bf16.xpose.msra.mxu0 0
        %2388 = vmatprep.subr.bf16.mxu0 0
        %2389 = vmatpush1.bf16.xpose.msra.mxu0 0
        %2390 = vmatprep.subr.bf16.mxu0 0
        %2391 = vmatpush1.bf16.xpose.msra.mxu0 0
        %2392 = vmatprep.subr.bf16.mxu0 0
        %2393 = vmatpush1.bf16.xpose.msra.mxu0 0
        %2394 = vmatprep.subr.bf16.mxu0 0
        %2395 = vmatpush1.bf16.xpose.msra.mxu0 0
        %2396 = vmatprep.subr.bf16.mxu0 0
        %2397 = vmatpush1.bf16.xpose.msra.mxu0 0
        %2398 = vmatprep.mubr.bf16.mxu0 0
        %2399 = vmatmul.mubr.bf16.gmra.mrb[0].mxu0 %v2361
        %v2400 = vpop.f32.mrb[0].mxu0
        %v2401 = vadd.f32 0.0, %v2400
        %v2402 = vpop.f32.mrb[0].mxu0
        %v2403 = vpop.f32.mrb[0].mxu0
        %v2404 = vadd.f32 0.0, %v2403
        %v2405 = vpop.f32.mrb[0].mxu0
        %2406 = vdwg.mxu0
        %v2407 = vmul.f32 %v2401, 0.125
        %v2408 = vmul.f32 %v2404, 0.125
        %v2409 = vadd.f32 %v2407, %v1748
        %v2410 = vadd.f32 %v2408, %v1748
        %v2411 = vsel %vm1751, %v2409, -inf
        %2412 = vmax.xlane.f32.xlu0 %v2411
        %v2413 = vpop.xlane.xlu0 %2412
        %v2414 = vsel %vm1751, %v2410, -inf
        %2415 = vmax.xlane.f32.xlu0 %v2414
        %v2416 = vpop.xlane.xlu0 %2415
        %v2417 = vsub.f32 %v2409, %v2413
        %v2418 = vsub.f32 %v2410, %v2416
        %v2419 = vmul.f32 %v2417, 1.442695
        %v2420 = vpow.pop %v2419
        %v2421 = vmul.f32 %v2418, 1.442695
        %v2422 = vpow.pop %v2421
        %v2423 = vsel %vm1751, %v2420, 0.0
        %2424 = vadd.xlane.f32.xlu0 %v2423
        %v2425 = vpop.xlane.xlu0 %2424
        %v2426 = vsel %vm1751, %v2422, 0.0
        %2427 = vadd.xlane.f32.xlu0 %v2426
        %v2428 = vpop.xlane.xlu0 %2427
        %v2429 = vrcp.pop %v2425
        %v2430 = vmul.f32 %v2420, %v2429
        %v2431 = vrcp.pop %v2428
        %v2432 = vmul.f32 %v2422, %v2431
        %v2433 = vpack.c.bf16 %v2432, %v2430
        %2435 = vrot.lane.b32.xlu0 %v1687, 64
        %v2436 = vpop.permute.xlu0 %2435
        %v2439 = vsel %vm1751, %v2433, 0
        %2441 = vmatprep.subr.bf16.mxu0 0
        %2442 = vmatpush1.bf16.msra.mxu0 %v2436
        %2443 = vmatprep.subr.bf16.mxu0 0
        %2444 = vmatpush1.bf16.msra.mxu0 0
        %2445 = vmatprep.subr.bf16.mxu0 0
        %2446 = vmatpush1.bf16.msra.mxu0 0
        %2447 = vmatprep.subr.bf16.mxu0 0
        %2448 = vmatpush1.bf16.msra.mxu0 0
        %2449 = vmatprep.subr.bf16.mxu0 0
        %2450 = vmatpush1.bf16.msra.mxu0 0
        %2451 = vmatprep.subr.bf16.mxu0 0
        %2452 = vmatpush1.bf16.msra.mxu0 0
        %2453 = vmatprep.subr.bf16.mxu0 0
        %2454 = vmatpush1.bf16.msra.mxu0 0
        %2455 = vmatprep.subr.bf16.mxu0 0
        %2456 = vmatpush1.bf16.msra.mxu0 0
        %2457 = vmatprep.subr.bf16.mxu0 0
        %2458 = vmatpush1.bf16.msra.mxu0 0
        %2459 = vmatprep.subr.bf16.mxu0 0
        %2460 = vmatpush1.bf16.msra.mxu0 0
        %2461 = vmatprep.subr.bf16.mxu0 0
        %2462 = vmatpush1.bf16.msra.mxu0 0
        %2463 = vmatprep.subr.bf16.mxu0 0
        %2464 = vmatpush1.bf16.msra.mxu0 0
        %2465 = vmatprep.subr.bf16.mxu0 0
        %2466 = vmatpush1.bf16.msra.mxu0 0
        %2467 = vmatprep.subr.bf16.mxu0 0
        %2468 = vmatpush1.bf16.msra.mxu0 0
        %2469 = vmatprep.subr.bf16.mxu0 0
        %2470 = vmatpush1.bf16.msra.mxu0 0
        %2471 = vmatprep.subr.bf16.mxu0 0
        %2472 = vmatpush1.bf16.msra.mxu0 0
        %2473 = vmatprep.mubr.bf16.mxu0 0
        %2474 = vmatmul.mubr.bf16.gmra.mrb[0].mxu0 %v2439
        %v2475 = vpop.f32.mrb[0].mxu0
        %v2476 = vadd.f32 0.0, %v2475
        %v2477 = vpop.f32.mrb[0].mxu0
        %v2478 = vpop.f32.mrb[0].mxu0
        %v2479 = vadd.f32 0.0, %v2478
        %v2480 = vpop.f32.mrb[0].mxu0
        %2481 = vdwg.mxu0
        %v2482 = vpack.c.bf16 %v2479, %v2476
        %v2483 = vld [vmem:[%s706 + $0xc0] sm:$0xff]
        %v2484 = vld [vmem:[%s706 + $0xc8] sm:$0xff]
        %v2485 = vld [vmem:[%s706 + $0xd0] sm:$0xff]
        %v2486 = vld [vmem:[%s706 + $0xd8] sm:$0xff]
        %v2487 = vld [vmem:[%s706 + $0xe0] sm:$0xff]
        %v2488 = vld [vmem:[%s706 + $0xe8] sm:$0xff]
        %v2489 = vld [vmem:[%s706 + $0xf0] sm:$0xff]
        %v2490 = vld [vmem:[%s706 + $0xf8] sm:$0xff]
        %v2499 = vunpack.c.l.b16 %v2483
        %v2500 = vunpack.c.h.b16 %v2483
        %v2501 = vunpack.c.l.b16 %v2484
        %v2502 = vunpack.c.h.b16 %v2484
        %v2503 = vunpack.c.l.b16 %v2485
        %v2504 = vunpack.c.h.b16 %v2485
        %v2505 = vunpack.c.l.b16 %v2486
        %v2506 = vunpack.c.h.b16 %v2486
        %v2507 = vunpack.c.l.b16 %v2487
        %v2508 = vunpack.c.h.b16 %v2487
        %v2509 = vunpack.c.l.b16 %v2488
        %v2510 = vunpack.c.h.b16 %v2488
        %v2511 = vunpack.c.l.b16 %v2489
        %v2512 = vunpack.c.h.b16 %v2489
        %v2513 = vunpack.c.l.b16 %v2490
        %v2514 = vunpack.c.h.b16 %v2490
        %v2515 = vpack.c.b16 %v2501, %v2499
        %v2516 = vpack.c.b16 %v2502, %v2500
        %v2517 = vpack.c.b16 %v2505, %v2503
        %v2518 = vpack.c.b16 %v2506, %v2504
        %v2519 = vpack.c.b16 %v2509, %v2507
        %v2520 = vpack.c.b16 %v2510, %v2508
        %v2521 = vpack.c.b16 %v2513, %v2511
        %v2522 = vpack.c.b16 %v2514, %v2512
        %v2532 = vsel %vm1695, %v2482, 0
        %2534 = vmatprep.subr.bf16.mxu0 %v2516
        %2535 = vmatpush1.bf16.msra.mxu0 %v2515
        %2536 = vmatprep.subr.bf16.mxu0 %v2518
        %2537 = vmatpush1.bf16.msra.mxu0 %v2517
        %2538 = vmatprep.subr.bf16.mxu0 %v2520
        %2539 = vmatpush1.bf16.msra.mxu0 %v2519
        %2540 = vmatprep.subr.bf16.mxu0 %v2522
        %2541 = vmatpush1.bf16.msra.mxu0 %v2521
        %2542 = vmatprep.subr.bf16.mxu0 0
        %2543 = vmatpush1.bf16.msra.mxu0 0
        %2544 = vmatprep.subr.bf16.mxu0 0
        %2545 = vmatpush1.bf16.msra.mxu0 0
        %2546 = vmatprep.subr.bf16.mxu0 0
        %2547 = vmatpush1.bf16.msra.mxu0 0
        %2548 = vmatprep.subr.bf16.mxu0 0
        %2549 = vmatpush1.bf16.msra.mxu0 0
        %2550 = vmatprep.subr.bf16.mxu0 0
        %2551 = vmatpush1.bf16.msra.mxu0 0
        %2552 = vmatprep.subr.bf16.mxu0 0
        %2553 = vmatpush1.bf16.msra.mxu0 0
        %2554 = vmatprep.subr.bf16.mxu0 0
        %2555 = vmatpush1.bf16.msra.mxu0 0
        %2556 = vmatprep.subr.bf16.mxu0 0
        %2557 = vmatpush1.bf16.msra.mxu0 0
        %2558 = vmatprep.subr.bf16.mxu0 0
        %2559 = vmatpush1.bf16.msra.mxu0 0
        %2560 = vmatprep.subr.bf16.mxu0 0
        %2561 = vmatpush1.bf16.msra.mxu0 0
        %2562 = vmatprep.subr.bf16.mxu0 0
        %2563 = vmatpush1.bf16.msra.mxu0 0
        %2564 = vmatprep.subr.bf16.mxu0 0
        %2565 = vmatpush1.bf16.msra.mxu0 0
        %2566 = vmatprep.mubr.bf16.mxu0 0
        %2567 = vmatmul.mubr.bf16.gmra.mrb[0].mxu0 %v2532
        %v2568 = vpop.f32.mrb[0].mxu0
        %v2569 = vadd.f32 0.0, %v2568
        %v2570 = vpop.f32.mrb[0].mxu0
        %v2571 = vadd.f32 0.0, %v2570
        %v2572 = vpop.f32.mrb[0].mxu0
        %v2573 = vadd.f32 0.0, %v2572
        %v2574 = vpop.f32.mrb[0].mxu0
        %v2575 = vadd.f32 0.0, %v2574
        %2576 = vdwg.mxu0
        %v2577 = vadd.f32 %v2350, %v2569
        %v2578 = vadd.f32 %v2351, %v2571
        %v2579 = vadd.f32 %v2352, %v2573
        %v2580 = vadd.f32 %v2353, %v2575
        %v2581 = vld [vmem:[%s1 + $0x1] sm:$0x1]
        %v2583 = vsel %vm1695, %v1688, 0
        %v2586 = vsel %vm1695, %v1690, 0
        %2588 = vmatprep.subr.bf16.mxu0 0
        %2589 = vmatpush1.bf16.xpose.msra.mxu0 %v2586
        %2590 = vmatprep.subr.bf16.mxu0 0
        %2591 = vmatpush1.bf16.xpose.msra.mxu0 0
        %2592 = vmatprep.subr.bf16.mxu0 0
        %2593 = vmatpush1.bf16.xpose.msra.mxu0 0
        %2594 = vmatprep.subr.bf16.mxu0 0
        %2595 = vmatpush1.bf16.xpose.msra.mxu0 0
        %2596 = vmatprep.subr.bf16.mxu0 0
        %2597 = vmatpush1.bf16.xpose.msra.mxu0 0
        %2598 = vmatprep.subr.bf16.mxu0 0
        %2599 = vmatpush1.bf16.xpose.msra.mxu0 0
        %2600 = vmatprep.subr.bf16.mxu0 0
        %2601 = vmatpush1.bf16.xpose.msra.mxu0 0
        %2602 = vmatprep.subr.bf16.mxu0 0
        %2603 = vmatpush1.bf16.xpose.msra.mxu0 0
        %2604 = vmatprep.subr.bf16.mxu0 0
        %2605 = vmatpush1.bf16.xpose.msra.mxu0 0
        %2606 = vmatprep.subr.bf16.mxu0 0
        %2607 = vmatpush1.bf16.xpose.msra.mxu0 0
        %2608 = vmatprep.subr.bf16.mxu0 0
        %2609 = vmatpush1.bf16.xpose.msra.mxu0 0
        %2610 = vmatprep.subr.bf16.mxu0 0
        %2611 = vmatpush1.bf16.xpose.msra.mxu0 0
        %2612 = vmatprep.subr.bf16.mxu0 0
        %2613 = vmatpush1.bf16.xpose.msra.mxu0 0
        %2614 = vmatprep.subr.bf16.mxu0 0
        %2615 = vmatpush1.bf16.xpose.msra.mxu0 0
        %2616 = vmatprep.subr.bf16.mxu0 0
        %2617 = vmatpush1.bf16.xpose.msra.mxu0 0
        %2618 = vmatprep.subr.bf16.mxu0 0
        %2619 = vmatpush1.bf16.xpose.msra.mxu0 0
        %2620 = vmatprep.mubr.bf16.mxu0 0
        %2621 = vmatmul.mubr.bf16.gmra.mrb[0].mxu0 %v2583
        %v2622 = vpop.f32.mrb[0].mxu0
        %v2623 = vadd.f32 0.0, %v2622
        %v2624 = vpop.f32.mrb[0].mxu0
        %v2625 = vpop.f32.mrb[0].mxu0
        %v2626 = vadd.f32 0.0, %v2625
        %v2627 = vpop.f32.mrb[0].mxu0
        %2628 = vdwg.mxu0
        %v2629 = vmul.f32 %v2623, 0.125
        %v2630 = vmul.f32 %v2626, 0.125
        %v2631 = vlaneseq
        %v2632 = vshrl.u32 %v2631, 7
        %v2633 = vsub.s32 0, %v2632
        %v2634 = vrot.slane %v2581, %v2633
        %v2635 = vadd.f32 %v2629, %v2634
        %v2636 = vadd.f32 %v2630, %v2634
        %v2637 = vsel %vm1751, %v2635, -inf
        %2638 = vmax.xlane.f32.xlu0 %v2637
        %v2639 = vpop.xlane.xlu0 %2638
        %v2640 = vsel %vm1751, %v2636, -inf
        %2641 = vmax.xlane.f32.xlu0 %v2640
        %v2642 = vpop.xlane.xlu0 %2641
        %v2643 = vsub.f32 %v2635, %v2639
        %v2644 = vsub.f32 %v2636, %v2642
        %v2645 = vmul.f32 %v2643, 1.442695
        %v2646 = vpow.pop %v2645
        %v2647 = vmul.f32 %v2644, 1.442695
        %v2648 = vpow.pop %v2647
        %v2649 = vsel %vm1751, %v2646, 0.0
        %2650 = vadd.xlane.f32.xlu0 %v2649
        %v2651 = vpop.xlane.xlu0 %2650
        %v2652 = vsel %vm1751, %v2648, 0.0
        %2653 = vadd.xlane.f32.xlu0 %v2652
        %v2654 = vpop.xlane.xlu0 %2653
        %v2655 = vrcp.pop %v2651
        %v2656 = vmul.f32 %v2646, %v2655
        %v2657 = vrcp.pop %v2654
        %v2658 = vmul.f32 %v2648, %v2657
        %v2659 = vpack.c.bf16 %v2658, %v2656
        %v2661 = vsel %vm1751, %v2659, 0
        %2663 = vmatprep.subr.bf16.mxu0 0
        %2664 = vmatpush1.bf16.msra.mxu0 %v1692
        %2665 = vmatprep.subr.bf16.mxu0 0
        %2666 = vmatpush1.bf16.msra.mxu0 0
        %2667 = vmatprep.subr.bf16.mxu0 0
        %2668 = vmatpush1.bf16.msra.mxu0 0
        %2669 = vmatprep.subr.bf16.mxu0 0
        %2670 = vmatpush1.bf16.msra.mxu0 0
        %2671 = vmatprep.subr.bf16.mxu0 0
        %2672 = vmatpush1.bf16.msra.mxu0 0
        %2673 = vmatprep.subr.bf16.mxu0 0
        %2674 = vmatpush1.bf16.msra.mxu0 0
        %2675 = vmatprep.subr.bf16.mxu0 0
        %2676 = vmatpush1.bf16.msra.mxu0 0
        %2677 = vmatprep.subr.bf16.mxu0 0
        %2678 = vmatpush1.bf16.msra.mxu0 0
        %2679 = vmatprep.subr.bf16.mxu0 0
        %2680 = vmatpush1.bf16.msra.mxu0 0
        %2681 = vmatprep.subr.bf16.mxu0 0
        %2682 = vmatpush1.bf16.msra.mxu0 0
        %2683 = vmatprep.subr.bf16.mxu0 0
        %2684 = vmatpush1.bf16.msra.mxu0 0
        %2685 = vmatprep.subr.bf16.mxu0 0
        %2686 = vmatpush1.bf16.msra.mxu0 0
        %2687 = vmatprep.subr.bf16.mxu0 0
        %2688 = vmatpush1.bf16.msra.mxu0 0
        %2689 = vmatprep.subr.bf16.mxu0 0
        %2690 = vmatpush1.bf16.msra.mxu0 0
        %2691 = vmatprep.subr.bf16.mxu0 0
        %2692 = vmatpush1.bf16.msra.mxu0 0
        %2693 = vmatprep.subr.bf16.mxu0 0
        %2694 = vmatpush1.bf16.msra.mxu0 0
        %2695 = vmatprep.mubr.bf16.mxu0 0
        %2696 = vmatmul.mubr.bf16.gmra.mrb[0].mxu0 %v2661
        %v2697 = vpop.f32.mrb[0].mxu0
        %v2698 = vadd.f32 0.0, %v2697
        %v2699 = vpop.f32.mrb[0].mxu0
        %v2700 = vpop.f32.mrb[0].mxu0
        %v2701 = vadd.f32 0.0, %v2700
        %v2702 = vpop.f32.mrb[0].mxu0
        %2703 = vdwg.mxu0
        %v2704 = vpack.c.bf16 %v2701, %v2698
        %2706 = vrot.lane.b32.xlu0 %v1688, 64
        %v2707 = vpop.permute.xlu0 %2706
        %2709 = vrot.lane.b32.xlu0 %v1690, 64
        %v2710 = vpop.permute.xlu0 %2709
        %v2712 = vsel %vm1695, %v2707, 0
        %v2715 = vsel %vm1695, %v2710, 0
        %2717 = vmatprep.subr.bf16.mxu0 0
        %2718 = vmatpush1.bf16.xpose.msra.mxu0 %v2715
        %2719 = vmatprep.subr.bf16.mxu0 0
        %2720 = vmatpush1.bf16.xpose.msra.mxu0 0
        %2721 = vmatprep.subr.bf16.mxu0 0
        %2722 = vmatpush1.bf16.xpose.msra.mxu0 0
        %2723 = vmatprep.subr.bf16.mxu0 0
        %2724 = vmatpush1.bf16.xpose.msra.mxu0 0
        %2725 = vmatprep.subr.bf16.mxu0 0
        %2726 = vmatpush1.bf16.xpose.msra.mxu0 0
        %2727 = vmatprep.subr.bf16.mxu0 0
        %2728 = vmatpush1.bf16.xpose.msra.mxu0 0
        %2729 = vmatprep.subr.bf16.mxu0 0
        %2730 = vmatpush1.bf16.xpose.msra.mxu0 0
        %2731 = vmatprep.subr.bf16.mxu0 0
        %2732 = vmatpush1.bf16.xpose.msra.mxu0 0
        %2733 = vmatprep.subr.bf16.mxu0 0
        %2734 = vmatpush1.bf16.xpose.msra.mxu0 0
        %2735 = vmatprep.subr.bf16.mxu0 0
        %2736 = vmatpush1.bf16.xpose.msra.mxu0 0
        %2737 = vmatprep.subr.bf16.mxu0 0
        %2738 = vmatpush1.bf16.xpose.msra.mxu0 0
        %2739 = vmatprep.subr.bf16.mxu0 0
        %2740 = vmatpush1.bf16.xpose.msra.mxu0 0
        %2741 = vmatprep.subr.bf16.mxu0 0
        %2742 = vmatpush1.bf16.xpose.msra.mxu0 0
        %2743 = vmatprep.subr.bf16.mxu0 0
        %2744 = vmatpush1.bf16.xpose.msra.mxu0 0
        %2745 = vmatprep.subr.bf16.mxu0 0
        %2746 = vmatpush1.bf16.xpose.msra.mxu0 0
        %2747 = vmatprep.subr.bf16.mxu0 0
        %2748 = vmatpush1.bf16.xpose.msra.mxu0 0
        %2749 = vmatprep.mubr.bf16.mxu0 0
        %2750 = vmatmul.mubr.bf16.gmra.mrb[0].mxu0 %v2712
        %v2751 = vpop.f32.mrb[0].mxu0
        %v2752 = vadd.f32 0.0, %v2751
        %v2753 = vpop.f32.mrb[0].mxu0
        %v2754 = vpop.f32.mrb[0].mxu0
        %v2755 = vadd.f32 0.0, %v2754
        %v2756 = vpop.f32.mrb[0].mxu0
        %2757 = vdwg.mxu0
        %v2758 = vmul.f32 %v2752, 0.125
        %v2759 = vmul.f32 %v2755, 0.125
        %v2760 = vadd.f32 %v2758, %v2634
        %v2761 = vadd.f32 %v2759, %v2634
        %v2762 = vsel %vm1751, %v2760, -inf
        %2763 = vmax.xlane.f32.xlu0 %v2762
        %v2764 = vpop.xlane.xlu0 %2763
        %v2765 = vsel %vm1751, %v2761, -inf
        %2766 = vmax.xlane.f32.xlu0 %v2765
        %v2767 = vpop.xlane.xlu0 %2766
        %v2768 = vsub.f32 %v2760, %v2764
        %v2769 = vsub.f32 %v2761, %v2767
        %v2770 = vmul.f32 %v2768, 1.442695
        %v2771 = vpow.pop %v2770
        %v2772 = vmul.f32 %v2769, 1.442695
        %v2773 = vpow.pop %v2772
        %v2774 = vsel %vm1751, %v2771, 0.0
        %2775 = vadd.xlane.f32.xlu0 %v2774
        %v2776 = vpop.xlane.xlu0 %2775
        %v2777 = vsel %vm1751, %v2773, 0.0
        %2778 = vadd.xlane.f32.xlu0 %v2777
        %v2779 = vpop.xlane.xlu0 %2778
        %v2780 = vrcp.pop %v2776
        %v2781 = vmul.f32 %v2771, %v2780
        %v2782 = vrcp.pop %v2779
        %v2783 = vmul.f32 %v2773, %v2782
        %v2784 = vpack.c.bf16 %v2783, %v2781
        %2786 = vrot.lane.b32.xlu0 %v1692, 64
        %v2787 = vpop.permute.xlu0 %2786
        %v2790 = vsel %vm1751, %v2784, 0
        %2792 = vmatprep.subr.bf16.mxu0 0
        %2793 = vmatpush1.bf16.msra.mxu0 %v2787
        %2794 = vmatprep.subr.bf16.mxu0 0
        %2795 = vmatpush1.bf16.msra.mxu0 0
        %2796 = vmatprep.subr.bf16.mxu0 0
        %2797 = vmatpush1.bf16.msra.mxu0 0
        %2798 = vmatprep.subr.bf16.mxu0 0
        %2799 = vmatpush1.bf16.msra.mxu0 0
        %2800 = vmatprep.subr.bf16.mxu0 0
        %2801 = vmatpush1.bf16.msra.mxu0 0
        %2802 = vmatprep.subr.bf16.mxu0 0
        %2803 = vmatpush1.bf16.msra.mxu0 0
        %2804 = vmatprep.subr.bf16.mxu0 0
        %2805 = vmatpush1.bf16.msra.mxu0 0
        %2806 = vmatprep.subr.bf16.mxu0 0
        %2807 = vmatpush1.bf16.msra.mxu0 0
        %2808 = vmatprep.subr.bf16.mxu0 0
        %2809 = vmatpush1.bf16.msra.mxu0 0
        %2810 = vmatprep.subr.bf16.mxu0 0
        %2811 = vmatpush1.bf16.msra.mxu0 0
        %2812 = vmatprep.subr.bf16.mxu0 0
        %2813 = vmatpush1.bf16.msra.mxu0 0
        %2814 = vmatprep.subr.bf16.mxu0 0
        %2815 = vmatpush1.bf16.msra.mxu0 0
        %2816 = vmatprep.subr.bf16.mxu0 0
        %2817 = vmatpush1.bf16.msra.mxu0 0
        %2818 = vmatprep.subr.bf16.mxu0 0
        %2819 = vmatpush1.bf16.msra.mxu0 0
        %2820 = vmatprep.subr.bf16.mxu0 0
        %2821 = vmatpush1.bf16.msra.mxu0 0
        %2822 = vmatprep.subr.bf16.mxu0 0
        %2823 = vmatpush1.bf16.msra.mxu0 0
        %2824 = vmatprep.mubr.bf16.mxu0 0
        %2825 = vmatmul.mubr.bf16.gmra.mrb[0].mxu0 %v2790
        %v2826 = vpop.f32.mrb[0].mxu0
        %v2827 = vadd.f32 0.0, %v2826
        %v2828 = vpop.f32.mrb[0].mxu0
        %v2829 = vpop.f32.mrb[0].mxu0
        %v2830 = vadd.f32 0.0, %v2829
        %v2831 = vpop.f32.mrb[0].mxu0
        %2832 = vdwg.mxu0
        %v2833 = vpack.c.bf16 %v2830, %v2827
        %v2835 = vsel %vm1695, %v2833, 0
        %2837 = vmatprep.subr.bf16.mxu0 %v1990
        %2838 = vmatpush1.bf16.msra.mxu0 %v1989
        %2839 = vmatprep.subr.bf16.mxu0 %v1992
        %2840 = vmatpush1.bf16.msra.mxu0 %v1991
        %2841 = vmatprep.subr.bf16.mxu0 %v1994
        %2842 = vmatpush1.bf16.msra.mxu0 %v1993
        %2843 = vmatprep.subr.bf16.mxu0 %v1996
        %2844 = vmatpush1.bf16.msra.mxu0 %v1995
        %2845 = vmatprep.subr.bf16.mxu0 0
        %2846 = vmatpush1.bf16.msra.mxu0 0
        %2847 = vmatprep.subr.bf16.mxu0 0
        %2848 = vmatpush1.bf16.msra.mxu0 0
        %2849 = vmatprep.subr.bf16.mxu0 0
        %2850 = vmatpush1.bf16.msra.mxu0 0
        %2851 = vmatprep.subr.bf16.mxu0 0
        %2852 = vmatpush1.bf16.msra.mxu0 0
        %2853 = vmatprep.subr.bf16.mxu0 0
        %2854 = vmatpush1.bf16.msra.mxu0 0
        %2855 = vmatprep.subr.bf16.mxu0 0
        %2856 = vmatpush1.bf16.msra.mxu0 0
        %2857 = vmatprep.subr.bf16.mxu0 0
        %2858 = vmatpush1.bf16.msra.mxu0 0
        %2859 = vmatprep.subr.bf16.mxu0 0
        %2860 = vmatpush1.bf16.msra.mxu0 0
        %2861 = vmatprep.subr.bf16.mxu0 0
        %2862 = vmatpush1.bf16.msra.mxu0 0
        %2863 = vmatprep.subr.bf16.mxu0 0
        %2864 = vmatpush1.bf16.msra.mxu0 0
        %2865 = vmatprep.subr.bf16.mxu0 0
        %2866 = vmatpush1.bf16.msra.mxu0 0
        %2867 = vmatprep.subr.bf16.mxu0 0
        %2868 = vmatpush1.bf16.msra.mxu0 0
        %2869 = vmatprep.mubr.bf16.mxu0 0
        %2870 = vmatmul.mubr.bf16.gmra.mrb[0].mxu0 %v2835
        %v2871 = vpop.f32.mrb[0].mxu0
        %v2872 = vadd.f32 0.0, %v2871
        %v2873 = vpop.f32.mrb[0].mxu0
        %v2874 = vadd.f32 0.0, %v2873
        %v2875 = vpop.f32.mrb[0].mxu0
        %v2876 = vadd.f32 0.0, %v2875
        %v2877 = vpop.f32.mrb[0].mxu0
        %v2878 = vadd.f32 0.0, %v2877
        %2879 = vdwg.mxu0
        %v2881 = vsel %vm1695, %v2704, 0
        %2883 = vmatprep.subr.bf16.mxu0 %v2076
        %2884 = vmatpush1.bf16.msra.mxu0 %v2075
        %2885 = vmatprep.subr.bf16.mxu0 %v2078
        %2886 = vmatpush1.bf16.msra.mxu0 %v2077
        %2887 = vmatprep.subr.bf16.mxu0 %v2080
        %2888 = vmatpush1.bf16.msra.mxu0 %v2079
        %2889 = vmatprep.subr.bf16.mxu0 %v2082
        %2890 = vmatpush1.bf16.msra.mxu0 %v2081
        %2891 = vmatprep.subr.bf16.mxu0 0
        %2892 = vmatpush1.bf16.msra.mxu0 0
        %2893 = vmatprep.subr.bf16.mxu0 0
        %2894 = vmatpush1.bf16.msra.mxu0 0
        %2895 = vmatprep.subr.bf16.mxu0 0
        %2896 = vmatpush1.bf16.msra.mxu0 0
        %2897 = vmatprep.subr.bf16.mxu0 0
        %2898 = vmatpush1.bf16.msra.mxu0 0
        %2899 = vmatprep.subr.bf16.mxu0 0
        %2900 = vmatpush1.bf16.msra.mxu0 0
        %2901 = vmatprep.subr.bf16.mxu0 0
        %2902 = vmatpush1.bf16.msra.mxu0 0
        %2903 = vmatprep.subr.bf16.mxu0 0
        %2904 = vmatpush1.bf16.msra.mxu0 0
        %2905 = vmatprep.subr.bf16.mxu0 0
        %2906 = vmatpush1.bf16.msra.mxu0 0
        %2907 = vmatprep.subr.bf16.mxu0 0
        %2908 = vmatpush1.bf16.msra.mxu0 0
        %2909 = vmatprep.subr.bf16.mxu0 0
        %2910 = vmatpush1.bf16.msra.mxu0 0
        %2911 = vmatprep.subr.bf16.mxu0 0
        %2912 = vmatpush1.bf16.msra.mxu0 0
        %2913 = vmatprep.subr.bf16.mxu0 0
        %2914 = vmatpush1.bf16.msra.mxu0 0
        %2915 = vmatprep.mubr.bf16.mxu0 0
        %2916 = vmatmul.mubr.bf16.gmra.mrb[0].mxu0 %v2881
        %v2917 = vpop.f32.mrb[0].mxu0
        %v2918 = vadd.f32 %v2872, %v2917
        %v2919 = vpop.f32.mrb[0].mxu0
        %v2920 = vadd.f32 %v2874, %v2919
        %v2921 = vpop.f32.mrb[0].mxu0
        %v2922 = vadd.f32 %v2876, %v2921
        %v2923 = vpop.f32.mrb[0].mxu0
        %v2924 = vadd.f32 %v2878, %v2923
        %2925 = vdwg.mxu0
        %v2927 = vsel %vm1695, %v1689, 0
        %v2930 = vsel %vm1695, %v1691, 0
        %2932 = vmatprep.subr.bf16.mxu0 0
        %2933 = vmatpush1.bf16.xpose.msra.mxu0 %v2930
        %2934 = vmatprep.subr.bf16.mxu0 0
        %2935 = vmatpush1.bf16.xpose.msra.mxu0 0
        %2936 = vmatprep.subr.bf16.mxu0 0
        %2937 = vmatpush1.bf16.xpose.msra.mxu0 0
        %2938 = vmatprep.subr.bf16.mxu0 0
        %2939 = vmatpush1.bf16.xpose.msra.mxu0 0
        %2940 = vmatprep.subr.bf16.mxu0 0
        %2941 = vmatpush1.bf16.xpose.msra.mxu0 0
        %2942 = vmatprep.subr.bf16.mxu0 0
        %2943 = vmatpush1.bf16.xpose.msra.mxu0 0
        %2944 = vmatprep.subr.bf16.mxu0 0
        %2945 = vmatpush1.bf16.xpose.msra.mxu0 0
        %2946 = vmatprep.subr.bf16.mxu0 0
        %2947 = vmatpush1.bf16.xpose.msra.mxu0 0
        %2948 = vmatprep.subr.bf16.mxu0 0
        %2949 = vmatpush1.bf16.xpose.msra.mxu0 0
        %2950 = vmatprep.subr.bf16.mxu0 0
        %2951 = vmatpush1.bf16.xpose.msra.mxu0 0
        %2952 = vmatprep.subr.bf16.mxu0 0
        %2953 = vmatpush1.bf16.xpose.msra.mxu0 0
        %2954 = vmatprep.subr.bf16.mxu0 0
        %2955 = vmatpush1.bf16.xpose.msra.mxu0 0
        %2956 = vmatprep.subr.bf16.mxu0 0
        %2957 = vmatpush1.bf16.xpose.msra.mxu0 0
        %2958 = vmatprep.subr.bf16.mxu0 0
        %2959 = vmatpush1.bf16.xpose.msra.mxu0 0
        %2960 = vmatprep.subr.bf16.mxu0 0
        %2961 = vmatpush1.bf16.xpose.msra.mxu0 0
        %2962 = vmatprep.subr.bf16.mxu0 0
        %2963 = vmatpush1.bf16.xpose.msra.mxu0 0
        %2964 = vmatprep.mubr.bf16.mxu0 0
        %2965 = vmatmul.mubr.bf16.gmra.mrb[0].mxu0 %v2927
        %v2966 = vpop.f32.mrb[0].mxu0
        %v2967 = vadd.f32 0.0, %v2966
        %v2968 = vpop.f32.mrb[0].mxu0
        %v2969 = vpop.f32.mrb[0].mxu0
        %v2970 = vadd.f32 0.0, %v2969
        %v2971 = vpop.f32.mrb[0].mxu0
        %2972 = vdwg.mxu0
        %v2973 = vmul.f32 %v2967, 0.125
        %v2974 = vmul.f32 %v2970, 0.125
        %v2975 = vadd.f32 %v2973, %v2634
        %v2976 = vadd.f32 %v2974, %v2634
        %v2977 = vsel %vm1751, %v2975, -inf
        %2978 = vmax.xlane.f32.xlu0 %v2977
        %v2979 = vpop.xlane.xlu0 %2978
        %v2980 = vsel %vm1751, %v2976, -inf
        %2981 = vmax.xlane.f32.xlu0 %v2980
        %v2982 = vpop.xlane.xlu0 %2981
        %v2983 = vsub.f32 %v2975, %v2979
        %v2984 = vsub.f32 %v2976, %v2982
        %v2985 = vmul.f32 %v2983, 1.442695
        %v2986 = vpow.pop %v2985
        %v2987 = vmul.f32 %v2984, 1.442695
        %v2988 = vpow.pop %v2987
        %v2989 = vsel %vm1751, %v2986, 0.0
        %2990 = vadd.xlane.f32.xlu0 %v2989
        %v2991 = vpop.xlane.xlu0 %2990
        %v2992 = vsel %vm1751, %v2988, 0.0
        %2993 = vadd.xlane.f32.xlu0 %v2992
        %v2994 = vpop.xlane.xlu0 %2993
        %v2995 = vrcp.pop %v2991
        %v2996 = vmul.f32 %v2986, %v2995
        %v2997 = vrcp.pop %v2994
        %v2998 = vmul.f32 %v2988, %v2997
        %v2999 = vpack.c.bf16 %v2998, %v2996
        %v3001 = vsel %vm1751, %v2999, 0
        %3003 = vmatprep.subr.bf16.mxu0 0
        %3004 = vmatpush1.bf16.msra.mxu0 %v1693
        %3005 = vmatprep.subr.bf16.mxu0 0
        %3006 = vmatpush1.bf16.msra.mxu0 0
        %3007 = vmatprep.subr.bf16.mxu0 0
        %3008 = vmatpush1.bf16.msra.mxu0 0
        %3009 = vmatprep.subr.bf16.mxu0 0
        %3010 = vmatpush1.bf16.msra.mxu0 0
        %3011 = vmatprep.subr.bf16.mxu0 0
        %3012 = vmatpush1.bf16.msra.mxu0 0
        %3013 = vmatprep.subr.bf16.mxu0 0
        %3014 = vmatpush1.bf16.msra.mxu0 0
        %3015 = vmatprep.subr.bf16.mxu0 0
        %3016 = vmatpush1.bf16.msra.mxu0 0
        %3017 = vmatprep.subr.bf16.mxu0 0
        %3018 = vmatpush1.bf16.msra.mxu0 0
        %3019 = vmatprep.subr.bf16.mxu0 0
        %3020 = vmatpush1.bf16.msra.mxu0 0
        %3021 = vmatprep.subr.bf16.mxu0 0
        %3022 = vmatpush1.bf16.msra.mxu0 0
        %3023 = vmatprep.subr.bf16.mxu0 0
        %3024 = vmatpush1.bf16.msra.mxu0 0
        %3025 = vmatprep.subr.bf16.mxu0 0
        %3026 = vmatpush1.bf16.msra.mxu0 0
        %3027 = vmatprep.subr.bf16.mxu0 0
        %3028 = vmatpush1.bf16.msra.mxu0 0
        %3029 = vmatprep.subr.bf16.mxu0 0
        %3030 = vmatpush1.bf16.msra.mxu0 0
        %3031 = vmatprep.subr.bf16.mxu0 0
        %3032 = vmatpush1.bf16.msra.mxu0 0
        %3033 = vmatprep.subr.bf16.mxu0 0
        %3034 = vmatpush1.bf16.msra.mxu0 0
        %3035 = vmatprep.mubr.bf16.mxu0 0
        %3036 = vmatmul.mubr.bf16.gmra.mrb[0].mxu0 %v3001
        %v3037 = vpop.f32.mrb[0].mxu0
        %v3038 = vadd.f32 0.0, %v3037
        %v3039 = vpop.f32.mrb[0].mxu0
        %v3040 = vpop.f32.mrb[0].mxu0
        %v3041 = vadd.f32 0.0, %v3040
        %v3042 = vpop.f32.mrb[0].mxu0
        %3043 = vdwg.mxu0
        %v3044 = vpack.c.bf16 %v3041, %v3038
        %v3046 = vsel %vm1695, %v3044, 0
        %3048 = vmatprep.subr.bf16.mxu0 %v2289
        %3049 = vmatpush1.bf16.msra.mxu0 %v2288
        %3050 = vmatprep.subr.bf16.mxu0 %v2291
        %3051 = vmatpush1.bf16.msra.mxu0 %v2290
        %3052 = vmatprep.subr.bf16.mxu0 %v2293
        %3053 = vmatpush1.bf16.msra.mxu0 %v2292
        %3054 = vmatprep.subr.bf16.mxu0 %v2295
        %3055 = vmatpush1.bf16.msra.mxu0 %v2294
        %3056 = vmatprep.subr.bf16.mxu0 0
        %3057 = vmatpush1.bf16.msra.mxu0 0
        %3058 = vmatprep.subr.bf16.mxu0 0
        %3059 = vmatpush1.bf16.msra.mxu0 0
        %3060 = vmatprep.subr.bf16.mxu0 0
        %3061 = vmatpush1.bf16.msra.mxu0 0
        %3062 = vmatprep.subr.bf16.mxu0 0
        %3063 = vmatpush1.bf16.msra.mxu0 0
        %3064 = vmatprep.subr.bf16.mxu0 0
        %3065 = vmatpush1.bf16.msra.mxu0 0
        %3066 = vmatprep.subr.bf16.mxu0 0
        %3067 = vmatpush1.bf16.msra.mxu0 0
        %3068 = vmatprep.subr.bf16.mxu0 0
        %3069 = vmatpush1.bf16.msra.mxu0 0
        %3070 = vmatprep.subr.bf16.mxu0 0
        %3071 = vmatpush1.bf16.msra.mxu0 0
        %3072 = vmatprep.subr.bf16.mxu0 0
        %3073 = vmatpush1.bf16.msra.mxu0 0
        %3074 = vmatprep.subr.bf16.mxu0 0
        %3075 = vmatpush1.bf16.msra.mxu0 0
        %3076 = vmatprep.subr.bf16.mxu0 0
        %3077 = vmatpush1.bf16.msra.mxu0 0
        %3078 = vmatprep.subr.bf16.mxu0 0
        %3079 = vmatpush1.bf16.msra.mxu0 0
        %3080 = vmatprep.mubr.bf16.mxu0 0
        %3081 = vmatmul.mubr.bf16.gmra.mrb[0].mxu0 %v3046
        %v3082 = vpop.f32.mrb[0].mxu0
        %v3083 = vadd.f32 0.0, %v3082
        %v3084 = vpop.f32.mrb[0].mxu0
        %v3085 = vadd.f32 0.0, %v3084
        %v3086 = vpop.f32.mrb[0].mxu0
        %v3087 = vadd.f32 0.0, %v3086
        %v3088 = vpop.f32.mrb[0].mxu0
        %v3089 = vadd.f32 0.0, %v3088
        %3090 = vdwg.mxu0
        %v3091 = vadd.f32 %v2918, %v3083
        %v3092 = vadd.f32 %v2920, %v3085
        %v3093 = vadd.f32 %v2922, %v3087
        %v3094 = vadd.f32 %v2924, %v3089
        %3096 = vrot.lane.b32.xlu0 %v1689, 64
        %v3097 = vpop.permute.xlu0 %3096
        %3099 = vrot.lane.b32.xlu0 %v1691, 64
        %v3100 = vpop.permute.xlu0 %3099
        %v3102 = vsel %vm1695, %v3097, 0
        %v3105 = vsel %vm1695, %v3100, 0
        %3107 = vmatprep.subr.bf16.mxu0 0
        %3108 = vmatpush1.bf16.xpose.msra.mxu0 %v3105
        %3109 = vmatprep.subr.bf16.mxu0 0
        %3110 = vmatpush1.bf16.xpose.msra.mxu0 0
        %3111 = vmatprep.subr.bf16.mxu0 0
        %3112 = vmatpush1.bf16.xpose.msra.mxu0 0
        %3113 = vmatprep.subr.bf16.mxu0 0
        %3114 = vmatpush1.bf16.xpose.msra.mxu0 0
        %3115 = vmatprep.subr.bf16.mxu0 0
        %3116 = vmatpush1.bf16.xpose.msra.mxu0 0
        %3117 = vmatprep.subr.bf16.mxu0 0
        %3118 = vmatpush1.bf16.xpose.msra.mxu0 0
        %3119 = vmatprep.subr.bf16.mxu0 0
        %3120 = vmatpush1.bf16.xpose.msra.mxu0 0
        %3121 = vmatprep.subr.bf16.mxu0 0
        %3122 = vmatpush1.bf16.xpose.msra.mxu0 0
        %3123 = vmatprep.subr.bf16.mxu0 0
        %3124 = vmatpush1.bf16.xpose.msra.mxu0 0
        %3125 = vmatprep.subr.bf16.mxu0 0
        %3126 = vmatpush1.bf16.xpose.msra.mxu0 0
        %3127 = vmatprep.subr.bf16.mxu0 0
        %3128 = vmatpush1.bf16.xpose.msra.mxu0 0
        %3129 = vmatprep.subr.bf16.mxu0 0
        %3130 = vmatpush1.bf16.xpose.msra.mxu0 0
        %3131 = vmatprep.subr.bf16.mxu0 0
        %3132 = vmatpush1.bf16.xpose.msra.mxu0 0
        %3133 = vmatprep.subr.bf16.mxu0 0
        %3134 = vmatpush1.bf16.xpose.msra.mxu0 0
        %3135 = vmatprep.subr.bf16.mxu0 0
        %3136 = vmatpush1.bf16.xpose.msra.mxu0 0
        %3137 = vmatprep.subr.bf16.mxu0 0
        %3138 = vmatpush1.bf16.xpose.msra.mxu0 0
        %3139 = vmatprep.mubr.bf16.mxu0 0
        %3140 = vmatmul.mubr.bf16.gmra.mrb[0].mxu0 %v3102
        %v3141 = vpop.f32.mrb[0].mxu0
        %v3142 = vadd.f32 0.0, %v3141
        %v3143 = vpop.f32.mrb[0].mxu0
        %v3144 = vpop.f32.mrb[0].mxu0
        %v3145 = vadd.f32 0.0, %v3144
        %v3146 = vpop.f32.mrb[0].mxu0
        %3147 = vdwg.mxu0
        %v3148 = vmul.f32 %v3142, 0.125
        %v3149 = vmul.f32 %v3145, 0.125
        %v3150 = vadd.f32 %v3148, %v2634
        %v3151 = vadd.f32 %v3149, %v2634
        %v3152 = vsel %vm1751, %v3150, -inf
        %3153 = vmax.xlane.f32.xlu0 %v3152
        %v3154 = vpop.xlane.xlu0 %3153
        %v3155 = vsel %vm1751, %v3151, -inf
        %3156 = vmax.xlane.f32.xlu0 %v3155
        %v3157 = vpop.xlane.xlu0 %3156
        %v3158 = vsub.f32 %v3150, %v3154
        %v3159 = vsub.f32 %v3151, %v3157
        %v3160 = vmul.f32 %v3158, 1.442695
        %v3161 = vpow.pop %v3160
        %v3162 = vmul.f32 %v3159, 1.442695
        %v3163 = vpow.pop %v3162
        %v3164 = vsel %vm1751, %v3161, 0.0
        %3165 = vadd.xlane.f32.xlu0 %v3164
        %v3166 = vpop.xlane.xlu0 %3165
        %v3167 = vsel %vm1751, %v3163, 0.0
        %3168 = vadd.xlane.f32.xlu0 %v3167
        %v3169 = vpop.xlane.xlu0 %3168
        %v3170 = vrcp.pop %v3166
        %v3171 = vmul.f32 %v3161, %v3170
        %v3172 = vrcp.pop %v3169
        %v3173 = vmul.f32 %v3163, %v3172
        %v3174 = vpack.c.bf16 %v3173, %v3171
        %3176 = vrot.lane.b32.xlu0 %v1693, 64
        %v3177 = vpop.permute.xlu0 %3176
        %v3180 = vsel %vm1751, %v3174, 0
        %3182 = vmatprep.subr.bf16.mxu0 0
        %3183 = vmatpush1.bf16.msra.mxu0 %v3177
        %3184 = vmatprep.subr.bf16.mxu0 0
        %3185 = vmatpush1.bf16.msra.mxu0 0
        %3186 = vmatprep.subr.bf16.mxu0 0
        %3187 = vmatpush1.bf16.msra.mxu0 0
        %3188 = vmatprep.subr.bf16.mxu0 0
        %3189 = vmatpush1.bf16.msra.mxu0 0
        %3190 = vmatprep.subr.bf16.mxu0 0
        %3191 = vmatpush1.bf16.msra.mxu0 0
        %3192 = vmatprep.subr.bf16.mxu0 0
        %3193 = vmatpush1.bf16.msra.mxu0 0
        %3194 = vmatprep.subr.bf16.mxu0 0
        %3195 = vmatpush1.bf16.msra.mxu0 0
        %3196 = vmatprep.subr.bf16.mxu0 0
        %3197 = vmatpush1.bf16.msra.mxu0 0
        %3198 = vmatprep.subr.bf16.mxu0 0
        %3199 = vmatpush1.bf16.msra.mxu0 0
        %3200 = vmatprep.subr.bf16.mxu0 0
        %3201 = vmatpush1.bf16.msra.mxu0 0
        %3202 = vmatprep.subr.bf16.mxu0 0
        %3203 = vmatpush1.bf16.msra.mxu0 0
        %3204 = vmatprep.subr.bf16.mxu0 0
        %3205 = vmatpush1.bf16.msra.mxu0 0
        %3206 = vmatprep.subr.bf16.mxu0 0
        %3207 = vmatpush1.bf16.msra.mxu0 0
        %3208 = vmatprep.subr.bf16.mxu0 0
        %3209 = vmatpush1.bf16.msra.mxu0 0
        %3210 = vmatprep.subr.bf16.mxu0 0
        %3211 = vmatpush1.bf16.msra.mxu0 0
        %3212 = vmatprep.subr.bf16.mxu0 0
        %3213 = vmatpush1.bf16.msra.mxu0 0
        %3214 = vmatprep.mubr.bf16.mxu0 0
        %3215 = vmatmul.mubr.bf16.gmra.mrb[0].mxu0 %v3180
        %v3216 = vpop.f32.mrb[0].mxu0
        %v3217 = vadd.f32 0.0, %v3216
        %v3218 = vpop.f32.mrb[0].mxu0
        %v3219 = vpop.f32.mrb[0].mxu0
        %v3220 = vadd.f32 0.0, %v3219
        %v3221 = vpop.f32.mrb[0].mxu0
        %3222 = vdwg.mxu0
        %v3223 = vpack.c.bf16 %v3220, %v3217
        %v3225 = vsel %vm1695, %v3223, 0
        %3227 = vmatprep.subr.bf16.mxu0 %v2516
        %3228 = vmatpush1.bf16.msra.mxu0 %v2515
        %3229 = vmatprep.subr.bf16.mxu0 %v2518
        %3230 = vmatpush1.bf16.msra.mxu0 %v2517
        %3231 = vmatprep.subr.bf16.mxu0 %v2520
        %3232 = vmatpush1.bf16.msra.mxu0 %v2519
        %3233 = vmatprep.subr.bf16.mxu0 %v2522
        %3234 = vmatpush1.bf16.msra.mxu0 %v2521
        %3235 = vmatprep.subr.bf16.mxu0 0
        %3236 = vmatpush1.bf16.msra.mxu0 0
        %3237 = vmatprep.subr.bf16.mxu0 0
        %3238 = vmatpush1.bf16.msra.mxu0 0
        %3239 = vmatprep.subr.bf16.mxu0 0
        %3240 = vmatpush1.bf16.msra.mxu0 0
        %3241 = vmatprep.subr.bf16.mxu0 0
        %3242 = vmatpush1.bf16.msra.mxu0 0
        %3243 = vmatprep.subr.bf16.mxu0 0
        %3244 = vmatpush1.bf16.msra.mxu0 0
        %3245 = vmatprep.subr.bf16.mxu0 0
        %3246 = vmatpush1.bf16.msra.mxu0 0
        %3247 = vmatprep.subr.bf16.mxu0 0
        %3248 = vmatpush1.bf16.msra.mxu0 0
        %3249 = vmatprep.subr.bf16.mxu0 0
        %3250 = vmatpush1.bf16.msra.mxu0 0
        %3251 = vmatprep.subr.bf16.mxu0 0
        %3252 = vmatpush1.bf16.msra.mxu0 0
        %3253 = vmatprep.subr.bf16.mxu0 0
        %3254 = vmatpush1.bf16.msra.mxu0 0
        %3255 = vmatprep.subr.bf16.mxu0 0
        %3256 = vmatpush1.bf16.msra.mxu0 0
        %3257 = vmatprep.subr.bf16.mxu0 0
        %3258 = vmatpush1.bf16.msra.mxu0 0
        %3259 = vmatprep.mubr.bf16.mxu0 0
        %3260 = vmatmul.mubr.bf16.gmra.mrb[0].mxu0 %v3225
        %v3261 = vpop.f32.mrb[0].mxu0
        %v3262 = vadd.f32 0.0, %v3261
        %v3263 = vpop.f32.mrb[0].mxu0
        %v3264 = vadd.f32 0.0, %v3263
        %v3265 = vpop.f32.mrb[0].mxu0
        %v3266 = vadd.f32 0.0, %v3265
        %v3267 = vpop.f32.mrb[0].mxu0
        %v3268 = vadd.f32 0.0, %v3267
        %3269 = vdwg.mxu0
        %v3270 = vadd.f32 %v3091, %v3262
        %v3271 = vadd.f32 %v3092, %v3264
        %v3272 = vadd.f32 %v3093, %v3266
        %v3273 = vadd.f32 %v3094, %v3268
        %v3274 = vld [vmem:[%s715] sm:$0x3]
        %v3276 = vlaneseq
        %v3277 = vshrl.u32 %v3276, 7
        %v3278 = vsub.s32 0, %v3277
        %v3279 = vrot.slane %v3274, %v3278
        %v3280 = vlaneseq
        %v3281 = vshrl.u32 %v3280, 7
        %v3282 = vsub.s32 1, %v3281
        %v3283 = vrot.slane %v3274, %v3282
        %v3286 = vadd.f32 %v2577, %v3279
        %v3287 = vadd.f32 %v2578, %v3283
        %v3288 = vadd.f32 %v2579, %v3279
        %v3289 = vadd.f32 %v2580, %v3283
        %v3290 = vadd.f32 %v3270, %v3279
        %v3291 = vadd.f32 %v3271, %v3283
        %v3292 = vadd.f32 %v3272, %v3279
        %v3293 = vadd.f32 %v3273, %v3283
        %v3294 = vadd.f32 %v3286, %v903
        %v3295 = vadd.f32 %v3287, %v904
        %v3296 = vadd.f32 %v3288, %v905
        %v3297 = vadd.f32 %v3289, %v906
        %v3298 = vadd.f32 %v3290, %v907
        %v3299 = vadd.f32 %v3291, %v908
        %v3300 = vadd.f32 %v3292, %v909
        %v3301 = vadd.f32 %v3293, %v910
        %v3302 = vld [vmem:[%s724] sm:$0x3]
        %v3303 = vld [vmem:[%s733] sm:$0x3]
        %v3304 = vadd.f32 %v3294, %v3295
        %3305 = vadd.xlane.f32.xlu0 %v3304
        %v3306 = vpop.xlane.xlu0 %3305
        %v3307 = vadd.f32 %v3296, %v3297
        %3308 = vadd.xlane.f32.xlu0 %v3307
        %v3309 = vpop.xlane.xlu0 %3308
        %v3310 = vadd.f32 %v3298, %v3299
        %3311 = vadd.xlane.f32.xlu0 %v3310
        %v3312 = vpop.xlane.xlu0 %3311
        %v3313 = vadd.f32 %v3300, %v3301
        %3314 = vadd.xlane.f32.xlu0 %v3313
        %v3315 = vpop.xlane.xlu0 %3314
        %v3316 = vrcp.pop 256.0
        %v3317 = vmul.f32 %v3306, %v3316
        %v3318 = vmul.f32 %v3309, %v3316
        %v3319 = vmul.f32 %v3312, %v3316
        %v3320 = vmul.f32 %v3315, %v3316
        %v3321 = vsub.f32 %v3294, %v3317
        %v3322 = vsub.f32 %v3295, %v3317
        %v3323 = vsub.f32 %v3296, %v3318
        %v3324 = vsub.f32 %v3297, %v3318
        %v3325 = vsub.f32 %v3298, %v3319
        %v3326 = vsub.f32 %v3299, %v3319
        %v3327 = vsub.f32 %v3300, %v3320
        %v3328 = vsub.f32 %v3301, %v3320
        %v3329 = vmul.f32 %v3321, %v3321
        %v3330 = vmul.f32 %v3322, %v3322
        %v3331 = vmul.f32 %v3323, %v3323
        %v3332 = vmul.f32 %v3324, %v3324
        %v3333 = vmul.f32 %v3325, %v3325
        %v3334 = vmul.f32 %v3326, %v3326
        %v3335 = vmul.f32 %v3327, %v3327
        %v3336 = vmul.f32 %v3328, %v3328
        %v3337 = vadd.f32 %v3329, %v3330
        %3338 = vadd.xlane.f32.xlu0 %v3337
        %v3339 = vpop.xlane.xlu0 %3338
        %v3340 = vadd.f32 %v3331, %v3332
        %3341 = vadd.xlane.f32.xlu0 %v3340
        %v3342 = vpop.xlane.xlu0 %3341
        %v3343 = vadd.f32 %v3333, %v3334
        %3344 = vadd.xlane.f32.xlu0 %v3343
        %v3345 = vpop.xlane.xlu0 %3344
        %v3346 = vadd.f32 %v3335, %v3336
        %3347 = vadd.xlane.f32.xlu0 %v3346
        %v3348 = vpop.xlane.xlu0 %3347
        %v3349 = vmul.f32 %v3339, %v3316
        %v3350 = vmul.f32 %v3342, %v3316
        %v3351 = vmul.f32 %v3345, %v3316
        %v3352 = vmul.f32 %v3348, %v3316
        %v3353 = vadd.f32 %v3349, 1e-12
        %v3354 = vadd.f32 %v3350, 1e-12
        %v3355 = vadd.f32 %v3351, 1e-12
        %v3356 = vadd.f32 %v3352, 1e-12
        %v3357 = vrsqrt.pop %v3353
        %v3358 = vrsqrt.pop %v3354
        %v3359 = vrsqrt.pop %v3355
        %v3360 = vrsqrt.pop %v3356
        %v3361 = vmul.f32 %v3321, %v3357
        %v3362 = vmul.f32 %v3322, %v3357
        %v3363 = vmul.f32 %v3323, %v3358
        %v3364 = vmul.f32 %v3324, %v3358
        %v3365 = vmul.f32 %v3325, %v3359
        %v3366 = vmul.f32 %v3326, %v3359
        %v3367 = vmul.f32 %v3327, %v3360
        %v3368 = vmul.f32 %v3328, %v3360
        %v3370 = vlaneseq
        %v3371 = vshrl.u32 %v3370, 7
        %v3372 = vsub.s32 0, %v3371
        %v3373 = vrot.slane %v3302, %v3372
        %v3374 = vlaneseq
        %v3375 = vshrl.u32 %v3374, 7
        %v3376 = vsub.s32 1, %v3375
        %v3377 = vrot.slane %v3302, %v3376
        %v3380 = vmul.f32 %v3361, %v3373
        %v3381 = vmul.f32 %v3362, %v3377
        %v3382 = vmul.f32 %v3363, %v3373
        %v3383 = vmul.f32 %v3364, %v3377
        %v3384 = vmul.f32 %v3365, %v3373
        %v3385 = vmul.f32 %v3366, %v3377
        %v3386 = vmul.f32 %v3367, %v3373
        %v3387 = vmul.f32 %v3368, %v3377
        %v3389 = vlaneseq
        %v3390 = vshrl.u32 %v3389, 7
        %v3391 = vsub.s32 0, %v3390
        %v3392 = vrot.slane %v3303, %v3391
        %v3393 = vlaneseq
        %v3394 = vshrl.u32 %v3393, 7
        %v3395 = vsub.s32 1, %v3394
        %v3396 = vrot.slane %v3303, %v3395
        %v3399 = vadd.f32 %v3380, %v3392
        %v3400 = vadd.f32 %v3381, %v3396
        %v3401 = vadd.f32 %v3382, %v3392
        %v3402 = vadd.f32 %v3383, %v3396
        %v3403 = vadd.f32 %v3384, %v3392
        %v3404 = vadd.f32 %v3385, %v3396
        %v3405 = vadd.f32 %v3386, %v3392
        %v3406 = vadd.f32 %v3387, %v3396
        %v3407 = vpack.c.bf16 %v3401, %v3399
        %v3408 = vpack.c.bf16 %v3402, %v3400
        %v3409 = vpack.c.bf16 %v3405, %v3403
        %v3410 = vpack.c.bf16 %v3406, %v3404
        %v3411 = vld [vmem:[%s742] sm:$0xff]
        %v3412 = vld [vmem:[%s742 + $0x8] sm:$0xff]
        %v3413 = vld [vmem:[%s742 + $0x10] sm:$0xff]
        %v3414 = vld [vmem:[%s742 + $0x18] sm:$0xff]
        %v3415 = vld [vmem:[%s742 + $0x20] sm:$0xff]
        %v3416 = vld [vmem:[%s742 + $0x28] sm:$0xff]
        %v3417 = vld [vmem:[%s742 + $0x30] sm:$0xff]
        %v3418 = vld [vmem:[%s742 + $0x38] sm:$0xff]
        %v3419 = vld [vmem:[%s742 + $0x40] sm:$0xff]
        %v3420 = vld [vmem:[%s742 + $0x48] sm:$0xff]
        %v3421 = vld [vmem:[%s742 + $0x50] sm:$0xff]
        %v3422 = vld [vmem:[%s742 + $0x58] sm:$0xff]
        %v3423 = vld [vmem:[%s742 + $0x60] sm:$0xff]
        %v3424 = vld [vmem:[%s742 + $0x68] sm:$0xff]
        %v3425 = vld [vmem:[%s742 + $0x70] sm:$0xff]
        %v3426 = vld [vmem:[%s742 + $0x78] sm:$0xff]
        %v3427 = vld [vmem:[%s742 + $0x80] sm:$0xff]
        %v3428 = vld [vmem:[%s742 + $0x88] sm:$0xff]
        %v3429 = vld [vmem:[%s742 + $0x90] sm:$0xff]
        %v3430 = vld [vmem:[%s742 + $0x98] sm:$0xff]
        %v3431 = vld [vmem:[%s742 + $0xa0] sm:$0xff]
        %v3432 = vld [vmem:[%s742 + $0xa8] sm:$0xff]
        %v3433 = vld [vmem:[%s742 + $0xb0] sm:$0xff]
        %v3434 = vld [vmem:[%s742 + $0xb8] sm:$0xff]
        %v3435 = vld [vmem:[%s742 + $0xc0] sm:$0xff]
        %v3436 = vld [vmem:[%s742 + $0xc8] sm:$0xff]
        %v3437 = vld [vmem:[%s742 + $0xd0] sm:$0xff]
        %v3438 = vld [vmem:[%s742 + $0xd8] sm:$0xff]
        %v3439 = vld [vmem:[%s742 + $0xe0] sm:$0xff]
        %v3440 = vld [vmem:[%s742 + $0xe8] sm:$0xff]
        %v3441 = vld [vmem:[%s742 + $0xf0] sm:$0xff]
        %v3442 = vld [vmem:[%s742 + $0xf8] sm:$0xff]
        %v3443 = vld [vmem:[%s742 + $0x100] sm:$0xff]
        %v3444 = vld [vmem:[%s742 + $0x108] sm:$0xff]
        %v3445 = vld [vmem:[%s742 + $0x110] sm:$0xff]
        %v3446 = vld [vmem:[%s742 + $0x118] sm:$0xff]
        %v3447 = vld [vmem:[%s742 + $0x120] sm:$0xff]
        %v3448 = vld [vmem:[%s742 + $0x128] sm:$0xff]
        %v3449 = vld [vmem:[%s742 + $0x130] sm:$0xff]
        %v3450 = vld [vmem:[%s742 + $0x138] sm:$0xff]
        %v3451 = vld [vmem:[%s742 + $0x140] sm:$0xff]
        %v3452 = vld [vmem:[%s742 + $0x148] sm:$0xff]
        %v3453 = vld [vmem:[%s742 + $0x150] sm:$0xff]
        %v3454 = vld [vmem:[%s742 + $0x158] sm:$0xff]
        %v3455 = vld [vmem:[%s742 + $0x160] sm:$0xff]
        %v3456 = vld [vmem:[%s742 + $0x168] sm:$0xff]
        %v3457 = vld [vmem:[%s742 + $0x170] sm:$0xff]
        %v3458 = vld [vmem:[%s742 + $0x178] sm:$0xff]
        %v3459 = vld [vmem:[%s742 + $0x180] sm:$0xff]
        %v3460 = vld [vmem:[%s742 + $0x188] sm:$0xff]
        %v3461 = vld [vmem:[%s742 + $0x190] sm:$0xff]
        %v3462 = vld [vmem:[%s742 + $0x198] sm:$0xff]
        %v3463 = vld [vmem:[%s742 + $0x1a0] sm:$0xff]
        %v3464 = vld [vmem:[%s742 + $0x1a8] sm:$0xff]
        %v3465 = vld [vmem:[%s742 + $0x1b0] sm:$0xff]
        %v3466 = vld [vmem:[%s742 + $0x1b8] sm:$0xff]
        %v3467 = vld [vmem:[%s742 + $0x1c0] sm:$0xff]
        %v3468 = vld [vmem:[%s742 + $0x1c8] sm:$0xff]
        %v3469 = vld [vmem:[%s742 + $0x1d0] sm:$0xff]
        %v3470 = vld [vmem:[%s742 + $0x1d8] sm:$0xff]
        %v3471 = vld [vmem:[%s742 + $0x1e0] sm:$0xff]
        %v3472 = vld [vmem:[%s742 + $0x1e8] sm:$0xff]
        %v3473 = vld [vmem:[%s742 + $0x1f0] sm:$0xff]
        %v3474 = vld [vmem:[%s742 + $0x1f8] sm:$0xff]
        %v3475 = vld [vmem:[%s742 + $0x200] sm:$0xff]
        %v3476 = vld [vmem:[%s742 + $0x208] sm:$0xff]
        %v3477 = vld [vmem:[%s742 + $0x210] sm:$0xff]
        %v3478 = vld [vmem:[%s742 + $0x218] sm:$0xff]
        %v3479 = vld [vmem:[%s742 + $0x220] sm:$0xff]
        %v3480 = vld [vmem:[%s742 + $0x228] sm:$0xff]
        %v3481 = vld [vmem:[%s742 + $0x230] sm:$0xff]
        %v3482 = vld [vmem:[%s742 + $0x238] sm:$0xff]
        %v3483 = vld [vmem:[%s742 + $0x240] sm:$0xff]
        %v3484 = vld [vmem:[%s742 + $0x248] sm:$0xff]
        %v3485 = vld [vmem:[%s742 + $0x250] sm:$0xff]
        %v3486 = vld [vmem:[%s742 + $0x258] sm:$0xff]
        %v3487 = vld [vmem:[%s742 + $0x260] sm:$0xff]
        %v3488 = vld [vmem:[%s742 + $0x268] sm:$0xff]
        %v3489 = vld [vmem:[%s742 + $0x270] sm:$0xff]
        %v3490 = vld [vmem:[%s742 + $0x278] sm:$0xff]
        %v3491 = vld [vmem:[%s742 + $0x280] sm:$0xff]
        %v3492 = vld [vmem:[%s742 + $0x288] sm:$0xff]
        %v3493 = vld [vmem:[%s742 + $0x290] sm:$0xff]
        %v3494 = vld [vmem:[%s742 + $0x298] sm:$0xff]
        %v3495 = vld [vmem:[%s742 + $0x2a0] sm:$0xff]
        %v3496 = vld [vmem:[%s742 + $0x2a8] sm:$0xff]
        %v3497 = vld [vmem:[%s742 + $0x2b0] sm:$0xff]
        %v3498 = vld [vmem:[%s742 + $0x2b8] sm:$0xff]
        %v3499 = vld [vmem:[%s742 + $0x2c0] sm:$0xff]
        %v3500 = vld [vmem:[%s742 + $0x2c8] sm:$0xff]
        %v3501 = vld [vmem:[%s742 + $0x2d0] sm:$0xff]
        %v3502 = vld [vmem:[%s742 + $0x2d8] sm:$0xff]
        %v3503 = vld [vmem:[%s742 + $0x2e0] sm:$0xff]
        %v3504 = vld [vmem:[%s742 + $0x2e8] sm:$0xff]
        %v3505 = vld [vmem:[%s742 + $0x2f0] sm:$0xff]
        %v3506 = vld [vmem:[%s742 + $0x2f8] sm:$0xff]
        %v3507 = vld [vmem:[%s742 + $0x300] sm:$0xff]
        %v3508 = vld [vmem:[%s742 + $0x308] sm:$0xff]
        %v3509 = vld [vmem:[%s742 + $0x310] sm:$0xff]
        %v3510 = vld [vmem:[%s742 + $0x318] sm:$0xff]
        %v3511 = vld [vmem:[%s742 + $0x320] sm:$0xff]
        %v3512 = vld [vmem:[%s742 + $0x328] sm:$0xff]
        %v3513 = vld [vmem:[%s742 + $0x330] sm:$0xff]
        %v3514 = vld [vmem:[%s742 + $0x338] sm:$0xff]
        %v3515 = vld [vmem:[%s742 + $0x340] sm:$0xff]
        %v3516 = vld [vmem:[%s742 + $0x348] sm:$0xff]
        %v3517 = vld [vmem:[%s742 + $0x350] sm:$0xff]
        %v3518 = vld [vmem:[%s742 + $0x358] sm:$0xff]
        %v3519 = vld [vmem:[%s742 + $0x360] sm:$0xff]
        %v3520 = vld [vmem:[%s742 + $0x368] sm:$0xff]
        %v3521 = vld [vmem:[%s742 + $0x370] sm:$0xff]
        %v3522 = vld [vmem:[%s742 + $0x378] sm:$0xff]
        %v3523 = vld [vmem:[%s742 + $0x380] sm:$0xff]
        %v3524 = vld [vmem:[%s742 + $0x388] sm:$0xff]
        %v3525 = vld [vmem:[%s742 + $0x390] sm:$0xff]
        %v3526 = vld [vmem:[%s742 + $0x398] sm:$0xff]
        %v3527 = vld [vmem:[%s742 + $0x3a0] sm:$0xff]
        %v3528 = vld [vmem:[%s742 + $0x3a8] sm:$0xff]
        %v3529 = vld [vmem:[%s742 + $0x3b0] sm:$0xff]
        %v3530 = vld [vmem:[%s742 + $0x3b8] sm:$0xff]
        %v3531 = vld [vmem:[%s742 + $0x3c0] sm:$0xff]
        %v3532 = vld [vmem:[%s742 + $0x3c8] sm:$0xff]
        %v3533 = vld [vmem:[%s742 + $0x3d0] sm:$0xff]
        %v3534 = vld [vmem:[%s742 + $0x3d8] sm:$0xff]
        %v3535 = vld [vmem:[%s742 + $0x3e0] sm:$0xff]
        %v3536 = vld [vmem:[%s742 + $0x3e8] sm:$0xff]
        %v3537 = vld [vmem:[%s742 + $0x3f0] sm:$0xff]
        %v3538 = vld [vmem:[%s742 + $0x3f8] sm:$0xff]
        %v3539 = vld [vmem:[%s751] sm:$0xff]
        %v3541 = vlaneseq
        %v3542 = vshrl.u32 %v3541, 7
        %v3543 = vsub.s32 0, %v3542
        %v3544 = vrot.slane %v3539, %v3543
        %v3545 = vlaneseq
        %v3546 = vshrl.u32 %v3545, 7
        %v3547 = vsub.s32 1, %v3546
        %v3548 = vrot.slane %v3539, %v3547
        %v3549 = vlaneseq
        %v3550 = vshrl.u32 %v3549, 7
        %v3551 = vsub.s32 2, %v3550
        %v3552 = vrot.slane %v3539, %v3551
        %v3553 = vlaneseq
        %v3554 = vshrl.u32 %v3553, 7
        %v3555 = vsub.s32 3, %v3554
        %v3556 = vrot.slane %v3539, %v3555
        %v3557 = vlaneseq
        %v3558 = vshrl.u32 %v3557, 7
        %v3559 = vsub.s32 4, %v3558
        %v3560 = vrot.slane %v3539, %v3559
        %v3561 = vlaneseq
        %v3562 = vshrl.u32 %v3561, 7
        %v3563 = vsub.s32 5, %v3562
        %v3564 = vrot.slane %v3539, %v3563
        %v3565 = vlaneseq
        %v3566 = vshrl.u32 %v3565, 7
        %v3567 = vsub.s32 6, %v3566
        %v3568 = vrot.slane %v3539, %v3567
        %v3569 = vlaneseq
        %v3570 = vshrl.u32 %v3569, 7
        %v3571 = vsub.s32 7, %v3570
        %v3572 = vrot.slane %v3539, %v3571
        %v3709 = vunpack.c.l.b16 %v3411
        %v3710 = vunpack.c.h.b16 %v3411
        %v3711 = vunpack.c.l.b16 %v3412
        %v3712 = vunpack.c.h.b16 %v3412
        %v3713 = vunpack.c.l.b16 %v3413
        %v3714 = vunpack.c.h.b16 %v3413
        %v3715 = vunpack.c.l.b16 %v3414
        %v3716 = vunpack.c.h.b16 %v3414
        %v3717 = vunpack.c.l.b16 %v3415
        %v3718 = vunpack.c.h.b16 %v3415
        %v3719 = vunpack.c.l.b16 %v3416
        %v3720 = vunpack.c.h.b16 %v3416
        %v3721 = vunpack.c.l.b16 %v3417
        %v3722 = vunpack.c.h.b16 %v3417
        %v3723 = vunpack.c.l.b16 %v3418
        %v3724 = vunpack.c.h.b16 %v3418
        %v3725 = vunpack.c.l.b16 %v3419
        %v3726 = vunpack.c.h.b16 %v3419
        %v3727 = vunpack.c.l.b16 %v3420
        %v3728 = vunpack.c.h.b16 %v3420
        %v3729 = vunpack.c.l.b16 %v3421
        %v3730 = vunpack.c.h.b16 %v3421
        %v3731 = vunpack.c.l.b16 %v3422
        %v3732 = vunpack.c.h.b16 %v3422
        %v3733 = vunpack.c.l.b16 %v3423
        %v3734 = vunpack.c.h.b16 %v3423
        %v3735 = vunpack.c.l.b16 %v3424
        %v3736 = vunpack.c.h.b16 %v3424
        %v3737 = vunpack.c.l.b16 %v3425
        %v3738 = vunpack.c.h.b16 %v3425
        %v3739 = vunpack.c.l.b16 %v3426
        %v3740 = vunpack.c.h.b16 %v3426
        %v3741 = vunpack.c.l.b16 %v3427
        %v3742 = vunpack.c.h.b16 %v3427
        %v3743 = vunpack.c.l.b16 %v3428
        %v3744 = vunpack.c.h.b16 %v3428
        %v3745 = vunpack.c.l.b16 %v3429
        %v3746 = vunpack.c.h.b16 %v3429
        %v3747 = vunpack.c.l.b16 %v3430
        %v3748 = vunpack.c.h.b16 %v3430
        %v3749 = vunpack.c.l.b16 %v3431
        %v3750 = vunpack.c.h.b16 %v3431
        %v3751 = vunpack.c.l.b16 %v3432
        %v3752 = vunpack.c.h.b16 %v3432
        %v3753 = vunpack.c.l.b16 %v3433
        %v3754 = vunpack.c.h.b16 %v3433
        %v3755 = vunpack.c.l.b16 %v3434
        %v3756 = vunpack.c.h.b16 %v3434
        %v3757 = vunpack.c.l.b16 %v3435
        %v3758 = vunpack.c.h.b16 %v3435
        %v3759 = vunpack.c.l.b16 %v3436
        %v3760 = vunpack.c.h.b16 %v3436
        %v3761 = vunpack.c.l.b16 %v3437
        %v3762 = vunpack.c.h.b16 %v3437
        %v3763 = vunpack.c.l.b16 %v3438
        %v3764 = vunpack.c.h.b16 %v3438
        %v3765 = vunpack.c.l.b16 %v3439
        %v3766 = vunpack.c.h.b16 %v3439
        %v3767 = vunpack.c.l.b16 %v3440
        %v3768 = vunpack.c.h.b16 %v3440
        %v3769 = vunpack.c.l.b16 %v3441
        %v3770 = vunpack.c.h.b16 %v3441
        %v3771 = vunpack.c.l.b16 %v3442
        %v3772 = vunpack.c.h.b16 %v3442
        %v3773 = vunpack.c.l.b16 %v3443
        %v3774 = vunpack.c.h.b16 %v3443
        %v3775 = vunpack.c.l.b16 %v3444
        %v3776 = vunpack.c.h.b16 %v3444
        %v3777 = vunpack.c.l.b16 %v3445
        %v3778 = vunpack.c.h.b16 %v3445
        %v3779 = vunpack.c.l.b16 %v3446
        %v3780 = vunpack.c.h.b16 %v3446
        %v3781 = vunpack.c.l.b16 %v3447
        %v3782 = vunpack.c.h.b16 %v3447
        %v3783 = vunpack.c.l.b16 %v3448
        %v3784 = vunpack.c.h.b16 %v3448
        %v3785 = vunpack.c.l.b16 %v3449
        %v3786 = vunpack.c.h.b16 %v3449
        %v3787 = vunpack.c.l.b16 %v3450
        %v3788 = vunpack.c.h.b16 %v3450
        %v3789 = vunpack.c.l.b16 %v3451
        %v3790 = vunpack.c.h.b16 %v3451
        %v3791 = vunpack.c.l.b16 %v3452
        %v3792 = vunpack.c.h.b16 %v3452
        %v3793 = vunpack.c.l.b16 %v3453
        %v3794 = vunpack.c.h.b16 %v3453
        %v3795 = vunpack.c.l.b16 %v3454
        %v3796 = vunpack.c.h.b16 %v3454
        %v3797 = vunpack.c.l.b16 %v3455
        %v3798 = vunpack.c.h.b16 %v3455
        %v3799 = vunpack.c.l.b16 %v3456
        %v3800 = vunpack.c.h.b16 %v3456
        %v3801 = vunpack.c.l.b16 %v3457
        %v3802 = vunpack.c.h.b16 %v3457
        %v3803 = vunpack.c.l.b16 %v3458
        %v3804 = vunpack.c.h.b16 %v3458
        %v3805 = vunpack.c.l.b16 %v3459
        %v3806 = vunpack.c.h.b16 %v3459
        %v3807 = vunpack.c.l.b16 %v3460
        %v3808 = vunpack.c.h.b16 %v3460
        %v3809 = vunpack.c.l.b16 %v3461
        %v3810 = vunpack.c.h.b16 %v3461
        %v3811 = vunpack.c.l.b16 %v3462
        %v3812 = vunpack.c.h.b16 %v3462
        %v3813 = vunpack.c.l.b16 %v3463
        %v3814 = vunpack.c.h.b16 %v3463
        %v3815 = vunpack.c.l.b16 %v3464
        %v3816 = vunpack.c.h.b16 %v3464
        %v3817 = vunpack.c.l.b16 %v3465
        %v3818 = vunpack.c.h.b16 %v3465
        %v3819 = vunpack.c.l.b16 %v3466
        %v3820 = vunpack.c.h.b16 %v3466
        %v3821 = vunpack.c.l.b16 %v3467
        %v3822 = vunpack.c.h.b16 %v3467
        %v3823 = vunpack.c.l.b16 %v3468
        %v3824 = vunpack.c.h.b16 %v3468
        %v3825 = vunpack.c.l.b16 %v3469
        %v3826 = vunpack.c.h.b16 %v3469
        %v3827 = vunpack.c.l.b16 %v3470
        %v3828 = vunpack.c.h.b16 %v3470
        %v3829 = vunpack.c.l.b16 %v3471
        %v3830 = vunpack.c.h.b16 %v3471
        %v3831 = vunpack.c.l.b16 %v3472
        %v3832 = vunpack.c.h.b16 %v3472
        %v3833 = vunpack.c.l.b16 %v3473
        %v3834 = vunpack.c.h.b16 %v3473
        %v3835 = vunpack.c.l.b16 %v3474
        %v3836 = vunpack.c.h.b16 %v3474
        %v3837 = vunpack.c.l.b16 %v3475
        %v3838 = vunpack.c.h.b16 %v3475
        %v3839 = vunpack.c.l.b16 %v3476
        %v3840 = vunpack.c.h.b16 %v3476
        %v3841 = vunpack.c.l.b16 %v3477
        %v3842 = vunpack.c.h.b16 %v3477
        %v3843 = vunpack.c.l.b16 %v3478
        %v3844 = vunpack.c.h.b16 %v3478
        %v3845 = vunpack.c.l.b16 %v3479
        %v3846 = vunpack.c.h.b16 %v3479
        %v3847 = vunpack.c.l.b16 %v3480
        %v3848 = vunpack.c.h.b16 %v3480
        %v3849 = vunpack.c.l.b16 %v3481
        %v3850 = vunpack.c.h.b16 %v3481
        %v3851 = vunpack.c.l.b16 %v3482
        %v3852 = vunpack.c.h.b16 %v3482
        %v3853 = vunpack.c.l.b16 %v3483
        %v3854 = vunpack.c.h.b16 %v3483
        %v3855 = vunpack.c.l.b16 %v3484
        %v3856 = vunpack.c.h.b16 %v3484
        %v3857 = vunpack.c.l.b16 %v3485
        %v3858 = vunpack.c.h.b16 %v3485
        %v3859 = vunpack.c.l.b16 %v3486
        %v3860 = vunpack.c.h.b16 %v3486
        %v3861 = vunpack.c.l.b16 %v3487
        %v3862 = vunpack.c.h.b16 %v3487
        %v3863 = vunpack.c.l.b16 %v3488
        %v3864 = vunpack.c.h.b16 %v3488
        %v3865 = vunpack.c.l.b16 %v3489
        %v3866 = vunpack.c.h.b16 %v3489
        %v3867 = vunpack.c.l.b16 %v3490
        %v3868 = vunpack.c.h.b16 %v3490
        %v3869 = vunpack.c.l.b16 %v3491
        %v3870 = vunpack.c.h.b16 %v3491
        %v3871 = vunpack.c.l.b16 %v3492
        %v3872 = vunpack.c.h.b16 %v3492
        %v3873 = vunpack.c.l.b16 %v3493
        %v3874 = vunpack.c.h.b16 %v3493
        %v3875 = vunpack.c.l.b16 %v3494
        %v3876 = vunpack.c.h.b16 %v3494
        %v3877 = vunpack.c.l.b16 %v3495
        %v3878 = vunpack.c.h.b16 %v3495
        %v3879 = vunpack.c.l.b16 %v3496
        %v3880 = vunpack.c.h.b16 %v3496
        %v3881 = vunpack.c.l.b16 %v3497
        %v3882 = vunpack.c.h.b16 %v3497
        %v3883 = vunpack.c.l.b16 %v3498
        %v3884 = vunpack.c.h.b16 %v3498
        %v3885 = vunpack.c.l.b16 %v3499
        %v3886 = vunpack.c.h.b16 %v3499
        %v3887 = vunpack.c.l.b16 %v3500
        %v3888 = vunpack.c.h.b16 %v3500
        %v3889 = vunpack.c.l.b16 %v3501
        %v3890 = vunpack.c.h.b16 %v3501
        %v3891 = vunpack.c.l.b16 %v3502
        %v3892 = vunpack.c.h.b16 %v3502
        %v3893 = vunpack.c.l.b16 %v3503
        %v3894 = vunpack.c.h.b16 %v3503
        %v3895 = vunpack.c.l.b16 %v3504
        %v3896 = vunpack.c.h.b16 %v3504
        %v3897 = vunpack.c.l.b16 %v3505
        %v3898 = vunpack.c.h.b16 %v3505
        %v3899 = vunpack.c.l.b16 %v3506
        %v3900 = vunpack.c.h.b16 %v3506
        %v3901 = vunpack.c.l.b16 %v3507
        %v3902 = vunpack.c.h.b16 %v3507
        %v3903 = vunpack.c.l.b16 %v3508
        %v3904 = vunpack.c.h.b16 %v3508
        %v3905 = vunpack.c.l.b16 %v3509
        %v3906 = vunpack.c.h.b16 %v3509
        %v3907 = vunpack.c.l.b16 %v3510
        %v3908 = vunpack.c.h.b16 %v3510
        %v3909 = vunpack.c.l.b16 %v3511
        %v3910 = vunpack.c.h.b16 %v3511
        %v3911 = vunpack.c.l.b16 %v3512
        %v3912 = vunpack.c.h.b16 %v3512
        %v3913 = vunpack.c.l.b16 %v3513
        %v3914 = vunpack.c.h.b16 %v3513
        %v3915 = vunpack.c.l.b16 %v3514
        %v3916 = vunpack.c.h.b16 %v3514
        %v3917 = vunpack.c.l.b16 %v3515
        %v3918 = vunpack.c.h.b16 %v3515
        %v3919 = vunpack.c.l.b16 %v3516
        %v3920 = vunpack.c.h.b16 %v3516
        %v3921 = vunpack.c.l.b16 %v3517
        %v3922 = vunpack.c.h.b16 %v3517
        %v3923 = vunpack.c.l.b16 %v3518
        %v3924 = vunpack.c.h.b16 %v3518
        %v3925 = vunpack.c.l.b16 %v3519
        %v3926 = vunpack.c.h.b16 %v3519
        %v3927 = vunpack.c.l.b16 %v3520
        %v3928 = vunpack.c.h.b16 %v3520
        %v3929 = vunpack.c.l.b16 %v3521
        %v3930 = vunpack.c.h.b16 %v3521
        %v3931 = vunpack.c.l.b16 %v3522
        %v3932 = vunpack.c.h.b16 %v3522
        %v3933 = vunpack.c.l.b16 %v3523
        %v3934 = vunpack.c.h.b16 %v3523
        %v3935 = vunpack.c.l.b16 %v3524
        %v3936 = vunpack.c.h.b16 %v3524
        %v3937 = vunpack.c.l.b16 %v3525
        %v3938 = vunpack.c.h.b16 %v3525
        %v3939 = vunpack.c.l.b16 %v3526
        %v3940 = vunpack.c.h.b16 %v3526
        %v3941 = vunpack.c.l.b16 %v3527
        %v3942 = vunpack.c.h.b16 %v3527
        %v3943 = vunpack.c.l.b16 %v3528
        %v3944 = vunpack.c.h.b16 %v3528
        %v3945 = vunpack.c.l.b16 %v3529
        %v3946 = vunpack.c.h.b16 %v3529
        %v3947 = vunpack.c.l.b16 %v3530
        %v3948 = vunpack.c.h.b16 %v3530
        %v3949 = vunpack.c.l.b16 %v3531
        %v3950 = vunpack.c.h.b16 %v3531
        %v3951 = vunpack.c.l.b16 %v3532
        %v3952 = vunpack.c.h.b16 %v3532
        %v3953 = vunpack.c.l.b16 %v3533
        %v3954 = vunpack.c.h.b16 %v3533
        %v3955 = vunpack.c.l.b16 %v3534
        %v3956 = vunpack.c.h.b16 %v3534
        %v3957 = vunpack.c.l.b16 %v3535
        %v3958 = vunpack.c.h.b16 %v3535
        %v3959 = vunpack.c.l.b16 %v3536
        %v3960 = vunpack.c.h.b16 %v3536
        %v3961 = vunpack.c.l.b16 %v3537
        %v3962 = vunpack.c.h.b16 %v3537
        %v3963 = vunpack.c.l.b16 %v3538
        %v3964 = vunpack.c.h.b16 %v3538
        %v3965 = vpack.c.b16 %v3717, %v3709
        %v3966 = vpack.c.b16 %v3718, %v3710
        %v3967 = vpack.c.b16 %v3719, %v3711
        %v3968 = vpack.c.b16 %v3720, %v3712
        %v3969 = vpack.c.b16 %v3721, %v3713
        %v3970 = vpack.c.b16 %v3722, %v3714
        %v3971 = vpack.c.b16 %v3723, %v3715
        %v3972 = vpack.c.b16 %v3724, %v3716
        %v3973 = vpack.c.b16 %v3733, %v3725
        %v3974 = vpack.c.b16 %v3734, %v3726
        %v3975 = vpack.c.b16 %v3735, %v3727
        %v3976 = vpack.c.b16 %v3736, %v3728
        %v3977 = vpack.c.b16 %v3737, %v3729
        %v3978 = vpack.c.b16 %v3738, %v3730
        %v3979 = vpack.c.b16 %v3739, %v3731
        %v3980 = vpack.c.b16 %v3740, %v3732
        %v3981 = vpack.c.b16 %v3749, %v3741
        %v3982 = vpack.c.b16 %v3750, %v3742
        %v3983 = vpack.c.b16 %v3751, %v3743
        %v3984 = vpack.c.b16 %v3752, %v3744
        %v3985 = vpack.c.b16 %v3753, %v3745
        %v3986 = vpack.c.b16 %v3754, %v3746
        %v3987 = vpack.c.b16 %v3755, %v3747
        %v3988 = vpack.c.b16 %v3756, %v3748
        %v3989 = vpack.c.b16 %v3765, %v3757
        %v3990 = vpack.c.b16 %v3766, %v3758
        %v3991 = vpack.c.b16 %v3767, %v3759
        %v3992 = vpack.c.b16 %v3768, %v3760
        %v3993 = vpack.c.b16 %v3769, %v3761
        %v3994 = vpack.c.b16 %v3770, %v3762
        %v3995 = vpack.c.b16 %v3771, %v3763
        %v3996 = vpack.c.b16 %v3772, %v3764
        %v3997 = vpack.c.b16 %v3781, %v3773
        %v3998 = vpack.c.b16 %v3782, %v3774
        %v3999 = vpack.c.b16 %v3783, %v3775
        %v4000 = vpack.c.b16 %v3784, %v3776
        %v4001 = vpack.c.b16 %v3785, %v3777
        %v4002 = vpack.c.b16 %v3786, %v3778
        %v4003 = vpack.c.b16 %v3787, %v3779
        %v4004 = vpack.c.b16 %v3788, %v3780
        %v4005 = vpack.c.b16 %v3797, %v3789
        %v4006 = vpack.c.b16 %v3798, %v3790
        %v4007 = vpack.c.b16 %v3799, %v3791
        %v4008 = vpack.c.b16 %v3800, %v3792
        %v4009 = vpack.c.b16 %v3801, %v3793
        %v4010 = vpack.c.b16 %v3802, %v3794
        %v4011 = vpack.c.b16 %v3803, %v3795
        %v4012 = vpack.c.b16 %v3804, %v3796
        %v4013 = vpack.c.b16 %v3813, %v3805
        %v4014 = vpack.c.b16 %v3814, %v3806
        %v4015 = vpack.c.b16 %v3815, %v3807
        %v4016 = vpack.c.b16 %v3816, %v3808
        %v4017 = vpack.c.b16 %v3817, %v3809
        %v4018 = vpack.c.b16 %v3818, %v3810
        %v4019 = vpack.c.b16 %v3819, %v3811
        %v4020 = vpack.c.b16 %v3820, %v3812
        %v4021 = vpack.c.b16 %v3829, %v3821
        %v4022 = vpack.c.b16 %v3830, %v3822
        %v4023 = vpack.c.b16 %v3831, %v3823
        %v4024 = vpack.c.b16 %v3832, %v3824
        %v4025 = vpack.c.b16 %v3833, %v3825
        %v4026 = vpack.c.b16 %v3834, %v3826
        %v4027 = vpack.c.b16 %v3835, %v3827
        %v4028 = vpack.c.b16 %v3836, %v3828
        %v4029 = vpack.c.b16 %v3845, %v3837
        %v4030 = vpack.c.b16 %v3846, %v3838
        %v4031 = vpack.c.b16 %v3847, %v3839
        %v4032 = vpack.c.b16 %v3848, %v3840
        %v4033 = vpack.c.b16 %v3849, %v3841
        %v4034 = vpack.c.b16 %v3850, %v3842
        %v4035 = vpack.c.b16 %v3851, %v3843
        %v4036 = vpack.c.b16 %v3852, %v3844
        %v4037 = vpack.c.b16 %v3861, %v3853
        %v4038 = vpack.c.b16 %v3862, %v3854
        %v4039 = vpack.c.b16 %v3863, %v3855
        %v4040 = vpack.c.b16 %v3864, %v3856
        %v4041 = vpack.c.b16 %v3865, %v3857
        %v4042 = vpack.c.b16 %v3866, %v3858
        %v4043 = vpack.c.b16 %v3867, %v3859
        %v4044 = vpack.c.b16 %v3868, %v3860
        %v4045 = vpack.c.b16 %v3877, %v3869
        %v4046 = vpack.c.b16 %v3878, %v3870
        %v4047 = vpack.c.b16 %v3879, %v3871
        %v4048 = vpack.c.b16 %v3880, %v3872
        %v4049 = vpack.c.b16 %v3881, %v3873
        %v4050 = vpack.c.b16 %v3882, %v3874
        %v4051 = vpack.c.b16 %v3883, %v3875
        %v4052 = vpack.c.b16 %v3884, %v3876
        %v4053 = vpack.c.b16 %v3893, %v3885
        %v4054 = vpack.c.b16 %v3894, %v3886
        %v4055 = vpack.c.b16 %v3895, %v3887
        %v4056 = vpack.c.b16 %v3896, %v3888
        %v4057 = vpack.c.b16 %v3897, %v3889
        %v4058 = vpack.c.b16 %v3898, %v3890
        %v4059 = vpack.c.b16 %v3899, %v3891
        %v4060 = vpack.c.b16 %v3900, %v3892
        %v4061 = vpack.c.b16 %v3909, %v3901
        %v4062 = vpack.c.b16 %v3910, %v3902
        %v4063 = vpack.c.b16 %v3911, %v3903
        %v4064 = vpack.c.b16 %v3912, %v3904
        %v4065 = vpack.c.b16 %v3913, %v3905
        %v4066 = vpack.c.b16 %v3914, %v3906
        %v4067 = vpack.c.b16 %v3915, %v3907
        %v4068 = vpack.c.b16 %v3916, %v3908
        %v4069 = vpack.c.b16 %v3925, %v3917
        %v4070 = vpack.c.b16 %v3926, %v3918
        %v4071 = vpack.c.b16 %v3927, %v3919
        %v4072 = vpack.c.b16 %v3928, %v3920
        %v4073 = vpack.c.b16 %v3929, %v3921
        %v4074 = vpack.c.b16 %v3930, %v3922
        %v4075 = vpack.c.b16 %v3931, %v3923
        %v4076 = vpack.c.b16 %v3932, %v3924
        %v4077 = vpack.c.b16 %v3941, %v3933
        %v4078 = vpack.c.b16 %v3942, %v3934
        %v4079 = vpack.c.b16 %v3943, %v3935
        %v4080 = vpack.c.b16 %v3944, %v3936
        %v4081 = vpack.c.b16 %v3945, %v3937
        %v4082 = vpack.c.b16 %v3946, %v3938
        %v4083 = vpack.c.b16 %v3947, %v3939
        %v4084 = vpack.c.b16 %v3948, %v3940
        %v4085 = vpack.c.b16 %v3957, %v3949
        %v4086 = vpack.c.b16 %v3958, %v3950
        %v4087 = vpack.c.b16 %v3959, %v3951
        %v4088 = vpack.c.b16 %v3960, %v3952
        %v4089 = vpack.c.b16 %v3961, %v3953
        %v4090 = vpack.c.b16 %v3962, %v3954
        %v4091 = vpack.c.b16 %v3963, %v3955
        %v4092 = vpack.c.b16 %v3964, %v3956
        %4221 = vmatprep.subr.bf16.mxu0 %v3966
        %4222 = vmatpush1.bf16.msra.mxu0 %v3965
        %4223 = vmatprep.subr.bf16.mxu0 %v3974
        %4224 = vmatpush1.bf16.msra.mxu0 %v3973
        %4225 = vmatprep.subr.bf16.mxu0 %v3982
        %4226 = vmatpush1.bf16.msra.mxu0 %v3981
        %4227 = vmatprep.subr.bf16.mxu0 %v3990
        %4228 = vmatpush1.bf16.msra.mxu0 %v3989
        %4229 = vmatprep.subr.bf16.mxu0 %v3998
        %4230 = vmatpush1.bf16.msra.mxu0 %v3997
        %4231 = vmatprep.subr.bf16.mxu0 %v4006
        %4232 = vmatpush1.bf16.msra.mxu0 %v4005
        %4233 = vmatprep.subr.bf16.mxu0 %v4014
        %4234 = vmatpush1.bf16.msra.mxu0 %v4013
        %4235 = vmatprep.subr.bf16.mxu0 %v4022
        %4236 = vmatpush1.bf16.msra.mxu0 %v4021
        %4237 = vmatprep.subr.bf16.mxu0 %v4030
        %4238 = vmatpush1.bf16.msra.mxu0 %v4029
        %4239 = vmatprep.subr.bf16.mxu0 %v4038
        %4240 = vmatpush1.bf16.msra.mxu0 %v4037
        %4241 = vmatprep.subr.bf16.mxu0 %v4046
        %4242 = vmatpush1.bf16.msra.mxu0 %v4045
        %4243 = vmatprep.subr.bf16.mxu0 %v4054
        %4244 = vmatpush1.bf16.msra.mxu0 %v4053
        %4245 = vmatprep.subr.bf16.mxu0 %v4062
        %4246 = vmatpush1.bf16.msra.mxu0 %v4061
        %4247 = vmatprep.subr.bf16.mxu0 %v4070
        %4248 = vmatpush1.bf16.msra.mxu0 %v4069
        %4249 = vmatprep.subr.bf16.mxu0 %v4078
        %4250 = vmatpush1.bf16.msra.mxu0 %v4077
        %4251 = vmatprep.subr.bf16.mxu0 %v4086
        %4252 = vmatpush1.bf16.msra.mxu0 %v4085
        %4253 = vmatprep.mubr.bf16.mxu0 %v3408
        %4254 = vmatmul.mubr.bf16.gmra.mrb[0].mxu0 %v3407
        %v4255 = vpop.f32.mrb[0].mxu0
        %v4256 = vadd.f32 %v3544, %v4255
        %v4257 = vpop.f32.mrb[0].mxu0
        %v4258 = vadd.f32 %v3548, %v4257
        %v4259 = vpop.f32.mrb[0].mxu0
        %v4260 = vadd.f32 %v3544, %v4259
        %v4261 = vpop.f32.mrb[0].mxu0
        %v4262 = vadd.f32 %v3548, %v4261
        %4263 = vmatprep.mubr.bf16.mxu0 %v3410
        %4264 = vmatmul.mubr.bf16.gmra.mrb[0].mxu0 %v3409
        %v4265 = vpop.f32.mrb[0].mxu0
        %v4266 = vadd.f32 %v3544, %v4265
        %v4267 = vpop.f32.mrb[0].mxu0
        %v4268 = vadd.f32 %v3548, %v4267
        %v4269 = vpop.f32.mrb[0].mxu0
        %v4270 = vadd.f32 %v3544, %v4269
        %v4271 = vpop.f32.mrb[0].mxu0
        %v4272 = vadd.f32 %v3548, %v4271
        %4273 = vdwg.mxu0
        %4274 = vmatprep.subr.bf16.mxu0 %v3968
        %4275 = vmatpush1.bf16.msra.mxu0 %v3967
        %4276 = vmatprep.subr.bf16.mxu0 %v3976
        %4277 = vmatpush1.bf16.msra.mxu0 %v3975
        %4278 = vmatprep.subr.bf16.mxu0 %v3984
        %4279 = vmatpush1.bf16.msra.mxu0 %v3983
        %4280 = vmatprep.subr.bf16.mxu0 %v3992
        %4281 = vmatpush1.bf16.msra.mxu0 %v3991
        %4282 = vmatprep.subr.bf16.mxu0 %v4000
        %4283 = vmatpush1.bf16.msra.mxu0 %v3999
        %4284 = vmatprep.subr.bf16.mxu0 %v4008
        %4285 = vmatpush1.bf16.msra.mxu0 %v4007
        %4286 = vmatprep.subr.bf16.mxu0 %v4016
        %4287 = vmatpush1.bf16.msra.mxu0 %v4015
        %4288 = vmatprep.subr.bf16.mxu0 %v4024
        %4289 = vmatpush1.bf16.msra.mxu0 %v4023
        %4290 = vmatprep.subr.bf16.mxu0 %v4032
        %4291 = vmatpush1.bf16.msra.mxu0 %v4031
        %4292 = vmatprep.subr.bf16.mxu0 %v4040
        %4293 = vmatpush1.bf16.msra.mxu0 %v4039
        %4294 = vmatprep.subr.bf16.mxu0 %v4048
        %4295 = vmatpush1.bf16.msra.mxu0 %v4047
        %4296 = vmatprep.subr.bf16.mxu0 %v4056
        %4297 = vmatpush1.bf16.msra.mxu0 %v4055
        %4298 = vmatprep.subr.bf16.mxu0 %v4064
        %4299 = vmatpush1.bf16.msra.mxu0 %v4063
        %4300 = vmatprep.subr.bf16.mxu0 %v4072
        %4301 = vmatpush1.bf16.msra.mxu0 %v4071
        %4302 = vmatprep.subr.bf16.mxu0 %v4080
        %4303 = vmatpush1.bf16.msra.mxu0 %v4079
        %4304 = vmatprep.subr.bf16.mxu0 %v4088
        %4305 = vmatpush1.bf16.msra.mxu0 %v4087
        %4306 = vmatprep.mubr.bf16.mxu0 %v3408
        %4307 = vmatmul.mubr.bf16.gmra.mrb[0].mxu0 %v3407
        %v4308 = vpop.f32.mrb[0].mxu0
        %v4309 = vadd.f32 %v3552, %v4308
        %v4310 = vpop.f32.mrb[0].mxu0
        %v4311 = vadd.f32 %v3556, %v4310
        %v4312 = vpop.f32.mrb[0].mxu0
        %v4313 = vadd.f32 %v3552, %v4312
        %v4314 = vpop.f32.mrb[0].mxu0
        %v4315 = vadd.f32 %v3556, %v4314
        %4316 = vmatprep.mubr.bf16.mxu0 %v3410
        %4317 = vmatmul.mubr.bf16.gmra.mrb[0].mxu0 %v3409
        %v4318 = vpop.f32.mrb[0].mxu0
        %v4319 = vadd.f32 %v3552, %v4318
        %v4320 = vpop.f32.mrb[0].mxu0
        %v4321 = vadd.f32 %v3556, %v4320
        %v4322 = vpop.f32.mrb[0].mxu0
        %v4323 = vadd.f32 %v3552, %v4322
        %v4324 = vpop.f32.mrb[0].mxu0
        %v4325 = vadd.f32 %v3556, %v4324
        %4326 = vdwg.mxu0
        %4327 = vmatprep.subr.bf16.mxu0 %v3970
        %4328 = vmatpush1.bf16.msra.mxu0 %v3969
        %4329 = vmatprep.subr.bf16.mxu0 %v3978
        %4330 = vmatpush1.bf16.msra.mxu0 %v3977
        %4331 = vmatprep.subr.bf16.mxu0 %v3986
        %4332 = vmatpush1.bf16.msra.mxu0 %v3985
        %4333 = vmatprep.subr.bf16.mxu0 %v3994
        %4334 = vmatpush1.bf16.msra.mxu0 %v3993
        %4335 = vmatprep.subr.bf16.mxu0 %v4002
        %4336 = vmatpush1.bf16.msra.mxu0 %v4001
        %4337 = vmatprep.subr.bf16.mxu0 %v4010
        %4338 = vmatpush1.bf16.msra.mxu0 %v4009
        %4339 = vmatprep.subr.bf16.mxu0 %v4018
        %4340 = vmatpush1.bf16.msra.mxu0 %v4017
        %4341 = vmatprep.subr.bf16.mxu0 %v4026
        %4342 = vmatpush1.bf16.msra.mxu0 %v4025
        %4343 = vmatprep.subr.bf16.mxu0 %v4034
        %4344 = vmatpush1.bf16.msra.mxu0 %v4033
        %4345 = vmatprep.subr.bf16.mxu0 %v4042
        %4346 = vmatpush1.bf16.msra.mxu0 %v4041
        %4347 = vmatprep.subr.bf16.mxu0 %v4050
        %4348 = vmatpush1.bf16.msra.mxu0 %v4049
        %4349 = vmatprep.subr.bf16.mxu0 %v4058
        %4350 = vmatpush1.bf16.msra.mxu0 %v4057
        %4351 = vmatprep.subr.bf16.mxu0 %v4066
        %4352 = vmatpush1.bf16.msra.mxu0 %v4065
        %4353 = vmatprep.subr.bf16.mxu0 %v4074
        %4354 = vmatpush1.bf16.msra.mxu0 %v4073
        %4355 = vmatprep.subr.bf16.mxu0 %v4082
        %4356 = vmatpush1.bf16.msra.mxu0 %v4081
        %4357 = vmatprep.subr.bf16.mxu0 %v4090
        %4358 = vmatpush1.bf16.msra.mxu0 %v4089
        %4359 = vmatprep.mubr.bf16.mxu0 %v3408
        %4360 = vmatmul.mubr.bf16.gmra.mrb[0].mxu0 %v3407
        %v4361 = vpop.f32.mrb[0].mxu0
        %v4362 = vadd.f32 %v3560, %v4361
        %v4363 = vpop.f32.mrb[0].mxu0
        %v4364 = vadd.f32 %v3564, %v4363
        %v4365 = vpop.f32.mrb[0].mxu0
        %v4366 = vadd.f32 %v3560, %v4365
        %v4367 = vpop.f32.mrb[0].mxu0
        %v4368 = vadd.f32 %v3564, %v4367
        %4369 = vmatprep.mubr.bf16.mxu0 %v3410
        %4370 = vmatmul.mubr.bf16.gmra.mrb[0].mxu0 %v3409
        %v4371 = vpop.f32.mrb[0].mxu0
        %v4372 = vadd.f32 %v3560, %v4371
        %v4373 = vpop.f32.mrb[0].mxu0
        %v4374 = vadd.f32 %v3564, %v4373
        %v4375 = vpop.f32.mrb[0].mxu0
        %v4376 = vadd.f32 %v3560, %v4375
        %v4377 = vpop.f32.mrb[0].mxu0
        %v4378 = vadd.f32 %v3564, %v4377
        %4379 = vdwg.mxu0
        %4380 = vmatprep.subr.bf16.mxu0 %v3972
        %4381 = vmatpush1.bf16.msra.mxu0 %v3971
        %4382 = vmatprep.subr.bf16.mxu0 %v3980
        %4383 = vmatpush1.bf16.msra.mxu0 %v3979
        %4384 = vmatprep.subr.bf16.mxu0 %v3988
        %4385 = vmatpush1.bf16.msra.mxu0 %v3987
        %4386 = vmatprep.subr.bf16.mxu0 %v3996
        %4387 = vmatpush1.bf16.msra.mxu0 %v3995
        %4388 = vmatprep.subr.bf16.mxu0 %v4004
        %4389 = vmatpush1.bf16.msra.mxu0 %v4003
        %4390 = vmatprep.subr.bf16.mxu0 %v4012
        %4391 = vmatpush1.bf16.msra.mxu0 %v4011
        %4392 = vmatprep.subr.bf16.mxu0 %v4020
        %4393 = vmatpush1.bf16.msra.mxu0 %v4019
        %4394 = vmatprep.subr.bf16.mxu0 %v4028
        %4395 = vmatpush1.bf16.msra.mxu0 %v4027
        %4396 = vmatprep.subr.bf16.mxu0 %v4036
        %4397 = vmatpush1.bf16.msra.mxu0 %v4035
        %4398 = vmatprep.subr.bf16.mxu0 %v4044
        %4399 = vmatpush1.bf16.msra.mxu0 %v4043
        %4400 = vmatprep.subr.bf16.mxu0 %v4052
        %4401 = vmatpush1.bf16.msra.mxu0 %v4051
        %4402 = vmatprep.subr.bf16.mxu0 %v4060
        %4403 = vmatpush1.bf16.msra.mxu0 %v4059
        %4404 = vmatprep.subr.bf16.mxu0 %v4068
        %4405 = vmatpush1.bf16.msra.mxu0 %v4067
        %4406 = vmatprep.subr.bf16.mxu0 %v4076
        %4407 = vmatpush1.bf16.msra.mxu0 %v4075
        %4408 = vmatprep.subr.bf16.mxu0 %v4084
        %4409 = vmatpush1.bf16.msra.mxu0 %v4083
        %4410 = vmatprep.subr.bf16.mxu0 %v4092
        %4411 = vmatpush1.bf16.msra.mxu0 %v4091
        %4412 = vmatprep.mubr.bf16.mxu0 %v3408
        %4413 = vmatmul.mubr.bf16.gmra.mrb[0].mxu0 %v3407
        %v4414 = vpop.f32.mrb[0].mxu0
        %v4415 = vadd.f32 %v3568, %v4414
        %v4416 = vpop.f32.mrb[0].mxu0
        %v4417 = vadd.f32 %v3572, %v4416
        %v4418 = vpop.f32.mrb[0].mxu0
        %v4419 = vadd.f32 %v3568, %v4418
        %v4420 = vpop.f32.mrb[0].mxu0
        %v4421 = vadd.f32 %v3572, %v4420
        %4422 = vmatprep.mubr.bf16.mxu0 %v3410
        %4423 = vmatmul.mubr.bf16.gmra.mrb[0].mxu0 %v3409
        %v4424 = vpop.f32.mrb[0].mxu0
        %v4425 = vadd.f32 %v3568, %v4424
        %v4426 = vpop.f32.mrb[0].mxu0
        %v4427 = vadd.f32 %v3572, %v4426
        %v4428 = vpop.f32.mrb[0].mxu0
        %v4429 = vadd.f32 %v3568, %v4428
        %v4430 = vpop.f32.mrb[0].mxu0
        %v4431 = vadd.f32 %v3572, %v4430
        %4432 = vdwg.mxu0
        %v4433 = vmul.f32 %v4256, %v4256
        %v4434 = vmul.f32 %v4258, %v4258
        %v4435 = vmul.f32 %v4309, %v4309
        %v4436 = vmul.f32 %v4311, %v4311
        %v4437 = vmul.f32 %v4362, %v4362
        %v4438 = vmul.f32 %v4364, %v4364
        %v4439 = vmul.f32 %v4415, %v4415
        %v4440 = vmul.f32 %v4417, %v4417
        %v4441 = vmul.f32 %v4260, %v4260
        %v4442 = vmul.f32 %v4262, %v4262
        %v4443 = vmul.f32 %v4313, %v4313
        %v4444 = vmul.f32 %v4315, %v4315
        %v4445 = vmul.f32 %v4366, %v4366
        %v4446 = vmul.f32 %v4368, %v4368
        %v4447 = vmul.f32 %v4419, %v4419
        %v4448 = vmul.f32 %v4421, %v4421
        %v4449 = vmul.f32 %v4266, %v4266
        %v4450 = vmul.f32 %v4268, %v4268
        %v4451 = vmul.f32 %v4319, %v4319
        %v4452 = vmul.f32 %v4321, %v4321
        %v4453 = vmul.f32 %v4372, %v4372
        %v4454 = vmul.f32 %v4374, %v4374
        %v4455 = vmul.f32 %v4425, %v4425
        %v4456 = vmul.f32 %v4427, %v4427
        %v4457 = vmul.f32 %v4270, %v4270
        %v4458 = vmul.f32 %v4272, %v4272
        %v4459 = vmul.f32 %v4323, %v4323
        %v4460 = vmul.f32 %v4325, %v4325
        %v4461 = vmul.f32 %v4376, %v4376
        %v4462 = vmul.f32 %v4378, %v4378
        %v4463 = vmul.f32 %v4429, %v4429
        %v4464 = vmul.f32 %v4431, %v4431
        %v4465 = vmul.f32 %v4256, %v4433
        %v4466 = vmul.f32 %v4258, %v4434
        %v4467 = vmul.f32 %v4309, %v4435
        %v4468 = vmul.f32 %v4311, %v4436
        %v4469 = vmul.f32 %v4362, %v4437
        %v4470 = vmul.f32 %v4364, %v4438
        %v4471 = vmul.f32 %v4415, %v4439
        %v4472 = vmul.f32 %v4417, %v4440
        %v4473 = vmul.f32 %v4260, %v4441
        %v4474 = vmul.f32 %v4262, %v4442
        %v4475 = vmul.f32 %v4313, %v4443
        %v4476 = vmul.f32 %v4315, %v4444
        %v4477 = vmul.f32 %v4366, %v4445
        %v4478 = vmul.f32 %v4368, %v4446
        %v4479 = vmul.f32 %v4419, %v4447
        %v4480 = vmul.f32 %v4421, %v4448
        %v4481 = vmul.f32 %v4266, %v4449
        %v4482 = vmul.f32 %v4268, %v4450
        %v4483 = vmul.f32 %v4319, %v4451
        %v4484 = vmul.f32 %v4321, %v4452
        %v4485 = vmul.f32 %v4372, %v4453
        %v4486 = vmul.f32 %v4374, %v4454
        %v4487 = vmul.f32 %v4425, %v4455
        %v4488 = vmul.f32 %v4427, %v4456
        %v4489 = vmul.f32 %v4270, %v4457
        %v4490 = vmul.f32 %v4272, %v4458
        %v4491 = vmul.f32 %v4323, %v4459
        %v4492 = vmul.f32 %v4325, %v4460
        %v4493 = vmul.f32 %v4376, %v4461
        %v4494 = vmul.f32 %v4378, %v4462
        %v4495 = vmul.f32 %v4429, %v4463
        %v4496 = vmul.f32 %v4431, %v4464
        %v4497 = vmul.f32 %v4465, 0.044715
        %v4498 = vmul.f32 %v4466, 0.044715
        %v4499 = vmul.f32 %v4467, 0.044715
        %v4500 = vmul.f32 %v4468, 0.044715
        %v4501 = vmul.f32 %v4469, 0.044715
        %v4502 = vmul.f32 %v4470, 0.044715
        %v4503 = vmul.f32 %v4471, 0.044715
        %v4504 = vmul.f32 %v4472, 0.044715
        %v4505 = vmul.f32 %v4473, 0.044715
        %v4506 = vmul.f32 %v4474, 0.044715
        %v4507 = vmul.f32 %v4475, 0.044715
        %v4508 = vmul.f32 %v4476, 0.044715
        %v4509 = vmul.f32 %v4477, 0.044715
        %v4510 = vmul.f32 %v4478, 0.044715
        %v4511 = vmul.f32 %v4479, 0.044715
        %v4512 = vmul.f32 %v4480, 0.044715
        %v4513 = vmul.f32 %v4481, 0.044715
        %v4514 = vmul.f32 %v4482, 0.044715
        %v4515 = vmul.f32 %v4483, 0.044715
        %v4516 = vmul.f32 %v4484, 0.044715
        %v4517 = vmul.f32 %v4485, 0.044715
        %v4518 = vmul.f32 %v4486, 0.044715
        %v4519 = vmul.f32 %v4487, 0.044715
        %v4520 = vmul.f32 %v4488, 0.044715
        %v4521 = vmul.f32 %v4489, 0.044715
        %v4522 = vmul.f32 %v4490, 0.044715
        %v4523 = vmul.f32 %v4491, 0.044715
        %v4524 = vmul.f32 %v4492, 0.044715
        %v4525 = vmul.f32 %v4493, 0.044715
        %v4526 = vmul.f32 %v4494, 0.044715
        %v4527 = vmul.f32 %v4495, 0.044715
        %v4528 = vmul.f32 %v4496, 0.044715
        %v4529 = vadd.f32 %v4256, %v4497
        %v4530 = vadd.f32 %v4258, %v4498
        %v4531 = vadd.f32 %v4309, %v4499
        %v4532 = vadd.f32 %v4311, %v4500
        %v4533 = vadd.f32 %v4362, %v4501
        %v4534 = vadd.f32 %v4364, %v4502
        %v4535 = vadd.f32 %v4415, %v4503
        %v4536 = vadd.f32 %v4417, %v4504
        %v4537 = vadd.f32 %v4260, %v4505
        %v4538 = vadd.f32 %v4262, %v4506
        %v4539 = vadd.f32 %v4313, %v4507
        %v4540 = vadd.f32 %v4315, %v4508
        %v4541 = vadd.f32 %v4366, %v4509
        %v4542 = vadd.f32 %v4368, %v4510
        %v4543 = vadd.f32 %v4419, %v4511
        %v4544 = vadd.f32 %v4421, %v4512
        %v4545 = vadd.f32 %v4266, %v4513
        %v4546 = vadd.f32 %v4268, %v4514
        %v4547 = vadd.f32 %v4319, %v4515
        %v4548 = vadd.f32 %v4321, %v4516
        %v4549 = vadd.f32 %v4372, %v4517
        %v4550 = vadd.f32 %v4374, %v4518
        %v4551 = vadd.f32 %v4425, %v4519
        %v4552 = vadd.f32 %v4427, %v4520
        %v4553 = vadd.f32 %v4270, %v4521
        %v4554 = vadd.f32 %v4272, %v4522
        %v4555 = vadd.f32 %v4323, %v4523
        %v4556 = vadd.f32 %v4325, %v4524
        %v4557 = vadd.f32 %v4376, %v4525
        %v4558 = vadd.f32 %v4378, %v4526
        %v4559 = vadd.f32 %v4429, %v4527
        %v4560 = vadd.f32 %v4431, %v4528
        %v4561 = vmul.f32 %v4529, 0.7978846
        %v4562 = vmul.f32 %v4530, 0.7978846
        %v4563 = vmul.f32 %v4531, 0.7978846
        %v4564 = vmul.f32 %v4532, 0.7978846
        %v4565 = vmul.f32 %v4533, 0.7978846
        %v4566 = vmul.f32 %v4534, 0.7978846
        %v4567 = vmul.f32 %v4535, 0.7978846
        %v4568 = vmul.f32 %v4536, 0.7978846
        %v4569 = vmul.f32 %v4537, 0.7978846
        %v4570 = vmul.f32 %v4538, 0.7978846
        %v4571 = vmul.f32 %v4539, 0.7978846
        %v4572 = vmul.f32 %v4540, 0.7978846
        %v4573 = vmul.f32 %v4541, 0.7978846
        %v4574 = vmul.f32 %v4542, 0.7978846
        %v4575 = vmul.f32 %v4543, 0.7978846
        %v4576 = vmul.f32 %v4544, 0.7978846
        %v4577 = vmul.f32 %v4545, 0.7978846
        %v4578 = vmul.f32 %v4546, 0.7978846
        %v4579 = vmul.f32 %v4547, 0.7978846
        %v4580 = vmul.f32 %v4548, 0.7978846
        %v4581 = vmul.f32 %v4549, 0.7978846
        %v4582 = vmul.f32 %v4550, 0.7978846
        %v4583 = vmul.f32 %v4551, 0.7978846
        %v4584 = vmul.f32 %v4552, 0.7978846
        %v4585 = vmul.f32 %v4553, 0.7978846
        %v4586 = vmul.f32 %v4554, 0.7978846
        %v4587 = vmul.f32 %v4555, 0.7978846
        %v4588 = vmul.f32 %v4556, 0.7978846
        %v4589 = vmul.f32 %v4557, 0.7978846
        %v4590 = vmul.f32 %v4558, 0.7978846
        %v4591 = vmul.f32 %v4559, 0.7978846
        %v4592 = vmul.f32 %v4560, 0.7978846
        %v4593 = vtanh.pop %v4561
        %v4594 = vtanh.pop %v4562
        %v4595 = vtanh.pop %v4563
        %v4596 = vtanh.pop %v4564
        %v4597 = vtanh.pop %v4565
        %v4598 = vtanh.pop %v4566
        %v4599 = vtanh.pop %v4567
        %v4600 = vtanh.pop %v4568
        %v4601 = vtanh.pop %v4569
        %v4602 = vtanh.pop %v4570
        %v4603 = vtanh.pop %v4571
        %v4604 = vtanh.pop %v4572
        %v4605 = vtanh.pop %v4573
        %v4606 = vtanh.pop %v4574
        %v4607 = vtanh.pop %v4575
        %v4608 = vtanh.pop %v4576
        %v4609 = vtanh.pop %v4577
        %v4610 = vtanh.pop %v4578
        %v4611 = vtanh.pop %v4579
        %v4612 = vtanh.pop %v4580
        %v4613 = vtanh.pop %v4581
        %v4614 = vtanh.pop %v4582
        %v4615 = vtanh.pop %v4583
        %v4616 = vtanh.pop %v4584
        %v4617 = vtanh.pop %v4585
        %v4618 = vtanh.pop %v4586
        %v4619 = vtanh.pop %v4587
        %v4620 = vtanh.pop %v4588
        %v4621 = vtanh.pop %v4589
        %v4622 = vtanh.pop %v4590
        %v4623 = vtanh.pop %v4591
        %v4624 = vtanh.pop %v4592
        %v4625 = vadd.f32 %v4593, 1.0
        %v4626 = vadd.f32 %v4594, 1.0
        %v4627 = vadd.f32 %v4595, 1.0
        %v4628 = vadd.f32 %v4596, 1.0
        %v4629 = vadd.f32 %v4597, 1.0
        %v4630 = vadd.f32 %v4598, 1.0
        %v4631 = vadd.f32 %v4599, 1.0
        %v4632 = vadd.f32 %v4600, 1.0
        %v4633 = vadd.f32 %v4601, 1.0
        %v4634 = vadd.f32 %v4602, 1.0
        %v4635 = vadd.f32 %v4603, 1.0
        %v4636 = vadd.f32 %v4604, 1.0
        %v4637 = vadd.f32 %v4605, 1.0
        %v4638 = vadd.f32 %v4606, 1.0
        %v4639 = vadd.f32 %v4607, 1.0
        %v4640 = vadd.f32 %v4608, 1.0
        %v4641 = vadd.f32 %v4609, 1.0
        %v4642 = vadd.f32 %v4610, 1.0
        %v4643 = vadd.f32 %v4611, 1.0
        %v4644 = vadd.f32 %v4612, 1.0
        %v4645 = vadd.f32 %v4613, 1.0
        %v4646 = vadd.f32 %v4614, 1.0
        %v4647 = vadd.f32 %v4615, 1.0
        %v4648 = vadd.f32 %v4616, 1.0
        %v4649 = vadd.f32 %v4617, 1.0
        %v4650 = vadd.f32 %v4618, 1.0
        %v4651 = vadd.f32 %v4619, 1.0
        %v4652 = vadd.f32 %v4620, 1.0
        %v4653 = vadd.f32 %v4621, 1.0
        %v4654 = vadd.f32 %v4622, 1.0
        %v4655 = vadd.f32 %v4623, 1.0
        %v4656 = vadd.f32 %v4624, 1.0
        %v4657 = vmul.f32 %v4625, 0.5
        %v4658 = vmul.f32 %v4626, 0.5
        %v4659 = vmul.f32 %v4627, 0.5
        %v4660 = vmul.f32 %v4628, 0.5
        %v4661 = vmul.f32 %v4629, 0.5
        %v4662 = vmul.f32 %v4630, 0.5
        %v4663 = vmul.f32 %v4631, 0.5
        %v4664 = vmul.f32 %v4632, 0.5
        %v4665 = vmul.f32 %v4633, 0.5
        %v4666 = vmul.f32 %v4634, 0.5
        %v4667 = vmul.f32 %v4635, 0.5
        %v4668 = vmul.f32 %v4636, 0.5
        %v4669 = vmul.f32 %v4637, 0.5
        %v4670 = vmul.f32 %v4638, 0.5
        %v4671 = vmul.f32 %v4639, 0.5
        %v4672 = vmul.f32 %v4640, 0.5
        %v4673 = vmul.f32 %v4641, 0.5
        %v4674 = vmul.f32 %v4642, 0.5
        %v4675 = vmul.f32 %v4643, 0.5
        %v4676 = vmul.f32 %v4644, 0.5
        %v4677 = vmul.f32 %v4645, 0.5
        %v4678 = vmul.f32 %v4646, 0.5
        %v4679 = vmul.f32 %v4647, 0.5
        %v4680 = vmul.f32 %v4648, 0.5
        %v4681 = vmul.f32 %v4649, 0.5
        %v4682 = vmul.f32 %v4650, 0.5
        %v4683 = vmul.f32 %v4651, 0.5
        %v4684 = vmul.f32 %v4652, 0.5
        %v4685 = vmul.f32 %v4653, 0.5
        %v4686 = vmul.f32 %v4654, 0.5
        %v4687 = vmul.f32 %v4655, 0.5
        %v4688 = vmul.f32 %v4656, 0.5
        %v4689 = vmul.f32 %v4256, %v4657
        %v4690 = vmul.f32 %v4258, %v4658
        %v4691 = vmul.f32 %v4309, %v4659
        %v4692 = vmul.f32 %v4311, %v4660
        %v4693 = vmul.f32 %v4362, %v4661
        %v4694 = vmul.f32 %v4364, %v4662
        %v4695 = vmul.f32 %v4415, %v4663
        %v4696 = vmul.f32 %v4417, %v4664
        %v4697 = vmul.f32 %v4260, %v4665
        %v4698 = vmul.f32 %v4262, %v4666
        %v4699 = vmul.f32 %v4313, %v4667
        %v4700 = vmul.f32 %v4315, %v4668
        %v4701 = vmul.f32 %v4366, %v4669
        %v4702 = vmul.f32 %v4368, %v4670
        %v4703 = vmul.f32 %v4419, %v4671
        %v4704 = vmul.f32 %v4421, %v4672
        %v4705 = vmul.f32 %v4266, %v4673
        %v4706 = vmul.f32 %v4268, %v4674
        %v4707 = vmul.f32 %v4319, %v4675
        %v4708 = vmul.f32 %v4321, %v4676
        %v4709 = vmul.f32 %v4372, %v4677
        %v4710 = vmul.f32 %v4374, %v4678
        %v4711 = vmul.f32 %v4425, %v4679
        %v4712 = vmul.f32 %v4427, %v4680
        %v4713 = vmul.f32 %v4270, %v4681
        %v4714 = vmul.f32 %v4272, %v4682
        %v4715 = vmul.f32 %v4323, %v4683
        %v4716 = vmul.f32 %v4325, %v4684
        %v4717 = vmul.f32 %v4376, %v4685
        %v4718 = vmul.f32 %v4378, %v4686
        %v4719 = vmul.f32 %v4429, %v4687
        %v4720 = vmul.f32 %v4431, %v4688
        %v4721 = vpack.c.bf16 %v4697, %v4689
        %v4722 = vpack.c.bf16 %v4698, %v4690
        %v4723 = vpack.c.bf16 %v4699, %v4691
        %v4724 = vpack.c.bf16 %v4700, %v4692
        %v4725 = vpack.c.bf16 %v4701, %v4693
        %v4726 = vpack.c.bf16 %v4702, %v4694
        %v4727 = vpack.c.bf16 %v4703, %v4695
        %v4728 = vpack.c.bf16 %v4704, %v4696
        %v4729 = vpack.c.bf16 %v4713, %v4705
        %v4730 = vpack.c.bf16 %v4714, %v4706
        %v4731 = vpack.c.bf16 %v4715, %v4707
        %v4732 = vpack.c.bf16 %v4716, %v4708
        %v4733 = vpack.c.bf16 %v4717, %v4709
        %v4734 = vpack.c.bf16 %v4718, %v4710
        %v4735 = vpack.c.bf16 %v4719, %v4711
        %v4736 = vpack.c.bf16 %v4720, %v4712
        %v4737 = vld [vmem:[%s760] sm:$0xff]
        %v4738 = vld [vmem:[%s760 + $0x8] sm:$0xff]
        %v4739 = vld [vmem:[%s760 + $0x10] sm:$0xff]
        %v4740 = vld [vmem:[%s760 + $0x18] sm:$0xff]
        %v4741 = vld [vmem:[%s760 + $0x20] sm:$0xff]
        %v4742 = vld [vmem:[%s760 + $0x28] sm:$0xff]
        %v4743 = vld [vmem:[%s760 + $0x30] sm:$0xff]
        %v4744 = vld [vmem:[%s760 + $0x38] sm:$0xff]
        %v4745 = vld [vmem:[%s760 + $0x40] sm:$0xff]
        %v4746 = vld [vmem:[%s760 + $0x48] sm:$0xff]
        %v4747 = vld [vmem:[%s760 + $0x50] sm:$0xff]
        %v4748 = vld [vmem:[%s760 + $0x58] sm:$0xff]
        %v4749 = vld [vmem:[%s760 + $0x60] sm:$0xff]
        %v4750 = vld [vmem:[%s760 + $0x68] sm:$0xff]
        %v4751 = vld [vmem:[%s760 + $0x70] sm:$0xff]
        %v4752 = vld [vmem:[%s760 + $0x78] sm:$0xff]
        %v4753 = vld [vmem:[%s760 + $0x80] sm:$0xff]
        %v4754 = vld [vmem:[%s760 + $0x88] sm:$0xff]
        %v4755 = vld [vmem:[%s760 + $0x90] sm:$0xff]
        %v4756 = vld [vmem:[%s760 + $0x98] sm:$0xff]
        %v4757 = vld [vmem:[%s760 + $0xa0] sm:$0xff]
        %v4758 = vld [vmem:[%s760 + $0xa8] sm:$0xff]
        %v4759 = vld [vmem:[%s760 + $0xb0] sm:$0xff]
        %v4760 = vld [vmem:[%s760 + $0xb8] sm:$0xff]
        %v4761 = vld [vmem:[%s760 + $0xc0] sm:$0xff]
        %v4762 = vld [vmem:[%s760 + $0xc8] sm:$0xff]
        %v4763 = vld [vmem:[%s760 + $0xd0] sm:$0xff]
        %v4764 = vld [vmem:[%s760 + $0xd8] sm:$0xff]
        %v4765 = vld [vmem:[%s760 + $0xe0] sm:$0xff]
        %v4766 = vld [vmem:[%s760 + $0xe8] sm:$0xff]
        %v4767 = vld [vmem:[%s760 + $0xf0] sm:$0xff]
        %v4768 = vld [vmem:[%s760 + $0xf8] sm:$0xff]
        %v4769 = vld [vmem:[%s760 + $0x100] sm:$0xff]
        %v4770 = vld [vmem:[%s760 + $0x108] sm:$0xff]
        %v4771 = vld [vmem:[%s760 + $0x110] sm:$0xff]
        %v4772 = vld [vmem:[%s760 + $0x118] sm:$0xff]
        %v4773 = vld [vmem:[%s760 + $0x120] sm:$0xff]
        %v4774 = vld [vmem:[%s760 + $0x128] sm:$0xff]
        %v4775 = vld [vmem:[%s760 + $0x130] sm:$0xff]
        %v4776 = vld [vmem:[%s760 + $0x138] sm:$0xff]
        %v4777 = vld [vmem:[%s760 + $0x140] sm:$0xff]
        %v4778 = vld [vmem:[%s760 + $0x148] sm:$0xff]
        %v4779 = vld [vmem:[%s760 + $0x150] sm:$0xff]
        %v4780 = vld [vmem:[%s760 + $0x158] sm:$0xff]
        %v4781 = vld [vmem:[%s760 + $0x160] sm:$0xff]
        %v4782 = vld [vmem:[%s760 + $0x168] sm:$0xff]
        %v4783 = vld [vmem:[%s760 + $0x170] sm:$0xff]
        %v4784 = vld [vmem:[%s760 + $0x178] sm:$0xff]
        %v4785 = vld [vmem:[%s760 + $0x180] sm:$0xff]
        %v4786 = vld [vmem:[%s760 + $0x188] sm:$0xff]
        %v4787 = vld [vmem:[%s760 + $0x190] sm:$0xff]
        %v4788 = vld [vmem:[%s760 + $0x198] sm:$0xff]
        %v4789 = vld [vmem:[%s760 + $0x1a0] sm:$0xff]
        %v4790 = vld [vmem:[%s760 + $0x1a8] sm:$0xff]
        %v4791 = vld [vmem:[%s760 + $0x1b0] sm:$0xff]
        %v4792 = vld [vmem:[%s760 + $0x1b8] sm:$0xff]
        %v4793 = vld [vmem:[%s760 + $0x1c0] sm:$0xff]
        %v4794 = vld [vmem:[%s760 + $0x1c8] sm:$0xff]
        %v4795 = vld [vmem:[%s760 + $0x1d0] sm:$0xff]
        %v4796 = vld [vmem:[%s760 + $0x1d8] sm:$0xff]
        %v4797 = vld [vmem:[%s760 + $0x1e0] sm:$0xff]
        %v4798 = vld [vmem:[%s760 + $0x1e8] sm:$0xff]
        %v4799 = vld [vmem:[%s760 + $0x1f0] sm:$0xff]
        %v4800 = vld [vmem:[%s760 + $0x1f8] sm:$0xff]
        %v4801 = vld [vmem:[%s760 + $0x200] sm:$0xff]
        %v4802 = vld [vmem:[%s760 + $0x208] sm:$0xff]
        %v4803 = vld [vmem:[%s760 + $0x210] sm:$0xff]
        %v4804 = vld [vmem:[%s760 + $0x218] sm:$0xff]
        %v4805 = vld [vmem:[%s760 + $0x220] sm:$0xff]
        %v4806 = vld [vmem:[%s760 + $0x228] sm:$0xff]
        %v4807 = vld [vmem:[%s760 + $0x230] sm:$0xff]
        %v4808 = vld [vmem:[%s760 + $0x238] sm:$0xff]
        %v4809 = vld [vmem:[%s760 + $0x240] sm:$0xff]
        %v4810 = vld [vmem:[%s760 + $0x248] sm:$0xff]
        %v4811 = vld [vmem:[%s760 + $0x250] sm:$0xff]
        %v4812 = vld [vmem:[%s760 + $0x258] sm:$0xff]
        %v4813 = vld [vmem:[%s760 + $0x260] sm:$0xff]
        %v4814 = vld [vmem:[%s760 + $0x268] sm:$0xff]
        %v4815 = vld [vmem:[%s760 + $0x270] sm:$0xff]
        %v4816 = vld [vmem:[%s760 + $0x278] sm:$0xff]
        %v4817 = vld [vmem:[%s760 + $0x280] sm:$0xff]
        %v4818 = vld [vmem:[%s760 + $0x288] sm:$0xff]
        %v4819 = vld [vmem:[%s760 + $0x290] sm:$0xff]
        %v4820 = vld [vmem:[%s760 + $0x298] sm:$0xff]
        %v4821 = vld [vmem:[%s760 + $0x2a0] sm:$0xff]
        %v4822 = vld [vmem:[%s760 + $0x2a8] sm:$0xff]
        %v4823 = vld [vmem:[%s760 + $0x2b0] sm:$0xff]
        %v4824 = vld [vmem:[%s760 + $0x2b8] sm:$0xff]
        %v4825 = vld [vmem:[%s760 + $0x2c0] sm:$0xff]
        %v4826 = vld [vmem:[%s760 + $0x2c8] sm:$0xff]
        %v4827 = vld [vmem:[%s760 + $0x2d0] sm:$0xff]
        %v4828 = vld [vmem:[%s760 + $0x2d8] sm:$0xff]
        %v4829 = vld [vmem:[%s760 + $0x2e0] sm:$0xff]
        %v4830 = vld [vmem:[%s760 + $0x2e8] sm:$0xff]
        %v4831 = vld [vmem:[%s760 + $0x2f0] sm:$0xff]
        %v4832 = vld [vmem:[%s760 + $0x2f8] sm:$0xff]
        %v4833 = vld [vmem:[%s760 + $0x300] sm:$0xff]
        %v4834 = vld [vmem:[%s760 + $0x308] sm:$0xff]
        %v4835 = vld [vmem:[%s760 + $0x310] sm:$0xff]
        %v4836 = vld [vmem:[%s760 + $0x318] sm:$0xff]
        %v4837 = vld [vmem:[%s760 + $0x320] sm:$0xff]
        %v4838 = vld [vmem:[%s760 + $0x328] sm:$0xff]
        %v4839 = vld [vmem:[%s760 + $0x330] sm:$0xff]
        %v4840 = vld [vmem:[%s760 + $0x338] sm:$0xff]
        %v4841 = vld [vmem:[%s760 + $0x340] sm:$0xff]
        %v4842 = vld [vmem:[%s760 + $0x348] sm:$0xff]
        %v4843 = vld [vmem:[%s760 + $0x350] sm:$0xff]
        %v4844 = vld [vmem:[%s760 + $0x358] sm:$0xff]
        %v4845 = vld [vmem:[%s760 + $0x360] sm:$0xff]
        %v4846 = vld [vmem:[%s760 + $0x368] sm:$0xff]
        %v4847 = vld [vmem:[%s760 + $0x370] sm:$0xff]
        %v4848 = vld [vmem:[%s760 + $0x378] sm:$0xff]
        %v4849 = vld [vmem:[%s760 + $0x380] sm:$0xff]
        %v4850 = vld [vmem:[%s760 + $0x388] sm:$0xff]
        %v4851 = vld [vmem:[%s760 + $0x390] sm:$0xff]
        %v4852 = vld [vmem:[%s760 + $0x398] sm:$0xff]
        %v4853 = vld [vmem:[%s760 + $0x3a0] sm:$0xff]
        %v4854 = vld [vmem:[%s760 + $0x3a8] sm:$0xff]
        %v4855 = vld [vmem:[%s760 + $0x3b0] sm:$0xff]
        %v4856 = vld [vmem:[%s760 + $0x3b8] sm:$0xff]
        %v4857 = vld [vmem:[%s760 + $0x3c0] sm:$0xff]
        %v4858 = vld [vmem:[%s760 + $0x3c8] sm:$0xff]
        %v4859 = vld [vmem:[%s760 + $0x3d0] sm:$0xff]
        %v4860 = vld [vmem:[%s760 + $0x3d8] sm:$0xff]
        %v4861 = vld [vmem:[%s760 + $0x3e0] sm:$0xff]
        %v4862 = vld [vmem:[%s760 + $0x3e8] sm:$0xff]
        %v4863 = vld [vmem:[%s760 + $0x3f0] sm:$0xff]
        %v4864 = vld [vmem:[%s760 + $0x3f8] sm:$0xff]
        %v4865 = vld [vmem:[%s769] sm:$0x3]
        %v4867 = vlaneseq
        %v4868 = vshrl.u32 %v4867, 7
        %v4869 = vsub.s32 0, %v4868
        %v4870 = vrot.slane %v4865, %v4869
        %v4871 = vlaneseq
        %v4872 = vshrl.u32 %v4871, 7
        %v4873 = vsub.s32 1, %v4872
        %v4874 = vrot.slane %v4865, %v4873
        %v5005 = vunpack.c.l.b16 %v4737
        %v5006 = vunpack.c.h.b16 %v4737
        %v5007 = vunpack.c.l.b16 %v4738
        %v5008 = vunpack.c.h.b16 %v4738
        %v5009 = vunpack.c.l.b16 %v4739
        %v5010 = vunpack.c.h.b16 %v4739
        %v5011 = vunpack.c.l.b16 %v4740
        %v5012 = vunpack.c.h.b16 %v4740
        %v5013 = vunpack.c.l.b16 %v4741
        %v5014 = vunpack.c.h.b16 %v4741
        %v5015 = vunpack.c.l.b16 %v4742
        %v5016 = vunpack.c.h.b16 %v4742
        %v5017 = vunpack.c.l.b16 %v4743
        %v5018 = vunpack.c.h.b16 %v4743
        %v5019 = vunpack.c.l.b16 %v4744
        %v5020 = vunpack.c.h.b16 %v4744
        %v5021 = vunpack.c.l.b16 %v4745
        %v5022 = vunpack.c.h.b16 %v4745
        %v5023 = vunpack.c.l.b16 %v4746
        %v5024 = vunpack.c.h.b16 %v4746
        %v5025 = vunpack.c.l.b16 %v4747
        %v5026 = vunpack.c.h.b16 %v4747
        %v5027 = vunpack.c.l.b16 %v4748
        %v5028 = vunpack.c.h.b16 %v4748
        %v5029 = vunpack.c.l.b16 %v4749
        %v5030 = vunpack.c.h.b16 %v4749
        %v5031 = vunpack.c.l.b16 %v4750
        %v5032 = vunpack.c.h.b16 %v4750
        %v5033 = vunpack.c.l.b16 %v4751
        %v5034 = vunpack.c.h.b16 %v4751
        %v5035 = vunpack.c.l.b16 %v4752
        %v5036 = vunpack.c.h.b16 %v4752
        %v5037 = vunpack.c.l.b16 %v4753
        %v5038 = vunpack.c.h.b16 %v4753
        %v5039 = vunpack.c.l.b16 %v4754
        %v5040 = vunpack.c.h.b16 %v4754
        %v5041 = vunpack.c.l.b16 %v4755
        %v5042 = vunpack.c.h.b16 %v4755
        %v5043 = vunpack.c.l.b16 %v4756
        %v5044 = vunpack.c.h.b16 %v4756
        %v5045 = vunpack.c.l.b16 %v4757
        %v5046 = vunpack.c.h.b16 %v4757
        %v5047 = vunpack.c.l.b16 %v4758
        %v5048 = vunpack.c.h.b16 %v4758
        %v5049 = vunpack.c.l.b16 %v4759
        %v5050 = vunpack.c.h.b16 %v4759
        %v5051 = vunpack.c.l.b16 %v4760
        %v5052 = vunpack.c.h.b16 %v4760
        %v5053 = vunpack.c.l.b16 %v4761
        %v5054 = vunpack.c.h.b16 %v4761
        %v5055 = vunpack.c.l.b16 %v4762
        %v5056 = vunpack.c.h.b16 %v4762
        %v5057 = vunpack.c.l.b16 %v4763
        %v5058 = vunpack.c.h.b16 %v4763
        %v5059 = vunpack.c.l.b16 %v4764
        %v5060 = vunpack.c.h.b16 %v4764
        %v5061 = vunpack.c.l.b16 %v4765
        %v5062 = vunpack.c.h.b16 %v4765
        %v5063 = vunpack.c.l.b16 %v4766
        %v5064 = vunpack.c.h.b16 %v4766
        %v5065 = vunpack.c.l.b16 %v4767
        %v5066 = vunpack.c.h.b16 %v4767
        %v5067 = vunpack.c.l.b16 %v4768
        %v5068 = vunpack.c.h.b16 %v4768
        %v5069 = vunpack.c.l.b16 %v4769
        %v5070 = vunpack.c.h.b16 %v4769
        %v5071 = vunpack.c.l.b16 %v4770
        %v5072 = vunpack.c.h.b16 %v4770
        %v5073 = vunpack.c.l.b16 %v4771
        %v5074 = vunpack.c.h.b16 %v4771
        %v5075 = vunpack.c.l.b16 %v4772
        %v5076 = vunpack.c.h.b16 %v4772
        %v5077 = vunpack.c.l.b16 %v4773
        %v5078 = vunpack.c.h.b16 %v4773
        %v5079 = vunpack.c.l.b16 %v4774
        %v5080 = vunpack.c.h.b16 %v4774
        %v5081 = vunpack.c.l.b16 %v4775
        %v5082 = vunpack.c.h.b16 %v4775
        %v5083 = vunpack.c.l.b16 %v4776
        %v5084 = vunpack.c.h.b16 %v4776
        %v5085 = vunpack.c.l.b16 %v4777
        %v5086 = vunpack.c.h.b16 %v4777
        %v5087 = vunpack.c.l.b16 %v4778
        %v5088 = vunpack.c.h.b16 %v4778
        %v5089 = vunpack.c.l.b16 %v4779
        %v5090 = vunpack.c.h.b16 %v4779
        %v5091 = vunpack.c.l.b16 %v4780
        %v5092 = vunpack.c.h.b16 %v4780
        %v5093 = vunpack.c.l.b16 %v4781
        %v5094 = vunpack.c.h.b16 %v4781
        %v5095 = vunpack.c.l.b16 %v4782
        %v5096 = vunpack.c.h.b16 %v4782
        %v5097 = vunpack.c.l.b16 %v4783
        %v5098 = vunpack.c.h.b16 %v4783
        %v5099 = vunpack.c.l.b16 %v4784
        %v5100 = vunpack.c.h.b16 %v4784
        %v5101 = vunpack.c.l.b16 %v4785
        %v5102 = vunpack.c.h.b16 %v4785
        %v5103 = vunpack.c.l.b16 %v4786
        %v5104 = vunpack.c.h.b16 %v4786
        %v5105 = vunpack.c.l.b16 %v4787
        %v5106 = vunpack.c.h.b16 %v4787
        %v5107 = vunpack.c.l.b16 %v4788
        %v5108 = vunpack.c.h.b16 %v4788
        %v5109 = vunpack.c.l.b16 %v4789
        %v5110 = vunpack.c.h.b16 %v4789
        %v5111 = vunpack.c.l.b16 %v4790
        %v5112 = vunpack.c.h.b16 %v4790
        %v5113 = vunpack.c.l.b16 %v4791
        %v5114 = vunpack.c.h.b16 %v4791
        %v5115 = vunpack.c.l.b16 %v4792
        %v5116 = vunpack.c.h.b16 %v4792
        %v5117 = vunpack.c.l.b16 %v4793
        %v5118 = vunpack.c.h.b16 %v4793
        %v5119 = vunpack.c.l.b16 %v4794
        %v5120 = vunpack.c.h.b16 %v4794
        %v5121 = vunpack.c.l.b16 %v4795
        %v5122 = vunpack.c.h.b16 %v4795
        %v5123 = vunpack.c.l.b16 %v4796
        %v5124 = vunpack.c.h.b16 %v4796
        %v5125 = vunpack.c.l.b16 %v4797
        %v5126 = vunpack.c.h.b16 %v4797
        %v5127 = vunpack.c.l.b16 %v4798
        %v5128 = vunpack.c.h.b16 %v4798
        %v5129 = vunpack.c.l.b16 %v4799
        %v5130 = vunpack.c.h.b16 %v4799
        %v5131 = vunpack.c.l.b16 %v4800
        %v5132 = vunpack.c.h.b16 %v4800
        %v5133 = vunpack.c.l.b16 %v4801
        %v5134 = vunpack.c.h.b16 %v4801
        %v5135 = vunpack.c.l.b16 %v4802
        %v5136 = vunpack.c.h.b16 %v4802
        %v5137 = vunpack.c.l.b16 %v4803
        %v5138 = vunpack.c.h.b16 %v4803
        %v5139 = vunpack.c.l.b16 %v4804
        %v5140 = vunpack.c.h.b16 %v4804
        %v5141 = vunpack.c.l.b16 %v4805
        %v5142 = vunpack.c.h.b16 %v4805
        %v5143 = vunpack.c.l.b16 %v4806
        %v5144 = vunpack.c.h.b16 %v4806
        %v5145 = vunpack.c.l.b16 %v4807
        %v5146 = vunpack.c.h.b16 %v4807
        %v5147 = vunpack.c.l.b16 %v4808
        %v5148 = vunpack.c.h.b16 %v4808
        %v5149 = vunpack.c.l.b16 %v4809
        %v5150 = vunpack.c.h.b16 %v4809
        %v5151 = vunpack.c.l.b16 %v4810
        %v5152 = vunpack.c.h.b16 %v4810
        %v5153 = vunpack.c.l.b16 %v4811
        %v5154 = vunpack.c.h.b16 %v4811
        %v5155 = vunpack.c.l.b16 %v4812
        %v5156 = vunpack.c.h.b16 %v4812
        %v5157 = vunpack.c.l.b16 %v4813
        %v5158 = vunpack.c.h.b16 %v4813
        %v5159 = vunpack.c.l.b16 %v4814
        %v5160 = vunpack.c.h.b16 %v4814
        %v5161 = vunpack.c.l.b16 %v4815
        %v5162 = vunpack.c.h.b16 %v4815
        %v5163 = vunpack.c.l.b16 %v4816
        %v5164 = vunpack.c.h.b16 %v4816
        %v5165 = vunpack.c.l.b16 %v4817
        %v5166 = vunpack.c.h.b16 %v4817
        %v5167 = vunpack.c.l.b16 %v4818
        %v5168 = vunpack.c.h.b16 %v4818
        %v5169 = vunpack.c.l.b16 %v4819
        %v5170 = vunpack.c.h.b16 %v4819
        %v5171 = vunpack.c.l.b16 %v4820
        %v5172 = vunpack.c.h.b16 %v4820
        %v5173 = vunpack.c.l.b16 %v4821
        %v5174 = vunpack.c.h.b16 %v4821
        %v5175 = vunpack.c.l.b16 %v4822
        %v5176 = vunpack.c.h.b16 %v4822
        %v5177 = vunpack.c.l.b16 %v4823
        %v5178 = vunpack.c.h.b16 %v4823
        %v5179 = vunpack.c.l.b16 %v4824
        %v5180 = vunpack.c.h.b16 %v4824
        %v5181 = vunpack.c.l.b16 %v4825
        %v5182 = vunpack.c.h.b16 %v4825
        %v5183 = vunpack.c.l.b16 %v4826
        %v5184 = vunpack.c.h.b16 %v4826
        %v5185 = vunpack.c.l.b16 %v4827
        %v5186 = vunpack.c.h.b16 %v4827
        %v5187 = vunpack.c.l.b16 %v4828
        %v5188 = vunpack.c.h.b16 %v4828
        %v5189 = vunpack.c.l.b16 %v4829
        %v5190 = vunpack.c.h.b16 %v4829
        %v5191 = vunpack.c.l.b16 %v4830
        %v5192 = vunpack.c.h.b16 %v4830
        %v5193 = vunpack.c.l.b16 %v4831
        %v5194 = vunpack.c.h.b16 %v4831
        %v5195 = vunpack.c.l.b16 %v4832
        %v5196 = vunpack.c.h.b16 %v4832
        %v5197 = vunpack.c.l.b16 %v4833
        %v5198 = vunpack.c.h.b16 %v4833
        %v5199 = vunpack.c.l.b16 %v4834
        %v5200 = vunpack.c.h.b16 %v4834
        %v5201 = vunpack.c.l.b16 %v4835
        %v5202 = vunpack.c.h.b16 %v4835
        %v5203 = vunpack.c.l.b16 %v4836
        %v5204 = vunpack.c.h.b16 %v4836
        %v5205 = vunpack.c.l.b16 %v4837
        %v5206 = vunpack.c.h.b16 %v4837
        %v5207 = vunpack.c.l.b16 %v4838
        %v5208 = vunpack.c.h.b16 %v4838
        %v5209 = vunpack.c.l.b16 %v4839
        %v5210 = vunpack.c.h.b16 %v4839
        %v5211 = vunpack.c.l.b16 %v4840
        %v5212 = vunpack.c.h.b16 %v4840
        %v5213 = vunpack.c.l.b16 %v4841
        %v5214 = vunpack.c.h.b16 %v4841
        %v5215 = vunpack.c.l.b16 %v4842
        %v5216 = vunpack.c.h.b16 %v4842
        %v5217 = vunpack.c.l.b16 %v4843
        %v5218 = vunpack.c.h.b16 %v4843
        %v5219 = vunpack.c.l.b16 %v4844
        %v5220 = vunpack.c.h.b16 %v4844
        %v5221 = vunpack.c.l.b16 %v4845
        %v5222 = vunpack.c.h.b16 %v4845
        %v5223 = vunpack.c.l.b16 %v4846
        %v5224 = vunpack.c.h.b16 %v4846
        %v5225 = vunpack.c.l.b16 %v4847
        %v5226 = vunpack.c.h.b16 %v4847
        %v5227 = vunpack.c.l.b16 %v4848
        %v5228 = vunpack.c.h.b16 %v4848
        %v5229 = vunpack.c.l.b16 %v4849
        %v5230 = vunpack.c.h.b16 %v4849
        %v5231 = vunpack.c.l.b16 %v4850
        %v5232 = vunpack.c.h.b16 %v4850
        %v5233 = vunpack.c.l.b16 %v4851
        %v5234 = vunpack.c.h.b16 %v4851
        %v5235 = vunpack.c.l.b16 %v4852
        %v5236 = vunpack.c.h.b16 %v4852
        %v5237 = vunpack.c.l.b16 %v4853
        %v5238 = vunpack.c.h.b16 %v4853
        %v5239 = vunpack.c.l.b16 %v4854
        %v5240 = vunpack.c.h.b16 %v4854
        %v5241 = vunpack.c.l.b16 %v4855
        %v5242 = vunpack.c.h.b16 %v4855
        %v5243 = vunpack.c.l.b16 %v4856
        %v5244 = vunpack.c.h.b16 %v4856
        %v5245 = vunpack.c.l.b16 %v4857
        %v5246 = vunpack.c.h.b16 %v4857
        %v5247 = vunpack.c.l.b16 %v4858
        %v5248 = vunpack.c.h.b16 %v4858
        %v5249 = vunpack.c.l.b16 %v4859
        %v5250 = vunpack.c.h.b16 %v4859
        %v5251 = vunpack.c.l.b16 %v4860
        %v5252 = vunpack.c.h.b16 %v4860
        %v5253 = vunpack.c.l.b16 %v4861
        %v5254 = vunpack.c.h.b16 %v4861
        %v5255 = vunpack.c.l.b16 %v4862
        %v5256 = vunpack.c.h.b16 %v4862
        %v5257 = vunpack.c.l.b16 %v4863
        %v5258 = vunpack.c.h.b16 %v4863
        %v5259 = vunpack.c.l.b16 %v4864
        %v5260 = vunpack.c.h.b16 %v4864
        %v5261 = vpack.c.b16 %v5007, %v5005
        %v5262 = vpack.c.b16 %v5008, %v5006
        %v5263 = vpack.c.b16 %v5011, %v5009
        %v5264 = vpack.c.b16 %v5012, %v5010
        %v5265 = vpack.c.b16 %v5015, %v5013
        %v5266 = vpack.c.b16 %v5016, %v5014
        %v5267 = vpack.c.b16 %v5019, %v5017
        %v5268 = vpack.c.b16 %v5020, %v5018
        %v5269 = vpack.c.b16 %v5023, %v5021
        %v5270 = vpack.c.b16 %v5024, %v5022
        %v5271 = vpack.c.b16 %v5027, %v5025
        %v5272 = vpack.c.b16 %v5028, %v5026
        %v5273 = vpack.c.b16 %v5031, %v5029
        %v5274 = vpack.c.b16 %v5032, %v5030
        %v5275 = vpack.c.b16 %v5035, %v5033
        %v5276 = vpack.c.b16 %v5036, %v5034
        %v5277 = vpack.c.b16 %v5039, %v5037
        %v5278 = vpack.c.b16 %v5040, %v5038
        %v5279 = vpack.c.b16 %v5043, %v5041
        %v5280 = vpack.c.b16 %v5044, %v5042
        %v5281 = vpack.c.b16 %v5047, %v5045
        %v5282 = vpack.c.b16 %v5048, %v5046
        %v5283 = vpack.c.b16 %v5051, %v5049
        %v5284 = vpack.c.b16 %v5052, %v5050
        %v5285 = vpack.c.b16 %v5055, %v5053
        %v5286 = vpack.c.b16 %v5056, %v5054
        %v5287 = vpack.c.b16 %v5059, %v5057
        %v5288 = vpack.c.b16 %v5060, %v5058
        %v5289 = vpack.c.b16 %v5063, %v5061
        %v5290 = vpack.c.b16 %v5064, %v5062
        %v5291 = vpack.c.b16 %v5067, %v5065
        %v5292 = vpack.c.b16 %v5068, %v5066
        %v5293 = vpack.c.b16 %v5071, %v5069
        %v5294 = vpack.c.b16 %v5072, %v5070
        %v5295 = vpack.c.b16 %v5075, %v5073
        %v5296 = vpack.c.b16 %v5076, %v5074
        %v5297 = vpack.c.b16 %v5079, %v5077
        %v5298 = vpack.c.b16 %v5080, %v5078
        %v5299 = vpack.c.b16 %v5083, %v5081
        %v5300 = vpack.c.b16 %v5084, %v5082
        %v5301 = vpack.c.b16 %v5087, %v5085
        %v5302 = vpack.c.b16 %v5088, %v5086
        %v5303 = vpack.c.b16 %v5091, %v5089
        %v5304 = vpack.c.b16 %v5092, %v5090
        %v5305 = vpack.c.b16 %v5095, %v5093
        %v5306 = vpack.c.b16 %v5096, %v5094
        %v5307 = vpack.c.b16 %v5099, %v5097
        %v5308 = vpack.c.b16 %v5100, %v5098
        %v5309 = vpack.c.b16 %v5103, %v5101
        %v5310 = vpack.c.b16 %v5104, %v5102
        %v5311 = vpack.c.b16 %v5107, %v5105
        %v5312 = vpack.c.b16 %v5108, %v5106
        %v5313 = vpack.c.b16 %v5111, %v5109
        %v5314 = vpack.c.b16 %v5112, %v5110
        %v5315 = vpack.c.b16 %v5115, %v5113
        %v5316 = vpack.c.b16 %v5116, %v5114
        %v5317 = vpack.c.b16 %v5119, %v5117
        %v5318 = vpack.c.b16 %v5120, %v5118
        %v5319 = vpack.c.b16 %v5123, %v5121
        %v5320 = vpack.c.b16 %v5124, %v5122
        %v5321 = vpack.c.b16 %v5127, %v5125
        %v5322 = vpack.c.b16 %v5128, %v5126
        %v5323 = vpack.c.b16 %v5131, %v5129
        %v5324 = vpack.c.b16 %v5132, %v5130
        %v5325 = vpack.c.b16 %v5135, %v5133
        %v5326 = vpack.c.b16 %v5136, %v5134
        %v5327 = vpack.c.b16 %v5139, %v5137
        %v5328 = vpack.c.b16 %v5140, %v5138
        %v5329 = vpack.c.b16 %v5143, %v5141
        %v5330 = vpack.c.b16 %v5144, %v5142
        %v5331 = vpack.c.b16 %v5147, %v5145
        %v5332 = vpack.c.b16 %v5148, %v5146
        %v5333 = vpack.c.b16 %v5151, %v5149
        %v5334 = vpack.c.b16 %v5152, %v5150
        %v5335 = vpack.c.b16 %v5155, %v5153
        %v5336 = vpack.c.b16 %v5156, %v5154
        %v5337 = vpack.c.b16 %v5159, %v5157
        %v5338 = vpack.c.b16 %v5160, %v5158
        %v5339 = vpack.c.b16 %v5163, %v5161
        %v5340 = vpack.c.b16 %v5164, %v5162
        %v5341 = vpack.c.b16 %v5167, %v5165
        %v5342 = vpack.c.b16 %v5168, %v5166
        %v5343 = vpack.c.b16 %v5171, %v5169
        %v5344 = vpack.c.b16 %v5172, %v5170
        %v5345 = vpack.c.b16 %v5175, %v5173
        %v5346 = vpack.c.b16 %v5176, %v5174
        %v5347 = vpack.c.b16 %v5179, %v5177
        %v5348 = vpack.c.b16 %v5180, %v5178
        %v5349 = vpack.c.b16 %v5183, %v5181
        %v5350 = vpack.c.b16 %v5184, %v5182
        %v5351 = vpack.c.b16 %v5187, %v5185
        %v5352 = vpack.c.b16 %v5188, %v5186
        %v5353 = vpack.c.b16 %v5191, %v5189
        %v5354 = vpack.c.b16 %v5192, %v5190
        %v5355 = vpack.c.b16 %v5195, %v5193
        %v5356 = vpack.c.b16 %v5196, %v5194
        %v5357 = vpack.c.b16 %v5199, %v5197
        %v5358 = vpack.c.b16 %v5200, %v5198
        %v5359 = vpack.c.b16 %v5203, %v5201
        %v5360 = vpack.c.b16 %v5204, %v5202
        %v5361 = vpack.c.b16 %v5207, %v5205
        %v5362 = vpack.c.b16 %v5208, %v5206
        %v5363 = vpack.c.b16 %v5211, %v5209
        %v5364 = vpack.c.b16 %v5212, %v5210
        %v5365 = vpack.c.b16 %v5215, %v5213
        %v5366 = vpack.c.b16 %v5216, %v5214
        %v5367 = vpack.c.b16 %v5219, %v5217
        %v5368 = vpack.c.b16 %v5220, %v5218
        %v5369 = vpack.c.b16 %v5223, %v5221
        %v5370 = vpack.c.b16 %v5224, %v5222
        %v5371 = vpack.c.b16 %v5227, %v5225
        %v5372 = vpack.c.b16 %v5228, %v5226
        %v5373 = vpack.c.b16 %v5231, %v5229
        %v5374 = vpack.c.b16 %v5232, %v5230
        %v5375 = vpack.c.b16 %v5235, %v5233
        %v5376 = vpack.c.b16 %v5236, %v5234
        %v5377 = vpack.c.b16 %v5239, %v5237
        %v5378 = vpack.c.b16 %v5240, %v5238
        %v5379 = vpack.c.b16 %v5243, %v5241
        %v5380 = vpack.c.b16 %v5244, %v5242
        %v5381 = vpack.c.b16 %v5247, %v5245
        %v5382 = vpack.c.b16 %v5248, %v5246
        %v5383 = vpack.c.b16 %v5251, %v5249
        %v5384 = vpack.c.b16 %v5252, %v5250
        %v5385 = vpack.c.b16 %v5255, %v5253
        %v5386 = vpack.c.b16 %v5256, %v5254
        %v5387 = vpack.c.b16 %v5259, %v5257
        %v5388 = vpack.c.b16 %v5260, %v5258
        %5517 = vmatprep.subr.bf16.mxu0 %v5262
        %5518 = vmatpush1.bf16.msra.mxu0 %v5261
        %5519 = vmatprep.subr.bf16.mxu0 %v5264
        %5520 = vmatpush1.bf16.msra.mxu0 %v5263
        %5521 = vmatprep.subr.bf16.mxu0 %v5266
        %5522 = vmatpush1.bf16.msra.mxu0 %v5265
        %5523 = vmatprep.subr.bf16.mxu0 %v5268
        %5524 = vmatpush1.bf16.msra.mxu0 %v5267
        %5525 = vmatprep.subr.bf16.mxu0 %v5270
        %5526 = vmatpush1.bf16.msra.mxu0 %v5269
        %5527 = vmatprep.subr.bf16.mxu0 %v5272
        %5528 = vmatpush1.bf16.msra.mxu0 %v5271
        %5529 = vmatprep.subr.bf16.mxu0 %v5274
        %5530 = vmatpush1.bf16.msra.mxu0 %v5273
        %5531 = vmatprep.subr.bf16.mxu0 %v5276
        %5532 = vmatpush1.bf16.msra.mxu0 %v5275
        %5533 = vmatprep.subr.bf16.mxu0 %v5278
        %5534 = vmatpush1.bf16.msra.mxu0 %v5277
        %5535 = vmatprep.subr.bf16.mxu0 %v5280
        %5536 = vmatpush1.bf16.msra.mxu0 %v5279
        %5537 = vmatprep.subr.bf16.mxu0 %v5282
        %5538 = vmatpush1.bf16.msra.mxu0 %v5281
        %5539 = vmatprep.subr.bf16.mxu0 %v5284
        %5540 = vmatpush1.bf16.msra.mxu0 %v5283
        %5541 = vmatprep.subr.bf16.mxu0 %v5286
        %5542 = vmatpush1.bf16.msra.mxu0 %v5285
        %5543 = vmatprep.subr.bf16.mxu0 %v5288
        %5544 = vmatpush1.bf16.msra.mxu0 %v5287
        %5545 = vmatprep.subr.bf16.mxu0 %v5290
        %5546 = vmatpush1.bf16.msra.mxu0 %v5289
        %5547 = vmatprep.subr.bf16.mxu0 %v5292
        %5548 = vmatpush1.bf16.msra.mxu0 %v5291
        %5549 = vmatprep.mubr.bf16.mxu0 %v4722
        %5550 = vmatmul.mubr.bf16.gmra.mrb[0].mxu0 %v4721
        %v5551 = vpop.f32.mrb[0].mxu0
        %v5552 = vadd.f32 %v4870, %v5551
        %v5553 = vpop.f32.mrb[0].mxu0
        %v5554 = vadd.f32 %v4874, %v5553
        %v5555 = vpop.f32.mrb[0].mxu0
        %v5556 = vadd.f32 %v4870, %v5555
        %v5557 = vpop.f32.mrb[0].mxu0
        %v5558 = vadd.f32 %v4874, %v5557
        %5559 = vmatprep.mubr.bf16.mxu0 %v4730
        %5560 = vmatmul.mubr.bf16.gmra.mrb[0].mxu0 %v4729
        %v5561 = vpop.f32.mrb[0].mxu0
        %v5562 = vadd.f32 %v4870, %v5561
        %v5563 = vpop.f32.mrb[0].mxu0
        %v5564 = vadd.f32 %v4874, %v5563
        %v5565 = vpop.f32.mrb[0].mxu0
        %v5566 = vadd.f32 %v4870, %v5565
        %v5567 = vpop.f32.mrb[0].mxu0
        %v5568 = vadd.f32 %v4874, %v5567
        %5569 = vdwg.mxu0
        %5570 = vmatprep.subr.bf16.mxu0 %v5294
        %5571 = vmatpush1.bf16.msra.mxu0 %v5293
        %5572 = vmatprep.subr.bf16.mxu0 %v5296
        %5573 = vmatpush1.bf16.msra.mxu0 %v5295
        %5574 = vmatprep.subr.bf16.mxu0 %v5298
        %5575 = vmatpush1.bf16.msra.mxu0 %v5297
        %5576 = vmatprep.subr.bf16.mxu0 %v5300
        %5577 = vmatpush1.bf16.msra.mxu0 %v5299
        %5578 = vmatprep.subr.bf16.mxu0 %v5302
        %5579 = vmatpush1.bf16.msra.mxu0 %v5301
        %5580 = vmatprep.subr.bf16.mxu0 %v5304
        %5581 = vmatpush1.bf16.msra.mxu0 %v5303
        %5582 = vmatprep.subr.bf16.mxu0 %v5306
        %5583 = vmatpush1.bf16.msra.mxu0 %v5305
        %5584 = vmatprep.subr.bf16.mxu0 %v5308
        %5585 = vmatpush1.bf16.msra.mxu0 %v5307
        %5586 = vmatprep.subr.bf16.mxu0 %v5310
        %5587 = vmatpush1.bf16.msra.mxu0 %v5309
        %5588 = vmatprep.subr.bf16.mxu0 %v5312
        %5589 = vmatpush1.bf16.msra.mxu0 %v5311
        %5590 = vmatprep.subr.bf16.mxu0 %v5314
        %5591 = vmatpush1.bf16.msra.mxu0 %v5313
        %5592 = vmatprep.subr.bf16.mxu0 %v5316
        %5593 = vmatpush1.bf16.msra.mxu0 %v5315
        %5594 = vmatprep.subr.bf16.mxu0 %v5318
        %5595 = vmatpush1.bf16.msra.mxu0 %v5317
        %5596 = vmatprep.subr.bf16.mxu0 %v5320
        %5597 = vmatpush1.bf16.msra.mxu0 %v5319
        %5598 = vmatprep.subr.bf16.mxu0 %v5322
        %5599 = vmatpush1.bf16.msra.mxu0 %v5321
        %5600 = vmatprep.subr.bf16.mxu0 %v5324
        %5601 = vmatpush1.bf16.msra.mxu0 %v5323
        %5602 = vmatprep.mubr.bf16.mxu0 %v4724
        %5603 = vmatmul.mubr.bf16.gmra.mrb[0].mxu0 %v4723
        %v5604 = vpop.f32.mrb[0].mxu0
        %v5605 = vadd.f32 %v5552, %v5604
        %v5606 = vpop.f32.mrb[0].mxu0
        %v5607 = vadd.f32 %v5554, %v5606
        %v5608 = vpop.f32.mrb[0].mxu0
        %v5609 = vadd.f32 %v5556, %v5608
        %v5610 = vpop.f32.mrb[0].mxu0
        %v5611 = vadd.f32 %v5558, %v5610
        %5612 = vmatprep.mubr.bf16.mxu0 %v4732
        %5613 = vmatmul.mubr.bf16.gmra.mrb[0].mxu0 %v4731
        %v5614 = vpop.f32.mrb[0].mxu0
        %v5615 = vadd.f32 %v5562, %v5614
        %v5616 = vpop.f32.mrb[0].mxu0
        %v5617 = vadd.f32 %v5564, %v5616
        %v5618 = vpop.f32.mrb[0].mxu0
        %v5619 = vadd.f32 %v5566, %v5618
        %v5620 = vpop.f32.mrb[0].mxu0
        %v5621 = vadd.f32 %v5568, %v5620
        %5622 = vdwg.mxu0
        %5623 = vmatprep.subr.bf16.mxu0 %v5326
        %5624 = vmatpush1.bf16.msra.mxu0 %v5325
        %5625 = vmatprep.subr.bf16.mxu0 %v5328
        %5626 = vmatpush1.bf16.msra.mxu0 %v5327
        %5627 = vmatprep.subr.bf16.mxu0 %v5330
        %5628 = vmatpush1.bf16.msra.mxu0 %v5329
        %5629 = vmatprep.subr.bf16.mxu0 %v5332
        %5630 = vmatpush1.bf16.msra.mxu0 %v5331
        %5631 = vmatprep.subr.bf16.mxu0 %v5334
        %5632 = vmatpush1.bf16.msra.mxu0 %v5333
        %5633 = vmatprep.subr.bf16.mxu0 %v5336
        %5634 = vmatpush1.bf16.msra.mxu0 %v5335
        %5635 = vmatprep.subr.bf16.mxu0 %v5338
        %5636 = vmatpush1.bf16.msra.mxu0 %v5337
        %5637 = vmatprep.subr.bf16.mxu0 %v5340
        %5638 = vmatpush1.bf16.msra.mxu0 %v5339
        %5639 = vmatprep.subr.bf16.mxu0 %v5342
        %5640 = vmatpush1.bf16.msra.mxu0 %v5341
        %5641 = vmatprep.subr.bf16.mxu0 %v5344
        %5642 = vmatpush1.bf16.msra.mxu0 %v5343
        %5643 = vmatprep.subr.bf16.mxu0 %v5346
        %5644 = vmatpush1.bf16.msra.mxu0 %v5345
        %5645 = vmatprep.subr.bf16.mxu0 %v5348
        %5646 = vmatpush1.bf16.msra.mxu0 %v5347
        %5647 = vmatprep.subr.bf16.mxu0 %v5350
        %5648 = vmatpush1.bf16.msra.mxu0 %v5349
        %5649 = vmatprep.subr.bf16.mxu0 %v5352
        %5650 = vmatpush1.bf16.msra.mxu0 %v5351
        %5651 = vmatprep.subr.bf16.mxu0 %v5354
        %5652 = vmatpush1.bf16.msra.mxu0 %v5353
        %5653 = vmatprep.subr.bf16.mxu0 %v5356
        %5654 = vmatpush1.bf16.msra.mxu0 %v5355
        %5655 = vmatprep.mubr.bf16.mxu0 %v4726
        %5656 = vmatmul.mubr.bf16.gmra.mrb[0].mxu0 %v4725
        %v5657 = vpop.f32.mrb[0].mxu0
        %v5658 = vadd.f32 %v5605, %v5657
        %v5659 = vpop.f32.mrb[0].mxu0
        %v5660 = vadd.f32 %v5607, %v5659
        %v5661 = vpop.f32.mrb[0].mxu0
        %v5662 = vadd.f32 %v5609, %v5661
        %v5663 = vpop.f32.mrb[0].mxu0
        %v5664 = vadd.f32 %v5611, %v5663
        %5665 = vmatprep.mubr.bf16.mxu0 %v4734
        %5666 = vmatmul.mubr.bf16.gmra.mrb[0].mxu0 %v4733
        %v5667 = vpop.f32.mrb[0].mxu0
        %v5668 = vadd.f32 %v5615, %v5667
        %v5669 = vpop.f32.mrb[0].mxu0
        %v5670 = vadd.f32 %v5617, %v5669
        %v5671 = vpop.f32.mrb[0].mxu0
        %v5672 = vadd.f32 %v5619, %v5671
        %v5673 = vpop.f32.mrb[0].mxu0
        %v5674 = vadd.f32 %v5621, %v5673
        %5675 = vdwg.mxu0
        %5676 = vmatprep.subr.bf16.mxu0 %v5358
        %5677 = vmatpush1.bf16.msra.mxu0 %v5357
        %5678 = vmatprep.subr.bf16.mxu0 %v5360
        %5679 = vmatpush1.bf16.msra.mxu0 %v5359
        %5680 = vmatprep.subr.bf16.mxu0 %v5362
        %5681 = vmatpush1.bf16.msra.mxu0 %v5361
        %5682 = vmatprep.subr.bf16.mxu0 %v5364
        %5683 = vmatpush1.bf16.msra.mxu0 %v5363
        %5684 = vmatprep.subr.bf16.mxu0 %v5366
        %5685 = vmatpush1.bf16.msra.mxu0 %v5365
        %5686 = vmatprep.subr.bf16.mxu0 %v5368
        %5687 = vmatpush1.bf16.msra.mxu0 %v5367
        %5688 = vmatprep.subr.bf16.mxu0 %v5370
        %5689 = vmatpush1.bf16.msra.mxu0 %v5369
        %5690 = vmatprep.subr.bf16.mxu0 %v5372
        %5691 = vmatpush1.bf16.msra.mxu0 %v5371
        %5692 = vmatprep.subr.bf16.mxu0 %v5374
        %5693 = vmatpush1.bf16.msra.mxu0 %v5373
        %5694 = vmatprep.subr.bf16.mxu0 %v5376
        %5695 = vmatpush1.bf16.msra.mxu0 %v5375
        %5696 = vmatprep.subr.bf16.mxu0 %v5378
        %5697 = vmatpush1.bf16.msra.mxu0 %v5377
        %5698 = vmatprep.subr.bf16.mxu0 %v5380
        %5699 = vmatpush1.bf16.msra.mxu0 %v5379
        %5700 = vmatprep.subr.bf16.mxu0 %v5382
        %5701 = vmatpush1.bf16.msra.mxu0 %v5381
        %5702 = vmatprep.subr.bf16.mxu0 %v5384
        %5703 = vmatpush1.bf16.msra.mxu0 %v5383
        %5704 = vmatprep.subr.bf16.mxu0 %v5386
        %5705 = vmatpush1.bf16.msra.mxu0 %v5385
        %5706 = vmatprep.subr.bf16.mxu0 %v5388
        %5707 = vmatpush1.bf16.msra.mxu0 %v5387
        %5708 = vmatprep.mubr.bf16.mxu0 %v4728
        %5709 = vmatmul.mubr.bf16.gmra.mrb[0].mxu0 %v4727
        %v5710 = vpop.f32.mrb[0].mxu0
        %v5711 = vadd.f32 %v5658, %v5710
        %v5712 = vpop.f32.mrb[0].mxu0
        %v5713 = vadd.f32 %v5660, %v5712
        %v5714 = vpop.f32.mrb[0].mxu0
        %v5715 = vadd.f32 %v5662, %v5714
        %v5716 = vpop.f32.mrb[0].mxu0
        %v5717 = vadd.f32 %v5664, %v5716
        %5718 = vmatprep.mubr.bf16.mxu0 %v4736
        %5719 = vmatmul.mubr.bf16.gmra.mrb[0].mxu0 %v4735
        %v5720 = vpop.f32.mrb[0].mxu0
        %v5721 = vadd.f32 %v5668, %v5720
        %v5722 = vpop.f32.mrb[0].mxu0
        %v5723 = vadd.f32 %v5670, %v5722
        %v5724 = vpop.f32.mrb[0].mxu0
        %v5725 = vadd.f32 %v5672, %v5724
        %v5726 = vpop.f32.mrb[0].mxu0
        %v5727 = vadd.f32 %v5674, %v5726
        %5728 = vdwg.mxu0
        %v5729 = vadd.f32 %v5711, %v3399
        %v5730 = vadd.f32 %v5713, %v3400
        %v5731 = vadd.f32 %v5715, %v3401
        %v5732 = vadd.f32 %v5717, %v3402
        %v5733 = vadd.f32 %v5721, %v3403
        %v5734 = vadd.f32 %v5723, %v3404
        %v5735 = vadd.f32 %v5725, %v3405
        %v5736 = vadd.f32 %v5727, %v3406
        %v5737 = vld [vmem:[%s778] sm:$0x3]
        %v5738 = vld [vmem:[%s787] sm:$0x3]
        %v5739 = vadd.f32 %v5729, %v5730
        %5740 = vadd.xlane.f32.xlu0 %v5739
        %v5741 = vpop.xlane.xlu0 %5740
        %v5742 = vadd.f32 %v5731, %v5732
        %5743 = vadd.xlane.f32.xlu0 %v5742
        %v5744 = vpop.xlane.xlu0 %5743
        %v5745 = vadd.f32 %v5733, %v5734
        %5746 = vadd.xlane.f32.xlu0 %v5745
        %v5747 = vpop.xlane.xlu0 %5746
        %v5748 = vadd.f32 %v5735, %v5736
        %5749 = vadd.xlane.f32.xlu0 %v5748
        %v5750 = vpop.xlane.xlu0 %5749
        %v5751 = vmul.f32 %v5741, %v3316
        %v5752 = vmul.f32 %v5744, %v3316
        %v5753 = vmul.f32 %v5747, %v3316
        %v5754 = vmul.f32 %v5750, %v3316
        %v5755 = vsub.f32 %v5729, %v5751
        %v5756 = vsub.f32 %v5730, %v5751
        %v5757 = vsub.f32 %v5731, %v5752
        %v5758 = vsub.f32 %v5732, %v5752
        %v5759 = vsub.f32 %v5733, %v5753
        %v5760 = vsub.f32 %v5734, %v5753
        %v5761 = vsub.f32 %v5735, %v5754
        %v5762 = vsub.f32 %v5736, %v5754
        %v5763 = vmul.f32 %v5755, %v5755
        %v5764 = vmul.f32 %v5756, %v5756
        %v5765 = vmul.f32 %v5757, %v5757
        %v5766 = vmul.f32 %v5758, %v5758
        %v5767 = vmul.f32 %v5759, %v5759
        %v5768 = vmul.f32 %v5760, %v5760
        %v5769 = vmul.f32 %v5761, %v5761
        %v5770 = vmul.f32 %v5762, %v5762
        %v5771 = vadd.f32 %v5763, %v5764
        %5772 = vadd.xlane.f32.xlu0 %v5771
        %v5773 = vpop.xlane.xlu0 %5772
        %v5774 = vadd.f32 %v5765, %v5766
        %5775 = vadd.xlane.f32.xlu0 %v5774
        %v5776 = vpop.xlane.xlu0 %5775
        %v5777 = vadd.f32 %v5767, %v5768
        %5778 = vadd.xlane.f32.xlu0 %v5777
        %v5779 = vpop.xlane.xlu0 %5778
        %v5780 = vadd.f32 %v5769, %v5770
        %5781 = vadd.xlane.f32.xlu0 %v5780
        %v5782 = vpop.xlane.xlu0 %5781
        %v5783 = vmul.f32 %v5773, %v3316
        %v5784 = vmul.f32 %v5776, %v3316
        %v5785 = vmul.f32 %v5779, %v3316
        %v5786 = vmul.f32 %v5782, %v3316
        %v5787 = vadd.f32 %v5783, 1e-12
        %v5788 = vadd.f32 %v5784, 1e-12
        %v5789 = vadd.f32 %v5785, 1e-12
        %v5790 = vadd.f32 %v5786, 1e-12
        %v5791 = vrsqrt.pop %v5787
        %v5792 = vrsqrt.pop %v5788
        %v5793 = vrsqrt.pop %v5789
        %v5794 = vrsqrt.pop %v5790
        %v5795 = vmul.f32 %v5755, %v5791
        %v5796 = vmul.f32 %v5756, %v5791
        %v5797 = vmul.f32 %v5757, %v5792
        %v5798 = vmul.f32 %v5758, %v5792
        %v5799 = vmul.f32 %v5759, %v5793
        %v5800 = vmul.f32 %v5760, %v5793
        %v5801 = vmul.f32 %v5761, %v5794
        %v5802 = vmul.f32 %v5762, %v5794
        %v5804 = vlaneseq
        %v5805 = vshrl.u32 %v5804, 7
        %v5806 = vsub.s32 0, %v5805
        %v5807 = vrot.slane %v5737, %v5806
        %v5808 = vlaneseq
        %v5809 = vshrl.u32 %v5808, 7
        %v5810 = vsub.s32 1, %v5809
        %v5811 = vrot.slane %v5737, %v5810
        %v5814 = vmul.f32 %v5795, %v5807
        %v5815 = vmul.f32 %v5796, %v5811
        %v5816 = vmul.f32 %v5797, %v5807
        %v5817 = vmul.f32 %v5798, %v5811
        %v5818 = vmul.f32 %v5799, %v5807
        %v5819 = vmul.f32 %v5800, %v5811
        %v5820 = vmul.f32 %v5801, %v5807
        %v5821 = vmul.f32 %v5802, %v5811
        %v5823 = vlaneseq
        %v5824 = vshrl.u32 %v5823, 7
        %v5825 = vsub.s32 0, %v5824
        %v5826 = vrot.slane %v5738, %v5825
        %v5827 = vlaneseq
        %v5828 = vshrl.u32 %v5827, 7
        %v5829 = vsub.s32 1, %v5828
        %v5830 = vrot.slane %v5738, %v5829
        %v5833 = vadd.f32 %v5814, %v5826
        %v5834 = vadd.f32 %v5815, %v5830
        %v5835 = vadd.f32 %v5816, %v5826
        %v5836 = vadd.f32 %v5817, %v5830
        %v5837 = vadd.f32 %v5818, %v5826
        %v5838 = vadd.f32 %v5819, %v5830
        %v5839 = vadd.f32 %v5820, %v5826
        %v5840 = vadd.f32 %v5821, %v5830
        %5841 = vst [vmem:[#allocation2] sm:$0xff] %v5833
        %5842 = vst [vmem:[#allocation2 + $0x8] sm:$0xff] %v5834
        %5843 = vst [vmem:[#allocation2 + $0x10] sm:$0xff] %v5835
        %5844 = vst [vmem:[#allocation2 + $0x18] sm:$0xff] %v5836
        %5845 = vst [vmem:[#allocation2 + $0x20] sm:$0xff] %v5837
        %5846 = vst [vmem:[#allocation2 + $0x28] sm:$0xff] %v5838
        %5847 = vst [vmem:[#allocation2 + $0x30] sm:$0xff] %v5839
        %5848 = vst [vmem:[#allocation2 + $0x38] sm:$0xff] %v5840
        %p5849 = scmp.eq.s32.totalorder %s46, 1
        // Predicated region
        $region129: #{pmodel_forward.2} parent=75 // pred_check
          %p5850 = pneg %p5849
        $region130: #{pmodel_forward.2} parent=75 // pred_check_branch
          %5852 = sbr.rel (%p5850) target = $region132
        $region131: #{pmodel_forward.2} parent=75 // pred_region
          %5853 = vst [vmem:[%s14] sm:$0xff] %v5833
          %5854 = vst [vmem:[%s14 + $0x8] sm:$0xff] %v5834
          %5855 = vst [vmem:[%s14 + $0x10] sm:$0xff] %v5835
          %5856 = vst [vmem:[%s14 + $0x18] sm:$0xff] %v5836
          %5857 = vst [vmem:[%s14 + $0x20] sm:$0xff] %v5837
          %5858 = vst [vmem:[%s14 + $0x28] sm:$0xff] %v5838
          %5859 = vst [vmem:[%s14 + $0x30] sm:$0xff] %v5839
          %5860 = vst [vmem:[%s14 + $0x38] sm:$0xff] %v5840
        $region132: #{pmodel_forward.2} parent=75 // pred_fallthru
          _
        // Predicated region
        $region133: #{pmodel_forward.2} parent=75 // pred_check
          %p5861 = pneg %p413
        $region134: #{pmodel_forward.2} parent=75 // pred_check_branch
          %5863 = sbr.rel (%p5861) target = $region136
        $region135: #{pmodel_forward.2} parent=75 // pred_region
          _
        $region136: #{pmodel_forward.2} parent=75 // pred_fallthru
          _
        // Predicated region
        $region137: #{pmodel_forward.2} parent=75 // pred_check
          %p5864 = pneg %p413
        $region138: #{pmodel_forward.2} parent=75 // pred_check_branch
          %5866 = sbr.rel (%p5864) target = $region140
        $region139: #{pmodel_forward.2} parent=75 // pred_region
          _
        $region140: #{pmodel_forward.2} parent=75 // pred_fallthru
          _
      $region76: #{pmodel_forward.2} parent=5 // pred_fallthru
        _
      %p5867 = scmp.le.s32.totalorder 2, %s41
      // Predicated region
      $region141: #{pmodel_forward.2} parent=5 // pred_check
        %p5868 = pneg %p5867
      $region142: #{pmodel_forward.2} parent=5 // pred_check_branch
        %5870 = sbr.rel (%p5868) target = $region144
      $region143: #{pmodel_forward.2} parent=5 // pred_region
        %s5871 = ssub.s32 %s41, 2
      $region144: #{pmodel_forward.2} parent=5 // pred_fallthru
        _
    $region6: #{pmodel_forward.2} parent=1 // loop_footer
      %s45 = sadd.s32 1, %s41
    $region7: #{pmodel_forward.2} parent=1 // loop_footer_branch
      %40 = sbr.rel target = $region3
    $region8: #{pmodel_forward.2} parent=1 // loop_exit
      _
    %5872 = vsyncpa [#allocation4], 1
    %s5873 = scalar_lea.sflag [#allocation4], 1
    %5874 = vsyncpa %s5873, 1
    %5875 = vsyncpa [#allocation6], 1
    %s5876 = scalar_lea.sflag [#allocation6], 1
    %5877 = vsyncpa %s5876, 1
    %5878 = vsyncpa [#allocation9], 1
    %s5879 = scalar_lea.sflag [#allocation9], 1
    %5880 = vsyncpa %s5879, 1
    %5881 = vsyncpa [#allocation12], 1
    %s5882 = scalar_lea.sflag [#allocation12], 1
    %5883 = vsyncpa %s5882, 1
    %5884 = vsyncpa [#allocation15], 1
    %s5885 = scalar_lea.sflag [#allocation15], 1
    %5886 = vsyncpa %s5885, 1
    %5887 = vsyncpa [#allocation18], 1
    %s5888 = scalar_lea.sflag [#allocation18], 1
    %5889 = vsyncpa %s5888, 1
    %5890 = vsyncpa [#allocation21], 1
    %s5891 = scalar_lea.sflag [#allocation21], 1
    %5892 = vsyncpa %s5891, 1

</llo_original>
